<compile_context>
chip_gen: v7x
topology: tpu7x:2x2x1
jax: 0.10.0
libtpu: 0.0.40
codegen_flags: <defaults>
</compile_context>

<pallas_src>
import jax
import jax.numpy as jnp
from jax.experimental import pallas as pl
from jax.experimental.pallas import tpu as pltpu

H1 = 512   # fc1 output width
H2 = 64    # fc2 output width
KC = 256   # K-chunk for the K-blocked h1 -> fc2 stage (one MXU pass on v6e/v7x)


def _round_up(x, k):
    return ((x + k - 1) // k) * k


def relation2_kernel(aa_ref, bb_ref, w2_ref, b2_ref, w3_ref, b3_ref, o_ref):
    # aa_ref: (tn, 512) bf16   x1-side fc1 projection (no bias)
    # bb_ref: (tm, 512) bf16   x2-side fc1 projection with b1 folded in
    # w2_ref: (512, 64) bf16   fc2 weight, (in, out) layout
    # b2_ref: (1, 64)   f32    fc2 bias
    # w3_ref: (1, 64)   bf16   fc3 weight row
    # b3_ref: (1,)      f32    fc3 bias (SMEM scalar)
    # o_ref : (tn, tm)  f32
    tn, tm = o_ref.shape

    # K-blocked fused "expand + concat + fc1 + relu + fc2".  Static,
    # fully-unrolled 2-iteration loop (H1/KC) with static slices (equivalent
    # to lax.fori_loop(unroll=True)); only one (tn, tm, KC) bf16 chunk is
    # live, and the MXU dot of chunk k overlaps the VPU add/relu of chunk k+1.
    h2 = jnp.zeros((tn * tm, H2), jnp.float32)
    for k in range(H1 // KC):
        s = k * KC
        a_c = aa_ref[:, s:s + KC]                                   # (tn, KC) bf16
        b_c = bb_ref[:, s:s + KC]                                   # (tm, KC) bf16
        h1 = jnp.maximum(a_c[:, None, :] + b_c[None, :, :], 0.0)    # (tn, tm, KC) bf16
        h2 = h2 + jnp.dot(h1.reshape(tn * tm, KC),                  # free view: tm % 16 == 0
                          w2_ref[s:s + KC, :],
                          preferred_element_type=jnp.float32)       # (tn*tm, 64) f32

    # fc2 bias + relu, then drop to bf16 for the epilogue (halves the vreg
    # count of the half-empty 64-lane vregs; the reduce accumulates in f32).
    h2 = jnp.maximum(h2 + b2_ref[...], 0.0).astype(jnp.bfloat16)     # (tn*tm, 64)
    h2 = h2.reshape(tn, tm, H2)

    # fc3 as multiply + cross-lane reduce (avoids an N=1 matmul and a
    # sublane->lane relayout); logits are lane-dense (tn, tm).
    logits = jnp.sum(h2 * w3_ref[...][None, :, :], axis=-1,
                     dtype=jnp.float32) + b3_ref[0]                  # (tn, tm) f32
    o_ref[...] = jax.nn.sigmoid(logits).astype(o_ref.dtype)


def relation2(x1, x2, params, *, tn=None, tm=None):
    """x1: (n, d1), x2: (m, d2). Returns (n, m) float32."""
    n, d1 = x1.shape
    m, d2 = x2.shape
    w1, b1, w2, b2, w3, b3 = params          # PyTorch layout: w = (out, in)
    assert w1.shape == (H1, d1 + d2)

    # Hoist the grid-invariant fc1 projections out of the kernel (tiny XLA
    # matmuls); fold b1 into the x2 side once.  bf16 so the in-kernel VPU
    # add/relu and the fc2 MXU matmul run bf16-native.
    aa = (x1.astype(jnp.float32) @ w1[:, :d1].T).astype(jnp.bfloat16)                 # (n, 512)
    bb = (x2.astype(jnp.float32) @ w1[:, d1:].T + b1[None, :]).astype(jnp.bfloat16)   # (m, 512)

    # Tile selection: tm multiple of 128 (lane-dense output stores), tn
    # multiple of 16 (bf16 sublane tile).  With K-blocking the live h1 chunk
    # at tn=64, tm=256 is ~8 MiB, safe on v7x's 64 MiB VMEM.
    if tm is None:
        m128 = _round_up(m, 128)
        tm = 256 if m128 % 256 == 0 else 128
    assert tm % 128 == 0
    if tn is None:
        n16 = _round_up(n, 16)
        tn = 64 if n16 % 64 == 0 else (32 if n16 % 32 == 0 else 16)
    assert tn % 16 == 0

    n_pad = _round_up(n, tn)
    m_pad = _round_up(m, tm)

    # v7x megacore: if the whole problem fits in a single grid step, split one
    # parallel axis so both TensorCores get balanced work.
    if n_pad // tn == 1 and m_pad // tm == 1:
        if tm >= 256:
            tm //= 2
            m_pad = _round_up(m, tm)
        elif tn >= 32:
            tn //= 2
            n_pad = _round_up(n, tn)

    # Zero-pad to full tiles; padded rows/cols are computed and discarded.
    if n_pad != n:
        aa = jnp.pad(aa, ((0, n_pad - n), (0, 0)))
    if m_pad != m:
        bb = jnp.pad(bb, ((0, m_pad - m), (0, 0)))

    w2t = w2.T.astype(jnp.bfloat16)                  # (512, 64)
    b2r = b2.reshape(1, -1).astype(jnp.float32)      # (1, 64)
    w3r = w3.reshape(1, -1).astype(jnp.bfloat16)     # (1, 64)
    b3r = b3.reshape(1).astype(jnp.float32)          # (1,)  -> SMEM scalar

    const = lambda i, j: (0, 0)
    grid = (n_pad // tn, m_pad // tm)

    # Advisory cost hint so XLA schedules neighboring ops around the call.
    cost = pl.CostEstimate(
        flops=2 * H1 * H2 * n_pad * m_pad,
        transcendentals=n_pad * m_pad,
        bytes_accessed=(n_pad * H1 * 2 * (m_pad // tm)
                        + m_pad * H1 * 2 * (n_pad // tn)
                        + n_pad * m_pad * 4),
    )

    out = pl.pallas_call(
        relation2_kernel,
        out_shape=jax.ShapeDtypeStruct((n_pad, m_pad), jnp.float32),
        grid_spec=pltpu.PrefetchScalarGridSpec(
            num_scalar_prefetch=0,
            grid=grid,
            in_specs=[
                pl.BlockSpec((tn, H1), lambda i, j: (i, 0)),          # aa tile
                pl.BlockSpec((tm, H1), lambda i, j: (j, 0)),          # bb tile
                pl.BlockSpec((H1, H2), const),                        # W2^T (grid-constant)
                pl.BlockSpec((1, H2), const),                         # b2
                pl.BlockSpec((1, H2), const),                         # w3 row
                pl.BlockSpec(memory_space=pltpu.MemorySpace.SMEM),    # b3 scalar
            ],
            out_specs=pl.BlockSpec((tn, tm), lambda i, j: (i, j)),
        ),
        compiler_params=pltpu.CompilerParams(
            dimension_semantics=("parallel", "parallel"),
            # Live set at tn=64, tm=256 (K-chunk + f32 accumulator +
            # double-buffered tiles) is ~25-30 MiB: above the 16/32 MiB scoped
            # defaults, comfortably under v7x's 64 MiB physical VMEM.
            vmem_limit_bytes=60 * 1024 * 1024,
        ),
        cost_estimate=cost,
    )(aa, bb, w2t, b2r, w3r, b3r)

    return out[:n, :m]


def init_params(key, h_dim):
    """Deterministic init mimicking nn.Linear default (uniform +/- 1/sqrt(fan_in))."""
    def linear(k, fan_in, fan_out):
        kw, kb = jax.random.split(k)
        bound = 1.0 / jnp.sqrt(fan_in)
        w = jax.random.uniform(kw, (fan_out, fan_in), jnp.float32, -bound, bound)
        b = jax.random.uniform(kb, (fan_out,), jnp.float32, -bound, bound)
        return w, b

    k1, k2, k3 = jax.random.split(key, 3)
    w1, b1 = linear(k1, h_dim, H1)
    w2, b2 = linear(k2, H1, H2)
    w3, b3 = linear(k3, H2, 1)
    return (w1, b1, w2, b2, w3, b3)


def relation2_ref(x1, x2, params):
    w1, b1, w2, b2, w3, b3 = params
    n, m = x1.shape[0], x2.shape[0]
    x1e = jnp.broadcast_to(x1[:, None, :], (n, m, x1.shape[1]))
    x2e = jnp.broadcast_to(x2[None, :, :], (n, m, x2.shape[1]))
    x = jnp.concatenate([x1e, x2e], axis=2)
    x = jax.nn.relu(x @ w1.T + b1)
    x = jax.nn.relu(x @ w2.T + b2)
    x = jax.nn.sigmoid(x @ w3.T + b3)
    return x[..., 0]


if __name__ == "__main__":
    # Small shapes: h_dim = 64 (x1 and x2 each contribute 32 features).
    n, m, d1, d2 = 16, 16, 32, 32
    h_dim = d1 + d2

    key = jax.random.PRNGKey(0)
    kx1, kx2, kp = jax.random.split(key, 3)
    x1 = jax.random.normal(kx1, (n, d1), jnp.float32)
    x2 = jax.random.normal(kx2, (m, d2), jnp.float32)
    params = init_params(kp, h_dim)

    out = relation2(x1, x2, params)
    out = jax.block_until_ready(out)

    ref = relation2_ref(x1, x2, params)
    assert out.shape == (n, m)
    err = jnp.max(jnp.abs(out - ref))
    # bf16 fc1/fc2 path + bf16 epilogue: post-sigmoid error ~1e-3..1e-2 abs.
    assert jnp.allclose(out, ref, atol=2e-2, rtol=1e-2), f"max err {err}"

    print("KERNEL_OK")
</pallas_src>

<mosaic_0001>
module attributes {stable_mosaic.version = 11 : i64} {
  func.func @relation2_kernel(%arg0: i32, %arg1: i32, %arg2: memref<16x512xbf16, #tpu.memory_space<vmem>>, %arg3: memref<128x512xbf16, #tpu.memory_space<vmem>>, %arg4: memref<512x64xbf16, #tpu.memory_space<vmem>>, %arg5: memref<1x64xf32, #tpu.memory_space<vmem>>, %arg6: memref<1x64xbf16, #tpu.memory_space<vmem>>, %arg7: memref<1xf32, #tpu.memory_space<smem>>, %arg8: memref<16x128xf32, #tpu.memory_space<vmem>>) attributes {dimension_semantics = [#tpu.dimension_semantics<parallel>, #tpu.dimension_semantics<parallel>], iteration_bounds = array<i64: 1, 1>, scalar_prefetch = 0 : i64, scratch_operands = 0 : i64, tpu.core_type = #tpu.core_type<tc>, window_params = [{transform_indices = @transform_0, window_bounds = array<i64: 16, 512>}, {transform_indices = @transform_1, window_bounds = array<i64: 128, 512>}, {pipeline_mode = #tpu.pipeline_mode<synchronous>, transform_indices = @transform_2, window_bounds = array<i64: 512, 64>}, {pipeline_mode = #tpu.pipeline_mode<synchronous>, transform_indices = @transform_3, window_bounds = array<i64: 1, 64>}, {pipeline_mode = #tpu.pipeline_mode<synchronous>, transform_indices = @transform_4, window_bounds = array<i64: 1, 64>}, {transform_indices = @transform_5, window_bounds = array<i64: 1>}, {transform_indices = @transform_6, window_bounds = array<i64: 16, 128>}]} {
    %cst = arith.constant 0.000000e+00 : f32
    %0 = vector.broadcast %cst : f32 to vector<2048x64xf32>
    %c0 = arith.constant 0 : index
    %c0_0 = arith.constant 0 : index
    %1 = vector.load %arg2[%c0, %c0_0] : memref<16x512xbf16, #tpu.memory_space<vmem>>, vector<16x256xbf16>
    %c0_1 = arith.constant 0 : index
    %c0_2 = arith.constant 0 : index
    %2 = vector.load %arg3[%c0_1, %c0_2] : memref<128x512xbf16, #tpu.memory_space<vmem>>, vector<128x256xbf16>
    %3 = vector.shape_cast %1 : vector<16x256xbf16> to vector<16x1x256xbf16>
    %4 = vector.shape_cast %2 : vector<128x256xbf16> to vector<1x128x256xbf16>
    %5 = vector.broadcast %3 : vector<16x1x256xbf16> to vector<16x128x256xbf16>
    %6 = vector.broadcast %4 : vector<1x128x256xbf16> to vector<16x128x256xbf16>
    %7 = arith.addf %5, %6 : vector<16x128x256xbf16>
    %cst_3 = arith.constant 0.000000e+00 : bf16
    %8 = vector.broadcast %cst_3 : bf16 to vector<16x128x256xbf16>
    %9 = arith.maximumf %7, %8 : vector<16x128x256xbf16>
    %10 = vector.shape_cast %9 : vector<16x128x256xbf16> to vector<2048x256xbf16>
    %c0_4 = arith.constant 0 : index
    %c0_5 = arith.constant 0 : index
    %11 = vector.load %arg4[%c0_4, %c0_5] : memref<512x64xbf16, #tpu.memory_space<vmem>>, vector<256x64xbf16>
    %cst_6 = arith.constant dense<0.000000e+00> : vector<2048x64xf32>
    %12 = tpu.matmul %10, %11, %cst_6 {dimension_numbers = #tpu.dot_dimension_numbers<[1], [0], [0], [1], [0, 0, 1, 1], [], []>} : vector<2048x256xbf16>, vector<256x64xbf16>, vector<2048x64xf32> -> vector<2048x64xf32>
    %13 = arith.addf %0, %12 : vector<2048x64xf32>
    %c0_7 = arith.constant 0 : index
    %c256 = arith.constant 256 : index
    %14 = vector.load %arg2[%c0_7, %c256] : memref<16x512xbf16, #tpu.memory_space<vmem>>, vector<16x256xbf16>
    %c0_8 = arith.constant 0 : index
    %c256_9 = arith.constant 256 : index
    %15 = vector.load %arg3[%c0_8, %c256_9] : memref<128x512xbf16, #tpu.memory_space<vmem>>, vector<128x256xbf16>
    %16 = vector.shape_cast %14 : vector<16x256xbf16> to vector<16x1x256xbf16>
    %17 = vector.shape_cast %15 : vector<128x256xbf16> to vector<1x128x256xbf16>
    %18 = vector.broadcast %16 : vector<16x1x256xbf16> to vector<16x128x256xbf16>
    %19 = vector.broadcast %17 : vector<1x128x256xbf16> to vector<16x128x256xbf16>
    %20 = arith.addf %18, %19 : vector<16x128x256xbf16>
    %cst_10 = arith.constant 0.000000e+00 : bf16
    %21 = vector.broadcast %cst_10 : bf16 to vector<16x128x256xbf16>
    %22 = arith.maximumf %20, %21 : vector<16x128x256xbf16>
    %23 = vector.shape_cast %22 : vector<16x128x256xbf16> to vector<2048x256xbf16>
    %c256_11 = arith.constant 256 : index
    %c0_12 = arith.constant 0 : index
    %24 = vector.load %arg4[%c256_11, %c0_12] : memref<512x64xbf16, #tpu.memory_space<vmem>>, vector<256x64xbf16>
    %cst_13 = arith.constant dense<0.000000e+00> : vector<2048x64xf32>
    %25 = tpu.matmul %23, %24, %cst_13 {dimension_numbers = #tpu.dot_dimension_numbers<[1], [0], [0], [1], [0, 0, 1, 1], [], []>} : vector<2048x256xbf16>, vector<256x64xbf16>, vector<2048x64xf32> -> vector<2048x64xf32>
    %26 = arith.addf %13, %25 : vector<2048x64xf32>
    %c0_14 = arith.constant 0 : index
    %c0_15 = arith.constant 0 : index
    %27 = vector.load %arg5[%c0_14, %c0_15] : memref<1x64xf32, #tpu.memory_space<vmem>>, vector<1x64xf32>
    %28 = vector.broadcast %27 : vector<1x64xf32> to vector<2048x64xf32>
    %29 = arith.addf %26, %28 : vector<2048x64xf32>
    %cst_16 = arith.constant 0.000000e+00 : f32
    %30 = vector.broadcast %cst_16 : f32 to vector<2048x64xf32>
    %31 = arith.maximumf %29, %30 : vector<2048x64xf32>
    %32 = arith.truncf %31 : vector<2048x64xf32> to vector<2048x64xbf16>
    %33 = vector.shape_cast %32 : vector<2048x64xbf16> to vector<16x128x64xbf16>
    %c0_17 = arith.constant 0 : index
    %c0_18 = arith.constant 0 : index
    %34 = vector.load %arg6[%c0_17, %c0_18] : memref<1x64xbf16, #tpu.memory_space<vmem>>, vector<1x64xbf16>
    %35 = vector.shape_cast %34 : vector<1x64xbf16> to vector<1x1x64xbf16>
    %36 = vector.broadcast %35 : vector<1x1x64xbf16> to vector<16x128x64xbf16>
    %37 = arith.mulf %33, %36 : vector<16x128x64xbf16>
    %38 = arith.extf %37 : vector<16x128x64xbf16> to vector<16x128x64xf32>
    %cst_19 = arith.constant dense<0.000000e+00> : vector<16x128xf32>
    %39 = vector.multi_reduction <add>, %38, %cst_19 [2] : vector<16x128x64xf32> to vector<16x128xf32>
    %c0_20 = arith.constant 0 : index
    %40 = memref.load %arg7[%c0_20] : memref<1xf32, #tpu.memory_space<smem>>
    %41 = vector.broadcast %40 : f32 to vector<16x128xf32>
    %42 = arith.addf %39, %41 : vector<16x128xf32>
    %43 = arith.negf %42 : vector<16x128xf32>
    %44 = math.exp %43 : vector<16x128xf32>
    %cst_21 = arith.constant 1.000000e+00 : f32
    %45 = vector.broadcast %cst_21 : f32 to vector<16x128xf32>
    %46 = arith.addf %45, %44 : vector<16x128xf32>
    %47 = arith.divf %45, %46 : vector<16x128xf32>
    %c0_22 = arith.constant 0 : index
    %c0_23 = arith.constant 0 : index
    %48 = vector.load %arg8[%c0_22, %c0_23] : memref<16x128xf32, #tpu.memory_space<vmem>>, vector<16x128xf32>
    tpu.vector_store %arg8[%c0_22, %c0_23], %47 {strides = array<i32>} : memref<16x128xf32, #tpu.memory_space<vmem>>, vector<16x128xf32>,
    return
  }
  func.func @transform_0(%arg0: i32, %arg1: i32) -> (i32, i32) {
    %c0_i32 = arith.constant 0 : i32
    %c0_i32_0 = arith.constant 0 : i32
    return %arg0, %c0_i32 : i32, i32
  }
  func.func @transform_1(%arg0: i32, %arg1: i32) -> (i32, i32) {
    %c0_i32 = arith.constant 0 : i32
    %c0_i32_0 = arith.constant 0 : i32
    return %arg1, %c0_i32 : i32, i32
  }
  func.func @transform_2(%arg0: i32, %arg1: i32) -> (i32, i32) {
    %c0_i32 = arith.constant 0 : i32
    %c0_i32_0 = arith.constant 0 : i32
    %c0_i32_1 = arith.constant 0 : i32
    return %c0_i32, %c0_i32_0 : i32, i32
  }
  func.func @transform_3(%arg0: i32, %arg1: i32) -> (i32, i32) {
    %c0_i32 = arith.constant 0 : i32
    %c0_i32_0 = arith.constant 0 : i32
    %c0_i32_1 = arith.constant 0 : i32
    return %c0_i32, %c0_i32_0 : i32, i32
  }
  func.func @transform_4(%arg0: i32, %arg1: i32) -> (i32, i32) {
    %c0_i32 = arith.constant 0 : i32
    %c0_i32_0 = arith.constant 0 : i32
    %c0_i32_1 = arith.constant 0 : i32
    return %c0_i32, %c0_i32_0 : i32, i32
  }
  func.func @transform_5(%arg0: i32, %arg1: i32) -> i32 {
    %c0_i32 = arith.constant 0 : i32
    %c0_i32_0 = arith.constant 0 : i32
    return %c0_i32 : i32
  }
  func.func @transform_6(%arg0: i32, %arg1: i32) -> (i32, i32) {
    %c0_i32 = arith.constant 0 : i32
    return %arg0, %arg1 : i32, i32
  }
}

</mosaic_0001>

<llo_original>
// kernel: tpu_custom_call.1
$region0: #{tpu_custom_call.1}
  #allocation0 [shape = 'u32[]', space=smem, size = 0x4, offset = 0x4, fixed_abs, tag = 'smem constant byte address 0x4 - core index']
  #allocation1 [shape = 'u32[144,128]{1,0:T(1,128)}', space=vmem, size = 0x12000, scoped, tag = 'internal scratch']
  #allocation2 [shape = 'f32[1]{0:T(128)S(6)}', space=smem, size = 0x200, scoped, tag = 'scoped memory for tpu_custom_call.1']
  %s0 = inlined_call_operand.vmem [shape: bf16[16,512], index: 0, kind: input, shape index: {}]
  %s1 = inlined_call_operand.vmem [shape: bf16[128,512], index: 1, kind: input, shape index: {}]
  %s2 = inlined_call_operand.vmem [shape: bf16[512,64], index: 2, kind: input, shape index: {}]
  %s3 = inlined_call_operand.vmem [shape: f32[1,64], index: 3, kind: input, shape index: {}]
  %s4 = inlined_call_operand.vmem [shape: bf16[1,64], index: 4, kind: input, shape index: {}]
  %s5 = inlined_call_operand.<no memory space> [shape: f32[1], index: 5, kind: input, shape index: {}]
  %s6 = inlined_call_operand.hbm [shape: f32[16,128], index: 6, kind: output, shape index: {}]
  %s7 = sld [smem:[#allocation0]]
  $region34: #{tpu_custom_call.1} parent=0
    _
  %s9 = ssub.s32 1, %s7
  %s10 = scalar_select 0, %s9, %s7
  %11 = sst [smem:[#allocation2]] %s5
  $region1: #{tpu_custom_call.1} parent=0
    #allocation3 [shape = 'u8[8192]{0}', space=vmem, size = 0x2000, scoped, tag = 'output window, operand 0, single buffered']
    #allocation4 [shape = 's32[1]{0}', space=sflag, size = 0x4, scoped, tag = 'scoped memory for tpu_custom_call.1']
    %12 = vsyncpa [#allocation4], 0
    // Predicated region
    $region2: #{tpu_custom_call.1} parent=1 // pred_check
      _
    $region3: #{tpu_custom_call.1} parent=1 // pred_check_branch
      %14 = sbr.rel (0) target = $region5
    $region4: #{tpu_custom_call.1} parent=1 // pred_region
      _
    $region5: #{tpu_custom_call.1} parent=1 // pred_fallthru
      _
    // Predicated region
    $region6: #{tpu_custom_call.1} parent=1 // pred_check
      _
    $region7: #{tpu_custom_call.1} parent=1 // pred_check_branch
      %16 = sbr.rel (0) target = $region9
    $region8: #{tpu_custom_call.1} parent=1 // pred_region
      _
    $region9: #{tpu_custom_call.1} parent=1 // pred_fallthru
      _
    // Predicated region
    $region10: #{tpu_custom_call.1} parent=1 // pred_check
      _
    $region11: #{tpu_custom_call.1} parent=1 // pred_check_branch
      %18 = sbr.rel (0) target = $region13
    $region12: #{tpu_custom_call.1} parent=1 // pred_region
      _
    $region13: #{tpu_custom_call.1} parent=1 // pred_fallthru
      _
    // Predicated region
    $region14: #{tpu_custom_call.1} parent=1 // pred_check
      _
    $region15: #{tpu_custom_call.1} parent=1 // pred_check_branch
      %20 = sbr.rel (0) target = $region17
    $region16: #{tpu_custom_call.1} parent=1 // pred_region
      _
    $region17: #{tpu_custom_call.1} parent=1 // pred_fallthru
      _
    // Predicated region
    $region18: #{tpu_custom_call.1} parent=1 // pred_check
      _
    $region19: #{tpu_custom_call.1} parent=1 // pred_check_branch
      %22 = sbr.rel (0) target = $region21
    $region20: #{tpu_custom_call.1} parent=1 // pred_region
      _
    $region21: #{tpu_custom_call.1} parent=1 // pred_fallthru
      _
    // Predicated region
    $region22: #{tpu_custom_call.1} parent=1 // pred_check
      _
    $region23: #{tpu_custom_call.1} parent=1 // pred_check_branch
      %24 = sbr.rel (0) target = $region25
    $region24: #{tpu_custom_call.1} parent=1 // pred_region
      _
    $region25: #{tpu_custom_call.1} parent=1 // pred_fallthru
      _
    %v26 = vld [vmem:[%s0] sm:$0xff]
    %v27 = vld [vmem:[%s0 + $0x10] sm:$0xff]
    %v28 = vld [vmem:[%s1] sm:$0xff]
    %v29 = vld [vmem:[%s1 + $0x10] sm:$0xff]
    %v30 = vld [vmem:[%s1 + $0x20] sm:$0xff]
    %v31 = vld [vmem:[%s1 + $0x30] sm:$0xff]
    %v32 = vld [vmem:[%s1 + $0x40] sm:$0xff]
    %v33 = vld [vmem:[%s1 + $0x50] sm:$0xff]
    %v34 = vld [vmem:[%s1 + $0x60] sm:$0xff]
    %v35 = vld [vmem:[%s1 + $0x70] sm:$0xff]
    %v36 = vld [vmem:[%s1 + $0x80] sm:$0xff]
    %v37 = vld [vmem:[%s1 + $0x90] sm:$0xff]
    %v38 = vld [vmem:[%s1 + $0xa0] sm:$0xff]
    %v39 = vld [vmem:[%s1 + $0xb0] sm:$0xff]
    %v40 = vld [vmem:[%s1 + $0xc0] sm:$0xff]
    %v41 = vld [vmem:[%s1 + $0xd0] sm:$0xff]
    %v42 = vld [vmem:[%s1 + $0xe0] sm:$0xff]
    %v43 = vld [vmem:[%s1 + $0xf0] sm:$0xff]
    %v47 = vunpack.c.l.s4 1966171168
    %v48 = vunpack.c.0.s8 %v47
    %v49 = vlaneseq
    %v50 = vshrl.u32 %v49, 7
    %v51 = vsub.s32 %v48, %v50
    %v52 = vrot.slane %v26, %v51
    %v53 = vcombine.high %v52, %v52
    %v55 = vunpack.c.l.s4 1966171168
    %v56 = vunpack.c.0.s8 %v55
    %v57 = vlaneseq
    %v58 = vshrl.u32 %v57, 7
    %v59 = vsub.s32 %v56, %v58
    %v60 = vrot.slane %v52, %v59
    %v62 = vunpack.c.l.s4 1966171168
    %v63 = vunpack.c.0.s8 %v62
    %v64 = vlaneseq
    %v65 = vshrl.u32 %v64, 7
    %v66 = vsub.s32 %v63, %v65
    %v67 = vrot.slane %v53, %v66
    %v68 = vcombine.high %v60, %v60
    %v69 = vcombine.high %v67, %v67
    %v71 = vunpack.c.l.s4 1966171168
    %v72 = vunpack.c.0.s8 %v71
    %v73 = vlaneseq
    %v74 = vshrl.u32 %v73, 7
    %v75 = vsub.s32 %v72, %v74
    %v76 = vrot.slane %v27, %v75
    %v77 = vcombine.high %v76, %v76
    %v79 = vunpack.c.l.s4 1966171168
    %v80 = vunpack.c.0.s8 %v79
    %v81 = vlaneseq
    %v82 = vshrl.u32 %v81, 7
    %v83 = vsub.s32 %v80, %v82
    %v84 = vrot.slane %v76, %v83
    %v86 = vunpack.c.l.s4 1966171168
    %v87 = vunpack.c.0.s8 %v86
    %v88 = vlaneseq
    %v89 = vshrl.u32 %v88, 7
    %v90 = vsub.s32 %v87, %v89
    %v91 = vrot.slane %v77, %v90
    %v92 = vcombine.high %v84, %v84
    %v93 = vcombine.high %v91, %v91
    %v94 = vunpack.i.l.s16 %v60
    %v95 = vunpack.i.h.s16 %v60
    %v96 = vunpack.i.l.s16 %v67
    %v97 = vunpack.i.h.s16 %v67
    %v98 = vunpack.i.l.s16 %v68
    %v99 = vunpack.i.h.s16 %v68
    %v100 = vunpack.i.l.s16 %v69
    %v101 = vunpack.i.h.s16 %v69
    %v102 = vunpack.i.l.s16 %v84
    %v103 = vunpack.i.h.s16 %v84
    %v104 = vunpack.i.l.s16 %v91
    %v105 = vunpack.i.h.s16 %v91
    %v106 = vunpack.i.l.s16 %v92
    %v107 = vunpack.i.h.s16 %v92
    %v108 = vunpack.i.l.s16 %v93
    %v109 = vunpack.i.h.s16 %v93
    %v110 = vpack.i.b16 %v94, %v94
    %v111 = vpack.i.b16 %v95, %v95
    %v112 = vpack.i.b16 %v96, %v96
    %v113 = vpack.i.b16 %v97, %v97
    %v114 = vpack.i.b16 %v98, %v98
    %v115 = vpack.i.b16 %v99, %v99
    %v116 = vpack.i.b16 %v100, %v100
    %v117 = vpack.i.b16 %v101, %v101
    %v118 = vpack.i.b16 %v102, %v102
    %v119 = vpack.i.b16 %v103, %v103
    %v120 = vpack.i.b16 %v104, %v104
    %v121 = vpack.i.b16 %v105, %v105
    %v122 = vpack.i.b16 %v106, %v106
    %v123 = vpack.i.b16 %v107, %v107
    %v124 = vpack.i.b16 %v108, %v108
    %v125 = vpack.i.b16 %v109, %v109
    %v126 = vlaneseq
    %v127 = vshrl.u32 %v126, 7
    %v128 = vsub.s32 0, %v127
    %v129 = vrot.slane %v110, %v128
    %v130 = vlaneseq
    %v131 = vshrl.u32 %v130, 7
    %v132 = vsub.s32 1, %v131
    %v133 = vrot.slane %v110, %v132
    %v134 = vlaneseq
    %v135 = vshrl.u32 %v134, 7
    %v136 = vsub.s32 0, %v135
    %v137 = vrot.slane %v111, %v136
    %v138 = vlaneseq
    %v139 = vshrl.u32 %v138, 7
    %v140 = vsub.s32 1, %v139
    %v141 = vrot.slane %v111, %v140
    %v142 = vlaneseq
    %v143 = vshrl.u32 %v142, 7
    %v144 = vsub.s32 0, %v143
    %v145 = vrot.slane %v112, %v144
    %v146 = vlaneseq
    %v147 = vshrl.u32 %v146, 7
    %v148 = vsub.s32 1, %v147
    %v149 = vrot.slane %v112, %v148
    %v150 = vlaneseq
    %v151 = vshrl.u32 %v150, 7
    %v152 = vsub.s32 0, %v151
    %v153 = vrot.slane %v113, %v152
    %v154 = vlaneseq
    %v155 = vshrl.u32 %v154, 7
    %v156 = vsub.s32 1, %v155
    %v157 = vrot.slane %v113, %v156
    %v158 = vlaneseq
    %v159 = vshrl.u32 %v158, 7
    %v160 = vsub.s32 0, %v159
    %v161 = vrot.slane %v114, %v160
    %v162 = vlaneseq
    %v163 = vshrl.u32 %v162, 7
    %v164 = vsub.s32 1, %v163
    %v165 = vrot.slane %v114, %v164
    %v166 = vlaneseq
    %v167 = vshrl.u32 %v166, 7
    %v168 = vsub.s32 0, %v167
    %v169 = vrot.slane %v115, %v168
    %v170 = vlaneseq
    %v171 = vshrl.u32 %v170, 7
    %v172 = vsub.s32 1, %v171
    %v173 = vrot.slane %v115, %v172
    %v174 = vlaneseq
    %v175 = vshrl.u32 %v174, 7
    %v176 = vsub.s32 0, %v175
    %v177 = vrot.slane %v116, %v176
    %v178 = vlaneseq
    %v179 = vshrl.u32 %v178, 7
    %v180 = vsub.s32 1, %v179
    %v181 = vrot.slane %v116, %v180
    %v182 = vlaneseq
    %v183 = vshrl.u32 %v182, 7
    %v184 = vsub.s32 0, %v183
    %v185 = vrot.slane %v117, %v184
    %v186 = vlaneseq
    %v187 = vshrl.u32 %v186, 7
    %v188 = vsub.s32 1, %v187
    %v189 = vrot.slane %v117, %v188
    %v190 = vlaneseq
    %v191 = vshrl.u32 %v190, 7
    %v192 = vsub.s32 0, %v191
    %v193 = vrot.slane %v118, %v192
    %v194 = vlaneseq
    %v195 = vshrl.u32 %v194, 7
    %v196 = vsub.s32 1, %v195
    %v197 = vrot.slane %v118, %v196
    %v198 = vlaneseq
    %v199 = vshrl.u32 %v198, 7
    %v200 = vsub.s32 0, %v199
    %v201 = vrot.slane %v119, %v200
    %v202 = vlaneseq
    %v203 = vshrl.u32 %v202, 7
    %v204 = vsub.s32 1, %v203
    %v205 = vrot.slane %v119, %v204
    %v206 = vlaneseq
    %v207 = vshrl.u32 %v206, 7
    %v208 = vsub.s32 0, %v207
    %v209 = vrot.slane %v120, %v208
    %v210 = vlaneseq
    %v211 = vshrl.u32 %v210, 7
    %v212 = vsub.s32 1, %v211
    %v213 = vrot.slane %v120, %v212
    %v214 = vlaneseq
    %v215 = vshrl.u32 %v214, 7
    %v216 = vsub.s32 0, %v215
    %v217 = vrot.slane %v121, %v216
    %v218 = vlaneseq
    %v219 = vshrl.u32 %v218, 7
    %v220 = vsub.s32 1, %v219
    %v221 = vrot.slane %v121, %v220
    %v222 = vlaneseq
    %v223 = vshrl.u32 %v222, 7
    %v224 = vsub.s32 0, %v223
    %v225 = vrot.slane %v122, %v224
    %v226 = vlaneseq
    %v227 = vshrl.u32 %v226, 7
    %v228 = vsub.s32 1, %v227
    %v229 = vrot.slane %v122, %v228
    %v230 = vlaneseq
    %v231 = vshrl.u32 %v230, 7
    %v232 = vsub.s32 0, %v231
    %v233 = vrot.slane %v123, %v232
    %v234 = vlaneseq
    %v235 = vshrl.u32 %v234, 7
    %v236 = vsub.s32 1, %v235
    %v237 = vrot.slane %v123, %v236
    %v238 = vlaneseq
    %v239 = vshrl.u32 %v238, 7
    %v240 = vsub.s32 0, %v239
    %v241 = vrot.slane %v124, %v240
    %v242 = vlaneseq
    %v243 = vshrl.u32 %v242, 7
    %v244 = vsub.s32 1, %v243
    %v245 = vrot.slane %v124, %v244
    %v246 = vlaneseq
    %v247 = vshrl.u32 %v246, 7
    %v248 = vsub.s32 0, %v247
    %v249 = vrot.slane %v125, %v248
    %v250 = vlaneseq
    %v251 = vshrl.u32 %v250, 7
    %v252 = vsub.s32 1, %v251
    %v253 = vrot.slane %v125, %v252
    %v255 = vpack.i.b16 %v129, %v129
    %v257 = vlaneseq
    %v258 = vshrl.u32 %v257, 7
    %v259 = vsub.s32 0, %v258
    %v260 = vrot.slane %v255, %v259
    %v262 = vpack.i.b16 %v133, %v133
    %v264 = vlaneseq
    %v265 = vshrl.u32 %v264, 7
    %v266 = vsub.s32 0, %v265
    %v267 = vrot.slane %v262, %v266
    %v269 = vpack.i.b16 %v137, %v137
    %v271 = vlaneseq
    %v272 = vshrl.u32 %v271, 7
    %v273 = vsub.s32 0, %v272
    %v274 = vrot.slane %v269, %v273
    %v276 = vpack.i.b16 %v141, %v141
    %v278 = vlaneseq
    %v279 = vshrl.u32 %v278, 7
    %v280 = vsub.s32 0, %v279
    %v281 = vrot.slane %v276, %v280
    %v283 = vpack.i.b16 %v145, %v145
    %v285 = vlaneseq
    %v286 = vshrl.u32 %v285, 7
    %v287 = vsub.s32 0, %v286
    %v288 = vrot.slane %v283, %v287
    %v290 = vpack.i.b16 %v149, %v149
    %v292 = vlaneseq
    %v293 = vshrl.u32 %v292, 7
    %v294 = vsub.s32 0, %v293
    %v295 = vrot.slane %v290, %v294
    %v297 = vpack.i.b16 %v153, %v153
    %v299 = vlaneseq
    %v300 = vshrl.u32 %v299, 7
    %v301 = vsub.s32 0, %v300
    %v302 = vrot.slane %v297, %v301
    %v304 = vpack.i.b16 %v157, %v157
    %v306 = vlaneseq
    %v307 = vshrl.u32 %v306, 7
    %v308 = vsub.s32 0, %v307
    %v309 = vrot.slane %v304, %v308
    %v311 = vpack.i.b16 %v161, %v161
    %v313 = vlaneseq
    %v314 = vshrl.u32 %v313, 7
    %v315 = vsub.s32 0, %v314
    %v316 = vrot.slane %v311, %v315
    %v318 = vpack.i.b16 %v165, %v165
    %v320 = vlaneseq
    %v321 = vshrl.u32 %v320, 7
    %v322 = vsub.s32 0, %v321
    %v323 = vrot.slane %v318, %v322
    %v325 = vpack.i.b16 %v169, %v169
    %v327 = vlaneseq
    %v328 = vshrl.u32 %v327, 7
    %v329 = vsub.s32 0, %v328
    %v330 = vrot.slane %v325, %v329
    %v332 = vpack.i.b16 %v173, %v173
    %v334 = vlaneseq
    %v335 = vshrl.u32 %v334, 7
    %v336 = vsub.s32 0, %v335
    %v337 = vrot.slane %v332, %v336
    %v339 = vpack.i.b16 %v177, %v177
    %v341 = vlaneseq
    %v342 = vshrl.u32 %v341, 7
    %v343 = vsub.s32 0, %v342
    %v344 = vrot.slane %v339, %v343
    %v346 = vpack.i.b16 %v181, %v181
    %v348 = vlaneseq
    %v349 = vshrl.u32 %v348, 7
    %v350 = vsub.s32 0, %v349
    %v351 = vrot.slane %v346, %v350
    %v353 = vpack.i.b16 %v185, %v185
    %v355 = vlaneseq
    %v356 = vshrl.u32 %v355, 7
    %v357 = vsub.s32 0, %v356
    %v358 = vrot.slane %v353, %v357
    %v360 = vpack.i.b16 %v189, %v189
    %v362 = vlaneseq
    %v363 = vshrl.u32 %v362, 7
    %v364 = vsub.s32 0, %v363
    %v365 = vrot.slane %v360, %v364
    %v367 = vpack.i.b16 %v193, %v193
    %v369 = vlaneseq
    %v370 = vshrl.u32 %v369, 7
    %v371 = vsub.s32 0, %v370
    %v372 = vrot.slane %v367, %v371
    %v374 = vpack.i.b16 %v197, %v197
    %v376 = vlaneseq
    %v377 = vshrl.u32 %v376, 7
    %v378 = vsub.s32 0, %v377
    %v379 = vrot.slane %v374, %v378
    %v381 = vpack.i.b16 %v201, %v201
    %v383 = vlaneseq
    %v384 = vshrl.u32 %v383, 7
    %v385 = vsub.s32 0, %v384
    %v386 = vrot.slane %v381, %v385
    %v388 = vpack.i.b16 %v205, %v205
    %v390 = vlaneseq
    %v391 = vshrl.u32 %v390, 7
    %v392 = vsub.s32 0, %v391
    %v393 = vrot.slane %v388, %v392
    %v395 = vpack.i.b16 %v209, %v209
    %v397 = vlaneseq
    %v398 = vshrl.u32 %v397, 7
    %v399 = vsub.s32 0, %v398
    %v400 = vrot.slane %v395, %v399
    %v402 = vpack.i.b16 %v213, %v213
    %v404 = vlaneseq
    %v405 = vshrl.u32 %v404, 7
    %v406 = vsub.s32 0, %v405
    %v407 = vrot.slane %v402, %v406
    %v409 = vpack.i.b16 %v217, %v217
    %v411 = vlaneseq
    %v412 = vshrl.u32 %v411, 7
    %v413 = vsub.s32 0, %v412
    %v414 = vrot.slane %v409, %v413
    %v416 = vpack.i.b16 %v221, %v221
    %v418 = vlaneseq
    %v419 = vshrl.u32 %v418, 7
    %v420 = vsub.s32 0, %v419
    %v421 = vrot.slane %v416, %v420
    %v423 = vpack.i.b16 %v225, %v225
    %v425 = vlaneseq
    %v426 = vshrl.u32 %v425, 7
    %v427 = vsub.s32 0, %v426
    %v428 = vrot.slane %v423, %v427
    %v430 = vpack.i.b16 %v229, %v229
    %v432 = vlaneseq
    %v433 = vshrl.u32 %v432, 7
    %v434 = vsub.s32 0, %v433
    %v435 = vrot.slane %v430, %v434
    %v437 = vpack.i.b16 %v233, %v233
    %v439 = vlaneseq
    %v440 = vshrl.u32 %v439, 7
    %v441 = vsub.s32 0, %v440
    %v442 = vrot.slane %v437, %v441
    %v444 = vpack.i.b16 %v237, %v237
    %v446 = vlaneseq
    %v447 = vshrl.u32 %v446, 7
    %v448 = vsub.s32 0, %v447
    %v449 = vrot.slane %v444, %v448
    %v451 = vpack.i.b16 %v241, %v241
    %v453 = vlaneseq
    %v454 = vshrl.u32 %v453, 7
    %v455 = vsub.s32 0, %v454
    %v456 = vrot.slane %v451, %v455
    %v458 = vpack.i.b16 %v245, %v245
    %v460 = vlaneseq
    %v461 = vshrl.u32 %v460, 7
    %v462 = vsub.s32 0, %v461
    %v463 = vrot.slane %v458, %v462
    %v465 = vpack.i.b16 %v249, %v249
    %v467 = vlaneseq
    %v468 = vshrl.u32 %v467, 7
    %v469 = vsub.s32 0, %v468
    %v470 = vrot.slane %v465, %v469
    %v472 = vpack.i.b16 %v253, %v253
    %v474 = vlaneseq
    %v475 = vshrl.u32 %v474, 7
    %v476 = vsub.s32 0, %v475
    %v477 = vrot.slane %v472, %v476
    %v494 = vunpack.c.l.b16 %v28
    %v495 = vunpack.c.h.b16 %v28
    %v496 = vunpack.c.l.b16 %v29
    %v497 = vunpack.c.h.b16 %v29
    %v498 = vunpack.c.l.b16 %v30
    %v499 = vunpack.c.h.b16 %v30
    %v500 = vunpack.c.l.b16 %v31
    %v501 = vunpack.c.h.b16 %v31
    %v502 = vunpack.c.l.b16 %v32
    %v503 = vunpack.c.h.b16 %v32
    %v504 = vunpack.c.l.b16 %v33
    %v505 = vunpack.c.h.b16 %v33
    %v506 = vunpack.c.l.b16 %v34
    %v507 = vunpack.c.h.b16 %v34
    %v508 = vunpack.c.l.b16 %v35
    %v509 = vunpack.c.h.b16 %v35
    %v510 = vunpack.c.l.b16 %v36
    %v511 = vunpack.c.h.b16 %v36
    %v512 = vunpack.c.l.b16 %v37
    %v513 = vunpack.c.h.b16 %v37
    %v514 = vunpack.c.l.b16 %v38
    %v515 = vunpack.c.h.b16 %v38
    %v516 = vunpack.c.l.b16 %v39
    %v517 = vunpack.c.h.b16 %v39
    %v518 = vunpack.c.l.b16 %v40
    %v519 = vunpack.c.h.b16 %v40
    %v520 = vunpack.c.l.b16 %v41
    %v521 = vunpack.c.h.b16 %v41
    %v522 = vunpack.c.l.b16 %v42
    %v523 = vunpack.c.h.b16 %v42
    %v524 = vunpack.c.l.b16 %v43
    %v525 = vunpack.c.h.b16 %v43
    %v526 = vpack.c.b16 %v496, %v494
    %v527 = vpack.c.b16 %v497, %v495
    %v528 = vpack.c.b16 %v500, %v498
    %v529 = vpack.c.b16 %v501, %v499
    %v530 = vpack.c.b16 %v504, %v502
    %v531 = vpack.c.b16 %v505, %v503
    %v532 = vpack.c.b16 %v508, %v506
    %v533 = vpack.c.b16 %v509, %v507
    %v534 = vpack.c.b16 %v512, %v510
    %v535 = vpack.c.b16 %v513, %v511
    %v536 = vpack.c.b16 %v516, %v514
    %v537 = vpack.c.b16 %v517, %v515
    %v538 = vpack.c.b16 %v520, %v518
    %v539 = vpack.c.b16 %v521, %v519
    %v540 = vpack.c.b16 %v524, %v522
    %v541 = vpack.c.b16 %v525, %v523
    %v558 = vadd.bf16 %v260, %v526
    %v559 = vadd.bf16 %v267, %v527
    %v560 = vadd.bf16 %v260, %v528
    %v561 = vadd.bf16 %v267, %v529
    %v562 = vadd.bf16 %v260, %v530
    %v563 = vadd.bf16 %v267, %v531
    %v564 = vadd.bf16 %v260, %v532
    %v565 = vadd.bf16 %v267, %v533
    %v566 = vadd.bf16 %v260, %v534
    %v567 = vadd.bf16 %v267, %v535
    %v568 = vadd.bf16 %v260, %v536
    %v569 = vadd.bf16 %v267, %v537
    %v570 = vadd.bf16 %v260, %v538
    %v571 = vadd.bf16 %v267, %v539
    %v572 = vadd.bf16 %v260, %v540
    %v573 = vadd.bf16 %v267, %v541
    %v574 = vadd.bf16 %v274, %v526
    %v575 = vadd.bf16 %v281, %v527
    %v576 = vadd.bf16 %v274, %v528
    %v577 = vadd.bf16 %v281, %v529
    %v578 = vadd.bf16 %v274, %v530
    %v579 = vadd.bf16 %v281, %v531
    %v580 = vadd.bf16 %v274, %v532
    %v581 = vadd.bf16 %v281, %v533
    %v582 = vadd.bf16 %v274, %v534
    %v583 = vadd.bf16 %v281, %v535
    %v584 = vadd.bf16 %v274, %v536
    %v585 = vadd.bf16 %v281, %v537
    %v586 = vadd.bf16 %v274, %v538
    %v587 = vadd.bf16 %v281, %v539
    %v588 = vadd.bf16 %v274, %v540
    %v589 = vadd.bf16 %v281, %v541
    %v590 = vadd.bf16 %v288, %v526
    %v591 = vadd.bf16 %v295, %v527
    %v592 = vadd.bf16 %v288, %v528
    %v593 = vadd.bf16 %v295, %v529
    %v594 = vadd.bf16 %v288, %v530
    %v595 = vadd.bf16 %v295, %v531
    %v596 = vadd.bf16 %v288, %v532
    %v597 = vadd.bf16 %v295, %v533
    %v598 = vadd.bf16 %v288, %v534
    %v599 = vadd.bf16 %v295, %v535
    %v600 = vadd.bf16 %v288, %v536
    %v601 = vadd.bf16 %v295, %v537
    %v602 = vadd.bf16 %v288, %v538
    %v603 = vadd.bf16 %v295, %v539
    %v604 = vadd.bf16 %v288, %v540
    %v605 = vadd.bf16 %v295, %v541
    %v606 = vadd.bf16 %v302, %v526
    %v607 = vadd.bf16 %v309, %v527
    %v608 = vadd.bf16 %v302, %v528
    %v609 = vadd.bf16 %v309, %v529
    %v610 = vadd.bf16 %v302, %v530
    %v611 = vadd.bf16 %v309, %v531
    %v612 = vadd.bf16 %v302, %v532
    %v613 = vadd.bf16 %v309, %v533
    %v614 = vadd.bf16 %v302, %v534
    %v615 = vadd.bf16 %v309, %v535
    %v616 = vadd.bf16 %v302, %v536
    %v617 = vadd.bf16 %v309, %v537
    %v618 = vadd.bf16 %v302, %v538
    %v619 = vadd.bf16 %v309, %v539
    %v620 = vadd.bf16 %v302, %v540
    %v621 = vadd.bf16 %v309, %v541
    %v622 = vadd.bf16 %v316, %v526
    %v623 = vadd.bf16 %v323, %v527
    %v624 = vadd.bf16 %v316, %v528
    %v625 = vadd.bf16 %v323, %v529
    %v626 = vadd.bf16 %v316, %v530
    %v627 = vadd.bf16 %v323, %v531
    %v628 = vadd.bf16 %v316, %v532
    %v629 = vadd.bf16 %v323, %v533
    %v630 = vadd.bf16 %v316, %v534
    %v631 = vadd.bf16 %v323, %v535
    %v632 = vadd.bf16 %v316, %v536
    %v633 = vadd.bf16 %v323, %v537
    %v634 = vadd.bf16 %v316, %v538
    %v635 = vadd.bf16 %v323, %v539
    %v636 = vadd.bf16 %v316, %v540
    %v637 = vadd.bf16 %v323, %v541
    %v638 = vadd.bf16 %v330, %v526
    %v639 = vadd.bf16 %v337, %v527
    %v640 = vadd.bf16 %v330, %v528
    %v641 = vadd.bf16 %v337, %v529
    %v642 = vadd.bf16 %v330, %v530
    %v643 = vadd.bf16 %v337, %v531
    %v644 = vadd.bf16 %v330, %v532
    %v645 = vadd.bf16 %v337, %v533
    %v646 = vadd.bf16 %v330, %v534
    %v647 = vadd.bf16 %v337, %v535
    %v648 = vadd.bf16 %v330, %v536
    %v649 = vadd.bf16 %v337, %v537
    %v650 = vadd.bf16 %v330, %v538
    %v651 = vadd.bf16 %v337, %v539
    %v652 = vadd.bf16 %v330, %v540
    %v653 = vadd.bf16 %v337, %v541
    %v654 = vadd.bf16 %v344, %v526
    %v655 = vadd.bf16 %v351, %v527
    %v656 = vadd.bf16 %v344, %v528
    %v657 = vadd.bf16 %v351, %v529
    %v658 = vadd.bf16 %v344, %v530
    %v659 = vadd.bf16 %v351, %v531
    %v660 = vadd.bf16 %v344, %v532
    %v661 = vadd.bf16 %v351, %v533
    %v662 = vadd.bf16 %v344, %v534
    %v663 = vadd.bf16 %v351, %v535
    %v664 = vadd.bf16 %v344, %v536
    %v665 = vadd.bf16 %v351, %v537
    %v666 = vadd.bf16 %v344, %v538
    %v667 = vadd.bf16 %v351, %v539
    %v668 = vadd.bf16 %v344, %v540
    %v669 = vadd.bf16 %v351, %v541
    %v670 = vadd.bf16 %v358, %v526
    %v671 = vadd.bf16 %v365, %v527
    %v672 = vadd.bf16 %v358, %v528
    %v673 = vadd.bf16 %v365, %v529
    %v674 = vadd.bf16 %v358, %v530
    %v675 = vadd.bf16 %v365, %v531
    %v676 = vadd.bf16 %v358, %v532
    %v677 = vadd.bf16 %v365, %v533
    %v678 = vadd.bf16 %v358, %v534
    %v679 = vadd.bf16 %v365, %v535
    %v680 = vadd.bf16 %v358, %v536
    %v681 = vadd.bf16 %v365, %v537
    %v682 = vadd.bf16 %v358, %v538
    %v683 = vadd.bf16 %v365, %v539
    %v684 = vadd.bf16 %v358, %v540
    %v685 = vadd.bf16 %v365, %v541
    %v686 = vadd.bf16 %v372, %v526
    %v687 = vadd.bf16 %v379, %v527
    %v688 = vadd.bf16 %v372, %v528
    %v689 = vadd.bf16 %v379, %v529
    %v690 = vadd.bf16 %v372, %v530
    %v691 = vadd.bf16 %v379, %v531
    %v692 = vadd.bf16 %v372, %v532
    %v693 = vadd.bf16 %v379, %v533
    %v694 = vadd.bf16 %v372, %v534
    %v695 = vadd.bf16 %v379, %v535
    %v696 = vadd.bf16 %v372, %v536
    %v697 = vadd.bf16 %v379, %v537
    %v698 = vadd.bf16 %v372, %v538
    %v699 = vadd.bf16 %v379, %v539
    %v700 = vadd.bf16 %v372, %v540
    %v701 = vadd.bf16 %v379, %v541
    %v702 = vadd.bf16 %v386, %v526
    %v703 = vadd.bf16 %v393, %v527
    %v704 = vadd.bf16 %v386, %v528
    %v705 = vadd.bf16 %v393, %v529
    %v706 = vadd.bf16 %v386, %v530
    %v707 = vadd.bf16 %v393, %v531
    %v708 = vadd.bf16 %v386, %v532
    %v709 = vadd.bf16 %v393, %v533
    %v710 = vadd.bf16 %v386, %v534
    %v711 = vadd.bf16 %v393, %v535
    %v712 = vadd.bf16 %v386, %v536
    %v713 = vadd.bf16 %v393, %v537
    %v714 = vadd.bf16 %v386, %v538
    %v715 = vadd.bf16 %v393, %v539
    %v716 = vadd.bf16 %v386, %v540
    %v717 = vadd.bf16 %v393, %v541
    %v718 = vadd.bf16 %v400, %v526
    %v719 = vadd.bf16 %v407, %v527
    %v720 = vadd.bf16 %v400, %v528
    %v721 = vadd.bf16 %v407, %v529
    %v722 = vadd.bf16 %v400, %v530
    %v723 = vadd.bf16 %v407, %v531
    %v724 = vadd.bf16 %v400, %v532
    %v725 = vadd.bf16 %v407, %v533
    %v726 = vadd.bf16 %v400, %v534
    %v727 = vadd.bf16 %v407, %v535
    %v728 = vadd.bf16 %v400, %v536
    %v729 = vadd.bf16 %v407, %v537
    %v730 = vadd.bf16 %v400, %v538
    %v731 = vadd.bf16 %v407, %v539
    %v732 = vadd.bf16 %v400, %v540
    %v733 = vadd.bf16 %v407, %v541
    %v734 = vadd.bf16 %v414, %v526
    %v735 = vadd.bf16 %v421, %v527
    %v736 = vadd.bf16 %v414, %v528
    %v737 = vadd.bf16 %v421, %v529
    %v738 = vadd.bf16 %v414, %v530
    %v739 = vadd.bf16 %v421, %v531
    %v740 = vadd.bf16 %v414, %v532
    %v741 = vadd.bf16 %v421, %v533
    %v742 = vadd.bf16 %v414, %v534
    %v743 = vadd.bf16 %v421, %v535
    %v744 = vadd.bf16 %v414, %v536
    %v745 = vadd.bf16 %v421, %v537
    %v746 = vadd.bf16 %v414, %v538
    %v747 = vadd.bf16 %v421, %v539
    %v748 = vadd.bf16 %v414, %v540
    %v749 = vadd.bf16 %v421, %v541
    %v750 = vadd.bf16 %v428, %v526
    %v751 = vadd.bf16 %v435, %v527
    %v752 = vadd.bf16 %v428, %v528
    %v753 = vadd.bf16 %v435, %v529
    %v754 = vadd.bf16 %v428, %v530
    %v755 = vadd.bf16 %v435, %v531
    %v756 = vadd.bf16 %v428, %v532
    %v757 = vadd.bf16 %v435, %v533
    %v758 = vadd.bf16 %v428, %v534
    %v759 = vadd.bf16 %v435, %v535
    %v760 = vadd.bf16 %v428, %v536
    %v761 = vadd.bf16 %v435, %v537
    %v762 = vadd.bf16 %v428, %v538
    %v763 = vadd.bf16 %v435, %v539
    %v764 = vadd.bf16 %v428, %v540
    %v765 = vadd.bf16 %v435, %v541
    %v766 = vadd.bf16 %v442, %v526
    %v767 = vadd.bf16 %v449, %v527
    %v768 = vadd.bf16 %v442, %v528
    %v769 = vadd.bf16 %v449, %v529
    %v770 = vadd.bf16 %v442, %v530
    %v771 = vadd.bf16 %v449, %v531
    %v772 = vadd.bf16 %v442, %v532
    %v773 = vadd.bf16 %v449, %v533
    %v774 = vadd.bf16 %v442, %v534
    %v775 = vadd.bf16 %v449, %v535
    %v776 = vadd.bf16 %v442, %v536
    %v777 = vadd.bf16 %v449, %v537
    %v778 = vadd.bf16 %v442, %v538
    %v779 = vadd.bf16 %v449, %v539
    %v780 = vadd.bf16 %v442, %v540
    %v781 = vadd.bf16 %v449, %v541
    %v782 = vadd.bf16 %v456, %v526
    %v783 = vadd.bf16 %v463, %v527
    %v784 = vadd.bf16 %v456, %v528
    %v785 = vadd.bf16 %v463, %v529
    %v786 = vadd.bf16 %v456, %v530
    %v787 = vadd.bf16 %v463, %v531
    %v788 = vadd.bf16 %v456, %v532
    %v789 = vadd.bf16 %v463, %v533
    %v790 = vadd.bf16 %v456, %v534
    %v791 = vadd.bf16 %v463, %v535
    %v792 = vadd.bf16 %v456, %v536
    %v793 = vadd.bf16 %v463, %v537
    %v794 = vadd.bf16 %v456, %v538
    %v795 = vadd.bf16 %v463, %v539
    %v796 = vadd.bf16 %v456, %v540
    %v797 = vadd.bf16 %v463, %v541
    %v798 = vadd.bf16 %v470, %v526
    %v799 = vadd.bf16 %v477, %v527
    %v800 = vadd.bf16 %v470, %v528
    %v801 = vadd.bf16 %v477, %v529
    %v802 = vadd.bf16 %v470, %v530
    %v803 = vadd.bf16 %v477, %v531
    %v804 = vadd.bf16 %v470, %v532
    %v805 = vadd.bf16 %v477, %v533
    %v806 = vadd.bf16 %v470, %v534
    %v807 = vadd.bf16 %v477, %v535
    %v808 = vadd.bf16 %v470, %v536
    %v809 = vadd.bf16 %v477, %v537
    %v810 = vadd.bf16 %v470, %v538
    %v811 = vadd.bf16 %v477, %v539
    %v812 = vadd.bf16 %v470, %v540
    %v813 = vadd.bf16 %v477, %v541
    %v814 = vmax.bf16 %v558, 0
    %v815 = vmax.bf16 %v559, 0
    %v816 = vmax.bf16 %v560, 0
    %v817 = vmax.bf16 %v561, 0
    %v818 = vmax.bf16 %v562, 0
    %v819 = vmax.bf16 %v563, 0
    %v820 = vmax.bf16 %v564, 0
    %v821 = vmax.bf16 %v565, 0
    %v822 = vmax.bf16 %v566, 0
    %v823 = vmax.bf16 %v567, 0
    %v824 = vmax.bf16 %v568, 0
    %v825 = vmax.bf16 %v569, 0
    %v826 = vmax.bf16 %v570, 0
    %v827 = vmax.bf16 %v571, 0
    %v828 = vmax.bf16 %v572, 0
    %v829 = vmax.bf16 %v573, 0
    %v830 = vmax.bf16 %v574, 0
    %v831 = vmax.bf16 %v575, 0
    %v832 = vmax.bf16 %v576, 0
    %v833 = vmax.bf16 %v577, 0
    %v834 = vmax.bf16 %v578, 0
    %v835 = vmax.bf16 %v579, 0
    %v836 = vmax.bf16 %v580, 0
    %v837 = vmax.bf16 %v581, 0
    %v838 = vmax.bf16 %v582, 0
    %v839 = vmax.bf16 %v583, 0
    %v840 = vmax.bf16 %v584, 0
    %v841 = vmax.bf16 %v585, 0
    %v842 = vmax.bf16 %v586, 0
    %v843 = vmax.bf16 %v587, 0
    %v844 = vmax.bf16 %v588, 0
    %v845 = vmax.bf16 %v589, 0
    %v846 = vmax.bf16 %v590, 0
    %v847 = vmax.bf16 %v591, 0
    %v848 = vmax.bf16 %v592, 0
    %v849 = vmax.bf16 %v593, 0
    %v850 = vmax.bf16 %v594, 0
    %v851 = vmax.bf16 %v595, 0
    %v852 = vmax.bf16 %v596, 0
    %v853 = vmax.bf16 %v597, 0
    %v854 = vmax.bf16 %v598, 0
    %v855 = vmax.bf16 %v599, 0
    %v856 = vmax.bf16 %v600, 0
    %v857 = vmax.bf16 %v601, 0
    %v858 = vmax.bf16 %v602, 0
    %v859 = vmax.bf16 %v603, 0
    %v860 = vmax.bf16 %v604, 0
    %v861 = vmax.bf16 %v605, 0
    %v862 = vmax.bf16 %v606, 0
    %v863 = vmax.bf16 %v607, 0
    %v864 = vmax.bf16 %v608, 0
    %v865 = vmax.bf16 %v609, 0
    %v866 = vmax.bf16 %v610, 0
    %v867 = vmax.bf16 %v611, 0
    %v868 = vmax.bf16 %v612, 0
    %v869 = vmax.bf16 %v613, 0
    %v870 = vmax.bf16 %v614, 0
    %v871 = vmax.bf16 %v615, 0
    %v872 = vmax.bf16 %v616, 0
    %v873 = vmax.bf16 %v617, 0
    %v874 = vmax.bf16 %v618, 0
    %v875 = vmax.bf16 %v619, 0
    %v876 = vmax.bf16 %v620, 0
    %v877 = vmax.bf16 %v621, 0
    %v878 = vmax.bf16 %v622, 0
    %v879 = vmax.bf16 %v623, 0
    %v880 = vmax.bf16 %v624, 0
    %v881 = vmax.bf16 %v625, 0
    %v882 = vmax.bf16 %v626, 0
    %v883 = vmax.bf16 %v627, 0
    %v884 = vmax.bf16 %v628, 0
    %v885 = vmax.bf16 %v629, 0
    %v886 = vmax.bf16 %v630, 0
    %v887 = vmax.bf16 %v631, 0
    %v888 = vmax.bf16 %v632, 0
    %v889 = vmax.bf16 %v633, 0
    %v890 = vmax.bf16 %v634, 0
    %v891 = vmax.bf16 %v635, 0
    %v892 = vmax.bf16 %v636, 0
    %v893 = vmax.bf16 %v637, 0
    %v894 = vmax.bf16 %v638, 0
    %v895 = vmax.bf16 %v639, 0
    %v896 = vmax.bf16 %v640, 0
    %v897 = vmax.bf16 %v641, 0
    %v898 = vmax.bf16 %v642, 0
    %v899 = vmax.bf16 %v643, 0
    %v900 = vmax.bf16 %v644, 0
    %v901 = vmax.bf16 %v645, 0
    %v902 = vmax.bf16 %v646, 0
    %v903 = vmax.bf16 %v647, 0
    %v904 = vmax.bf16 %v648, 0
    %v905 = vmax.bf16 %v649, 0
    %v906 = vmax.bf16 %v650, 0
    %v907 = vmax.bf16 %v651, 0
    %v908 = vmax.bf16 %v652, 0
    %v909 = vmax.bf16 %v653, 0
    %v910 = vmax.bf16 %v654, 0
    %v911 = vmax.bf16 %v655, 0
    %v912 = vmax.bf16 %v656, 0
    %v913 = vmax.bf16 %v657, 0
    %v914 = vmax.bf16 %v658, 0
    %v915 = vmax.bf16 %v659, 0
    %v916 = vmax.bf16 %v660, 0
    %v917 = vmax.bf16 %v661, 0
    %v918 = vmax.bf16 %v662, 0
    %v919 = vmax.bf16 %v663, 0
    %v920 = vmax.bf16 %v664, 0
    %v921 = vmax.bf16 %v665, 0
    %v922 = vmax.bf16 %v666, 0
    %v923 = vmax.bf16 %v667, 0
    %v924 = vmax.bf16 %v668, 0
    %v925 = vmax.bf16 %v669, 0
    %v926 = vmax.bf16 %v670, 0
    %v927 = vmax.bf16 %v671, 0
    %v928 = vmax.bf16 %v672, 0
    %v929 = vmax.bf16 %v673, 0
    %v930 = vmax.bf16 %v674, 0
    %v931 = vmax.bf16 %v675, 0
    %v932 = vmax.bf16 %v676, 0
    %v933 = vmax.bf16 %v677, 0
    %v934 = vmax.bf16 %v678, 0
    %v935 = vmax.bf16 %v679, 0
    %v936 = vmax.bf16 %v680, 0
    %v937 = vmax.bf16 %v681, 0
    %v938 = vmax.bf16 %v682, 0
    %v939 = vmax.bf16 %v683, 0
    %v940 = vmax.bf16 %v684, 0
    %v941 = vmax.bf16 %v685, 0
    %v942 = vmax.bf16 %v686, 0
    %v943 = vmax.bf16 %v687, 0
    %v944 = vmax.bf16 %v688, 0
    %v945 = vmax.bf16 %v689, 0
    %v946 = vmax.bf16 %v690, 0
    %v947 = vmax.bf16 %v691, 0
    %v948 = vmax.bf16 %v692, 0
    %v949 = vmax.bf16 %v693, 0
    %v950 = vmax.bf16 %v694, 0
    %v951 = vmax.bf16 %v695, 0
    %v952 = vmax.bf16 %v696, 0
    %v953 = vmax.bf16 %v697, 0
    %v954 = vmax.bf16 %v698, 0
    %v955 = vmax.bf16 %v699, 0
    %v956 = vmax.bf16 %v700, 0
    %v957 = vmax.bf16 %v701, 0
    %v958 = vmax.bf16 %v702, 0
    %v959 = vmax.bf16 %v703, 0
    %v960 = vmax.bf16 %v704, 0
    %v961 = vmax.bf16 %v705, 0
    %v962 = vmax.bf16 %v706, 0
    %v963 = vmax.bf16 %v707, 0
    %v964 = vmax.bf16 %v708, 0
    %v965 = vmax.bf16 %v709, 0
    %v966 = vmax.bf16 %v710, 0
    %v967 = vmax.bf16 %v711, 0
    %v968 = vmax.bf16 %v712, 0
    %v969 = vmax.bf16 %v713, 0
    %v970 = vmax.bf16 %v714, 0
    %v971 = vmax.bf16 %v715, 0
    %v972 = vmax.bf16 %v716, 0
    %v973 = vmax.bf16 %v717, 0
    %v974 = vmax.bf16 %v718, 0
    %v975 = vmax.bf16 %v719, 0
    %v976 = vmax.bf16 %v720, 0
    %v977 = vmax.bf16 %v721, 0
    %v978 = vmax.bf16 %v722, 0
    %v979 = vmax.bf16 %v723, 0
    %v980 = vmax.bf16 %v724, 0
    %v981 = vmax.bf16 %v725, 0
    %v982 = vmax.bf16 %v726, 0
    %v983 = vmax.bf16 %v727, 0
    %v984 = vmax.bf16 %v728, 0
    %v985 = vmax.bf16 %v729, 0
    %v986 = vmax.bf16 %v730, 0
    %v987 = vmax.bf16 %v731, 0
    %v988 = vmax.bf16 %v732, 0
    %v989 = vmax.bf16 %v733, 0
    %v990 = vmax.bf16 %v734, 0
    %v991 = vmax.bf16 %v735, 0
    %v992 = vmax.bf16 %v736, 0
    %v993 = vmax.bf16 %v737, 0
    %v994 = vmax.bf16 %v738, 0
    %v995 = vmax.bf16 %v739, 0
    %v996 = vmax.bf16 %v740, 0
    %v997 = vmax.bf16 %v741, 0
    %v998 = vmax.bf16 %v742, 0
    %v999 = vmax.bf16 %v743, 0
    %v1000 = vmax.bf16 %v744, 0
    %v1001 = vmax.bf16 %v745, 0
    %v1002 = vmax.bf16 %v746, 0
    %v1003 = vmax.bf16 %v747, 0
    %v1004 = vmax.bf16 %v748, 0
    %v1005 = vmax.bf16 %v749, 0
    %v1006 = vmax.bf16 %v750, 0
    %v1007 = vmax.bf16 %v751, 0
    %v1008 = vmax.bf16 %v752, 0
    %v1009 = vmax.bf16 %v753, 0
    %v1010 = vmax.bf16 %v754, 0
    %v1011 = vmax.bf16 %v755, 0
    %v1012 = vmax.bf16 %v756, 0
    %v1013 = vmax.bf16 %v757, 0
    %v1014 = vmax.bf16 %v758, 0
    %v1015 = vmax.bf16 %v759, 0
    %v1016 = vmax.bf16 %v760, 0
    %v1017 = vmax.bf16 %v761, 0
    %v1018 = vmax.bf16 %v762, 0
    %v1019 = vmax.bf16 %v763, 0
    %v1020 = vmax.bf16 %v764, 0
    %v1021 = vmax.bf16 %v765, 0
    %v1022 = vmax.bf16 %v766, 0
    %v1023 = vmax.bf16 %v767, 0
    %v1024 = vmax.bf16 %v768, 0
    %v1025 = vmax.bf16 %v769, 0
    %v1026 = vmax.bf16 %v770, 0
    %v1027 = vmax.bf16 %v771, 0
    %v1028 = vmax.bf16 %v772, 0
    %v1029 = vmax.bf16 %v773, 0
    %v1030 = vmax.bf16 %v774, 0
    %v1031 = vmax.bf16 %v775, 0
    %v1032 = vmax.bf16 %v776, 0
    %v1033 = vmax.bf16 %v777, 0
    %v1034 = vmax.bf16 %v778, 0
    %v1035 = vmax.bf16 %v779, 0
    %v1036 = vmax.bf16 %v780, 0
    %v1037 = vmax.bf16 %v781, 0
    %v1038 = vmax.bf16 %v782, 0
    %v1039 = vmax.bf16 %v783, 0
    %v1040 = vmax.bf16 %v784, 0
    %v1041 = vmax.bf16 %v785, 0
    %v1042 = vmax.bf16 %v786, 0
    %v1043 = vmax.bf16 %v787, 0
    %v1044 = vmax.bf16 %v788, 0
    %v1045 = vmax.bf16 %v789, 0
    %v1046 = vmax.bf16 %v790, 0
    %v1047 = vmax.bf16 %v791, 0
    %v1048 = vmax.bf16 %v792, 0
    %v1049 = vmax.bf16 %v793, 0
    %v1050 = vmax.bf16 %v794, 0
    %v1051 = vmax.bf16 %v795, 0
    %v1052 = vmax.bf16 %v796, 0
    %v1053 = vmax.bf16 %v797, 0
    %v1054 = vmax.bf16 %v798, 0
    %v1055 = vmax.bf16 %v799, 0
    %v1056 = vmax.bf16 %v800, 0
    %v1057 = vmax.bf16 %v801, 0
    %v1058 = vmax.bf16 %v802, 0
    %v1059 = vmax.bf16 %v803, 0
    %v1060 = vmax.bf16 %v804, 0
    %v1061 = vmax.bf16 %v805, 0
    %v1062 = vmax.bf16 %v806, 0
    %v1063 = vmax.bf16 %v807, 0
    %v1064 = vmax.bf16 %v808, 0
    %v1065 = vmax.bf16 %v809, 0
    %v1066 = vmax.bf16 %v810, 0
    %v1067 = vmax.bf16 %v811, 0
    %v1068 = vmax.bf16 %v812, 0
    %v1069 = vmax.bf16 %v813, 0
    %v1070 = vld [vmem:[%s2] sm:$0xf]
    %v1071 = vld [vmem:[%s2 + $0x4] sm:$0xf]
    %v1072 = vld [vmem:[%s2 + $0x8] sm:$0xf]
    %v1073 = vld [vmem:[%s2 + $0xc] sm:$0xf]
    %v1074 = vld [vmem:[%s2 + $0x10] sm:$0xf]
    %v1075 = vld [vmem:[%s2 + $0x14] sm:$0xf]
    %v1076 = vld [vmem:[%s2 + $0x18] sm:$0xf]
    %v1077 = vld [vmem:[%s2 + $0x1c] sm:$0xf]
    %v1078 = vld [vmem:[%s2 + $0x20] sm:$0xf]
    %v1079 = vld [vmem:[%s2 + $0x24] sm:$0xf]
    %v1080 = vld [vmem:[%s2 + $0x28] sm:$0xf]
    %v1081 = vld [vmem:[%s2 + $0x2c] sm:$0xf]
    %v1082 = vld [vmem:[%s2 + $0x30] sm:$0xf]
    %v1083 = vld [vmem:[%s2 + $0x34] sm:$0xf]
    %v1084 = vld [vmem:[%s2 + $0x38] sm:$0xf]
    %v1085 = vld [vmem:[%s2 + $0x3c] sm:$0xf]
    %v1086 = vld [vmem:[%s2 + $0x40] sm:$0xf]
    %v1087 = vld [vmem:[%s2 + $0x44] sm:$0xf]
    %v1088 = vld [vmem:[%s2 + $0x48] sm:$0xf]
    %v1089 = vld [vmem:[%s2 + $0x4c] sm:$0xf]
    %v1090 = vld [vmem:[%s2 + $0x50] sm:$0xf]
    %v1091 = vld [vmem:[%s2 + $0x54] sm:$0xf]
    %v1092 = vld [vmem:[%s2 + $0x58] sm:$0xf]
    %v1093 = vld [vmem:[%s2 + $0x5c] sm:$0xf]
    %v1094 = vld [vmem:[%s2 + $0x60] sm:$0xf]
    %v1095 = vld [vmem:[%s2 + $0x64] sm:$0xf]
    %v1096 = vld [vmem:[%s2 + $0x68] sm:$0xf]
    %v1097 = vld [vmem:[%s2 + $0x6c] sm:$0xf]
    %v1098 = vld [vmem:[%s2 + $0x70] sm:$0xf]
    %v1099 = vld [vmem:[%s2 + $0x74] sm:$0xf]
    %v1100 = vld [vmem:[%s2 + $0x78] sm:$0xf]
    %v1101 = vld [vmem:[%s2 + $0x7c] sm:$0xf]
    %v1102 = vld [vmem:[%s0 + $0x8] sm:$0xff]
    %v1103 = vld [vmem:[%s0 + $0x18] sm:$0xff]
    %v1104 = vld [vmem:[%s1 + $0x8] sm:$0xff]
    %v1105 = vld [vmem:[%s1 + $0x18] sm:$0xff]
    %v1106 = vld [vmem:[%s1 + $0x28] sm:$0xff]
    %v1107 = vld [vmem:[%s1 + $0x38] sm:$0xff]
    %v1108 = vld [vmem:[%s1 + $0x48] sm:$0xff]
    %v1109 = vld [vmem:[%s1 + $0x58] sm:$0xff]
    %v1110 = vld [vmem:[%s1 + $0x68] sm:$0xff]
    %v1111 = vld [vmem:[%s1 + $0x78] sm:$0xff]
    %v1112 = vld [vmem:[%s1 + $0x88] sm:$0xff]
    %v1113 = vld [vmem:[%s1 + $0x98] sm:$0xff]
    %v1114 = vld [vmem:[%s1 + $0xa8] sm:$0xff]
    %v1115 = vld [vmem:[%s1 + $0xb8] sm:$0xff]
    %v1116 = vld [vmem:[%s1 + $0xc8] sm:$0xff]
    %v1117 = vld [vmem:[%s1 + $0xd8] sm:$0xff]
    %v1118 = vld [vmem:[%s1 + $0xe8] sm:$0xff]
    %v1119 = vld [vmem:[%s1 + $0xf8] sm:$0xff]
    %v1123 = vunpack.c.l.s4 1966171168
    %v1124 = vunpack.c.0.s8 %v1123
    %v1125 = vlaneseq
    %v1126 = vshrl.u32 %v1125, 7
    %v1127 = vsub.s32 %v1124, %v1126
    %v1128 = vrot.slane %v1102, %v1127
    %v1129 = vcombine.high %v1128, %v1128
    %v1131 = vunpack.c.l.s4 1966171168
    %v1132 = vunpack.c.0.s8 %v1131
    %v1133 = vlaneseq
    %v1134 = vshrl.u32 %v1133, 7
    %v1135 = vsub.s32 %v1132, %v1134
    %v1136 = vrot.slane %v1128, %v1135
    %v1138 = vunpack.c.l.s4 1966171168
    %v1139 = vunpack.c.0.s8 %v1138
    %v1140 = vlaneseq
    %v1141 = vshrl.u32 %v1140, 7
    %v1142 = vsub.s32 %v1139, %v1141
    %v1143 = vrot.slane %v1129, %v1142
    %v1144 = vcombine.high %v1136, %v1136
    %v1145 = vcombine.high %v1143, %v1143
    %v1147 = vunpack.c.l.s4 1966171168
    %v1148 = vunpack.c.0.s8 %v1147
    %v1149 = vlaneseq
    %v1150 = vshrl.u32 %v1149, 7
    %v1151 = vsub.s32 %v1148, %v1150
    %v1152 = vrot.slane %v1103, %v1151
    %v1153 = vcombine.high %v1152, %v1152
    %v1155 = vunpack.c.l.s4 1966171168
    %v1156 = vunpack.c.0.s8 %v1155
    %v1157 = vlaneseq
    %v1158 = vshrl.u32 %v1157, 7
    %v1159 = vsub.s32 %v1156, %v1158
    %v1160 = vrot.slane %v1152, %v1159
    %v1162 = vunpack.c.l.s4 1966171168
    %v1163 = vunpack.c.0.s8 %v1162
    %v1164 = vlaneseq
    %v1165 = vshrl.u32 %v1164, 7
    %v1166 = vsub.s32 %v1163, %v1165
    %v1167 = vrot.slane %v1153, %v1166
    %v1168 = vcombine.high %v1160, %v1160
    %v1169 = vcombine.high %v1167, %v1167
    %v1170 = vunpack.i.l.s16 %v1136
    %v1171 = vunpack.i.h.s16 %v1136
    %v1172 = vunpack.i.l.s16 %v1143
    %v1173 = vunpack.i.h.s16 %v1143
    %v1174 = vunpack.i.l.s16 %v1144
    %v1175 = vunpack.i.h.s16 %v1144
    %v1176 = vunpack.i.l.s16 %v1145
    %v1177 = vunpack.i.h.s16 %v1145
    %v1178 = vunpack.i.l.s16 %v1160
    %v1179 = vunpack.i.h.s16 %v1160
    %v1180 = vunpack.i.l.s16 %v1167
    %v1181 = vunpack.i.h.s16 %v1167
    %v1182 = vunpack.i.l.s16 %v1168
    %v1183 = vunpack.i.h.s16 %v1168
    %v1184 = vunpack.i.l.s16 %v1169
    %v1185 = vunpack.i.h.s16 %v1169
    %v1186 = vpack.i.b16 %v1170, %v1170
    %v1187 = vpack.i.b16 %v1171, %v1171
    %v1188 = vpack.i.b16 %v1172, %v1172
    %v1189 = vpack.i.b16 %v1173, %v1173
    %v1190 = vpack.i.b16 %v1174, %v1174
    %v1191 = vpack.i.b16 %v1175, %v1175
    %v1192 = vpack.i.b16 %v1176, %v1176
    %v1193 = vpack.i.b16 %v1177, %v1177
    %v1194 = vpack.i.b16 %v1178, %v1178
    %v1195 = vpack.i.b16 %v1179, %v1179
    %v1196 = vpack.i.b16 %v1180, %v1180
    %v1197 = vpack.i.b16 %v1181, %v1181
    %v1198 = vpack.i.b16 %v1182, %v1182
    %v1199 = vpack.i.b16 %v1183, %v1183
    %v1200 = vpack.i.b16 %v1184, %v1184
    %v1201 = vpack.i.b16 %v1185, %v1185
    %v1202 = vlaneseq
    %v1203 = vshrl.u32 %v1202, 7
    %v1204 = vsub.s32 0, %v1203
    %v1205 = vrot.slane %v1186, %v1204
    %v1206 = vlaneseq
    %v1207 = vshrl.u32 %v1206, 7
    %v1208 = vsub.s32 1, %v1207
    %v1209 = vrot.slane %v1186, %v1208
    %v1210 = vlaneseq
    %v1211 = vshrl.u32 %v1210, 7
    %v1212 = vsub.s32 0, %v1211
    %v1213 = vrot.slane %v1187, %v1212
    %v1214 = vlaneseq
    %v1215 = vshrl.u32 %v1214, 7
    %v1216 = vsub.s32 1, %v1215
    %v1217 = vrot.slane %v1187, %v1216
    %v1218 = vlaneseq
    %v1219 = vshrl.u32 %v1218, 7
    %v1220 = vsub.s32 0, %v1219
    %v1221 = vrot.slane %v1188, %v1220
    %v1222 = vlaneseq
    %v1223 = vshrl.u32 %v1222, 7
    %v1224 = vsub.s32 1, %v1223
    %v1225 = vrot.slane %v1188, %v1224
    %v1226 = vlaneseq
    %v1227 = vshrl.u32 %v1226, 7
    %v1228 = vsub.s32 0, %v1227
    %v1229 = vrot.slane %v1189, %v1228
    %v1230 = vlaneseq
    %v1231 = vshrl.u32 %v1230, 7
    %v1232 = vsub.s32 1, %v1231
    %v1233 = vrot.slane %v1189, %v1232
    %v1234 = vlaneseq
    %v1235 = vshrl.u32 %v1234, 7
    %v1236 = vsub.s32 0, %v1235
    %v1237 = vrot.slane %v1190, %v1236
    %v1238 = vlaneseq
    %v1239 = vshrl.u32 %v1238, 7
    %v1240 = vsub.s32 1, %v1239
    %v1241 = vrot.slane %v1190, %v1240
    %v1242 = vlaneseq
    %v1243 = vshrl.u32 %v1242, 7
    %v1244 = vsub.s32 0, %v1243
    %v1245 = vrot.slane %v1191, %v1244
    %v1246 = vlaneseq
    %v1247 = vshrl.u32 %v1246, 7
    %v1248 = vsub.s32 1, %v1247
    %v1249 = vrot.slane %v1191, %v1248
    %v1250 = vlaneseq
    %v1251 = vshrl.u32 %v1250, 7
    %v1252 = vsub.s32 0, %v1251
    %v1253 = vrot.slane %v1192, %v1252
    %v1254 = vlaneseq
    %v1255 = vshrl.u32 %v1254, 7
    %v1256 = vsub.s32 1, %v1255
    %v1257 = vrot.slane %v1192, %v1256
    %v1258 = vlaneseq
    %v1259 = vshrl.u32 %v1258, 7
    %v1260 = vsub.s32 0, %v1259
    %v1261 = vrot.slane %v1193, %v1260
    %v1262 = vlaneseq
    %v1263 = vshrl.u32 %v1262, 7
    %v1264 = vsub.s32 1, %v1263
    %v1265 = vrot.slane %v1193, %v1264
    %v1266 = vlaneseq
    %v1267 = vshrl.u32 %v1266, 7
    %v1268 = vsub.s32 0, %v1267
    %v1269 = vrot.slane %v1194, %v1268
    %v1270 = vlaneseq
    %v1271 = vshrl.u32 %v1270, 7
    %v1272 = vsub.s32 1, %v1271
    %v1273 = vrot.slane %v1194, %v1272
    %v1274 = vlaneseq
    %v1275 = vshrl.u32 %v1274, 7
    %v1276 = vsub.s32 0, %v1275
    %v1277 = vrot.slane %v1195, %v1276
    %v1278 = vlaneseq
    %v1279 = vshrl.u32 %v1278, 7
    %v1280 = vsub.s32 1, %v1279
    %v1281 = vrot.slane %v1195, %v1280
    %v1282 = vlaneseq
    %v1283 = vshrl.u32 %v1282, 7
    %v1284 = vsub.s32 0, %v1283
    %v1285 = vrot.slane %v1196, %v1284
    %v1286 = vlaneseq
    %v1287 = vshrl.u32 %v1286, 7
    %v1288 = vsub.s32 1, %v1287
    %v1289 = vrot.slane %v1196, %v1288
    %v1290 = vlaneseq
    %v1291 = vshrl.u32 %v1290, 7
    %v1292 = vsub.s32 0, %v1291
    %v1293 = vrot.slane %v1197, %v1292
    %v1294 = vlaneseq
    %v1295 = vshrl.u32 %v1294, 7
    %v1296 = vsub.s32 1, %v1295
    %v1297 = vrot.slane %v1197, %v1296
    %v1298 = vlaneseq
    %v1299 = vshrl.u32 %v1298, 7
    %v1300 = vsub.s32 0, %v1299
    %v1301 = vrot.slane %v1198, %v1300
    %v1302 = vlaneseq
    %v1303 = vshrl.u32 %v1302, 7
    %v1304 = vsub.s32 1, %v1303
    %v1305 = vrot.slane %v1198, %v1304
    %v1306 = vlaneseq
    %v1307 = vshrl.u32 %v1306, 7
    %v1308 = vsub.s32 0, %v1307
    %v1309 = vrot.slane %v1199, %v1308
    %v1310 = vlaneseq
    %v1311 = vshrl.u32 %v1310, 7
    %v1312 = vsub.s32 1, %v1311
    %v1313 = vrot.slane %v1199, %v1312
    %v1314 = vlaneseq
    %v1315 = vshrl.u32 %v1314, 7
    %v1316 = vsub.s32 0, %v1315
    %v1317 = vrot.slane %v1200, %v1316
    %v1318 = vlaneseq
    %v1319 = vshrl.u32 %v1318, 7
    %v1320 = vsub.s32 1, %v1319
    %v1321 = vrot.slane %v1200, %v1320
    %v1322 = vlaneseq
    %v1323 = vshrl.u32 %v1322, 7
    %v1324 = vsub.s32 0, %v1323
    %v1325 = vrot.slane %v1201, %v1324
    %v1326 = vlaneseq
    %v1327 = vshrl.u32 %v1326, 7
    %v1328 = vsub.s32 1, %v1327
    %v1329 = vrot.slane %v1201, %v1328
    %v1331 = vpack.i.b16 %v1205, %v1205
    %v1333 = vlaneseq
    %v1334 = vshrl.u32 %v1333, 7
    %v1335 = vsub.s32 0, %v1334
    %v1336 = vrot.slane %v1331, %v1335
    %v1338 = vpack.i.b16 %v1209, %v1209
    %v1340 = vlaneseq
    %v1341 = vshrl.u32 %v1340, 7
    %v1342 = vsub.s32 0, %v1341
    %v1343 = vrot.slane %v1338, %v1342
    %v1345 = vpack.i.b16 %v1213, %v1213
    %v1347 = vlaneseq
    %v1348 = vshrl.u32 %v1347, 7
    %v1349 = vsub.s32 0, %v1348
    %v1350 = vrot.slane %v1345, %v1349
    %v1352 = vpack.i.b16 %v1217, %v1217
    %v1354 = vlaneseq
    %v1355 = vshrl.u32 %v1354, 7
    %v1356 = vsub.s32 0, %v1355
    %v1357 = vrot.slane %v1352, %v1356
    %v1359 = vpack.i.b16 %v1221, %v1221
    %v1361 = vlaneseq
    %v1362 = vshrl.u32 %v1361, 7
    %v1363 = vsub.s32 0, %v1362
    %v1364 = vrot.slane %v1359, %v1363
    %v1366 = vpack.i.b16 %v1225, %v1225
    %v1368 = vlaneseq
    %v1369 = vshrl.u32 %v1368, 7
    %v1370 = vsub.s32 0, %v1369
    %v1371 = vrot.slane %v1366, %v1370
    %v1373 = vpack.i.b16 %v1229, %v1229
    %v1375 = vlaneseq
    %v1376 = vshrl.u32 %v1375, 7
    %v1377 = vsub.s32 0, %v1376
    %v1378 = vrot.slane %v1373, %v1377
    %v1380 = vpack.i.b16 %v1233, %v1233
    %v1382 = vlaneseq
    %v1383 = vshrl.u32 %v1382, 7
    %v1384 = vsub.s32 0, %v1383
    %v1385 = vrot.slane %v1380, %v1384
    %v1387 = vpack.i.b16 %v1237, %v1237
    %v1389 = vlaneseq
    %v1390 = vshrl.u32 %v1389, 7
    %v1391 = vsub.s32 0, %v1390
    %v1392 = vrot.slane %v1387, %v1391
    %v1394 = vpack.i.b16 %v1241, %v1241
    %v1396 = vlaneseq
    %v1397 = vshrl.u32 %v1396, 7
    %v1398 = vsub.s32 0, %v1397
    %v1399 = vrot.slane %v1394, %v1398
    %v1401 = vpack.i.b16 %v1245, %v1245
    %v1403 = vlaneseq
    %v1404 = vshrl.u32 %v1403, 7
    %v1405 = vsub.s32 0, %v1404
    %v1406 = vrot.slane %v1401, %v1405
    %v1408 = vpack.i.b16 %v1249, %v1249
    %v1410 = vlaneseq
    %v1411 = vshrl.u32 %v1410, 7
    %v1412 = vsub.s32 0, %v1411
    %v1413 = vrot.slane %v1408, %v1412
    %v1415 = vpack.i.b16 %v1253, %v1253
    %v1417 = vlaneseq
    %v1418 = vshrl.u32 %v1417, 7
    %v1419 = vsub.s32 0, %v1418
    %v1420 = vrot.slane %v1415, %v1419
    %v1422 = vpack.i.b16 %v1257, %v1257
    %v1424 = vlaneseq
    %v1425 = vshrl.u32 %v1424, 7
    %v1426 = vsub.s32 0, %v1425
    %v1427 = vrot.slane %v1422, %v1426
    %v1429 = vpack.i.b16 %v1261, %v1261
    %v1431 = vlaneseq
    %v1432 = vshrl.u32 %v1431, 7
    %v1433 = vsub.s32 0, %v1432
    %v1434 = vrot.slane %v1429, %v1433
    %v1436 = vpack.i.b16 %v1265, %v1265
    %v1438 = vlaneseq
    %v1439 = vshrl.u32 %v1438, 7
    %v1440 = vsub.s32 0, %v1439
    %v1441 = vrot.slane %v1436, %v1440
    %v1443 = vpack.i.b16 %v1269, %v1269
    %v1445 = vlaneseq
    %v1446 = vshrl.u32 %v1445, 7
    %v1447 = vsub.s32 0, %v1446
    %v1448 = vrot.slane %v1443, %v1447
    %v1450 = vpack.i.b16 %v1273, %v1273
    %v1452 = vlaneseq
    %v1453 = vshrl.u32 %v1452, 7
    %v1454 = vsub.s32 0, %v1453
    %v1455 = vrot.slane %v1450, %v1454
    %v1457 = vpack.i.b16 %v1277, %v1277
    %v1459 = vlaneseq
    %v1460 = vshrl.u32 %v1459, 7
    %v1461 = vsub.s32 0, %v1460
    %v1462 = vrot.slane %v1457, %v1461
    %v1464 = vpack.i.b16 %v1281, %v1281
    %v1466 = vlaneseq
    %v1467 = vshrl.u32 %v1466, 7
    %v1468 = vsub.s32 0, %v1467
    %v1469 = vrot.slane %v1464, %v1468
    %v1471 = vpack.i.b16 %v1285, %v1285
    %v1473 = vlaneseq
    %v1474 = vshrl.u32 %v1473, 7
    %v1475 = vsub.s32 0, %v1474
    %v1476 = vrot.slane %v1471, %v1475
    %v1478 = vpack.i.b16 %v1289, %v1289
    %v1480 = vlaneseq
    %v1481 = vshrl.u32 %v1480, 7
    %v1482 = vsub.s32 0, %v1481
    %v1483 = vrot.slane %v1478, %v1482
    %v1485 = vpack.i.b16 %v1293, %v1293
    %v1487 = vlaneseq
    %v1488 = vshrl.u32 %v1487, 7
    %v1489 = vsub.s32 0, %v1488
    %v1490 = vrot.slane %v1485, %v1489
    %v1492 = vpack.i.b16 %v1297, %v1297
    %v1494 = vlaneseq
    %v1495 = vshrl.u32 %v1494, 7
    %v1496 = vsub.s32 0, %v1495
    %v1497 = vrot.slane %v1492, %v1496
    %v1499 = vpack.i.b16 %v1301, %v1301
    %v1501 = vlaneseq
    %v1502 = vshrl.u32 %v1501, 7
    %v1503 = vsub.s32 0, %v1502
    %v1504 = vrot.slane %v1499, %v1503
    %v1506 = vpack.i.b16 %v1305, %v1305
    %v1508 = vlaneseq
    %v1509 = vshrl.u32 %v1508, 7
    %v1510 = vsub.s32 0, %v1509
    %v1511 = vrot.slane %v1506, %v1510
    %v1513 = vpack.i.b16 %v1309, %v1309
    %v1515 = vlaneseq
    %v1516 = vshrl.u32 %v1515, 7
    %v1517 = vsub.s32 0, %v1516
    %v1518 = vrot.slane %v1513, %v1517
    %v1520 = vpack.i.b16 %v1313, %v1313
    %v1522 = vlaneseq
    %v1523 = vshrl.u32 %v1522, 7
    %v1524 = vsub.s32 0, %v1523
    %v1525 = vrot.slane %v1520, %v1524
    %v1527 = vpack.i.b16 %v1317, %v1317
    %v1529 = vlaneseq
    %v1530 = vshrl.u32 %v1529, 7
    %v1531 = vsub.s32 0, %v1530
    %v1532 = vrot.slane %v1527, %v1531
    %v1534 = vpack.i.b16 %v1321, %v1321
    %v1536 = vlaneseq
    %v1537 = vshrl.u32 %v1536, 7
    %v1538 = vsub.s32 0, %v1537
    %v1539 = vrot.slane %v1534, %v1538
    %v1541 = vpack.i.b16 %v1325, %v1325
    %v1543 = vlaneseq
    %v1544 = vshrl.u32 %v1543, 7
    %v1545 = vsub.s32 0, %v1544
    %v1546 = vrot.slane %v1541, %v1545
    %v1548 = vpack.i.b16 %v1329, %v1329
    %v1550 = vlaneseq
    %v1551 = vshrl.u32 %v1550, 7
    %v1552 = vsub.s32 0, %v1551
    %v1553 = vrot.slane %v1548, %v1552
    %v1570 = vunpack.c.l.b16 %v1104
    %v1571 = vunpack.c.h.b16 %v1104
    %v1572 = vunpack.c.l.b16 %v1105
    %v1573 = vunpack.c.h.b16 %v1105
    %v1574 = vunpack.c.l.b16 %v1106
    %v1575 = vunpack.c.h.b16 %v1106
    %v1576 = vunpack.c.l.b16 %v1107
    %v1577 = vunpack.c.h.b16 %v1107
    %v1578 = vunpack.c.l.b16 %v1108
    %v1579 = vunpack.c.h.b16 %v1108
    %v1580 = vunpack.c.l.b16 %v1109
    %v1581 = vunpack.c.h.b16 %v1109
    %v1582 = vunpack.c.l.b16 %v1110
    %v1583 = vunpack.c.h.b16 %v1110
    %v1584 = vunpack.c.l.b16 %v1111
    %v1585 = vunpack.c.h.b16 %v1111
    %v1586 = vunpack.c.l.b16 %v1112
    %v1587 = vunpack.c.h.b16 %v1112
    %v1588 = vunpack.c.l.b16 %v1113
    %v1589 = vunpack.c.h.b16 %v1113
    %v1590 = vunpack.c.l.b16 %v1114
    %v1591 = vunpack.c.h.b16 %v1114
    %v1592 = vunpack.c.l.b16 %v1115
    %v1593 = vunpack.c.h.b16 %v1115
    %v1594 = vunpack.c.l.b16 %v1116
    %v1595 = vunpack.c.h.b16 %v1116
    %v1596 = vunpack.c.l.b16 %v1117
    %v1597 = vunpack.c.h.b16 %v1117
    %v1598 = vunpack.c.l.b16 %v1118
    %v1599 = vunpack.c.h.b16 %v1118
    %v1600 = vunpack.c.l.b16 %v1119
    %v1601 = vunpack.c.h.b16 %v1119
    %v1602 = vpack.c.b16 %v1572, %v1570
    %v1603 = vpack.c.b16 %v1573, %v1571
    %v1604 = vpack.c.b16 %v1576, %v1574
    %v1605 = vpack.c.b16 %v1577, %v1575
    %v1606 = vpack.c.b16 %v1580, %v1578
    %v1607 = vpack.c.b16 %v1581, %v1579
    %v1608 = vpack.c.b16 %v1584, %v1582
    %v1609 = vpack.c.b16 %v1585, %v1583
    %v1610 = vpack.c.b16 %v1588, %v1586
    %v1611 = vpack.c.b16 %v1589, %v1587
    %v1612 = vpack.c.b16 %v1592, %v1590
    %v1613 = vpack.c.b16 %v1593, %v1591
    %v1614 = vpack.c.b16 %v1596, %v1594
    %v1615 = vpack.c.b16 %v1597, %v1595
    %v1616 = vpack.c.b16 %v1600, %v1598
    %v1617 = vpack.c.b16 %v1601, %v1599
    %v1634 = vadd.bf16 %v1336, %v1602
    %v1635 = vadd.bf16 %v1343, %v1603
    %v1636 = vadd.bf16 %v1336, %v1604
    %v1637 = vadd.bf16 %v1343, %v1605
    %v1638 = vadd.bf16 %v1336, %v1606
    %v1639 = vadd.bf16 %v1343, %v1607
    %v1640 = vadd.bf16 %v1336, %v1608
    %v1641 = vadd.bf16 %v1343, %v1609
    %v1642 = vadd.bf16 %v1336, %v1610
    %v1643 = vadd.bf16 %v1343, %v1611
    %v1644 = vadd.bf16 %v1336, %v1612
    %v1645 = vadd.bf16 %v1343, %v1613
    %v1646 = vadd.bf16 %v1336, %v1614
    %v1647 = vadd.bf16 %v1343, %v1615
    %v1648 = vadd.bf16 %v1336, %v1616
    %v1649 = vadd.bf16 %v1343, %v1617
    %v1650 = vadd.bf16 %v1350, %v1602
    %v1651 = vadd.bf16 %v1357, %v1603
    %v1652 = vadd.bf16 %v1350, %v1604
    %v1653 = vadd.bf16 %v1357, %v1605
    %v1654 = vadd.bf16 %v1350, %v1606
    %v1655 = vadd.bf16 %v1357, %v1607
    %v1656 = vadd.bf16 %v1350, %v1608
    %v1657 = vadd.bf16 %v1357, %v1609
    %v1658 = vadd.bf16 %v1350, %v1610
    %v1659 = vadd.bf16 %v1357, %v1611
    %v1660 = vadd.bf16 %v1350, %v1612
    %v1661 = vadd.bf16 %v1357, %v1613
    %v1662 = vadd.bf16 %v1350, %v1614
    %v1663 = vadd.bf16 %v1357, %v1615
    %v1664 = vadd.bf16 %v1350, %v1616
    %v1665 = vadd.bf16 %v1357, %v1617
    %v1666 = vadd.bf16 %v1364, %v1602
    %v1667 = vadd.bf16 %v1371, %v1603
    %v1668 = vadd.bf16 %v1364, %v1604
    %v1669 = vadd.bf16 %v1371, %v1605
    %v1670 = vadd.bf16 %v1364, %v1606
    %v1671 = vadd.bf16 %v1371, %v1607
    %v1672 = vadd.bf16 %v1364, %v1608
    %v1673 = vadd.bf16 %v1371, %v1609
    %v1674 = vadd.bf16 %v1364, %v1610
    %v1675 = vadd.bf16 %v1371, %v1611
    %v1676 = vadd.bf16 %v1364, %v1612
    %v1677 = vadd.bf16 %v1371, %v1613
    %v1678 = vadd.bf16 %v1364, %v1614
    %v1679 = vadd.bf16 %v1371, %v1615
    %v1680 = vadd.bf16 %v1364, %v1616
    %v1681 = vadd.bf16 %v1371, %v1617
    %v1682 = vadd.bf16 %v1378, %v1602
    %v1683 = vadd.bf16 %v1385, %v1603
    %v1684 = vadd.bf16 %v1378, %v1604
    %v1685 = vadd.bf16 %v1385, %v1605
    %v1686 = vadd.bf16 %v1378, %v1606
    %v1687 = vadd.bf16 %v1385, %v1607
    %v1688 = vadd.bf16 %v1378, %v1608
    %v1689 = vadd.bf16 %v1385, %v1609
    %v1690 = vadd.bf16 %v1378, %v1610
    %v1691 = vadd.bf16 %v1385, %v1611
    %v1692 = vadd.bf16 %v1378, %v1612
    %v1693 = vadd.bf16 %v1385, %v1613
    %v1694 = vadd.bf16 %v1378, %v1614
    %v1695 = vadd.bf16 %v1385, %v1615
    %v1696 = vadd.bf16 %v1378, %v1616
    %v1697 = vadd.bf16 %v1385, %v1617
    %v1698 = vadd.bf16 %v1392, %v1602
    %v1699 = vadd.bf16 %v1399, %v1603
    %v1700 = vadd.bf16 %v1392, %v1604
    %v1701 = vadd.bf16 %v1399, %v1605
    %v1702 = vadd.bf16 %v1392, %v1606
    %v1703 = vadd.bf16 %v1399, %v1607
    %v1704 = vadd.bf16 %v1392, %v1608
    %v1705 = vadd.bf16 %v1399, %v1609
    %v1706 = vadd.bf16 %v1392, %v1610
    %v1707 = vadd.bf16 %v1399, %v1611
    %v1708 = vadd.bf16 %v1392, %v1612
    %v1709 = vadd.bf16 %v1399, %v1613
    %v1710 = vadd.bf16 %v1392, %v1614
    %v1711 = vadd.bf16 %v1399, %v1615
    %v1712 = vadd.bf16 %v1392, %v1616
    %v1713 = vadd.bf16 %v1399, %v1617
    %v1714 = vadd.bf16 %v1406, %v1602
    %v1715 = vadd.bf16 %v1413, %v1603
    %v1716 = vadd.bf16 %v1406, %v1604
    %v1717 = vadd.bf16 %v1413, %v1605
    %v1718 = vadd.bf16 %v1406, %v1606
    %v1719 = vadd.bf16 %v1413, %v1607
    %v1720 = vadd.bf16 %v1406, %v1608
    %v1721 = vadd.bf16 %v1413, %v1609
    %v1722 = vadd.bf16 %v1406, %v1610
    %v1723 = vadd.bf16 %v1413, %v1611
    %v1724 = vadd.bf16 %v1406, %v1612
    %v1725 = vadd.bf16 %v1413, %v1613
    %v1726 = vadd.bf16 %v1406, %v1614
    %v1727 = vadd.bf16 %v1413, %v1615
    %v1728 = vadd.bf16 %v1406, %v1616
    %v1729 = vadd.bf16 %v1413, %v1617
    %v1730 = vadd.bf16 %v1420, %v1602
    %v1731 = vadd.bf16 %v1427, %v1603
    %v1732 = vadd.bf16 %v1420, %v1604
    %v1733 = vadd.bf16 %v1427, %v1605
    %v1734 = vadd.bf16 %v1420, %v1606
    %v1735 = vadd.bf16 %v1427, %v1607
    %v1736 = vadd.bf16 %v1420, %v1608
    %v1737 = vadd.bf16 %v1427, %v1609
    %v1738 = vadd.bf16 %v1420, %v1610
    %v1739 = vadd.bf16 %v1427, %v1611
    %v1740 = vadd.bf16 %v1420, %v1612
    %v1741 = vadd.bf16 %v1427, %v1613
    %v1742 = vadd.bf16 %v1420, %v1614
    %v1743 = vadd.bf16 %v1427, %v1615
    %v1744 = vadd.bf16 %v1420, %v1616
    %v1745 = vadd.bf16 %v1427, %v1617
    %v1746 = vadd.bf16 %v1434, %v1602
    %v1747 = vadd.bf16 %v1441, %v1603
    %v1748 = vadd.bf16 %v1434, %v1604
    %v1749 = vadd.bf16 %v1441, %v1605
    %v1750 = vadd.bf16 %v1434, %v1606
    %v1751 = vadd.bf16 %v1441, %v1607
    %v1752 = vadd.bf16 %v1434, %v1608
    %v1753 = vadd.bf16 %v1441, %v1609
    %v1754 = vadd.bf16 %v1434, %v1610
    %v1755 = vadd.bf16 %v1441, %v1611
    %v1756 = vadd.bf16 %v1434, %v1612
    %v1757 = vadd.bf16 %v1441, %v1613
    %v1758 = vadd.bf16 %v1434, %v1614
    %v1759 = vadd.bf16 %v1441, %v1615
    %v1760 = vadd.bf16 %v1434, %v1616
    %v1761 = vadd.bf16 %v1441, %v1617
    %v1762 = vadd.bf16 %v1448, %v1602
    %v1763 = vadd.bf16 %v1455, %v1603
    %v1764 = vadd.bf16 %v1448, %v1604
    %v1765 = vadd.bf16 %v1455, %v1605
    %v1766 = vadd.bf16 %v1448, %v1606
    %v1767 = vadd.bf16 %v1455, %v1607
    %v1768 = vadd.bf16 %v1448, %v1608
    %v1769 = vadd.bf16 %v1455, %v1609
    %v1770 = vadd.bf16 %v1448, %v1610
    %v1771 = vadd.bf16 %v1455, %v1611
    %v1772 = vadd.bf16 %v1448, %v1612
    %v1773 = vadd.bf16 %v1455, %v1613
    %v1774 = vadd.bf16 %v1448, %v1614
    %v1775 = vadd.bf16 %v1455, %v1615
    %v1776 = vadd.bf16 %v1448, %v1616
    %v1777 = vadd.bf16 %v1455, %v1617
    %v1778 = vadd.bf16 %v1462, %v1602
    %v1779 = vadd.bf16 %v1469, %v1603
    %v1780 = vadd.bf16 %v1462, %v1604
    %v1781 = vadd.bf16 %v1469, %v1605
    %v1782 = vadd.bf16 %v1462, %v1606
    %v1783 = vadd.bf16 %v1469, %v1607
    %v1784 = vadd.bf16 %v1462, %v1608
    %v1785 = vadd.bf16 %v1469, %v1609
    %v1786 = vadd.bf16 %v1462, %v1610
    %v1787 = vadd.bf16 %v1469, %v1611
    %v1788 = vadd.bf16 %v1462, %v1612
    %v1789 = vadd.bf16 %v1469, %v1613
    %v1790 = vadd.bf16 %v1462, %v1614
    %v1791 = vadd.bf16 %v1469, %v1615
    %v1792 = vadd.bf16 %v1462, %v1616
    %v1793 = vadd.bf16 %v1469, %v1617
    %v1794 = vadd.bf16 %v1476, %v1602
    %v1795 = vadd.bf16 %v1483, %v1603
    %v1796 = vadd.bf16 %v1476, %v1604
    %v1797 = vadd.bf16 %v1483, %v1605
    %v1798 = vadd.bf16 %v1476, %v1606
    %v1799 = vadd.bf16 %v1483, %v1607
    %v1800 = vadd.bf16 %v1476, %v1608
    %v1801 = vadd.bf16 %v1483, %v1609
    %v1802 = vadd.bf16 %v1476, %v1610
    %v1803 = vadd.bf16 %v1483, %v1611
    %v1804 = vadd.bf16 %v1476, %v1612
    %v1805 = vadd.bf16 %v1483, %v1613
    %v1806 = vadd.bf16 %v1476, %v1614
    %v1807 = vadd.bf16 %v1483, %v1615
    %v1808 = vadd.bf16 %v1476, %v1616
    %v1809 = vadd.bf16 %v1483, %v1617
    %v1810 = vadd.bf16 %v1490, %v1602
    %v1811 = vadd.bf16 %v1497, %v1603
    %v1812 = vadd.bf16 %v1490, %v1604
    %v1813 = vadd.bf16 %v1497, %v1605
    %v1814 = vadd.bf16 %v1490, %v1606
    %v1815 = vadd.bf16 %v1497, %v1607
    %v1816 = vadd.bf16 %v1490, %v1608
    %v1817 = vadd.bf16 %v1497, %v1609
    %v1818 = vadd.bf16 %v1490, %v1610
    %v1819 = vadd.bf16 %v1497, %v1611
    %v1820 = vadd.bf16 %v1490, %v1612
    %v1821 = vadd.bf16 %v1497, %v1613
    %v1822 = vadd.bf16 %v1490, %v1614
    %v1823 = vadd.bf16 %v1497, %v1615
    %v1824 = vadd.bf16 %v1490, %v1616
    %v1825 = vadd.bf16 %v1497, %v1617
    %v1826 = vadd.bf16 %v1504, %v1602
    %v1827 = vadd.bf16 %v1511, %v1603
    %v1828 = vadd.bf16 %v1504, %v1604
    %v1829 = vadd.bf16 %v1511, %v1605
    %v1830 = vadd.bf16 %v1504, %v1606
    %v1831 = vadd.bf16 %v1511, %v1607
    %v1832 = vadd.bf16 %v1504, %v1608
    %v1833 = vadd.bf16 %v1511, %v1609
    %v1834 = vadd.bf16 %v1504, %v1610
    %v1835 = vadd.bf16 %v1511, %v1611
    %v1836 = vadd.bf16 %v1504, %v1612
    %v1837 = vadd.bf16 %v1511, %v1613
    %v1838 = vadd.bf16 %v1504, %v1614
    %v1839 = vadd.bf16 %v1511, %v1615
    %v1840 = vadd.bf16 %v1504, %v1616
    %v1841 = vadd.bf16 %v1511, %v1617
    %v1842 = vadd.bf16 %v1518, %v1602
    %v1843 = vadd.bf16 %v1525, %v1603
    %v1844 = vadd.bf16 %v1518, %v1604
    %v1845 = vadd.bf16 %v1525, %v1605
    %v1846 = vadd.bf16 %v1518, %v1606
    %v1847 = vadd.bf16 %v1525, %v1607
    %v1848 = vadd.bf16 %v1518, %v1608
    %v1849 = vadd.bf16 %v1525, %v1609
    %v1850 = vadd.bf16 %v1518, %v1610
    %v1851 = vadd.bf16 %v1525, %v1611
    %v1852 = vadd.bf16 %v1518, %v1612
    %v1853 = vadd.bf16 %v1525, %v1613
    %v1854 = vadd.bf16 %v1518, %v1614
    %v1855 = vadd.bf16 %v1525, %v1615
    %v1856 = vadd.bf16 %v1518, %v1616
    %v1857 = vadd.bf16 %v1525, %v1617
    %v1858 = vadd.bf16 %v1532, %v1602
    %v1859 = vadd.bf16 %v1539, %v1603
    %v1860 = vadd.bf16 %v1532, %v1604
    %v1861 = vadd.bf16 %v1539, %v1605
    %v1862 = vadd.bf16 %v1532, %v1606
    %v1863 = vadd.bf16 %v1539, %v1607
    %v1864 = vadd.bf16 %v1532, %v1608
    %v1865 = vadd.bf16 %v1539, %v1609
    %v1866 = vadd.bf16 %v1532, %v1610
    %v1867 = vadd.bf16 %v1539, %v1611
    %v1868 = vadd.bf16 %v1532, %v1612
    %v1869 = vadd.bf16 %v1539, %v1613
    %v1870 = vadd.bf16 %v1532, %v1614
    %v1871 = vadd.bf16 %v1539, %v1615
    %v1872 = vadd.bf16 %v1532, %v1616
    %v1873 = vadd.bf16 %v1539, %v1617
    %v1874 = vadd.bf16 %v1546, %v1602
    %v1875 = vadd.bf16 %v1553, %v1603
    %v1876 = vadd.bf16 %v1546, %v1604
    %v1877 = vadd.bf16 %v1553, %v1605
    %v1878 = vadd.bf16 %v1546, %v1606
    %v1879 = vadd.bf16 %v1553, %v1607
    %v1880 = vadd.bf16 %v1546, %v1608
    %v1881 = vadd.bf16 %v1553, %v1609
    %v1882 = vadd.bf16 %v1546, %v1610
    %v1883 = vadd.bf16 %v1553, %v1611
    %v1884 = vadd.bf16 %v1546, %v1612
    %v1885 = vadd.bf16 %v1553, %v1613
    %v1886 = vadd.bf16 %v1546, %v1614
    %v1887 = vadd.bf16 %v1553, %v1615
    %v1888 = vadd.bf16 %v1546, %v1616
    %v1889 = vadd.bf16 %v1553, %v1617
    %v1890 = vmax.bf16 %v1634, 0
    %v1891 = vmax.bf16 %v1635, 0
    %v1892 = vmax.bf16 %v1636, 0
    %v1893 = vmax.bf16 %v1637, 0
    %v1894 = vmax.bf16 %v1638, 0
    %v1895 = vmax.bf16 %v1639, 0
    %v1896 = vmax.bf16 %v1640, 0
    %v1897 = vmax.bf16 %v1641, 0
    %v1898 = vmax.bf16 %v1642, 0
    %v1899 = vmax.bf16 %v1643, 0
    %v1900 = vmax.bf16 %v1644, 0
    %v1901 = vmax.bf16 %v1645, 0
    %v1902 = vmax.bf16 %v1646, 0
    %v1903 = vmax.bf16 %v1647, 0
    %v1904 = vmax.bf16 %v1648, 0
    %v1905 = vmax.bf16 %v1649, 0
    %v1906 = vmax.bf16 %v1650, 0
    %v1907 = vmax.bf16 %v1651, 0
    %v1908 = vmax.bf16 %v1652, 0
    %v1909 = vmax.bf16 %v1653, 0
    %v1910 = vmax.bf16 %v1654, 0
    %v1911 = vmax.bf16 %v1655, 0
    %v1912 = vmax.bf16 %v1656, 0
    %v1913 = vmax.bf16 %v1657, 0
    %v1914 = vmax.bf16 %v1658, 0
    %v1915 = vmax.bf16 %v1659, 0
    %v1916 = vmax.bf16 %v1660, 0
    %v1917 = vmax.bf16 %v1661, 0
    %v1918 = vmax.bf16 %v1662, 0
    %v1919 = vmax.bf16 %v1663, 0
    %v1920 = vmax.bf16 %v1664, 0
    %v1921 = vmax.bf16 %v1665, 0
    %v1922 = vmax.bf16 %v1666, 0
    %v1923 = vmax.bf16 %v1667, 0
    %v1924 = vmax.bf16 %v1668, 0
    %v1925 = vmax.bf16 %v1669, 0
    %v1926 = vmax.bf16 %v1670, 0
    %v1927 = vmax.bf16 %v1671, 0
    %v1928 = vmax.bf16 %v1672, 0
    %v1929 = vmax.bf16 %v1673, 0
    %v1930 = vmax.bf16 %v1674, 0
    %v1931 = vmax.bf16 %v1675, 0
    %v1932 = vmax.bf16 %v1676, 0
    %v1933 = vmax.bf16 %v1677, 0
    %v1934 = vmax.bf16 %v1678, 0
    %v1935 = vmax.bf16 %v1679, 0
    %v1936 = vmax.bf16 %v1680, 0
    %v1937 = vmax.bf16 %v1681, 0
    %v1938 = vmax.bf16 %v1682, 0
    %v1939 = vmax.bf16 %v1683, 0
    %v1940 = vmax.bf16 %v1684, 0
    %v1941 = vmax.bf16 %v1685, 0
    %v1942 = vmax.bf16 %v1686, 0
    %v1943 = vmax.bf16 %v1687, 0
    %v1944 = vmax.bf16 %v1688, 0
    %v1945 = vmax.bf16 %v1689, 0
    %v1946 = vmax.bf16 %v1690, 0
    %v1947 = vmax.bf16 %v1691, 0
    %v1948 = vmax.bf16 %v1692, 0
    %v1949 = vmax.bf16 %v1693, 0
    %v1950 = vmax.bf16 %v1694, 0
    %v1951 = vmax.bf16 %v1695, 0
    %v1952 = vmax.bf16 %v1696, 0
    %v1953 = vmax.bf16 %v1697, 0
    %v1954 = vmax.bf16 %v1698, 0
    %v1955 = vmax.bf16 %v1699, 0
    %v1956 = vmax.bf16 %v1700, 0
    %v1957 = vmax.bf16 %v1701, 0
    %v1958 = vmax.bf16 %v1702, 0
    %v1959 = vmax.bf16 %v1703, 0
    %v1960 = vmax.bf16 %v1704, 0
    %v1961 = vmax.bf16 %v1705, 0
    %v1962 = vmax.bf16 %v1706, 0
    %v1963 = vmax.bf16 %v1707, 0
    %v1964 = vmax.bf16 %v1708, 0
    %v1965 = vmax.bf16 %v1709, 0
    %v1966 = vmax.bf16 %v1710, 0
    %v1967 = vmax.bf16 %v1711, 0
    %v1968 = vmax.bf16 %v1712, 0
    %v1969 = vmax.bf16 %v1713, 0
    %v1970 = vmax.bf16 %v1714, 0
    %v1971 = vmax.bf16 %v1715, 0
    %v1972 = vmax.bf16 %v1716, 0
    %v1973 = vmax.bf16 %v1717, 0
    %v1974 = vmax.bf16 %v1718, 0
    %v1975 = vmax.bf16 %v1719, 0
    %v1976 = vmax.bf16 %v1720, 0
    %v1977 = vmax.bf16 %v1721, 0
    %v1978 = vmax.bf16 %v1722, 0
    %v1979 = vmax.bf16 %v1723, 0
    %v1980 = vmax.bf16 %v1724, 0
    %v1981 = vmax.bf16 %v1725, 0
    %v1982 = vmax.bf16 %v1726, 0
    %v1983 = vmax.bf16 %v1727, 0
    %v1984 = vmax.bf16 %v1728, 0
    %v1985 = vmax.bf16 %v1729, 0
    %v1986 = vmax.bf16 %v1730, 0
    %v1987 = vmax.bf16 %v1731, 0
    %v1988 = vmax.bf16 %v1732, 0
    %v1989 = vmax.bf16 %v1733, 0
    %v1990 = vmax.bf16 %v1734, 0
    %v1991 = vmax.bf16 %v1735, 0
    %v1992 = vmax.bf16 %v1736, 0
    %v1993 = vmax.bf16 %v1737, 0
    %v1994 = vmax.bf16 %v1738, 0
    %v1995 = vmax.bf16 %v1739, 0
    %v1996 = vmax.bf16 %v1740, 0
    %v1997 = vmax.bf16 %v1741, 0
    %v1998 = vmax.bf16 %v1742, 0
    %v1999 = vmax.bf16 %v1743, 0
    %v2000 = vmax.bf16 %v1744, 0
    %v2001 = vmax.bf16 %v1745, 0
    %v2002 = vmax.bf16 %v1746, 0
    %v2003 = vmax.bf16 %v1747, 0
    %v2004 = vmax.bf16 %v1748, 0
    %v2005 = vmax.bf16 %v1749, 0
    %v2006 = vmax.bf16 %v1750, 0
    %v2007 = vmax.bf16 %v1751, 0
    %v2008 = vmax.bf16 %v1752, 0
    %v2009 = vmax.bf16 %v1753, 0
    %v2010 = vmax.bf16 %v1754, 0
    %v2011 = vmax.bf16 %v1755, 0
    %v2012 = vmax.bf16 %v1756, 0
    %v2013 = vmax.bf16 %v1757, 0
    %v2014 = vmax.bf16 %v1758, 0
    %v2015 = vmax.bf16 %v1759, 0
    %v2016 = vmax.bf16 %v1760, 0
    %v2017 = vmax.bf16 %v1761, 0
    %v2018 = vmax.bf16 %v1762, 0
    %v2019 = vmax.bf16 %v1763, 0
    %v2020 = vmax.bf16 %v1764, 0
    %v2021 = vmax.bf16 %v1765, 0
    %v2022 = vmax.bf16 %v1766, 0
    %v2023 = vmax.bf16 %v1767, 0
    %v2024 = vmax.bf16 %v1768, 0
    %v2025 = vmax.bf16 %v1769, 0
    %v2026 = vmax.bf16 %v1770, 0
    %v2027 = vmax.bf16 %v1771, 0
    %v2028 = vmax.bf16 %v1772, 0
    %v2029 = vmax.bf16 %v1773, 0
    %v2030 = vmax.bf16 %v1774, 0
    %v2031 = vmax.bf16 %v1775, 0
    %v2032 = vmax.bf16 %v1776, 0
    %v2033 = vmax.bf16 %v1777, 0
    %v2034 = vmax.bf16 %v1778, 0
    %v2035 = vmax.bf16 %v1779, 0
    %v2036 = vmax.bf16 %v1780, 0
    %v2037 = vmax.bf16 %v1781, 0
    %v2038 = vmax.bf16 %v1782, 0
    %v2039 = vmax.bf16 %v1783, 0
    %v2040 = vmax.bf16 %v1784, 0
    %v2041 = vmax.bf16 %v1785, 0
    %v2042 = vmax.bf16 %v1786, 0
    %v2043 = vmax.bf16 %v1787, 0
    %v2044 = vmax.bf16 %v1788, 0
    %v2045 = vmax.bf16 %v1789, 0
    %v2046 = vmax.bf16 %v1790, 0
    %v2047 = vmax.bf16 %v1791, 0
    %v2048 = vmax.bf16 %v1792, 0
    %v2049 = vmax.bf16 %v1793, 0
    %v2050 = vmax.bf16 %v1794, 0
    %v2051 = vmax.bf16 %v1795, 0
    %v2052 = vmax.bf16 %v1796, 0
    %v2053 = vmax.bf16 %v1797, 0
    %v2054 = vmax.bf16 %v1798, 0
    %v2055 = vmax.bf16 %v1799, 0
    %v2056 = vmax.bf16 %v1800, 0
    %v2057 = vmax.bf16 %v1801, 0
    %v2058 = vmax.bf16 %v1802, 0
    %v2059 = vmax.bf16 %v1803, 0
    %v2060 = vmax.bf16 %v1804, 0
    %v2061 = vmax.bf16 %v1805, 0
    %v2062 = vmax.bf16 %v1806, 0
    %v2063 = vmax.bf16 %v1807, 0
    %v2064 = vmax.bf16 %v1808, 0
    %v2065 = vmax.bf16 %v1809, 0
    %v2066 = vmax.bf16 %v1810, 0
    %v2067 = vmax.bf16 %v1811, 0
    %v2068 = vmax.bf16 %v1812, 0
    %v2069 = vmax.bf16 %v1813, 0
    %v2070 = vmax.bf16 %v1814, 0
    %v2071 = vmax.bf16 %v1815, 0
    %v2072 = vmax.bf16 %v1816, 0
    %v2073 = vmax.bf16 %v1817, 0
    %v2074 = vmax.bf16 %v1818, 0
    %v2075 = vmax.bf16 %v1819, 0
    %v2076 = vmax.bf16 %v1820, 0
    %v2077 = vmax.bf16 %v1821, 0
    %v2078 = vmax.bf16 %v1822, 0
    %v2079 = vmax.bf16 %v1823, 0
    %v2080 = vmax.bf16 %v1824, 0
    %v2081 = vmax.bf16 %v1825, 0
    %v2082 = vmax.bf16 %v1826, 0
    %v2083 = vmax.bf16 %v1827, 0
    %v2084 = vmax.bf16 %v1828, 0
    %v2085 = vmax.bf16 %v1829, 0
    %v2086 = vmax.bf16 %v1830, 0
    %v2087 = vmax.bf16 %v1831, 0
    %v2088 = vmax.bf16 %v1832, 0
    %v2089 = vmax.bf16 %v1833, 0
    %v2090 = vmax.bf16 %v1834, 0
    %v2091 = vmax.bf16 %v1835, 0
    %v2092 = vmax.bf16 %v1836, 0
    %v2093 = vmax.bf16 %v1837, 0
    %v2094 = vmax.bf16 %v1838, 0
    %v2095 = vmax.bf16 %v1839, 0
    %v2096 = vmax.bf16 %v1840, 0
    %v2097 = vmax.bf16 %v1841, 0
    %v2098 = vmax.bf16 %v1842, 0
    %v2099 = vmax.bf16 %v1843, 0
    %v2100 = vmax.bf16 %v1844, 0
    %v2101 = vmax.bf16 %v1845, 0
    %v2102 = vmax.bf16 %v1846, 0
    %v2103 = vmax.bf16 %v1847, 0
    %v2104 = vmax.bf16 %v1848, 0
    %v2105 = vmax.bf16 %v1849, 0
    %v2106 = vmax.bf16 %v1850, 0
    %v2107 = vmax.bf16 %v1851, 0
    %v2108 = vmax.bf16 %v1852, 0
    %v2109 = vmax.bf16 %v1853, 0
    %v2110 = vmax.bf16 %v1854, 0
    %v2111 = vmax.bf16 %v1855, 0
    %v2112 = vmax.bf16 %v1856, 0
    %v2113 = vmax.bf16 %v1857, 0
    %v2114 = vmax.bf16 %v1858, 0
    %v2115 = vmax.bf16 %v1859, 0
    %v2116 = vmax.bf16 %v1860, 0
    %v2117 = vmax.bf16 %v1861, 0
    %v2118 = vmax.bf16 %v1862, 0
    %v2119 = vmax.bf16 %v1863, 0
    %v2120 = vmax.bf16 %v1864, 0
    %v2121 = vmax.bf16 %v1865, 0
    %v2122 = vmax.bf16 %v1866, 0
    %v2123 = vmax.bf16 %v1867, 0
    %v2124 = vmax.bf16 %v1868, 0
    %v2125 = vmax.bf16 %v1869, 0
    %v2126 = vmax.bf16 %v1870, 0
    %v2127 = vmax.bf16 %v1871, 0
    %v2128 = vmax.bf16 %v1872, 0
    %v2129 = vmax.bf16 %v1873, 0
    %v2130 = vmax.bf16 %v1874, 0
    %v2131 = vmax.bf16 %v1875, 0
    %v2132 = vmax.bf16 %v1876, 0
    %v2133 = vmax.bf16 %v1877, 0
    %v2134 = vmax.bf16 %v1878, 0
    %v2135 = vmax.bf16 %v1879, 0
    %v2136 = vmax.bf16 %v1880, 0
    %v2137 = vmax.bf16 %v1881, 0
    %v2138 = vmax.bf16 %v1882, 0
    %v2139 = vmax.bf16 %v1883, 0
    %v2140 = vmax.bf16 %v1884, 0
    %v2141 = vmax.bf16 %v1885, 0
    %v2142 = vmax.bf16 %v1886, 0
    %v2143 = vmax.bf16 %v1887, 0
    %v2144 = vmax.bf16 %v1888, 0
    %v2145 = vmax.bf16 %v1889, 0
    %v2146 = vld [vmem:[%s2 + $0x80] sm:$0xf]
    %v2147 = vld [vmem:[%s2 + $0x84] sm:$0xf]
    %v2148 = vld [vmem:[%s2 + $0x88] sm:$0xf]
    %v2149 = vld [vmem:[%s2 + $0x8c] sm:$0xf]
    %v2150 = vld [vmem:[%s2 + $0x90] sm:$0xf]
    %v2151 = vld [vmem:[%s2 + $0x94] sm:$0xf]
    %v2152 = vld [vmem:[%s2 + $0x98] sm:$0xf]
    %v2153 = vld [vmem:[%s2 + $0x9c] sm:$0xf]
    %v2154 = vld [vmem:[%s2 + $0xa0] sm:$0xf]
    %v2155 = vld [vmem:[%s2 + $0xa4] sm:$0xf]
    %v2156 = vld [vmem:[%s2 + $0xa8] sm:$0xf]
    %v2157 = vld [vmem:[%s2 + $0xac] sm:$0xf]
    %v2158 = vld [vmem:[%s2 + $0xb0] sm:$0xf]
    %v2159 = vld [vmem:[%s2 + $0xb4] sm:$0xf]
    %v2160 = vld [vmem:[%s2 + $0xb8] sm:$0xf]
    %v2161 = vld [vmem:[%s2 + $0xbc] sm:$0xf]
    %v2162 = vld [vmem:[%s2 + $0xc0] sm:$0xf]
    %v2163 = vld [vmem:[%s2 + $0xc4] sm:$0xf]
    %v2164 = vld [vmem:[%s2 + $0xc8] sm:$0xf]
    %v2165 = vld [vmem:[%s2 + $0xcc] sm:$0xf]
    %v2166 = vld [vmem:[%s2 + $0xd0] sm:$0xf]
    %v2167 = vld [vmem:[%s2 + $0xd4] sm:$0xf]
    %v2168 = vld [vmem:[%s2 + $0xd8] sm:$0xf]
    %v2169 = vld [vmem:[%s2 + $0xdc] sm:$0xf]
    %v2170 = vld [vmem:[%s2 + $0xe0] sm:$0xf]
    %v2171 = vld [vmem:[%s2 + $0xe4] sm:$0xf]
    %v2172 = vld [vmem:[%s2 + $0xe8] sm:$0xf]
    %v2173 = vld [vmem:[%s2 + $0xec] sm:$0xf]
    %v2174 = vld [vmem:[%s2 + $0xf0] sm:$0xf]
    %v2175 = vld [vmem:[%s2 + $0xf4] sm:$0xf]
    %v2176 = vld [vmem:[%s2 + $0xf8] sm:$0xf]
    %v2177 = vld [vmem:[%s2 + $0xfc] sm:$0xf]
    %v2210 = vunpack.c.l.b16 %v2146
    %v2211 = vunpack.c.l.b16 %v2147
    %v2212 = vunpack.c.l.b16 %v2148
    %v2213 = vunpack.c.l.b16 %v2149
    %v2214 = vunpack.c.l.b16 %v2150
    %v2215 = vunpack.c.l.b16 %v2151
    %v2216 = vunpack.c.l.b16 %v2152
    %v2217 = vunpack.c.l.b16 %v2153
    %v2218 = vunpack.c.l.b16 %v2154
    %v2219 = vunpack.c.l.b16 %v2155
    %v2220 = vunpack.c.l.b16 %v2156
    %v2221 = vunpack.c.l.b16 %v2157
    %v2222 = vunpack.c.l.b16 %v2158
    %v2223 = vunpack.c.l.b16 %v2159
    %v2224 = vunpack.c.l.b16 %v2160
    %v2225 = vunpack.c.l.b16 %v2161
    %v2226 = vunpack.c.l.b16 %v2162
    %v2227 = vunpack.c.l.b16 %v2163
    %v2228 = vunpack.c.l.b16 %v2164
    %v2229 = vunpack.c.l.b16 %v2165
    %v2230 = vunpack.c.l.b16 %v2166
    %v2231 = vunpack.c.l.b16 %v2167
    %v2232 = vunpack.c.l.b16 %v2168
    %v2233 = vunpack.c.l.b16 %v2169
    %v2234 = vunpack.c.l.b16 %v2170
    %v2235 = vunpack.c.l.b16 %v2171
    %v2236 = vunpack.c.l.b16 %v2172
    %v2237 = vunpack.c.l.b16 %v2173
    %v2238 = vunpack.c.l.b16 %v2174
    %v2239 = vunpack.c.l.b16 %v2175
    %v2240 = vunpack.c.l.b16 %v2176
    %v2241 = vunpack.c.l.b16 %v2177
    %v2242 = vpack.c.b16 %v2211, %v2210
    %v2243 = vpack.c.b16 %v2213, %v2212
    %v2244 = vpack.c.b16 %v2215, %v2214
    %v2245 = vpack.c.b16 %v2217, %v2216
    %v2246 = vpack.c.b16 %v2219, %v2218
    %v2247 = vpack.c.b16 %v2221, %v2220
    %v2248 = vpack.c.b16 %v2223, %v2222
    %v2249 = vpack.c.b16 %v2225, %v2224
    %v2250 = vpack.c.b16 %v2227, %v2226
    %v2251 = vpack.c.b16 %v2229, %v2228
    %v2252 = vpack.c.b16 %v2231, %v2230
    %v2253 = vpack.c.b16 %v2233, %v2232
    %v2254 = vpack.c.b16 %v2235, %v2234
    %v2255 = vpack.c.b16 %v2237, %v2236
    %v2256 = vpack.c.b16 %v2239, %v2238
    %v2257 = vpack.c.b16 %v2241, %v2240
    %2274 = vmatprep.subr.bf16.mxu0 0
    %2275 = vmatpush1.bf16.msra.mxu0 %v2242
    %2276 = vmatprep.subr.bf16.mxu0 0
    %2277 = vmatpush1.bf16.msra.mxu0 %v2243
    %2278 = vmatprep.subr.bf16.mxu0 0
    %2279 = vmatpush1.bf16.msra.mxu0 %v2244
    %2280 = vmatprep.subr.bf16.mxu0 0
    %2281 = vmatpush1.bf16.msra.mxu0 %v2245
    %2282 = vmatprep.subr.bf16.mxu0 0
    %2283 = vmatpush1.bf16.msra.mxu0 %v2246
    %2284 = vmatprep.subr.bf16.mxu0 0
    %2285 = vmatpush1.bf16.msra.mxu0 %v2247
    %2286 = vmatprep.subr.bf16.mxu0 0
    %2287 = vmatpush1.bf16.msra.mxu0 %v2248
    %2288 = vmatprep.subr.bf16.mxu0 0
    %2289 = vmatpush1.bf16.msra.mxu0 %v2249
    %2290 = vmatprep.subr.bf16.mxu0 0
    %2291 = vmatpush1.bf16.msra.mxu0 %v2250
    %2292 = vmatprep.subr.bf16.mxu0 0
    %2293 = vmatpush1.bf16.msra.mxu0 %v2251
    %2294 = vmatprep.subr.bf16.mxu0 0
    %2295 = vmatpush1.bf16.msra.mxu0 %v2252
    %2296 = vmatprep.subr.bf16.mxu0 0
    %2297 = vmatpush1.bf16.msra.mxu0 %v2253
    %2298 = vmatprep.subr.bf16.mxu0 0
    %2299 = vmatpush1.bf16.msra.mxu0 %v2254
    %2300 = vmatprep.subr.bf16.mxu0 0
    %2301 = vmatpush1.bf16.msra.mxu0 %v2255
    %2302 = vmatprep.subr.bf16.mxu0 0
    %2303 = vmatpush1.bf16.msra.mxu0 %v2256
    %2304 = vmatprep.subr.bf16.mxu0 0
    %2305 = vmatpush1.bf16.msra.mxu0 %v2257
    %2306 = vmatprep.mubr.bf16.mxu0 %v1891
    %2307 = vmatmul.mubr.bf16.gmra.mrb[0].mxu0 %v1890
    %v2308 = vpop.f32.mrb[0].mxu0
    %v2309 = vadd.f32 0.0, %v2308
    %v2310 = vpop.f32.mrb[0].mxu0
    %v2311 = vpop.f32.mrb[0].mxu0
    %v2312 = vadd.f32 0.0, %v2311
    %v2313 = vpop.f32.mrb[0].mxu0
    %2314 = vmatprep.mubr.bf16.mxu0 %v1893
    %2315 = vmatmul.mubr.bf16.gmra.mrb[0].mxu0 %v1892
    %v2316 = vpop.f32.mrb[0].mxu0
    %v2317 = vadd.f32 0.0, %v2316
    %v2318 = vpop.f32.mrb[0].mxu0
    %v2319 = vpop.f32.mrb[0].mxu0
    %v2320 = vadd.f32 0.0, %v2319
    %v2321 = vpop.f32.mrb[0].mxu0
    %2322 = vmatprep.mubr.bf16.mxu0 %v1895
    %2323 = vmatmul.mubr.bf16.gmra.mrb[0].mxu0 %v1894
    %v2324 = vpop.f32.mrb[0].mxu0
    %v2325 = vadd.f32 0.0, %v2324
    %v2326 = vpop.f32.mrb[0].mxu0
    %v2327 = vpop.f32.mrb[0].mxu0
    %v2328 = vadd.f32 0.0, %v2327
    %v2329 = vpop.f32.mrb[0].mxu0
    %2330 = vmatprep.mubr.bf16.mxu0 %v1897
    %2331 = vmatmul.mubr.bf16.gmra.mrb[0].mxu0 %v1896
    %v2332 = vpop.f32.mrb[0].mxu0
    %v2333 = vadd.f32 0.0, %v2332
    %v2334 = vpop.f32.mrb[0].mxu0
    %v2335 = vpop.f32.mrb[0].mxu0
    %v2336 = vadd.f32 0.0, %v2335
    %v2337 = vpop.f32.mrb[0].mxu0
    %2338 = vmatprep.mubr.bf16.mxu0 %v1899
    %2339 = vmatmul.mubr.bf16.gmra.mrb[0].mxu0 %v1898
    %v2340 = vpop.f32.mrb[0].mxu0
    %v2341 = vadd.f32 0.0, %v2340
    %v2342 = vpop.f32.mrb[0].mxu0
    %v2343 = vpop.f32.mrb[0].mxu0
    %v2344 = vadd.f32 0.0, %v2343
    %v2345 = vpop.f32.mrb[0].mxu0
    %2346 = vmatprep.mubr.bf16.mxu0 %v1901
    %2347 = vmatmul.mubr.bf16.gmra.mrb[0].mxu0 %v1900
    %v2348 = vpop.f32.mrb[0].mxu0
    %v2349 = vadd.f32 0.0, %v2348
    %v2350 = vpop.f32.mrb[0].mxu0
    %v2351 = vpop.f32.mrb[0].mxu0
    %v2352 = vadd.f32 0.0, %v2351
    %v2353 = vpop.f32.mrb[0].mxu0
    %2354 = vmatprep.mubr.bf16.mxu0 %v1903
    %2355 = vmatmul.mubr.bf16.gmra.mrb[0].mxu0 %v1902
    %v2356 = vpop.f32.mrb[0].mxu0
    %v2357 = vadd.f32 0.0, %v2356
    %v2358 = vpop.f32.mrb[0].mxu0
    %v2359 = vpop.f32.mrb[0].mxu0
    %v2360 = vadd.f32 0.0, %v2359
    %v2361 = vpop.f32.mrb[0].mxu0
    %2362 = vmatprep.mubr.bf16.mxu0 %v1905
    %2363 = vmatmul.mubr.bf16.gmra.mrb[0].mxu0 %v1904
    %v2364 = vpop.f32.mrb[0].mxu0
    %v2365 = vadd.f32 0.0, %v2364
    %v2366 = vpop.f32.mrb[0].mxu0
    %v2367 = vpop.f32.mrb[0].mxu0
    %v2368 = vadd.f32 0.0, %v2367
    %v2369 = vpop.f32.mrb[0].mxu0
    %2370 = vmatprep.mubr.bf16.mxu0 %v1907
    %2371 = vmatmul.mubr.bf16.gmra.mrb[0].mxu0 %v1906
    %v2372 = vpop.f32.mrb[0].mxu0
    %v2373 = vadd.f32 0.0, %v2372
    %v2374 = vpop.f32.mrb[0].mxu0
    %v2375 = vpop.f32.mrb[0].mxu0
    %v2376 = vadd.f32 0.0, %v2375
    %v2377 = vpop.f32.mrb[0].mxu0
    %2378 = vmatprep.mubr.bf16.mxu0 %v1909
    %2379 = vmatmul.mubr.bf16.gmra.mrb[0].mxu0 %v1908
    %v2380 = vpop.f32.mrb[0].mxu0
    %v2381 = vadd.f32 0.0, %v2380
    %v2382 = vpop.f32.mrb[0].mxu0
    %v2383 = vpop.f32.mrb[0].mxu0
    %v2384 = vadd.f32 0.0, %v2383
    %v2385 = vpop.f32.mrb[0].mxu0
    %2386 = vmatprep.mubr.bf16.mxu0 %v1911
    %2387 = vmatmul.mubr.bf16.gmra.mrb[0].mxu0 %v1910
    %v2388 = vpop.f32.mrb[0].mxu0
    %v2389 = vadd.f32 0.0, %v2388
    %v2390 = vpop.f32.mrb[0].mxu0
    %v2391 = vpop.f32.mrb[0].mxu0
    %v2392 = vadd.f32 0.0, %v2391
    %v2393 = vpop.f32.mrb[0].mxu0
    %2394 = vmatprep.mubr.bf16.mxu0 %v1913
    %2395 = vmatmul.mubr.bf16.gmra.mrb[0].mxu0 %v1912
    %v2396 = vpop.f32.mrb[0].mxu0
    %v2397 = vadd.f32 0.0, %v2396
    %v2398 = vpop.f32.mrb[0].mxu0
    %v2399 = vpop.f32.mrb[0].mxu0
    %v2400 = vadd.f32 0.0, %v2399
    %v2401 = vpop.f32.mrb[0].mxu0
    %2402 = vmatprep.mubr.bf16.mxu0 %v1915
    %2403 = vmatmul.mubr.bf16.gmra.mrb[0].mxu0 %v1914
    %v2404 = vpop.f32.mrb[0].mxu0
    %v2405 = vadd.f32 0.0, %v2404
    %v2406 = vpop.f32.mrb[0].mxu0
    %v2407 = vpop.f32.mrb[0].mxu0
    %v2408 = vadd.f32 0.0, %v2407
    %v2409 = vpop.f32.mrb[0].mxu0
    %2410 = vmatprep.mubr.bf16.mxu0 %v1917
    %2411 = vmatmul.mubr.bf16.gmra.mrb[0].mxu0 %v1916
    %v2412 = vpop.f32.mrb[0].mxu0
    %v2413 = vadd.f32 0.0, %v2412
    %v2414 = vpop.f32.mrb[0].mxu0
    %v2415 = vpop.f32.mrb[0].mxu0
    %v2416 = vadd.f32 0.0, %v2415
    %v2417 = vpop.f32.mrb[0].mxu0
    %2418 = vmatprep.mubr.bf16.mxu0 %v1919
    %2419 = vmatmul.mubr.bf16.gmra.mrb[0].mxu0 %v1918
    %v2420 = vpop.f32.mrb[0].mxu0
    %v2421 = vadd.f32 0.0, %v2420
    %v2422 = vpop.f32.mrb[0].mxu0
    %v2423 = vpop.f32.mrb[0].mxu0
    %v2424 = vadd.f32 0.0, %v2423
    %v2425 = vpop.f32.mrb[0].mxu0
    %2426 = vmatprep.mubr.bf16.mxu0 %v1921
    %2427 = vmatmul.mubr.bf16.gmra.mrb[0].mxu0 %v1920
    %v2428 = vpop.f32.mrb[0].mxu0
    %v2429 = vadd.f32 0.0, %v2428
    %v2430 = vpop.f32.mrb[0].mxu0
    %v2431 = vpop.f32.mrb[0].mxu0
    %v2432 = vadd.f32 0.0, %v2431
    %v2433 = vpop.f32.mrb[0].mxu0
    %2434 = vmatprep.mubr.bf16.mxu0 %v1923
    %2435 = vmatmul.mubr.bf16.gmra.mrb[0].mxu0 %v1922
    %v2436 = vpop.f32.mrb[0].mxu0
    %v2437 = vadd.f32 0.0, %v2436
    %v2438 = vpop.f32.mrb[0].mxu0
    %v2439 = vpop.f32.mrb[0].mxu0
    %v2440 = vadd.f32 0.0, %v2439
    %v2441 = vpop.f32.mrb[0].mxu0
    %2442 = vmatprep.mubr.bf16.mxu0 %v1925
    %2443 = vmatmul.mubr.bf16.gmra.mrb[0].mxu0 %v1924
    %v2444 = vpop.f32.mrb[0].mxu0
    %v2445 = vadd.f32 0.0, %v2444
    %v2446 = vpop.f32.mrb[0].mxu0
    %v2447 = vpop.f32.mrb[0].mxu0
    %v2448 = vadd.f32 0.0, %v2447
    %v2449 = vpop.f32.mrb[0].mxu0
    %2450 = vmatprep.mubr.bf16.mxu0 %v1927
    %2451 = vmatmul.mubr.bf16.gmra.mrb[0].mxu0 %v1926
    %v2452 = vpop.f32.mrb[0].mxu0
    %v2453 = vadd.f32 0.0, %v2452
    %v2454 = vpop.f32.mrb[0].mxu0
    %v2455 = vpop.f32.mrb[0].mxu0
    %v2456 = vadd.f32 0.0, %v2455
    %v2457 = vpop.f32.mrb[0].mxu0
    %2458 = vmatprep.mubr.bf16.mxu0 %v1929
    %2459 = vmatmul.mubr.bf16.gmra.mrb[0].mxu0 %v1928
    %v2460 = vpop.f32.mrb[0].mxu0
    %v2461 = vadd.f32 0.0, %v2460
    %v2462 = vpop.f32.mrb[0].mxu0
    %v2463 = vpop.f32.mrb[0].mxu0
    %v2464 = vadd.f32 0.0, %v2463
    %v2465 = vpop.f32.mrb[0].mxu0
    %2466 = vmatprep.mubr.bf16.mxu0 %v1931
    %2467 = vmatmul.mubr.bf16.gmra.mrb[0].mxu0 %v1930
    %v2468 = vpop.f32.mrb[0].mxu0
    %v2469 = vadd.f32 0.0, %v2468
    %v2470 = vpop.f32.mrb[0].mxu0
    %v2471 = vpop.f32.mrb[0].mxu0
    %v2472 = vadd.f32 0.0, %v2471
    %v2473 = vpop.f32.mrb[0].mxu0
    %2474 = vmatprep.mubr.bf16.mxu0 %v1933
    %2475 = vmatmul.mubr.bf16.gmra.mrb[0].mxu0 %v1932
    %v2476 = vpop.f32.mrb[0].mxu0
    %v2477 = vadd.f32 0.0, %v2476
    %v2478 = vpop.f32.mrb[0].mxu0
    %v2479 = vpop.f32.mrb[0].mxu0
    %v2480 = vadd.f32 0.0, %v2479
    %v2481 = vpop.f32.mrb[0].mxu0
    %2482 = vmatprep.mubr.bf16.mxu0 %v1935
    %2483 = vmatmul.mubr.bf16.gmra.mrb[0].mxu0 %v1934
    %v2484 = vpop.f32.mrb[0].mxu0
    %v2485 = vadd.f32 0.0, %v2484
    %v2486 = vpop.f32.mrb[0].mxu0
    %v2487 = vpop.f32.mrb[0].mxu0
    %v2488 = vadd.f32 0.0, %v2487
    %v2489 = vpop.f32.mrb[0].mxu0
    %2490 = vmatprep.mubr.bf16.mxu0 %v1937
    %2491 = vmatmul.mubr.bf16.gmra.mrb[0].mxu0 %v1936
    %v2492 = vpop.f32.mrb[0].mxu0
    %v2493 = vadd.f32 0.0, %v2492
    %v2494 = vpop.f32.mrb[0].mxu0
    %v2495 = vpop.f32.mrb[0].mxu0
    %v2496 = vadd.f32 0.0, %v2495
    %v2497 = vpop.f32.mrb[0].mxu0
    %2498 = vmatprep.mubr.bf16.mxu0 %v1939
    %2499 = vmatmul.mubr.bf16.gmra.mrb[0].mxu0 %v1938
    %v2500 = vpop.f32.mrb[0].mxu0
    %v2501 = vadd.f32 0.0, %v2500
    %v2502 = vpop.f32.mrb[0].mxu0
    %v2503 = vpop.f32.mrb[0].mxu0
    %v2504 = vadd.f32 0.0, %v2503
    %v2505 = vpop.f32.mrb[0].mxu0
    %2506 = vmatprep.mubr.bf16.mxu0 %v1941
    %2507 = vmatmul.mubr.bf16.gmra.mrb[0].mxu0 %v1940
    %v2508 = vpop.f32.mrb[0].mxu0
    %v2509 = vadd.f32 0.0, %v2508
    %v2510 = vpop.f32.mrb[0].mxu0
    %v2511 = vpop.f32.mrb[0].mxu0
    %v2512 = vadd.f32 0.0, %v2511
    %v2513 = vpop.f32.mrb[0].mxu0
    %2514 = vmatprep.mubr.bf16.mxu0 %v1943
    %2515 = vmatmul.mubr.bf16.gmra.mrb[0].mxu0 %v1942
    %v2516 = vpop.f32.mrb[0].mxu0
    %v2517 = vadd.f32 0.0, %v2516
    %v2518 = vpop.f32.mrb[0].mxu0
    %v2519 = vpop.f32.mrb[0].mxu0
    %v2520 = vadd.f32 0.0, %v2519
    %v2521 = vpop.f32.mrb[0].mxu0
    %2522 = vmatprep.mubr.bf16.mxu0 %v1945
    %2523 = vmatmul.mubr.bf16.gmra.mrb[0].mxu0 %v1944
    %v2524 = vpop.f32.mrb[0].mxu0
    %v2525 = vadd.f32 0.0, %v2524
    %v2526 = vpop.f32.mrb[0].mxu0
    %v2527 = vpop.f32.mrb[0].mxu0
    %v2528 = vadd.f32 0.0, %v2527
    %v2529 = vpop.f32.mrb[0].mxu0
    %2530 = vmatprep.mubr.bf16.mxu0 %v1947
    %2531 = vmatmul.mubr.bf16.gmra.mrb[0].mxu0 %v1946
    %v2532 = vpop.f32.mrb[0].mxu0
    %v2533 = vadd.f32 0.0, %v2532
    %v2534 = vpop.f32.mrb[0].mxu0
    %v2535 = vpop.f32.mrb[0].mxu0
    %v2536 = vadd.f32 0.0, %v2535
    %v2537 = vpop.f32.mrb[0].mxu0
    %2538 = vmatprep.mubr.bf16.mxu0 %v1949
    %2539 = vmatmul.mubr.bf16.gmra.mrb[0].mxu0 %v1948
    %v2540 = vpop.f32.mrb[0].mxu0
    %v2541 = vadd.f32 0.0, %v2540
    %v2542 = vpop.f32.mrb[0].mxu0
    %v2543 = vpop.f32.mrb[0].mxu0
    %v2544 = vadd.f32 0.0, %v2543
    %v2545 = vpop.f32.mrb[0].mxu0
    %2546 = vmatprep.mubr.bf16.mxu0 %v1951
    %2547 = vmatmul.mubr.bf16.gmra.mrb[0].mxu0 %v1950
    %v2548 = vpop.f32.mrb[0].mxu0
    %v2549 = vadd.f32 0.0, %v2548
    %v2550 = vpop.f32.mrb[0].mxu0
    %v2551 = vpop.f32.mrb[0].mxu0
    %v2552 = vadd.f32 0.0, %v2551
    %v2553 = vpop.f32.mrb[0].mxu0
    %2554 = vmatprep.mubr.bf16.mxu0 %v1953
    %2555 = vmatmul.mubr.bf16.gmra.mrb[0].mxu0 %v1952
    %v2556 = vpop.f32.mrb[0].mxu0
    %v2557 = vadd.f32 0.0, %v2556
    %v2558 = vpop.f32.mrb[0].mxu0
    %v2559 = vpop.f32.mrb[0].mxu0
    %v2560 = vadd.f32 0.0, %v2559
    %v2561 = vpop.f32.mrb[0].mxu0
    %2562 = vmatprep.mubr.bf16.mxu0 %v1955
    %2563 = vmatmul.mubr.bf16.gmra.mrb[0].mxu0 %v1954
    %v2564 = vpop.f32.mrb[0].mxu0
    %v2565 = vadd.f32 0.0, %v2564
    %v2566 = vpop.f32.mrb[0].mxu0
    %v2567 = vpop.f32.mrb[0].mxu0
    %v2568 = vadd.f32 0.0, %v2567
    %v2569 = vpop.f32.mrb[0].mxu0
    %2570 = vmatprep.mubr.bf16.mxu0 %v1957
    %2571 = vmatmul.mubr.bf16.gmra.mrb[0].mxu0 %v1956
    %v2572 = vpop.f32.mrb[0].mxu0
    %v2573 = vadd.f32 0.0, %v2572
    %v2574 = vpop.f32.mrb[0].mxu0
    %v2575 = vpop.f32.mrb[0].mxu0
    %v2576 = vadd.f32 0.0, %v2575
    %v2577 = vpop.f32.mrb[0].mxu0
    %2578 = vmatprep.mubr.bf16.mxu0 %v1959
    %2579 = vmatmul.mubr.bf16.gmra.mrb[0].mxu0 %v1958
    %v2580 = vpop.f32.mrb[0].mxu0
    %v2581 = vadd.f32 0.0, %v2580
    %v2582 = vpop.f32.mrb[0].mxu0
    %v2583 = vpop.f32.mrb[0].mxu0
    %v2584 = vadd.f32 0.0, %v2583
    %v2585 = vpop.f32.mrb[0].mxu0
    %2586 = vmatprep.mubr.bf16.mxu0 %v1961
    %2587 = vmatmul.mubr.bf16.gmra.mrb[0].mxu0 %v1960
    %v2588 = vpop.f32.mrb[0].mxu0
    %v2589 = vadd.f32 0.0, %v2588
    %v2590 = vpop.f32.mrb[0].mxu0
    %v2591 = vpop.f32.mrb[0].mxu0
    %v2592 = vadd.f32 0.0, %v2591
    %v2593 = vpop.f32.mrb[0].mxu0
    %2594 = vmatprep.mubr.bf16.mxu0 %v1963
    %2595 = vmatmul.mubr.bf16.gmra.mrb[0].mxu0 %v1962
    %v2596 = vpop.f32.mrb[0].mxu0
    %v2597 = vadd.f32 0.0, %v2596
    %v2598 = vpop.f32.mrb[0].mxu0
    %v2599 = vpop.f32.mrb[0].mxu0
    %v2600 = vadd.f32 0.0, %v2599
    %v2601 = vpop.f32.mrb[0].mxu0
    %2602 = vmatprep.mubr.bf16.mxu0 %v1965
    %2603 = vmatmul.mubr.bf16.gmra.mrb[0].mxu0 %v1964
    %v2604 = vpop.f32.mrb[0].mxu0
    %v2605 = vadd.f32 0.0, %v2604
    %v2606 = vpop.f32.mrb[0].mxu0
    %v2607 = vpop.f32.mrb[0].mxu0
    %v2608 = vadd.f32 0.0, %v2607
    %v2609 = vpop.f32.mrb[0].mxu0
    %2610 = vmatprep.mubr.bf16.mxu0 %v1967
    %2611 = vmatmul.mubr.bf16.gmra.mrb[0].mxu0 %v1966
    %v2612 = vpop.f32.mrb[0].mxu0
    %v2613 = vadd.f32 0.0, %v2612
    %v2614 = vpop.f32.mrb[0].mxu0
    %v2615 = vpop.f32.mrb[0].mxu0
    %v2616 = vadd.f32 0.0, %v2615
    %v2617 = vpop.f32.mrb[0].mxu0
    %2618 = vmatprep.mubr.bf16.mxu0 %v1969
    %2619 = vmatmul.mubr.bf16.gmra.mrb[0].mxu0 %v1968
    %v2620 = vpop.f32.mrb[0].mxu0
    %v2621 = vadd.f32 0.0, %v2620
    %v2622 = vpop.f32.mrb[0].mxu0
    %v2623 = vpop.f32.mrb[0].mxu0
    %v2624 = vadd.f32 0.0, %v2623
    %v2625 = vpop.f32.mrb[0].mxu0
    %2626 = vmatprep.mubr.bf16.mxu0 %v1971
    %2627 = vmatmul.mubr.bf16.gmra.mrb[0].mxu0 %v1970
    %v2628 = vpop.f32.mrb[0].mxu0
    %v2629 = vadd.f32 0.0, %v2628
    %v2630 = vpop.f32.mrb[0].mxu0
    %v2631 = vpop.f32.mrb[0].mxu0
    %v2632 = vadd.f32 0.0, %v2631
    %v2633 = vpop.f32.mrb[0].mxu0
    %2634 = vmatprep.mubr.bf16.mxu0 %v1973
    %2635 = vmatmul.mubr.bf16.gmra.mrb[0].mxu0 %v1972
    %v2636 = vpop.f32.mrb[0].mxu0
    %v2637 = vadd.f32 0.0, %v2636
    %v2638 = vpop.f32.mrb[0].mxu0
    %v2639 = vpop.f32.mrb[0].mxu0
    %v2640 = vadd.f32 0.0, %v2639
    %v2641 = vpop.f32.mrb[0].mxu0
    %2642 = vmatprep.mubr.bf16.mxu0 %v1975
    %2643 = vmatmul.mubr.bf16.gmra.mrb[0].mxu0 %v1974
    %v2644 = vpop.f32.mrb[0].mxu0
    %v2645 = vadd.f32 0.0, %v2644
    %v2646 = vpop.f32.mrb[0].mxu0
    %v2647 = vpop.f32.mrb[0].mxu0
    %v2648 = vadd.f32 0.0, %v2647
    %v2649 = vpop.f32.mrb[0].mxu0
    %2650 = vmatprep.mubr.bf16.mxu0 %v1977
    %2651 = vmatmul.mubr.bf16.gmra.mrb[0].mxu0 %v1976
    %v2652 = vpop.f32.mrb[0].mxu0
    %v2653 = vadd.f32 0.0, %v2652
    %v2654 = vpop.f32.mrb[0].mxu0
    %v2655 = vpop.f32.mrb[0].mxu0
    %v2656 = vadd.f32 0.0, %v2655
    %v2657 = vpop.f32.mrb[0].mxu0
    %2658 = vmatprep.mubr.bf16.mxu0 %v1979
    %2659 = vmatmul.mubr.bf16.gmra.mrb[0].mxu0 %v1978
    %v2660 = vpop.f32.mrb[0].mxu0
    %v2661 = vadd.f32 0.0, %v2660
    %v2662 = vpop.f32.mrb[0].mxu0
    %v2663 = vpop.f32.mrb[0].mxu0
    %v2664 = vadd.f32 0.0, %v2663
    %v2665 = vpop.f32.mrb[0].mxu0
    %2666 = vmatprep.mubr.bf16.mxu0 %v1981
    %2667 = vmatmul.mubr.bf16.gmra.mrb[0].mxu0 %v1980
    %v2668 = vpop.f32.mrb[0].mxu0
    %v2669 = vadd.f32 0.0, %v2668
    %v2670 = vpop.f32.mrb[0].mxu0
    %v2671 = vpop.f32.mrb[0].mxu0
    %v2672 = vadd.f32 0.0, %v2671
    %v2673 = vpop.f32.mrb[0].mxu0
    %2674 = vmatprep.mubr.bf16.mxu0 %v1983
    %2675 = vmatmul.mubr.bf16.gmra.mrb[0].mxu0 %v1982
    %v2676 = vpop.f32.mrb[0].mxu0
    %v2677 = vadd.f32 0.0, %v2676
    %v2678 = vpop.f32.mrb[0].mxu0
    %v2679 = vpop.f32.mrb[0].mxu0
    %v2680 = vadd.f32 0.0, %v2679
    %v2681 = vpop.f32.mrb[0].mxu0
    %2682 = vmatprep.mubr.bf16.mxu0 %v1985
    %2683 = vmatmul.mubr.bf16.gmra.mrb[0].mxu0 %v1984
    %v2684 = vpop.f32.mrb[0].mxu0
    %v2685 = vadd.f32 0.0, %v2684
    %v2686 = vpop.f32.mrb[0].mxu0
    %v2687 = vpop.f32.mrb[0].mxu0
    %v2688 = vadd.f32 0.0, %v2687
    %v2689 = vpop.f32.mrb[0].mxu0
    %2690 = vmatprep.mubr.bf16.mxu0 %v1987
    %2691 = vmatmul.mubr.bf16.gmra.mrb[0].mxu0 %v1986
    %v2692 = vpop.f32.mrb[0].mxu0
    %v2693 = vadd.f32 0.0, %v2692
    %v2694 = vpop.f32.mrb[0].mxu0
    %v2695 = vpop.f32.mrb[0].mxu0
    %v2696 = vadd.f32 0.0, %v2695
    %v2697 = vpop.f32.mrb[0].mxu0
    %2698 = vmatprep.mubr.bf16.mxu0 %v1989
    %2699 = vmatmul.mubr.bf16.gmra.mrb[0].mxu0 %v1988
    %v2700 = vpop.f32.mrb[0].mxu0
    %v2701 = vadd.f32 0.0, %v2700
    %v2702 = vpop.f32.mrb[0].mxu0
    %v2703 = vpop.f32.mrb[0].mxu0
    %v2704 = vadd.f32 0.0, %v2703
    %v2705 = vpop.f32.mrb[0].mxu0
    %2706 = vmatprep.mubr.bf16.mxu0 %v1991
    %2707 = vmatmul.mubr.bf16.gmra.mrb[0].mxu0 %v1990
    %v2708 = vpop.f32.mrb[0].mxu0
    %v2709 = vadd.f32 0.0, %v2708
    %v2710 = vpop.f32.mrb[0].mxu0
    %v2711 = vpop.f32.mrb[0].mxu0
    %v2712 = vadd.f32 0.0, %v2711
    %v2713 = vpop.f32.mrb[0].mxu0
    %2714 = vmatprep.mubr.bf16.mxu0 %v1993
    %2715 = vmatmul.mubr.bf16.gmra.mrb[0].mxu0 %v1992
    %v2716 = vpop.f32.mrb[0].mxu0
    %v2717 = vadd.f32 0.0, %v2716
    %v2718 = vpop.f32.mrb[0].mxu0
    %v2719 = vpop.f32.mrb[0].mxu0
    %v2720 = vadd.f32 0.0, %v2719
    %v2721 = vpop.f32.mrb[0].mxu0
    %2722 = vmatprep.mubr.bf16.mxu0 %v1995
    %2723 = vmatmul.mubr.bf16.gmra.mrb[0].mxu0 %v1994
    %v2724 = vpop.f32.mrb[0].mxu0
    %v2725 = vadd.f32 0.0, %v2724
    %v2726 = vpop.f32.mrb[0].mxu0
    %v2727 = vpop.f32.mrb[0].mxu0
    %v2728 = vadd.f32 0.0, %v2727
    %v2729 = vpop.f32.mrb[0].mxu0
    %2730 = vmatprep.mubr.bf16.mxu0 %v1997
    %2731 = vmatmul.mubr.bf16.gmra.mrb[0].mxu0 %v1996
    %v2732 = vpop.f32.mrb[0].mxu0
    %v2733 = vadd.f32 0.0, %v2732
    %v2734 = vpop.f32.mrb[0].mxu0
    %v2735 = vpop.f32.mrb[0].mxu0
    %v2736 = vadd.f32 0.0, %v2735
    %v2737 = vpop.f32.mrb[0].mxu0
    %2738 = vmatprep.mubr.bf16.mxu0 %v1999
    %2739 = vmatmul.mubr.bf16.gmra.mrb[0].mxu0 %v1998
    %v2740 = vpop.f32.mrb[0].mxu0
    %v2741 = vadd.f32 0.0, %v2740
    %v2742 = vpop.f32.mrb[0].mxu0
    %v2743 = vpop.f32.mrb[0].mxu0
    %v2744 = vadd.f32 0.0, %v2743
    %v2745 = vpop.f32.mrb[0].mxu0
    %2746 = vmatprep.mubr.bf16.mxu0 %v2001
    %2747 = vmatmul.mubr.bf16.gmra.mrb[0].mxu0 %v2000
    %v2748 = vpop.f32.mrb[0].mxu0
    %v2749 = vadd.f32 0.0, %v2748
    %v2750 = vpop.f32.mrb[0].mxu0
    %v2751 = vpop.f32.mrb[0].mxu0
    %v2752 = vadd.f32 0.0, %v2751
    %v2753 = vpop.f32.mrb[0].mxu0
    %2754 = vmatprep.mubr.bf16.mxu0 %v2003
    %2755 = vmatmul.mubr.bf16.gmra.mrb[0].mxu0 %v2002
    %v2756 = vpop.f32.mrb[0].mxu0
    %v2757 = vadd.f32 0.0, %v2756
    %v2758 = vpop.f32.mrb[0].mxu0
    %v2759 = vpop.f32.mrb[0].mxu0
    %v2760 = vadd.f32 0.0, %v2759
    %v2761 = vpop.f32.mrb[0].mxu0
    %2762 = vmatprep.mubr.bf16.mxu0 %v2005
    %2763 = vmatmul.mubr.bf16.gmra.mrb[0].mxu0 %v2004
    %v2764 = vpop.f32.mrb[0].mxu0
    %v2765 = vadd.f32 0.0, %v2764
    %v2766 = vpop.f32.mrb[0].mxu0
    %v2767 = vpop.f32.mrb[0].mxu0
    %v2768 = vadd.f32 0.0, %v2767
    %v2769 = vpop.f32.mrb[0].mxu0
    %2770 = vmatprep.mubr.bf16.mxu0 %v2007
    %2771 = vmatmul.mubr.bf16.gmra.mrb[0].mxu0 %v2006
    %v2772 = vpop.f32.mrb[0].mxu0
    %v2773 = vadd.f32 0.0, %v2772
    %v2774 = vpop.f32.mrb[0].mxu0
    %v2775 = vpop.f32.mrb[0].mxu0
    %v2776 = vadd.f32 0.0, %v2775
    %v2777 = vpop.f32.mrb[0].mxu0
    %2778 = vmatprep.mubr.bf16.mxu0 %v2009
    %2779 = vmatmul.mubr.bf16.gmra.mrb[0].mxu0 %v2008
    %v2780 = vpop.f32.mrb[0].mxu0
    %v2781 = vadd.f32 0.0, %v2780
    %v2782 = vpop.f32.mrb[0].mxu0
    %v2783 = vpop.f32.mrb[0].mxu0
    %v2784 = vadd.f32 0.0, %v2783
    %v2785 = vpop.f32.mrb[0].mxu0
    %2786 = vmatprep.mubr.bf16.mxu0 %v2011
    %2787 = vmatmul.mubr.bf16.gmra.mrb[0].mxu0 %v2010
    %v2788 = vpop.f32.mrb[0].mxu0
    %v2789 = vadd.f32 0.0, %v2788
    %v2790 = vpop.f32.mrb[0].mxu0
    %v2791 = vpop.f32.mrb[0].mxu0
    %v2792 = vadd.f32 0.0, %v2791
    %v2793 = vpop.f32.mrb[0].mxu0
    %2794 = vmatprep.mubr.bf16.mxu0 %v2013
    %2795 = vmatmul.mubr.bf16.gmra.mrb[0].mxu0 %v2012
    %v2796 = vpop.f32.mrb[0].mxu0
    %v2797 = vadd.f32 0.0, %v2796
    %v2798 = vpop.f32.mrb[0].mxu0
    %v2799 = vpop.f32.mrb[0].mxu0
    %v2800 = vadd.f32 0.0, %v2799
    %v2801 = vpop.f32.mrb[0].mxu0
    %2802 = vmatprep.mubr.bf16.mxu0 %v2015
    %2803 = vmatmul.mubr.bf16.gmra.mrb[0].mxu0 %v2014
    %v2804 = vpop.f32.mrb[0].mxu0
    %v2805 = vadd.f32 0.0, %v2804
    %v2806 = vpop.f32.mrb[0].mxu0
    %v2807 = vpop.f32.mrb[0].mxu0
    %v2808 = vadd.f32 0.0, %v2807
    %v2809 = vpop.f32.mrb[0].mxu0
    %2810 = vmatprep.mubr.bf16.mxu0 %v2017
    %2811 = vmatmul.mubr.bf16.gmra.mrb[0].mxu0 %v2016
    %v2812 = vpop.f32.mrb[0].mxu0
    %v2813 = vadd.f32 0.0, %v2812
    %v2814 = vpop.f32.mrb[0].mxu0
    %v2815 = vpop.f32.mrb[0].mxu0
    %v2816 = vadd.f32 0.0, %v2815
    %v2817 = vpop.f32.mrb[0].mxu0
    %2818 = vmatprep.mubr.bf16.mxu0 %v2019
    %2819 = vmatmul.mubr.bf16.gmra.mrb[0].mxu0 %v2018
    %v2820 = vpop.f32.mrb[0].mxu0
    %v2821 = vadd.f32 0.0, %v2820
    %v2822 = vpop.f32.mrb[0].mxu0
    %v2823 = vpop.f32.mrb[0].mxu0
    %v2824 = vadd.f32 0.0, %v2823
    %v2825 = vpop.f32.mrb[0].mxu0
    %2826 = vmatprep.mubr.bf16.mxu0 %v2021
    %2827 = vmatmul.mubr.bf16.gmra.mrb[0].mxu0 %v2020
    %v2828 = vpop.f32.mrb[0].mxu0
    %v2829 = vadd.f32 0.0, %v2828
    %v2830 = vpop.f32.mrb[0].mxu0
    %v2831 = vpop.f32.mrb[0].mxu0
    %v2832 = vadd.f32 0.0, %v2831
    %v2833 = vpop.f32.mrb[0].mxu0
    %2834 = vmatprep.mubr.bf16.mxu0 %v2023
    %2835 = vmatmul.mubr.bf16.gmra.mrb[0].mxu0 %v2022
    %v2836 = vpop.f32.mrb[0].mxu0
    %v2837 = vadd.f32 0.0, %v2836
    %v2838 = vpop.f32.mrb[0].mxu0
    %v2839 = vpop.f32.mrb[0].mxu0
    %v2840 = vadd.f32 0.0, %v2839
    %v2841 = vpop.f32.mrb[0].mxu0
    %2842 = vmatprep.mubr.bf16.mxu0 %v2025
    %2843 = vmatmul.mubr.bf16.gmra.mrb[0].mxu0 %v2024
    %v2844 = vpop.f32.mrb[0].mxu0
    %v2845 = vadd.f32 0.0, %v2844
    %v2846 = vpop.f32.mrb[0].mxu0
    %v2847 = vpop.f32.mrb[0].mxu0
    %v2848 = vadd.f32 0.0, %v2847
    %v2849 = vpop.f32.mrb[0].mxu0
    %2850 = vmatprep.mubr.bf16.mxu0 %v2027
    %2851 = vmatmul.mubr.bf16.gmra.mrb[0].mxu0 %v2026
    %v2852 = vpop.f32.mrb[0].mxu0
    %v2853 = vadd.f32 0.0, %v2852
    %v2854 = vpop.f32.mrb[0].mxu0
    %v2855 = vpop.f32.mrb[0].mxu0
    %v2856 = vadd.f32 0.0, %v2855
    %v2857 = vpop.f32.mrb[0].mxu0
    %2858 = vmatprep.mubr.bf16.mxu0 %v2029
    %2859 = vmatmul.mubr.bf16.gmra.mrb[0].mxu0 %v2028
    %v2860 = vpop.f32.mrb[0].mxu0
    %v2861 = vadd.f32 0.0, %v2860
    %v2862 = vpop.f32.mrb[0].mxu0
    %v2863 = vpop.f32.mrb[0].mxu0
    %v2864 = vadd.f32 0.0, %v2863
    %v2865 = vpop.f32.mrb[0].mxu0
    %2866 = vmatprep.mubr.bf16.mxu0 %v2031
    %2867 = vmatmul.mubr.bf16.gmra.mrb[0].mxu0 %v2030
    %v2868 = vpop.f32.mrb[0].mxu0
    %v2869 = vadd.f32 0.0, %v2868
    %v2870 = vpop.f32.mrb[0].mxu0
    %v2871 = vpop.f32.mrb[0].mxu0
    %v2872 = vadd.f32 0.0, %v2871
    %v2873 = vpop.f32.mrb[0].mxu0
    %2874 = vmatprep.mubr.bf16.mxu0 %v2033
    %2875 = vmatmul.mubr.bf16.gmra.mrb[0].mxu0 %v2032
    %v2876 = vpop.f32.mrb[0].mxu0
    %v2877 = vadd.f32 0.0, %v2876
    %v2878 = vpop.f32.mrb[0].mxu0
    %v2879 = vpop.f32.mrb[0].mxu0
    %v2880 = vadd.f32 0.0, %v2879
    %v2881 = vpop.f32.mrb[0].mxu0
    %2882 = vmatprep.mubr.bf16.mxu0 %v2035
    %2883 = vmatmul.mubr.bf16.gmra.mrb[0].mxu0 %v2034
    %v2884 = vpop.f32.mrb[0].mxu0
    %v2885 = vadd.f32 0.0, %v2884
    %v2886 = vpop.f32.mrb[0].mxu0
    %v2887 = vpop.f32.mrb[0].mxu0
    %v2888 = vadd.f32 0.0, %v2887
    %v2889 = vpop.f32.mrb[0].mxu0
    %2890 = vmatprep.mubr.bf16.mxu0 %v2037
    %2891 = vmatmul.mubr.bf16.gmra.mrb[0].mxu0 %v2036
    %v2892 = vpop.f32.mrb[0].mxu0
    %v2893 = vadd.f32 0.0, %v2892
    %v2894 = vpop.f32.mrb[0].mxu0
    %v2895 = vpop.f32.mrb[0].mxu0
    %v2896 = vadd.f32 0.0, %v2895
    %v2897 = vpop.f32.mrb[0].mxu0
    %2898 = vmatprep.mubr.bf16.mxu0 %v2039
    %2899 = vmatmul.mubr.bf16.gmra.mrb[0].mxu0 %v2038
    %v2900 = vpop.f32.mrb[0].mxu0
    %v2901 = vadd.f32 0.0, %v2900
    %v2902 = vpop.f32.mrb[0].mxu0
    %v2903 = vpop.f32.mrb[0].mxu0
    %v2904 = vadd.f32 0.0, %v2903
    %v2905 = vpop.f32.mrb[0].mxu0
    %2906 = vmatprep.mubr.bf16.mxu0 %v2041
    %2907 = vmatmul.mubr.bf16.gmra.mrb[0].mxu0 %v2040
    %v2908 = vpop.f32.mrb[0].mxu0
    %v2909 = vadd.f32 0.0, %v2908
    %v2910 = vpop.f32.mrb[0].mxu0
    %v2911 = vpop.f32.mrb[0].mxu0
    %v2912 = vadd.f32 0.0, %v2911
    %v2913 = vpop.f32.mrb[0].mxu0
    %2914 = vmatprep.mubr.bf16.mxu0 %v2043
    %2915 = vmatmul.mubr.bf16.gmra.mrb[0].mxu0 %v2042
    %v2916 = vpop.f32.mrb[0].mxu0
    %v2917 = vadd.f32 0.0, %v2916
    %v2918 = vpop.f32.mrb[0].mxu0
    %v2919 = vpop.f32.mrb[0].mxu0
    %v2920 = vadd.f32 0.0, %v2919
    %v2921 = vpop.f32.mrb[0].mxu0
    %2922 = vmatprep.mubr.bf16.mxu0 %v2045
    %2923 = vmatmul.mubr.bf16.gmra.mrb[0].mxu0 %v2044
    %v2924 = vpop.f32.mrb[0].mxu0
    %v2925 = vadd.f32 0.0, %v2924
    %v2926 = vpop.f32.mrb[0].mxu0
    %v2927 = vpop.f32.mrb[0].mxu0
    %v2928 = vadd.f32 0.0, %v2927
    %v2929 = vpop.f32.mrb[0].mxu0
    %2930 = vmatprep.mubr.bf16.mxu0 %v2047
    %2931 = vmatmul.mubr.bf16.gmra.mrb[0].mxu0 %v2046
    %v2932 = vpop.f32.mrb[0].mxu0
    %v2933 = vadd.f32 0.0, %v2932
    %v2934 = vpop.f32.mrb[0].mxu0
    %v2935 = vpop.f32.mrb[0].mxu0
    %v2936 = vadd.f32 0.0, %v2935
    %v2937 = vpop.f32.mrb[0].mxu0
    %2938 = vmatprep.mubr.bf16.mxu0 %v2049
    %2939 = vmatmul.mubr.bf16.gmra.mrb[0].mxu0 %v2048
    %v2940 = vpop.f32.mrb[0].mxu0
    %v2941 = vadd.f32 0.0, %v2940
    %v2942 = vpop.f32.mrb[0].mxu0
    %v2943 = vpop.f32.mrb[0].mxu0
    %v2944 = vadd.f32 0.0, %v2943
    %v2945 = vpop.f32.mrb[0].mxu0
    %2946 = vmatprep.mubr.bf16.mxu0 %v2051
    %2947 = vmatmul.mubr.bf16.gmra.mrb[0].mxu0 %v2050
    %v2948 = vpop.f32.mrb[0].mxu0
    %v2949 = vadd.f32 0.0, %v2948
    %v2950 = vpop.f32.mrb[0].mxu0
    %v2951 = vpop.f32.mrb[0].mxu0
    %v2952 = vadd.f32 0.0, %v2951
    %v2953 = vpop.f32.mrb[0].mxu0
    %2954 = vmatprep.mubr.bf16.mxu0 %v2053
    %2955 = vmatmul.mubr.bf16.gmra.mrb[0].mxu0 %v2052
    %v2956 = vpop.f32.mrb[0].mxu0
    %v2957 = vadd.f32 0.0, %v2956
    %v2958 = vpop.f32.mrb[0].mxu0
    %v2959 = vpop.f32.mrb[0].mxu0
    %v2960 = vadd.f32 0.0, %v2959
    %v2961 = vpop.f32.mrb[0].mxu0
    %2962 = vmatprep.mubr.bf16.mxu0 %v2055
    %2963 = vmatmul.mubr.bf16.gmra.mrb[0].mxu0 %v2054
    %v2964 = vpop.f32.mrb[0].mxu0
    %v2965 = vadd.f32 0.0, %v2964
    %v2966 = vpop.f32.mrb[0].mxu0
    %v2967 = vpop.f32.mrb[0].mxu0
    %v2968 = vadd.f32 0.0, %v2967
    %v2969 = vpop.f32.mrb[0].mxu0
    %2970 = vmatprep.mubr.bf16.mxu0 %v2057
    %2971 = vmatmul.mubr.bf16.gmra.mrb[0].mxu0 %v2056
    %v2972 = vpop.f32.mrb[0].mxu0
    %v2973 = vadd.f32 0.0, %v2972
    %v2974 = vpop.f32.mrb[0].mxu0
    %v2975 = vpop.f32.mrb[0].mxu0
    %v2976 = vadd.f32 0.0, %v2975
    %v2977 = vpop.f32.mrb[0].mxu0
    %2978 = vmatprep.mubr.bf16.mxu0 %v2059
    %2979 = vmatmul.mubr.bf16.gmra.mrb[0].mxu0 %v2058
    %v2980 = vpop.f32.mrb[0].mxu0
    %v2981 = vadd.f32 0.0, %v2980
    %v2982 = vpop.f32.mrb[0].mxu0
    %v2983 = vpop.f32.mrb[0].mxu0
    %v2984 = vadd.f32 0.0, %v2983
    %v2985 = vpop.f32.mrb[0].mxu0
    %2986 = vmatprep.mubr.bf16.mxu0 %v2061
    %2987 = vmatmul.mubr.bf16.gmra.mrb[0].mxu0 %v2060
    %v2988 = vpop.f32.mrb[0].mxu0
    %v2989 = vadd.f32 0.0, %v2988
    %v2990 = vpop.f32.mrb[0].mxu0
    %v2991 = vpop.f32.mrb[0].mxu0
    %v2992 = vadd.f32 0.0, %v2991
    %v2993 = vpop.f32.mrb[0].mxu0
    %2994 = vmatprep.mubr.bf16.mxu0 %v2063
    %2995 = vmatmul.mubr.bf16.gmra.mrb[0].mxu0 %v2062
    %v2996 = vpop.f32.mrb[0].mxu0
    %v2997 = vadd.f32 0.0, %v2996
    %v2998 = vpop.f32.mrb[0].mxu0
    %v2999 = vpop.f32.mrb[0].mxu0
    %v3000 = vadd.f32 0.0, %v2999
    %v3001 = vpop.f32.mrb[0].mxu0
    %3002 = vmatprep.mubr.bf16.mxu0 %v2065
    %3003 = vmatmul.mubr.bf16.gmra.mrb[0].mxu0 %v2064
    %v3004 = vpop.f32.mrb[0].mxu0
    %v3005 = vadd.f32 0.0, %v3004
    %v3006 = vpop.f32.mrb[0].mxu0
    %v3007 = vpop.f32.mrb[0].mxu0
    %v3008 = vadd.f32 0.0, %v3007
    %v3009 = vpop.f32.mrb[0].mxu0
    %3010 = vmatprep.mubr.bf16.mxu0 %v2067
    %3011 = vmatmul.mubr.bf16.gmra.mrb[0].mxu0 %v2066
    %v3012 = vpop.f32.mrb[0].mxu0
    %v3013 = vadd.f32 0.0, %v3012
    %v3014 = vpop.f32.mrb[0].mxu0
    %v3015 = vpop.f32.mrb[0].mxu0
    %v3016 = vadd.f32 0.0, %v3015
    %v3017 = vpop.f32.mrb[0].mxu0
    %3018 = vmatprep.mubr.bf16.mxu0 %v2069
    %3019 = vmatmul.mubr.bf16.gmra.mrb[0].mxu0 %v2068
    %v3020 = vpop.f32.mrb[0].mxu0
    %v3021 = vadd.f32 0.0, %v3020
    %v3022 = vpop.f32.mrb[0].mxu0
    %v3023 = vpop.f32.mrb[0].mxu0
    %v3024 = vadd.f32 0.0, %v3023
    %v3025 = vpop.f32.mrb[0].mxu0
    %3026 = vmatprep.mubr.bf16.mxu0 %v2071
    %3027 = vmatmul.mubr.bf16.gmra.mrb[0].mxu0 %v2070
    %v3028 = vpop.f32.mrb[0].mxu0
    %v3029 = vadd.f32 0.0, %v3028
    %v3030 = vpop.f32.mrb[0].mxu0
    %v3031 = vpop.f32.mrb[0].mxu0
    %v3032 = vadd.f32 0.0, %v3031
    %v3033 = vpop.f32.mrb[0].mxu0
    %3034 = vmatprep.mubr.bf16.mxu0 %v2073
    %3035 = vmatmul.mubr.bf16.gmra.mrb[0].mxu0 %v2072
    %v3036 = vpop.f32.mrb[0].mxu0
    %v3037 = vadd.f32 0.0, %v3036
    %v3038 = vpop.f32.mrb[0].mxu0
    %v3039 = vpop.f32.mrb[0].mxu0
    %v3040 = vadd.f32 0.0, %v3039
    %v3041 = vpop.f32.mrb[0].mxu0
    %3042 = vmatprep.mubr.bf16.mxu0 %v2075
    %3043 = vmatmul.mubr.bf16.gmra.mrb[0].mxu0 %v2074
    %v3044 = vpop.f32.mrb[0].mxu0
    %v3045 = vadd.f32 0.0, %v3044
    %v3046 = vpop.f32.mrb[0].mxu0
    %v3047 = vpop.f32.mrb[0].mxu0
    %v3048 = vadd.f32 0.0, %v3047
    %v3049 = vpop.f32.mrb[0].mxu0
    %3050 = vmatprep.mubr.bf16.mxu0 %v2077
    %3051 = vmatmul.mubr.bf16.gmra.mrb[0].mxu0 %v2076
    %v3052 = vpop.f32.mrb[0].mxu0
    %v3053 = vadd.f32 0.0, %v3052
    %v3054 = vpop.f32.mrb[0].mxu0
    %v3055 = vpop.f32.mrb[0].mxu0
    %v3056 = vadd.f32 0.0, %v3055
    %v3057 = vpop.f32.mrb[0].mxu0
    %3058 = vmatprep.mubr.bf16.mxu0 %v2079
    %3059 = vmatmul.mubr.bf16.gmra.mrb[0].mxu0 %v2078
    %v3060 = vpop.f32.mrb[0].mxu0
    %v3061 = vadd.f32 0.0, %v3060
    %v3062 = vpop.f32.mrb[0].mxu0
    %v3063 = vpop.f32.mrb[0].mxu0
    %v3064 = vadd.f32 0.0, %v3063
    %v3065 = vpop.f32.mrb[0].mxu0
    %3066 = vmatprep.mubr.bf16.mxu0 %v2081
    %3067 = vmatmul.mubr.bf16.gmra.mrb[0].mxu0 %v2080
    %v3068 = vpop.f32.mrb[0].mxu0
    %v3069 = vadd.f32 0.0, %v3068
    %v3070 = vpop.f32.mrb[0].mxu0
    %v3071 = vpop.f32.mrb[0].mxu0
    %v3072 = vadd.f32 0.0, %v3071
    %v3073 = vpop.f32.mrb[0].mxu0
    %3074 = vmatprep.mubr.bf16.mxu0 %v2083
    %3075 = vmatmul.mubr.bf16.gmra.mrb[0].mxu0 %v2082
    %v3076 = vpop.f32.mrb[0].mxu0
    %v3077 = vadd.f32 0.0, %v3076
    %v3078 = vpop.f32.mrb[0].mxu0
    %v3079 = vpop.f32.mrb[0].mxu0
    %v3080 = vadd.f32 0.0, %v3079
    %v3081 = vpop.f32.mrb[0].mxu0
    %3082 = vmatprep.mubr.bf16.mxu0 %v2085
    %3083 = vmatmul.mubr.bf16.gmra.mrb[0].mxu0 %v2084
    %v3084 = vpop.f32.mrb[0].mxu0
    %v3085 = vadd.f32 0.0, %v3084
    %v3086 = vpop.f32.mrb[0].mxu0
    %v3087 = vpop.f32.mrb[0].mxu0
    %v3088 = vadd.f32 0.0, %v3087
    %v3089 = vpop.f32.mrb[0].mxu0
    %3090 = vmatprep.mubr.bf16.mxu0 %v2087
    %3091 = vmatmul.mubr.bf16.gmra.mrb[0].mxu0 %v2086
    %v3092 = vpop.f32.mrb[0].mxu0
    %v3093 = vadd.f32 0.0, %v3092
    %v3094 = vpop.f32.mrb[0].mxu0
    %v3095 = vpop.f32.mrb[0].mxu0
    %v3096 = vadd.f32 0.0, %v3095
    %v3097 = vpop.f32.mrb[0].mxu0
    %3098 = vmatprep.mubr.bf16.mxu0 %v2089
    %3099 = vmatmul.mubr.bf16.gmra.mrb[0].mxu0 %v2088
    %v3100 = vpop.f32.mrb[0].mxu0
    %v3101 = vadd.f32 0.0, %v3100
    %v3102 = vpop.f32.mrb[0].mxu0
    %v3103 = vpop.f32.mrb[0].mxu0
    %v3104 = vadd.f32 0.0, %v3103
    %v3105 = vpop.f32.mrb[0].mxu0
    %3106 = vmatprep.mubr.bf16.mxu0 %v2091
    %3107 = vmatmul.mubr.bf16.gmra.mrb[0].mxu0 %v2090
    %v3108 = vpop.f32.mrb[0].mxu0
    %v3109 = vadd.f32 0.0, %v3108
    %v3110 = vpop.f32.mrb[0].mxu0
    %v3111 = vpop.f32.mrb[0].mxu0
    %v3112 = vadd.f32 0.0, %v3111
    %v3113 = vpop.f32.mrb[0].mxu0
    %3114 = vmatprep.mubr.bf16.mxu0 %v2093
    %3115 = vmatmul.mubr.bf16.gmra.mrb[0].mxu0 %v2092
    %v3116 = vpop.f32.mrb[0].mxu0
    %v3117 = vadd.f32 0.0, %v3116
    %v3118 = vpop.f32.mrb[0].mxu0
    %v3119 = vpop.f32.mrb[0].mxu0
    %v3120 = vadd.f32 0.0, %v3119
    %v3121 = vpop.f32.mrb[0].mxu0
    %3122 = vmatprep.mubr.bf16.mxu0 %v2095
    %3123 = vmatmul.mubr.bf16.gmra.mrb[0].mxu0 %v2094
    %v3124 = vpop.f32.mrb[0].mxu0
    %v3125 = vadd.f32 0.0, %v3124
    %v3126 = vpop.f32.mrb[0].mxu0
    %v3127 = vpop.f32.mrb[0].mxu0
    %v3128 = vadd.f32 0.0, %v3127
    %v3129 = vpop.f32.mrb[0].mxu0
    %3130 = vmatprep.mubr.bf16.mxu0 %v2097
    %3131 = vmatmul.mubr.bf16.gmra.mrb[0].mxu0 %v2096
    %v3132 = vpop.f32.mrb[0].mxu0
    %v3133 = vadd.f32 0.0, %v3132
    %v3134 = vpop.f32.mrb[0].mxu0
    %v3135 = vpop.f32.mrb[0].mxu0
    %v3136 = vadd.f32 0.0, %v3135
    %v3137 = vpop.f32.mrb[0].mxu0
    %3138 = vmatprep.mubr.bf16.mxu0 %v2099
    %3139 = vmatmul.mubr.bf16.gmra.mrb[0].mxu0 %v2098
    %v3140 = vpop.f32.mrb[0].mxu0
    %v3141 = vadd.f32 0.0, %v3140
    %v3142 = vpop.f32.mrb[0].mxu0
    %v3143 = vpop.f32.mrb[0].mxu0
    %v3144 = vadd.f32 0.0, %v3143
    %v3145 = vpop.f32.mrb[0].mxu0
    %3146 = vmatprep.mubr.bf16.mxu0 %v2101
    %3147 = vmatmul.mubr.bf16.gmra.mrb[0].mxu0 %v2100
    %v3148 = vpop.f32.mrb[0].mxu0
    %v3149 = vadd.f32 0.0, %v3148
    %v3150 = vpop.f32.mrb[0].mxu0
    %v3151 = vpop.f32.mrb[0].mxu0
    %v3152 = vadd.f32 0.0, %v3151
    %v3153 = vpop.f32.mrb[0].mxu0
    %3154 = vmatprep.mubr.bf16.mxu0 %v2103
    %3155 = vmatmul.mubr.bf16.gmra.mrb[0].mxu0 %v2102
    %v3156 = vpop.f32.mrb[0].mxu0
    %v3157 = vadd.f32 0.0, %v3156
    %v3158 = vpop.f32.mrb[0].mxu0
    %v3159 = vpop.f32.mrb[0].mxu0
    %v3160 = vadd.f32 0.0, %v3159
    %v3161 = vpop.f32.mrb[0].mxu0
    %3162 = vmatprep.mubr.bf16.mxu0 %v2105
    %3163 = vmatmul.mubr.bf16.gmra.mrb[0].mxu0 %v2104
    %v3164 = vpop.f32.mrb[0].mxu0
    %v3165 = vadd.f32 0.0, %v3164
    %v3166 = vpop.f32.mrb[0].mxu0
    %v3167 = vpop.f32.mrb[0].mxu0
    %v3168 = vadd.f32 0.0, %v3167
    %v3169 = vpop.f32.mrb[0].mxu0
    %3170 = vmatprep.mubr.bf16.mxu0 %v2107
    %3171 = vmatmul.mubr.bf16.gmra.mrb[0].mxu0 %v2106
    %v3172 = vpop.f32.mrb[0].mxu0
    %v3173 = vadd.f32 0.0, %v3172
    %v3174 = vpop.f32.mrb[0].mxu0
    %v3175 = vpop.f32.mrb[0].mxu0
    %v3176 = vadd.f32 0.0, %v3175
    %v3177 = vpop.f32.mrb[0].mxu0
    %3178 = vmatprep.mubr.bf16.mxu0 %v2109
    %3179 = vmatmul.mubr.bf16.gmra.mrb[0].mxu0 %v2108
    %v3180 = vpop.f32.mrb[0].mxu0
    %v3181 = vadd.f32 0.0, %v3180
    %v3182 = vpop.f32.mrb[0].mxu0
    %v3183 = vpop.f32.mrb[0].mxu0
    %v3184 = vadd.f32 0.0, %v3183
    %v3185 = vpop.f32.mrb[0].mxu0
    %3186 = vmatprep.mubr.bf16.mxu0 %v2111
    %3187 = vmatmul.mubr.bf16.gmra.mrb[0].mxu0 %v2110
    %v3188 = vpop.f32.mrb[0].mxu0
    %v3189 = vadd.f32 0.0, %v3188
    %v3190 = vpop.f32.mrb[0].mxu0
    %v3191 = vpop.f32.mrb[0].mxu0
    %v3192 = vadd.f32 0.0, %v3191
    %v3193 = vpop.f32.mrb[0].mxu0
    %3194 = vmatprep.mubr.bf16.mxu0 %v2113
    %3195 = vmatmul.mubr.bf16.gmra.mrb[0].mxu0 %v2112
    %v3196 = vpop.f32.mrb[0].mxu0
    %v3197 = vadd.f32 0.0, %v3196
    %v3198 = vpop.f32.mrb[0].mxu0
    %v3199 = vpop.f32.mrb[0].mxu0
    %v3200 = vadd.f32 0.0, %v3199
    %v3201 = vpop.f32.mrb[0].mxu0
    %3202 = vmatprep.mubr.bf16.mxu0 %v2115
    %3203 = vmatmul.mubr.bf16.gmra.mrb[0].mxu0 %v2114
    %v3204 = vpop.f32.mrb[0].mxu0
    %v3205 = vadd.f32 0.0, %v3204
    %v3206 = vpop.f32.mrb[0].mxu0
    %v3207 = vpop.f32.mrb[0].mxu0
    %v3208 = vadd.f32 0.0, %v3207
    %v3209 = vpop.f32.mrb[0].mxu0
    %3210 = vmatprep.mubr.bf16.mxu0 %v2117
    %3211 = vmatmul.mubr.bf16.gmra.mrb[0].mxu0 %v2116
    %v3212 = vpop.f32.mrb[0].mxu0
    %v3213 = vadd.f32 0.0, %v3212
    %v3214 = vpop.f32.mrb[0].mxu0
    %v3215 = vpop.f32.mrb[0].mxu0
    %v3216 = vadd.f32 0.0, %v3215
    %v3217 = vpop.f32.mrb[0].mxu0
    %3218 = vmatprep.mubr.bf16.mxu0 %v2119
    %3219 = vmatmul.mubr.bf16.gmra.mrb[0].mxu0 %v2118
    %v3220 = vpop.f32.mrb[0].mxu0
    %v3221 = vadd.f32 0.0, %v3220
    %v3222 = vpop.f32.mrb[0].mxu0
    %v3223 = vpop.f32.mrb[0].mxu0
    %v3224 = vadd.f32 0.0, %v3223
    %v3225 = vpop.f32.mrb[0].mxu0
    %3226 = vmatprep.mubr.bf16.mxu0 %v2121
    %3227 = vmatmul.mubr.bf16.gmra.mrb[0].mxu0 %v2120
    %v3228 = vpop.f32.mrb[0].mxu0
    %v3229 = vadd.f32 0.0, %v3228
    %v3230 = vpop.f32.mrb[0].mxu0
    %v3231 = vpop.f32.mrb[0].mxu0
    %v3232 = vadd.f32 0.0, %v3231
    %v3233 = vpop.f32.mrb[0].mxu0
    %3234 = vmatprep.mubr.bf16.mxu0 %v2123
    %3235 = vmatmul.mubr.bf16.gmra.mrb[0].mxu0 %v2122
    %v3236 = vpop.f32.mrb[0].mxu0
    %v3237 = vadd.f32 0.0, %v3236
    %v3238 = vpop.f32.mrb[0].mxu0
    %v3239 = vpop.f32.mrb[0].mxu0
    %v3240 = vadd.f32 0.0, %v3239
    %v3241 = vpop.f32.mrb[0].mxu0
    %3242 = vmatprep.mubr.bf16.mxu0 %v2125
    %3243 = vmatmul.mubr.bf16.gmra.mrb[0].mxu0 %v2124
    %v3244 = vpop.f32.mrb[0].mxu0
    %v3245 = vadd.f32 0.0, %v3244
    %v3246 = vpop.f32.mrb[0].mxu0
    %v3247 = vpop.f32.mrb[0].mxu0
    %v3248 = vadd.f32 0.0, %v3247
    %v3249 = vpop.f32.mrb[0].mxu0
    %3250 = vmatprep.mubr.bf16.mxu0 %v2127
    %3251 = vmatmul.mubr.bf16.gmra.mrb[0].mxu0 %v2126
    %v3252 = vpop.f32.mrb[0].mxu0
    %v3253 = vadd.f32 0.0, %v3252
    %v3254 = vpop.f32.mrb[0].mxu0
    %v3255 = vpop.f32.mrb[0].mxu0
    %v3256 = vadd.f32 0.0, %v3255
    %v3257 = vpop.f32.mrb[0].mxu0
    %3258 = vmatprep.mubr.bf16.mxu0 %v2129
    %3259 = vmatmul.mubr.bf16.gmra.mrb[0].mxu0 %v2128
    %v3260 = vpop.f32.mrb[0].mxu0
    %v3261 = vadd.f32 0.0, %v3260
    %v3262 = vpop.f32.mrb[0].mxu0
    %v3263 = vpop.f32.mrb[0].mxu0
    %v3264 = vadd.f32 0.0, %v3263
    %v3265 = vpop.f32.mrb[0].mxu0
    %3266 = vmatprep.mubr.bf16.mxu0 %v2131
    %3267 = vmatmul.mubr.bf16.gmra.mrb[0].mxu0 %v2130
    %v3268 = vpop.f32.mrb[0].mxu0
    %v3269 = vadd.f32 0.0, %v3268
    %v3270 = vpop.f32.mrb[0].mxu0
    %v3271 = vpop.f32.mrb[0].mxu0
    %v3272 = vadd.f32 0.0, %v3271
    %v3273 = vpop.f32.mrb[0].mxu0
    %3274 = vmatprep.mubr.bf16.mxu0 %v2133
    %3275 = vmatmul.mubr.bf16.gmra.mrb[0].mxu0 %v2132
    %v3276 = vpop.f32.mrb[0].mxu0
    %v3277 = vadd.f32 0.0, %v3276
    %v3278 = vpop.f32.mrb[0].mxu0
    %v3279 = vpop.f32.mrb[0].mxu0
    %v3280 = vadd.f32 0.0, %v3279
    %v3281 = vpop.f32.mrb[0].mxu0
    %3282 = vmatprep.mubr.bf16.mxu0 %v2135
    %3283 = vmatmul.mubr.bf16.gmra.mrb[0].mxu0 %v2134
    %v3284 = vpop.f32.mrb[0].mxu0
    %v3285 = vadd.f32 0.0, %v3284
    %v3286 = vpop.f32.mrb[0].mxu0
    %v3287 = vpop.f32.mrb[0].mxu0
    %v3288 = vadd.f32 0.0, %v3287
    %v3289 = vpop.f32.mrb[0].mxu0
    %3290 = vmatprep.mubr.bf16.mxu0 %v2137
    %3291 = vmatmul.mubr.bf16.gmra.mrb[0].mxu0 %v2136
    %v3292 = vpop.f32.mrb[0].mxu0
    %v3293 = vadd.f32 0.0, %v3292
    %v3294 = vpop.f32.mrb[0].mxu0
    %v3295 = vpop.f32.mrb[0].mxu0
    %v3296 = vadd.f32 0.0, %v3295
    %v3297 = vpop.f32.mrb[0].mxu0
    %3298 = vmatprep.mubr.bf16.mxu0 %v2139
    %3299 = vmatmul.mubr.bf16.gmra.mrb[0].mxu0 %v2138
    %v3300 = vpop.f32.mrb[0].mxu0
    %v3301 = vadd.f32 0.0, %v3300
    %v3302 = vpop.f32.mrb[0].mxu0
    %v3303 = vpop.f32.mrb[0].mxu0
    %v3304 = vadd.f32 0.0, %v3303
    %v3305 = vpop.f32.mrb[0].mxu0
    %3306 = vmatprep.mubr.bf16.mxu0 %v2141
    %3307 = vmatmul.mubr.bf16.gmra.mrb[0].mxu0 %v2140
    %v3308 = vpop.f32.mrb[0].mxu0
    %v3309 = vadd.f32 0.0, %v3308
    %v3310 = vpop.f32.mrb[0].mxu0
    %v3311 = vpop.f32.mrb[0].mxu0
    %v3312 = vadd.f32 0.0, %v3311
    %v3313 = vpop.f32.mrb[0].mxu0
    %3314 = vmatprep.mubr.bf16.mxu0 %v2143
    %3315 = vmatmul.mubr.bf16.gmra.mrb[0].mxu0 %v2142
    %v3316 = vpop.f32.mrb[0].mxu0
    %v3317 = vadd.f32 0.0, %v3316
    %v3318 = vpop.f32.mrb[0].mxu0
    %v3319 = vpop.f32.mrb[0].mxu0
    %v3320 = vadd.f32 0.0, %v3319
    %v3321 = vpop.f32.mrb[0].mxu0
    %3322 = vmatprep.mubr.bf16.mxu0 %v2145
    %3323 = vmatmul.mubr.bf16.gmra.mrb[0].mxu0 %v2144
    %v3324 = vpop.f32.mrb[0].mxu0
    %v3325 = vadd.f32 0.0, %v3324
    %v3326 = vpop.f32.mrb[0].mxu0
    %v3327 = vpop.f32.mrb[0].mxu0
    %v3328 = vadd.f32 0.0, %v3327
    %v3329 = vpop.f32.mrb[0].mxu0
    %3330 = vdwg.mxu0
    %v3363 = vunpack.c.l.b16 %v1070
    %v3364 = vunpack.c.l.b16 %v1071
    %v3365 = vunpack.c.l.b16 %v1072
    %v3366 = vunpack.c.l.b16 %v1073
    %v3367 = vunpack.c.l.b16 %v1074
    %v3368 = vunpack.c.l.b16 %v1075
    %v3369 = vunpack.c.l.b16 %v1076
    %v3370 = vunpack.c.l.b16 %v1077
    %v3371 = vunpack.c.l.b16 %v1078
    %v3372 = vunpack.c.l.b16 %v1079
    %v3373 = vunpack.c.l.b16 %v1080
    %v3374 = vunpack.c.l.b16 %v1081
    %v3375 = vunpack.c.l.b16 %v1082
    %v3376 = vunpack.c.l.b16 %v1083
    %v3377 = vunpack.c.l.b16 %v1084
    %v3378 = vunpack.c.l.b16 %v1085
    %v3379 = vunpack.c.l.b16 %v1086
    %v3380 = vunpack.c.l.b16 %v1087
    %v3381 = vunpack.c.l.b16 %v1088
    %v3382 = vunpack.c.l.b16 %v1089
    %v3383 = vunpack.c.l.b16 %v1090
    %v3384 = vunpack.c.l.b16 %v1091
    %v3385 = vunpack.c.l.b16 %v1092
    %v3386 = vunpack.c.l.b16 %v1093
    %v3387 = vunpack.c.l.b16 %v1094
    %v3388 = vunpack.c.l.b16 %v1095
    %v3389 = vunpack.c.l.b16 %v1096
    %v3390 = vunpack.c.l.b16 %v1097
    %v3391 = vunpack.c.l.b16 %v1098
    %v3392 = vunpack.c.l.b16 %v1099
    %v3393 = vunpack.c.l.b16 %v1100
    %v3394 = vunpack.c.l.b16 %v1101
    %v3395 = vpack.c.b16 %v3364, %v3363
    %v3396 = vpack.c.b16 %v3366, %v3365
    %v3397 = vpack.c.b16 %v3368, %v3367
    %v3398 = vpack.c.b16 %v3370, %v3369
    %v3399 = vpack.c.b16 %v3372, %v3371
    %v3400 = vpack.c.b16 %v3374, %v3373
    %v3401 = vpack.c.b16 %v3376, %v3375
    %v3402 = vpack.c.b16 %v3378, %v3377
    %v3403 = vpack.c.b16 %v3380, %v3379
    %v3404 = vpack.c.b16 %v3382, %v3381
    %v3405 = vpack.c.b16 %v3384, %v3383
    %v3406 = vpack.c.b16 %v3386, %v3385
    %v3407 = vpack.c.b16 %v3388, %v3387
    %v3408 = vpack.c.b16 %v3390, %v3389
    %v3409 = vpack.c.b16 %v3392, %v3391
    %v3410 = vpack.c.b16 %v3394, %v3393
    %3427 = vmatprep.subr.bf16.mxu0 0
    %3428 = vmatpush1.bf16.msra.mxu0 %v3395
    %3429 = vmatprep.subr.bf16.mxu0 0
    %3430 = vmatpush1.bf16.msra.mxu0 %v3396
    %3431 = vmatprep.subr.bf16.mxu0 0
    %3432 = vmatpush1.bf16.msra.mxu0 %v3397
    %3433 = vmatprep.subr.bf16.mxu0 0
    %3434 = vmatpush1.bf16.msra.mxu0 %v3398
    %3435 = vmatprep.subr.bf16.mxu0 0
    %3436 = vmatpush1.bf16.msra.mxu0 %v3399
    %3437 = vmatprep.subr.bf16.mxu0 0
    %3438 = vmatpush1.bf16.msra.mxu0 %v3400
    %3439 = vmatprep.subr.bf16.mxu0 0
    %3440 = vmatpush1.bf16.msra.mxu0 %v3401
    %3441 = vmatprep.subr.bf16.mxu0 0
    %3442 = vmatpush1.bf16.msra.mxu0 %v3402
    %3443 = vmatprep.subr.bf16.mxu0 0
    %3444 = vmatpush1.bf16.msra.mxu0 %v3403
    %3445 = vmatprep.subr.bf16.mxu0 0
    %3446 = vmatpush1.bf16.msra.mxu0 %v3404
    %3447 = vmatprep.subr.bf16.mxu0 0
    %3448 = vmatpush1.bf16.msra.mxu0 %v3405
    %3449 = vmatprep.subr.bf16.mxu0 0
    %3450 = vmatpush1.bf16.msra.mxu0 %v3406
    %3451 = vmatprep.subr.bf16.mxu0 0
    %3452 = vmatpush1.bf16.msra.mxu0 %v3407
    %3453 = vmatprep.subr.bf16.mxu0 0
    %3454 = vmatpush1.bf16.msra.mxu0 %v3408
    %3455 = vmatprep.subr.bf16.mxu0 0
    %3456 = vmatpush1.bf16.msra.mxu0 %v3409
    %3457 = vmatprep.subr.bf16.mxu0 0
    %3458 = vmatpush1.bf16.msra.mxu0 %v3410
    %3459 = vmatprep.mubr.bf16.mxu0 %v815
    %3460 = vmatmul.mubr.bf16.gmra.mrb[0].mxu0 %v814
    %v3461 = vpop.f32.mrb[0].mxu0
    %v3462 = vadd.f32 %v2309, %v3461
    %v3463 = vpop.f32.mrb[0].mxu0
    %v3464 = vpop.f32.mrb[0].mxu0
    %v3465 = vadd.f32 %v2312, %v3464
    %v3466 = vpop.f32.mrb[0].mxu0
    %3467 = vmatprep.mubr.bf16.mxu0 %v817
    %3468 = vmatmul.mubr.bf16.gmra.mrb[0].mxu0 %v816
    %v3469 = vpop.f32.mrb[0].mxu0
    %v3470 = vadd.f32 %v2317, %v3469
    %v3471 = vpop.f32.mrb[0].mxu0
    %v3472 = vpop.f32.mrb[0].mxu0
    %v3473 = vadd.f32 %v2320, %v3472
    %v3474 = vpop.f32.mrb[0].mxu0
    %3475 = vmatprep.mubr.bf16.mxu0 %v819
    %3476 = vmatmul.mubr.bf16.gmra.mrb[0].mxu0 %v818
    %v3477 = vpop.f32.mrb[0].mxu0
    %v3478 = vadd.f32 %v2325, %v3477
    %v3479 = vpop.f32.mrb[0].mxu0
    %v3480 = vpop.f32.mrb[0].mxu0
    %v3481 = vadd.f32 %v2328, %v3480
    %v3482 = vpop.f32.mrb[0].mxu0
    %3483 = vmatprep.mubr.bf16.mxu0 %v821
    %3484 = vmatmul.mubr.bf16.gmra.mrb[0].mxu0 %v820
    %v3485 = vpop.f32.mrb[0].mxu0
    %v3486 = vadd.f32 %v2333, %v3485
    %v3487 = vpop.f32.mrb[0].mxu0
    %v3488 = vpop.f32.mrb[0].mxu0
    %v3489 = vadd.f32 %v2336, %v3488
    %v3490 = vpop.f32.mrb[0].mxu0
    %3491 = vmatprep.mubr.bf16.mxu0 %v823
    %3492 = vmatmul.mubr.bf16.gmra.mrb[0].mxu0 %v822
    %v3493 = vpop.f32.mrb[0].mxu0
    %v3494 = vadd.f32 %v2341, %v3493
    %v3495 = vpop.f32.mrb[0].mxu0
    %v3496 = vpop.f32.mrb[0].mxu0
    %v3497 = vadd.f32 %v2344, %v3496
    %v3498 = vpop.f32.mrb[0].mxu0
    %3499 = vmatprep.mubr.bf16.mxu0 %v825
    %3500 = vmatmul.mubr.bf16.gmra.mrb[0].mxu0 %v824
    %v3501 = vpop.f32.mrb[0].mxu0
    %v3502 = vadd.f32 %v2349, %v3501
    %v3503 = vpop.f32.mrb[0].mxu0
    %v3504 = vpop.f32.mrb[0].mxu0
    %v3505 = vadd.f32 %v2352, %v3504
    %v3506 = vpop.f32.mrb[0].mxu0
    %3507 = vmatprep.mubr.bf16.mxu0 %v827
    %3508 = vmatmul.mubr.bf16.gmra.mrb[0].mxu0 %v826
    %v3509 = vpop.f32.mrb[0].mxu0
    %v3510 = vadd.f32 %v2357, %v3509
    %v3511 = vpop.f32.mrb[0].mxu0
    %v3512 = vpop.f32.mrb[0].mxu0
    %v3513 = vadd.f32 %v2360, %v3512
    %v3514 = vpop.f32.mrb[0].mxu0
    %3515 = vmatprep.mubr.bf16.mxu0 %v829
    %3516 = vmatmul.mubr.bf16.gmra.mrb[0].mxu0 %v828
    %v3517 = vpop.f32.mrb[0].mxu0
    %v3518 = vadd.f32 %v2365, %v3517
    %v3519 = vpop.f32.mrb[0].mxu0
    %v3520 = vpop.f32.mrb[0].mxu0
    %v3521 = vadd.f32 %v2368, %v3520
    %v3522 = vpop.f32.mrb[0].mxu0
    %3523 = vmatprep.mubr.bf16.mxu0 %v831
    %3524 = vmatmul.mubr.bf16.gmra.mrb[0].mxu0 %v830
    %v3525 = vpop.f32.mrb[0].mxu0
    %v3526 = vadd.f32 %v2373, %v3525
    %v3527 = vpop.f32.mrb[0].mxu0
    %v3528 = vpop.f32.mrb[0].mxu0
    %v3529 = vadd.f32 %v2376, %v3528
    %v3530 = vpop.f32.mrb[0].mxu0
    %3531 = vmatprep.mubr.bf16.mxu0 %v833
    %3532 = vmatmul.mubr.bf16.gmra.mrb[0].mxu0 %v832
    %v3533 = vpop.f32.mrb[0].mxu0
    %v3534 = vadd.f32 %v2381, %v3533
    %v3535 = vpop.f32.mrb[0].mxu0
    %v3536 = vpop.f32.mrb[0].mxu0
    %v3537 = vadd.f32 %v2384, %v3536
    %v3538 = vpop.f32.mrb[0].mxu0
    %3539 = vmatprep.mubr.bf16.mxu0 %v835
    %3540 = vmatmul.mubr.bf16.gmra.mrb[0].mxu0 %v834
    %v3541 = vpop.f32.mrb[0].mxu0
    %v3542 = vadd.f32 %v2389, %v3541
    %v3543 = vpop.f32.mrb[0].mxu0
    %v3544 = vpop.f32.mrb[0].mxu0
    %v3545 = vadd.f32 %v2392, %v3544
    %v3546 = vpop.f32.mrb[0].mxu0
    %3547 = vmatprep.mubr.bf16.mxu0 %v837
    %3548 = vmatmul.mubr.bf16.gmra.mrb[0].mxu0 %v836
    %v3549 = vpop.f32.mrb[0].mxu0
    %v3550 = vadd.f32 %v2397, %v3549
    %v3551 = vpop.f32.mrb[0].mxu0
    %v3552 = vpop.f32.mrb[0].mxu0
    %v3553 = vadd.f32 %v2400, %v3552
    %v3554 = vpop.f32.mrb[0].mxu0
    %3555 = vmatprep.mubr.bf16.mxu0 %v839
    %3556 = vmatmul.mubr.bf16.gmra.mrb[0].mxu0 %v838
    %v3557 = vpop.f32.mrb[0].mxu0
    %v3558 = vadd.f32 %v2405, %v3557
    %v3559 = vpop.f32.mrb[0].mxu0
    %v3560 = vpop.f32.mrb[0].mxu0
    %v3561 = vadd.f32 %v2408, %v3560
    %v3562 = vpop.f32.mrb[0].mxu0
    %3563 = vmatprep.mubr.bf16.mxu0 %v841
    %3564 = vmatmul.mubr.bf16.gmra.mrb[0].mxu0 %v840
    %v3565 = vpop.f32.mrb[0].mxu0
    %v3566 = vadd.f32 %v2413, %v3565
    %v3567 = vpop.f32.mrb[0].mxu0
    %v3568 = vpop.f32.mrb[0].mxu0
    %v3569 = vadd.f32 %v2416, %v3568
    %v3570 = vpop.f32.mrb[0].mxu0
    %3571 = vmatprep.mubr.bf16.mxu0 %v843
    %3572 = vmatmul.mubr.bf16.gmra.mrb[0].mxu0 %v842
    %v3573 = vpop.f32.mrb[0].mxu0
    %v3574 = vadd.f32 %v2421, %v3573
    %v3575 = vpop.f32.mrb[0].mxu0
    %v3576 = vpop.f32.mrb[0].mxu0
    %v3577 = vadd.f32 %v2424, %v3576
    %v3578 = vpop.f32.mrb[0].mxu0
    %3579 = vmatprep.mubr.bf16.mxu0 %v845
    %3580 = vmatmul.mubr.bf16.gmra.mrb[0].mxu0 %v844
    %v3581 = vpop.f32.mrb[0].mxu0
    %v3582 = vadd.f32 %v2429, %v3581
    %v3583 = vpop.f32.mrb[0].mxu0
    %v3584 = vpop.f32.mrb[0].mxu0
    %v3585 = vadd.f32 %v2432, %v3584
    %v3586 = vpop.f32.mrb[0].mxu0
    %3587 = vmatprep.mubr.bf16.mxu0 %v847
    %3588 = vmatmul.mubr.bf16.gmra.mrb[0].mxu0 %v846
    %v3589 = vpop.f32.mrb[0].mxu0
    %v3590 = vadd.f32 %v2437, %v3589
    %v3591 = vpop.f32.mrb[0].mxu0
    %v3592 = vpop.f32.mrb[0].mxu0
    %v3593 = vadd.f32 %v2440, %v3592
    %v3594 = vpop.f32.mrb[0].mxu0
    %3595 = vmatprep.mubr.bf16.mxu0 %v849
    %3596 = vmatmul.mubr.bf16.gmra.mrb[0].mxu0 %v848
    %v3597 = vpop.f32.mrb[0].mxu0
    %v3598 = vadd.f32 %v2445, %v3597
    %v3599 = vpop.f32.mrb[0].mxu0
    %v3600 = vpop.f32.mrb[0].mxu0
    %v3601 = vadd.f32 %v2448, %v3600
    %v3602 = vpop.f32.mrb[0].mxu0
    %3603 = vmatprep.mubr.bf16.mxu0 %v851
    %3604 = vmatmul.mubr.bf16.gmra.mrb[0].mxu0 %v850
    %v3605 = vpop.f32.mrb[0].mxu0
    %v3606 = vadd.f32 %v2453, %v3605
    %v3607 = vpop.f32.mrb[0].mxu0
    %v3608 = vpop.f32.mrb[0].mxu0
    %v3609 = vadd.f32 %v2456, %v3608
    %v3610 = vpop.f32.mrb[0].mxu0
    %3611 = vmatprep.mubr.bf16.mxu0 %v853
    %3612 = vmatmul.mubr.bf16.gmra.mrb[0].mxu0 %v852
    %v3613 = vpop.f32.mrb[0].mxu0
    %v3614 = vadd.f32 %v2461, %v3613
    %v3615 = vpop.f32.mrb[0].mxu0
    %v3616 = vpop.f32.mrb[0].mxu0
    %v3617 = vadd.f32 %v2464, %v3616
    %v3618 = vpop.f32.mrb[0].mxu0
    %3619 = vmatprep.mubr.bf16.mxu0 %v855
    %3620 = vmatmul.mubr.bf16.gmra.mrb[0].mxu0 %v854
    %v3621 = vpop.f32.mrb[0].mxu0
    %v3622 = vadd.f32 %v2469, %v3621
    %v3623 = vpop.f32.mrb[0].mxu0
    %v3624 = vpop.f32.mrb[0].mxu0
    %v3625 = vadd.f32 %v2472, %v3624
    %v3626 = vpop.f32.mrb[0].mxu0
    %3627 = vmatprep.mubr.bf16.mxu0 %v857
    %3628 = vmatmul.mubr.bf16.gmra.mrb[0].mxu0 %v856
    %v3629 = vpop.f32.mrb[0].mxu0
    %v3630 = vadd.f32 %v2477, %v3629
    %v3631 = vpop.f32.mrb[0].mxu0
    %v3632 = vpop.f32.mrb[0].mxu0
    %v3633 = vadd.f32 %v2480, %v3632
    %v3634 = vpop.f32.mrb[0].mxu0
    %3635 = vmatprep.mubr.bf16.mxu0 %v859
    %3636 = vmatmul.mubr.bf16.gmra.mrb[0].mxu0 %v858
    %v3637 = vpop.f32.mrb[0].mxu0
    %v3638 = vadd.f32 %v2485, %v3637
    %v3639 = vpop.f32.mrb[0].mxu0
    %v3640 = vpop.f32.mrb[0].mxu0
    %v3641 = vadd.f32 %v2488, %v3640
    %v3642 = vpop.f32.mrb[0].mxu0
    %3643 = vmatprep.mubr.bf16.mxu0 %v861
    %3644 = vmatmul.mubr.bf16.gmra.mrb[0].mxu0 %v860
    %v3645 = vpop.f32.mrb[0].mxu0
    %v3646 = vadd.f32 %v2493, %v3645
    %v3647 = vpop.f32.mrb[0].mxu0
    %v3648 = vpop.f32.mrb[0].mxu0
    %v3649 = vadd.f32 %v2496, %v3648
    %v3650 = vpop.f32.mrb[0].mxu0
    %3651 = vmatprep.mubr.bf16.mxu0 %v863
    %3652 = vmatmul.mubr.bf16.gmra.mrb[0].mxu0 %v862
    %v3653 = vpop.f32.mrb[0].mxu0
    %v3654 = vadd.f32 %v2501, %v3653
    %v3655 = vpop.f32.mrb[0].mxu0
    %v3656 = vpop.f32.mrb[0].mxu0
    %v3657 = vadd.f32 %v2504, %v3656
    %v3658 = vpop.f32.mrb[0].mxu0
    %3659 = vmatprep.mubr.bf16.mxu0 %v865
    %3660 = vmatmul.mubr.bf16.gmra.mrb[0].mxu0 %v864
    %v3661 = vpop.f32.mrb[0].mxu0
    %v3662 = vadd.f32 %v2509, %v3661
    %v3663 = vpop.f32.mrb[0].mxu0
    %v3664 = vpop.f32.mrb[0].mxu0
    %v3665 = vadd.f32 %v2512, %v3664
    %v3666 = vpop.f32.mrb[0].mxu0
    %3667 = vmatprep.mubr.bf16.mxu0 %v867
    %3668 = vmatmul.mubr.bf16.gmra.mrb[0].mxu0 %v866
    %v3669 = vpop.f32.mrb[0].mxu0
    %v3670 = vadd.f32 %v2517, %v3669
    %v3671 = vpop.f32.mrb[0].mxu0
    %v3672 = vpop.f32.mrb[0].mxu0
    %v3673 = vadd.f32 %v2520, %v3672
    %v3674 = vpop.f32.mrb[0].mxu0
    %3675 = vmatprep.mubr.bf16.mxu0 %v869
    %3676 = vmatmul.mubr.bf16.gmra.mrb[0].mxu0 %v868
    %v3677 = vpop.f32.mrb[0].mxu0
    %v3678 = vadd.f32 %v2525, %v3677
    %v3679 = vpop.f32.mrb[0].mxu0
    %v3680 = vpop.f32.mrb[0].mxu0
    %v3681 = vadd.f32 %v2528, %v3680
    %v3682 = vpop.f32.mrb[0].mxu0
    %3683 = vmatprep.mubr.bf16.mxu0 %v871
    %3684 = vmatmul.mubr.bf16.gmra.mrb[0].mxu0 %v870
    %v3685 = vpop.f32.mrb[0].mxu0
    %v3686 = vadd.f32 %v2533, %v3685
    %v3687 = vpop.f32.mrb[0].mxu0
    %v3688 = vpop.f32.mrb[0].mxu0
    %v3689 = vadd.f32 %v2536, %v3688
    %v3690 = vpop.f32.mrb[0].mxu0
    %3691 = vmatprep.mubr.bf16.mxu0 %v873
    %3692 = vmatmul.mubr.bf16.gmra.mrb[0].mxu0 %v872
    %v3693 = vpop.f32.mrb[0].mxu0
    %v3694 = vadd.f32 %v2541, %v3693
    %v3695 = vpop.f32.mrb[0].mxu0
    %v3696 = vpop.f32.mrb[0].mxu0
    %v3697 = vadd.f32 %v2544, %v3696
    %v3698 = vpop.f32.mrb[0].mxu0
    %3699 = vmatprep.mubr.bf16.mxu0 %v875
    %3700 = vmatmul.mubr.bf16.gmra.mrb[0].mxu0 %v874
    %v3701 = vpop.f32.mrb[0].mxu0
    %v3702 = vadd.f32 %v2549, %v3701
    %v3703 = vpop.f32.mrb[0].mxu0
    %v3704 = vpop.f32.mrb[0].mxu0
    %v3705 = vadd.f32 %v2552, %v3704
    %v3706 = vpop.f32.mrb[0].mxu0
    %3707 = vmatprep.mubr.bf16.mxu0 %v877
    %3708 = vmatmul.mubr.bf16.gmra.mrb[0].mxu0 %v876
    %v3709 = vpop.f32.mrb[0].mxu0
    %v3710 = vadd.f32 %v2557, %v3709
    %v3711 = vpop.f32.mrb[0].mxu0
    %v3712 = vpop.f32.mrb[0].mxu0
    %v3713 = vadd.f32 %v2560, %v3712
    %v3714 = vpop.f32.mrb[0].mxu0
    %3715 = vmatprep.mubr.bf16.mxu0 %v879
    %3716 = vmatmul.mubr.bf16.gmra.mrb[0].mxu0 %v878
    %v3717 = vpop.f32.mrb[0].mxu0
    %v3718 = vadd.f32 %v2565, %v3717
    %v3719 = vpop.f32.mrb[0].mxu0
    %v3720 = vpop.f32.mrb[0].mxu0
    %v3721 = vadd.f32 %v2568, %v3720
    %v3722 = vpop.f32.mrb[0].mxu0
    %3723 = vmatprep.mubr.bf16.mxu0 %v881
    %3724 = vmatmul.mubr.bf16.gmra.mrb[0].mxu0 %v880
    %v3725 = vpop.f32.mrb[0].mxu0
    %v3726 = vadd.f32 %v2573, %v3725
    %v3727 = vpop.f32.mrb[0].mxu0
    %v3728 = vpop.f32.mrb[0].mxu0
    %v3729 = vadd.f32 %v2576, %v3728
    %v3730 = vpop.f32.mrb[0].mxu0
    %3731 = vmatprep.mubr.bf16.mxu0 %v883
    %3732 = vmatmul.mubr.bf16.gmra.mrb[0].mxu0 %v882
    %v3733 = vpop.f32.mrb[0].mxu0
    %v3734 = vadd.f32 %v2581, %v3733
    %v3735 = vpop.f32.mrb[0].mxu0
    %v3736 = vpop.f32.mrb[0].mxu0
    %v3737 = vadd.f32 %v2584, %v3736
    %v3738 = vpop.f32.mrb[0].mxu0
    %3739 = vmatprep.mubr.bf16.mxu0 %v885
    %3740 = vmatmul.mubr.bf16.gmra.mrb[0].mxu0 %v884
    %v3741 = vpop.f32.mrb[0].mxu0
    %v3742 = vadd.f32 %v2589, %v3741
    %v3743 = vpop.f32.mrb[0].mxu0
    %v3744 = vpop.f32.mrb[0].mxu0
    %v3745 = vadd.f32 %v2592, %v3744
    %v3746 = vpop.f32.mrb[0].mxu0
    %3747 = vmatprep.mubr.bf16.mxu0 %v887
    %3748 = vmatmul.mubr.bf16.gmra.mrb[0].mxu0 %v886
    %v3749 = vpop.f32.mrb[0].mxu0
    %v3750 = vadd.f32 %v2597, %v3749
    %v3751 = vpop.f32.mrb[0].mxu0
    %v3752 = vpop.f32.mrb[0].mxu0
    %v3753 = vadd.f32 %v2600, %v3752
    %v3754 = vpop.f32.mrb[0].mxu0
    %3755 = vmatprep.mubr.bf16.mxu0 %v889
    %3756 = vmatmul.mubr.bf16.gmra.mrb[0].mxu0 %v888
    %v3757 = vpop.f32.mrb[0].mxu0
    %v3758 = vadd.f32 %v2605, %v3757
    %v3759 = vpop.f32.mrb[0].mxu0
    %v3760 = vpop.f32.mrb[0].mxu0
    %v3761 = vadd.f32 %v2608, %v3760
    %v3762 = vpop.f32.mrb[0].mxu0
    %3763 = vmatprep.mubr.bf16.mxu0 %v891
    %3764 = vmatmul.mubr.bf16.gmra.mrb[0].mxu0 %v890
    %v3765 = vpop.f32.mrb[0].mxu0
    %v3766 = vadd.f32 %v2613, %v3765
    %v3767 = vpop.f32.mrb[0].mxu0
    %v3768 = vpop.f32.mrb[0].mxu0
    %v3769 = vadd.f32 %v2616, %v3768
    %v3770 = vpop.f32.mrb[0].mxu0
    %3771 = vmatprep.mubr.bf16.mxu0 %v893
    %3772 = vmatmul.mubr.bf16.gmra.mrb[0].mxu0 %v892
    %v3773 = vpop.f32.mrb[0].mxu0
    %v3774 = vadd.f32 %v2621, %v3773
    %v3775 = vpop.f32.mrb[0].mxu0
    %v3776 = vpop.f32.mrb[0].mxu0
    %v3777 = vadd.f32 %v2624, %v3776
    %v3778 = vpop.f32.mrb[0].mxu0
    %3779 = vmatprep.mubr.bf16.mxu0 %v895
    %3780 = vmatmul.mubr.bf16.gmra.mrb[0].mxu0 %v894
    %v3781 = vpop.f32.mrb[0].mxu0
    %v3782 = vadd.f32 %v2629, %v3781
    %v3783 = vpop.f32.mrb[0].mxu0
    %v3784 = vpop.f32.mrb[0].mxu0
    %v3785 = vadd.f32 %v2632, %v3784
    %v3786 = vpop.f32.mrb[0].mxu0
    %3787 = vmatprep.mubr.bf16.mxu0 %v897
    %3788 = vmatmul.mubr.bf16.gmra.mrb[0].mxu0 %v896
    %v3789 = vpop.f32.mrb[0].mxu0
    %v3790 = vadd.f32 %v2637, %v3789
    %v3791 = vpop.f32.mrb[0].mxu0
    %v3792 = vpop.f32.mrb[0].mxu0
    %v3793 = vadd.f32 %v2640, %v3792
    %v3794 = vpop.f32.mrb[0].mxu0
    %3795 = vmatprep.mubr.bf16.mxu0 %v899
    %3796 = vmatmul.mubr.bf16.gmra.mrb[0].mxu0 %v898
    %v3797 = vpop.f32.mrb[0].mxu0
    %v3798 = vadd.f32 %v2645, %v3797
    %v3799 = vpop.f32.mrb[0].mxu0
    %v3800 = vpop.f32.mrb[0].mxu0
    %v3801 = vadd.f32 %v2648, %v3800
    %v3802 = vpop.f32.mrb[0].mxu0
    %3803 = vmatprep.mubr.bf16.mxu0 %v901
    %3804 = vmatmul.mubr.bf16.gmra.mrb[0].mxu0 %v900
    %v3805 = vpop.f32.mrb[0].mxu0
    %v3806 = vadd.f32 %v2653, %v3805
    %v3807 = vpop.f32.mrb[0].mxu0
    %v3808 = vpop.f32.mrb[0].mxu0
    %v3809 = vadd.f32 %v2656, %v3808
    %v3810 = vpop.f32.mrb[0].mxu0
    %3811 = vmatprep.mubr.bf16.mxu0 %v903
    %3812 = vmatmul.mubr.bf16.gmra.mrb[0].mxu0 %v902
    %v3813 = vpop.f32.mrb[0].mxu0
    %v3814 = vadd.f32 %v2661, %v3813
    %v3815 = vpop.f32.mrb[0].mxu0
    %v3816 = vpop.f32.mrb[0].mxu0
    %v3817 = vadd.f32 %v2664, %v3816
    %v3818 = vpop.f32.mrb[0].mxu0
    %3819 = vmatprep.mubr.bf16.mxu0 %v905
    %3820 = vmatmul.mubr.bf16.gmra.mrb[0].mxu0 %v904
    %v3821 = vpop.f32.mrb[0].mxu0
    %v3822 = vadd.f32 %v2669, %v3821
    %v3823 = vpop.f32.mrb[0].mxu0
    %v3824 = vpop.f32.mrb[0].mxu0
    %v3825 = vadd.f32 %v2672, %v3824
    %v3826 = vpop.f32.mrb[0].mxu0
    %3827 = vmatprep.mubr.bf16.mxu0 %v907
    %3828 = vmatmul.mubr.bf16.gmra.mrb[0].mxu0 %v906
    %v3829 = vpop.f32.mrb[0].mxu0
    %v3830 = vadd.f32 %v2677, %v3829
    %v3831 = vpop.f32.mrb[0].mxu0
    %v3832 = vpop.f32.mrb[0].mxu0
    %v3833 = vadd.f32 %v2680, %v3832
    %v3834 = vpop.f32.mrb[0].mxu0
    %3835 = vmatprep.mubr.bf16.mxu0 %v909
    %3836 = vmatmul.mubr.bf16.gmra.mrb[0].mxu0 %v908
    %v3837 = vpop.f32.mrb[0].mxu0
    %v3838 = vadd.f32 %v2685, %v3837
    %v3839 = vpop.f32.mrb[0].mxu0
    %v3840 = vpop.f32.mrb[0].mxu0
    %v3841 = vadd.f32 %v2688, %v3840
    %v3842 = vpop.f32.mrb[0].mxu0
    %3843 = vmatprep.mubr.bf16.mxu0 %v911
    %3844 = vmatmul.mubr.bf16.gmra.mrb[0].mxu0 %v910
    %v3845 = vpop.f32.mrb[0].mxu0
    %v3846 = vadd.f32 %v2693, %v3845
    %v3847 = vpop.f32.mrb[0].mxu0
    %v3848 = vpop.f32.mrb[0].mxu0
    %v3849 = vadd.f32 %v2696, %v3848
    %v3850 = vpop.f32.mrb[0].mxu0
    %3851 = vmatprep.mubr.bf16.mxu0 %v913
    %3852 = vmatmul.mubr.bf16.gmra.mrb[0].mxu0 %v912
    %v3853 = vpop.f32.mrb[0].mxu0
    %v3854 = vadd.f32 %v2701, %v3853
    %v3855 = vpop.f32.mrb[0].mxu0
    %v3856 = vpop.f32.mrb[0].mxu0
    %v3857 = vadd.f32 %v2704, %v3856
    %v3858 = vpop.f32.mrb[0].mxu0
    %3859 = vmatprep.mubr.bf16.mxu0 %v915
    %3860 = vmatmul.mubr.bf16.gmra.mrb[0].mxu0 %v914
    %v3861 = vpop.f32.mrb[0].mxu0
    %v3862 = vadd.f32 %v2709, %v3861
    %v3863 = vpop.f32.mrb[0].mxu0
    %v3864 = vpop.f32.mrb[0].mxu0
    %v3865 = vadd.f32 %v2712, %v3864
    %v3866 = vpop.f32.mrb[0].mxu0
    %3867 = vmatprep.mubr.bf16.mxu0 %v917
    %3868 = vmatmul.mubr.bf16.gmra.mrb[0].mxu0 %v916
    %v3869 = vpop.f32.mrb[0].mxu0
    %v3870 = vadd.f32 %v2717, %v3869
    %v3871 = vpop.f32.mrb[0].mxu0
    %v3872 = vpop.f32.mrb[0].mxu0
    %v3873 = vadd.f32 %v2720, %v3872
    %v3874 = vpop.f32.mrb[0].mxu0
    %3875 = vmatprep.mubr.bf16.mxu0 %v919
    %3876 = vmatmul.mubr.bf16.gmra.mrb[0].mxu0 %v918
    %v3877 = vpop.f32.mrb[0].mxu0
    %v3878 = vadd.f32 %v2725, %v3877
    %v3879 = vpop.f32.mrb[0].mxu0
    %v3880 = vpop.f32.mrb[0].mxu0
    %v3881 = vadd.f32 %v2728, %v3880
    %v3882 = vpop.f32.mrb[0].mxu0
    %3883 = vmatprep.mubr.bf16.mxu0 %v921
    %3884 = vmatmul.mubr.bf16.gmra.mrb[0].mxu0 %v920
    %v3885 = vpop.f32.mrb[0].mxu0
    %v3886 = vadd.f32 %v2733, %v3885
    %v3887 = vpop.f32.mrb[0].mxu0
    %v3888 = vpop.f32.mrb[0].mxu0
    %v3889 = vadd.f32 %v2736, %v3888
    %v3890 = vpop.f32.mrb[0].mxu0
    %3891 = vmatprep.mubr.bf16.mxu0 %v923
    %3892 = vmatmul.mubr.bf16.gmra.mrb[0].mxu0 %v922
    %v3893 = vpop.f32.mrb[0].mxu0
    %v3894 = vadd.f32 %v2741, %v3893
    %v3895 = vpop.f32.mrb[0].mxu0
    %v3896 = vpop.f32.mrb[0].mxu0
    %v3897 = vadd.f32 %v2744, %v3896
    %v3898 = vpop.f32.mrb[0].mxu0
    %3899 = vmatprep.mubr.bf16.mxu0 %v925
    %3900 = vmatmul.mubr.bf16.gmra.mrb[0].mxu0 %v924
    %v3901 = vpop.f32.mrb[0].mxu0
    %v3902 = vadd.f32 %v2749, %v3901
    %v3903 = vpop.f32.mrb[0].mxu0
    %v3904 = vpop.f32.mrb[0].mxu0
    %v3905 = vadd.f32 %v2752, %v3904
    %v3906 = vpop.f32.mrb[0].mxu0
    %3907 = vmatprep.mubr.bf16.mxu0 %v927
    %3908 = vmatmul.mubr.bf16.gmra.mrb[0].mxu0 %v926
    %v3909 = vpop.f32.mrb[0].mxu0
    %v3910 = vadd.f32 %v2757, %v3909
    %v3911 = vpop.f32.mrb[0].mxu0
    %v3912 = vpop.f32.mrb[0].mxu0
    %v3913 = vadd.f32 %v2760, %v3912
    %v3914 = vpop.f32.mrb[0].mxu0
    %3915 = vmatprep.mubr.bf16.mxu0 %v929
    %3916 = vmatmul.mubr.bf16.gmra.mrb[0].mxu0 %v928
    %v3917 = vpop.f32.mrb[0].mxu0
    %v3918 = vadd.f32 %v2765, %v3917
    %v3919 = vpop.f32.mrb[0].mxu0
    %v3920 = vpop.f32.mrb[0].mxu0
    %v3921 = vadd.f32 %v2768, %v3920
    %v3922 = vpop.f32.mrb[0].mxu0
    %3923 = vmatprep.mubr.bf16.mxu0 %v931
    %3924 = vmatmul.mubr.bf16.gmra.mrb[0].mxu0 %v930
    %v3925 = vpop.f32.mrb[0].mxu0
    %v3926 = vadd.f32 %v2773, %v3925
    %v3927 = vpop.f32.mrb[0].mxu0
    %v3928 = vpop.f32.mrb[0].mxu0
    %v3929 = vadd.f32 %v2776, %v3928
    %v3930 = vpop.f32.mrb[0].mxu0
    %3931 = vmatprep.mubr.bf16.mxu0 %v933
    %3932 = vmatmul.mubr.bf16.gmra.mrb[0].mxu0 %v932
    %v3933 = vpop.f32.mrb[0].mxu0
    %v3934 = vadd.f32 %v2781, %v3933
    %v3935 = vpop.f32.mrb[0].mxu0
    %v3936 = vpop.f32.mrb[0].mxu0
    %v3937 = vadd.f32 %v2784, %v3936
    %v3938 = vpop.f32.mrb[0].mxu0
    %3939 = vmatprep.mubr.bf16.mxu0 %v935
    %3940 = vmatmul.mubr.bf16.gmra.mrb[0].mxu0 %v934
    %v3941 = vpop.f32.mrb[0].mxu0
    %v3942 = vadd.f32 %v2789, %v3941
    %v3943 = vpop.f32.mrb[0].mxu0
    %v3944 = vpop.f32.mrb[0].mxu0
    %v3945 = vadd.f32 %v2792, %v3944
    %v3946 = vpop.f32.mrb[0].mxu0
    %3947 = vmatprep.mubr.bf16.mxu0 %v937
    %3948 = vmatmul.mubr.bf16.gmra.mrb[0].mxu0 %v936
    %v3949 = vpop.f32.mrb[0].mxu0
    %v3950 = vadd.f32 %v2797, %v3949
    %v3951 = vpop.f32.mrb[0].mxu0
    %v3952 = vpop.f32.mrb[0].mxu0
    %v3953 = vadd.f32 %v2800, %v3952
    %v3954 = vpop.f32.mrb[0].mxu0
    %3955 = vmatprep.mubr.bf16.mxu0 %v939
    %3956 = vmatmul.mubr.bf16.gmra.mrb[0].mxu0 %v938
    %v3957 = vpop.f32.mrb[0].mxu0
    %v3958 = vadd.f32 %v2805, %v3957
    %v3959 = vpop.f32.mrb[0].mxu0
    %v3960 = vpop.f32.mrb[0].mxu0
    %v3961 = vadd.f32 %v2808, %v3960
    %v3962 = vpop.f32.mrb[0].mxu0
    %3963 = vmatprep.mubr.bf16.mxu0 %v941
    %3964 = vmatmul.mubr.bf16.gmra.mrb[0].mxu0 %v940
    %v3965 = vpop.f32.mrb[0].mxu0
    %v3966 = vadd.f32 %v2813, %v3965
    %v3967 = vpop.f32.mrb[0].mxu0
    %v3968 = vpop.f32.mrb[0].mxu0
    %v3969 = vadd.f32 %v2816, %v3968
    %v3970 = vpop.f32.mrb[0].mxu0
    %3971 = vmatprep.mubr.bf16.mxu0 %v943
    %3972 = vmatmul.mubr.bf16.gmra.mrb[0].mxu0 %v942
    %v3973 = vpop.f32.mrb[0].mxu0
    %v3974 = vadd.f32 %v2821, %v3973
    %v3975 = vpop.f32.mrb[0].mxu0
    %v3976 = vpop.f32.mrb[0].mxu0
    %v3977 = vadd.f32 %v2824, %v3976
    %v3978 = vpop.f32.mrb[0].mxu0
    %3979 = vmatprep.mubr.bf16.mxu0 %v945
    %3980 = vmatmul.mubr.bf16.gmra.mrb[0].mxu0 %v944
    %v3981 = vpop.f32.mrb[0].mxu0
    %v3982 = vadd.f32 %v2829, %v3981
    %v3983 = vpop.f32.mrb[0].mxu0
    %v3984 = vpop.f32.mrb[0].mxu0
    %v3985 = vadd.f32 %v2832, %v3984
    %v3986 = vpop.f32.mrb[0].mxu0
    %3987 = vmatprep.mubr.bf16.mxu0 %v947
    %3988 = vmatmul.mubr.bf16.gmra.mrb[0].mxu0 %v946
    %v3989 = vpop.f32.mrb[0].mxu0
    %v3990 = vadd.f32 %v2837, %v3989
    %v3991 = vpop.f32.mrb[0].mxu0
    %v3992 = vpop.f32.mrb[0].mxu0
    %v3993 = vadd.f32 %v2840, %v3992
    %v3994 = vpop.f32.mrb[0].mxu0
    %3995 = vmatprep.mubr.bf16.mxu0 %v949
    %3996 = vmatmul.mubr.bf16.gmra.mrb[0].mxu0 %v948
    %v3997 = vpop.f32.mrb[0].mxu0
    %v3998 = vadd.f32 %v2845, %v3997
    %v3999 = vpop.f32.mrb[0].mxu0
    %v4000 = vpop.f32.mrb[0].mxu0
    %v4001 = vadd.f32 %v2848, %v4000
    %v4002 = vpop.f32.mrb[0].mxu0
    %4003 = vmatprep.mubr.bf16.mxu0 %v951
    %4004 = vmatmul.mubr.bf16.gmra.mrb[0].mxu0 %v950
    %v4005 = vpop.f32.mrb[0].mxu0
    %v4006 = vadd.f32 %v2853, %v4005
    %v4007 = vpop.f32.mrb[0].mxu0
    %v4008 = vpop.f32.mrb[0].mxu0
    %v4009 = vadd.f32 %v2856, %v4008
    %v4010 = vpop.f32.mrb[0].mxu0
    %4011 = vmatprep.mubr.bf16.mxu0 %v953
    %4012 = vmatmul.mubr.bf16.gmra.mrb[0].mxu0 %v952
    %v4013 = vpop.f32.mrb[0].mxu0
    %v4014 = vadd.f32 %v2861, %v4013
    %v4015 = vpop.f32.mrb[0].mxu0
    %v4016 = vpop.f32.mrb[0].mxu0
    %v4017 = vadd.f32 %v2864, %v4016
    %v4018 = vpop.f32.mrb[0].mxu0
    %4019 = vmatprep.mubr.bf16.mxu0 %v955
    %4020 = vmatmul.mubr.bf16.gmra.mrb[0].mxu0 %v954
    %v4021 = vpop.f32.mrb[0].mxu0
    %v4022 = vadd.f32 %v2869, %v4021
    %v4023 = vpop.f32.mrb[0].mxu0
    %v4024 = vpop.f32.mrb[0].mxu0
    %v4025 = vadd.f32 %v2872, %v4024
    %v4026 = vpop.f32.mrb[0].mxu0
    %4027 = vmatprep.mubr.bf16.mxu0 %v957
    %4028 = vmatmul.mubr.bf16.gmra.mrb[0].mxu0 %v956
    %v4029 = vpop.f32.mrb[0].mxu0
    %v4030 = vadd.f32 %v2877, %v4029
    %v4031 = vpop.f32.mrb[0].mxu0
    %v4032 = vpop.f32.mrb[0].mxu0
    %v4033 = vadd.f32 %v2880, %v4032
    %v4034 = vpop.f32.mrb[0].mxu0
    %4035 = vmatprep.mubr.bf16.mxu0 %v959
    %4036 = vmatmul.mubr.bf16.gmra.mrb[0].mxu0 %v958
    %v4037 = vpop.f32.mrb[0].mxu0
    %v4038 = vadd.f32 %v2885, %v4037
    %v4039 = vpop.f32.mrb[0].mxu0
    %v4040 = vpop.f32.mrb[0].mxu0
    %v4041 = vadd.f32 %v2888, %v4040
    %v4042 = vpop.f32.mrb[0].mxu0
    %4043 = vmatprep.mubr.bf16.mxu0 %v961
    %4044 = vmatmul.mubr.bf16.gmra.mrb[0].mxu0 %v960
    %v4045 = vpop.f32.mrb[0].mxu0
    %v4046 = vadd.f32 %v2893, %v4045
    %v4047 = vpop.f32.mrb[0].mxu0
    %v4048 = vpop.f32.mrb[0].mxu0
    %v4049 = vadd.f32 %v2896, %v4048
    %v4050 = vpop.f32.mrb[0].mxu0
    %4051 = vmatprep.mubr.bf16.mxu0 %v963
    %4052 = vmatmul.mubr.bf16.gmra.mrb[0].mxu0 %v962
    %v4053 = vpop.f32.mrb[0].mxu0
    %v4054 = vadd.f32 %v2901, %v4053
    %v4055 = vpop.f32.mrb[0].mxu0
    %v4056 = vpop.f32.mrb[0].mxu0
    %v4057 = vadd.f32 %v2904, %v4056
    %v4058 = vpop.f32.mrb[0].mxu0
    %4059 = vmatprep.mubr.bf16.mxu0 %v965
    %4060 = vmatmul.mubr.bf16.gmra.mrb[0].mxu0 %v964
    %v4061 = vpop.f32.mrb[0].mxu0
    %v4062 = vadd.f32 %v2909, %v4061
    %v4063 = vpop.f32.mrb[0].mxu0
    %v4064 = vpop.f32.mrb[0].mxu0
    %v4065 = vadd.f32 %v2912, %v4064
    %v4066 = vpop.f32.mrb[0].mxu0
    %4067 = vmatprep.mubr.bf16.mxu0 %v967
    %4068 = vmatmul.mubr.bf16.gmra.mrb[0].mxu0 %v966
    %v4069 = vpop.f32.mrb[0].mxu0
    %v4070 = vadd.f32 %v2917, %v4069
    %v4071 = vpop.f32.mrb[0].mxu0
    %v4072 = vpop.f32.mrb[0].mxu0
    %v4073 = vadd.f32 %v2920, %v4072
    %v4074 = vpop.f32.mrb[0].mxu0
    %4075 = vmatprep.mubr.bf16.mxu0 %v969
    %4076 = vmatmul.mubr.bf16.gmra.mrb[0].mxu0 %v968
    %v4077 = vpop.f32.mrb[0].mxu0
    %v4078 = vadd.f32 %v2925, %v4077
    %v4079 = vpop.f32.mrb[0].mxu0
    %v4080 = vpop.f32.mrb[0].mxu0
    %v4081 = vadd.f32 %v2928, %v4080
    %v4082 = vpop.f32.mrb[0].mxu0
    %4083 = vmatprep.mubr.bf16.mxu0 %v971
    %4084 = vmatmul.mubr.bf16.gmra.mrb[0].mxu0 %v970
    %v4085 = vpop.f32.mrb[0].mxu0
    %v4086 = vadd.f32 %v2933, %v4085
    %v4087 = vpop.f32.mrb[0].mxu0
    %v4088 = vpop.f32.mrb[0].mxu0
    %v4089 = vadd.f32 %v2936, %v4088
    %v4090 = vpop.f32.mrb[0].mxu0
    %4091 = vmatprep.mubr.bf16.mxu0 %v973
    %4092 = vmatmul.mubr.bf16.gmra.mrb[0].mxu0 %v972
    %v4093 = vpop.f32.mrb[0].mxu0
    %v4094 = vadd.f32 %v2941, %v4093
    %v4095 = vpop.f32.mrb[0].mxu0
    %v4096 = vpop.f32.mrb[0].mxu0
    %v4097 = vadd.f32 %v2944, %v4096
    %v4098 = vpop.f32.mrb[0].mxu0
    %4099 = vmatprep.mubr.bf16.mxu0 %v975
    %4100 = vmatmul.mubr.bf16.gmra.mrb[0].mxu0 %v974
    %v4101 = vpop.f32.mrb[0].mxu0
    %v4102 = vadd.f32 %v2949, %v4101
    %v4103 = vpop.f32.mrb[0].mxu0
    %v4104 = vpop.f32.mrb[0].mxu0
    %v4105 = vadd.f32 %v2952, %v4104
    %v4106 = vpop.f32.mrb[0].mxu0
    %4107 = vmatprep.mubr.bf16.mxu0 %v977
    %4108 = vmatmul.mubr.bf16.gmra.mrb[0].mxu0 %v976
    %v4109 = vpop.f32.mrb[0].mxu0
    %v4110 = vadd.f32 %v2957, %v4109
    %v4111 = vpop.f32.mrb[0].mxu0
    %v4112 = vpop.f32.mrb[0].mxu0
    %v4113 = vadd.f32 %v2960, %v4112
    %v4114 = vpop.f32.mrb[0].mxu0
    %4115 = vmatprep.mubr.bf16.mxu0 %v979
    %4116 = vmatmul.mubr.bf16.gmra.mrb[0].mxu0 %v978
    %v4117 = vpop.f32.mrb[0].mxu0
    %v4118 = vadd.f32 %v2965, %v4117
    %v4119 = vpop.f32.mrb[0].mxu0
    %v4120 = vpop.f32.mrb[0].mxu0
    %v4121 = vadd.f32 %v2968, %v4120
    %v4122 = vpop.f32.mrb[0].mxu0
    %4123 = vmatprep.mubr.bf16.mxu0 %v981
    %4124 = vmatmul.mubr.bf16.gmra.mrb[0].mxu0 %v980
    %v4125 = vpop.f32.mrb[0].mxu0
    %v4126 = vadd.f32 %v2973, %v4125
    %v4127 = vpop.f32.mrb[0].mxu0
    %v4128 = vpop.f32.mrb[0].mxu0
    %v4129 = vadd.f32 %v2976, %v4128
    %v4130 = vpop.f32.mrb[0].mxu0
    %4131 = vmatprep.mubr.bf16.mxu0 %v983
    %4132 = vmatmul.mubr.bf16.gmra.mrb[0].mxu0 %v982
    %v4133 = vpop.f32.mrb[0].mxu0
    %v4134 = vadd.f32 %v2981, %v4133
    %v4135 = vpop.f32.mrb[0].mxu0
    %v4136 = vpop.f32.mrb[0].mxu0
    %v4137 = vadd.f32 %v2984, %v4136
    %v4138 = vpop.f32.mrb[0].mxu0
    %4139 = vmatprep.mubr.bf16.mxu0 %v985
    %4140 = vmatmul.mubr.bf16.gmra.mrb[0].mxu0 %v984
    %v4141 = vpop.f32.mrb[0].mxu0
    %v4142 = vadd.f32 %v2989, %v4141
    %v4143 = vpop.f32.mrb[0].mxu0
    %v4144 = vpop.f32.mrb[0].mxu0
    %v4145 = vadd.f32 %v2992, %v4144
    %v4146 = vpop.f32.mrb[0].mxu0
    %4147 = vmatprep.mubr.bf16.mxu0 %v987
    %4148 = vmatmul.mubr.bf16.gmra.mrb[0].mxu0 %v986
    %v4149 = vpop.f32.mrb[0].mxu0
    %v4150 = vadd.f32 %v2997, %v4149
    %v4151 = vpop.f32.mrb[0].mxu0
    %v4152 = vpop.f32.mrb[0].mxu0
    %v4153 = vadd.f32 %v3000, %v4152
    %v4154 = vpop.f32.mrb[0].mxu0
    %4155 = vmatprep.mubr.bf16.mxu0 %v989
    %4156 = vmatmul.mubr.bf16.gmra.mrb[0].mxu0 %v988
    %v4157 = vpop.f32.mrb[0].mxu0
    %v4158 = vadd.f32 %v3005, %v4157
    %v4159 = vpop.f32.mrb[0].mxu0
    %v4160 = vpop.f32.mrb[0].mxu0
    %v4161 = vadd.f32 %v3008, %v4160
    %v4162 = vpop.f32.mrb[0].mxu0
    %4163 = vmatprep.mubr.bf16.mxu0 %v991
    %4164 = vmatmul.mubr.bf16.gmra.mrb[0].mxu0 %v990
    %v4165 = vpop.f32.mrb[0].mxu0
    %v4166 = vadd.f32 %v3013, %v4165
    %v4167 = vpop.f32.mrb[0].mxu0
    %v4168 = vpop.f32.mrb[0].mxu0
    %v4169 = vadd.f32 %v3016, %v4168
    %v4170 = vpop.f32.mrb[0].mxu0
    %4171 = vmatprep.mubr.bf16.mxu0 %v993
    %4172 = vmatmul.mubr.bf16.gmra.mrb[0].mxu0 %v992
    %v4173 = vpop.f32.mrb[0].mxu0
    %v4174 = vadd.f32 %v3021, %v4173
    %v4175 = vpop.f32.mrb[0].mxu0
    %v4176 = vpop.f32.mrb[0].mxu0
    %v4177 = vadd.f32 %v3024, %v4176
    %v4178 = vpop.f32.mrb[0].mxu0
    %4179 = vmatprep.mubr.bf16.mxu0 %v995
    %4180 = vmatmul.mubr.bf16.gmra.mrb[0].mxu0 %v994
    %v4181 = vpop.f32.mrb[0].mxu0
    %v4182 = vadd.f32 %v3029, %v4181
    %v4183 = vpop.f32.mrb[0].mxu0
    %v4184 = vpop.f32.mrb[0].mxu0
    %v4185 = vadd.f32 %v3032, %v4184
    %v4186 = vpop.f32.mrb[0].mxu0
    %4187 = vmatprep.mubr.bf16.mxu0 %v997
    %4188 = vmatmul.mubr.bf16.gmra.mrb[0].mxu0 %v996
    %v4189 = vpop.f32.mrb[0].mxu0
    %v4190 = vadd.f32 %v3037, %v4189
    %v4191 = vpop.f32.mrb[0].mxu0
    %v4192 = vpop.f32.mrb[0].mxu0
    %v4193 = vadd.f32 %v3040, %v4192
    %v4194 = vpop.f32.mrb[0].mxu0
    %4195 = vmatprep.mubr.bf16.mxu0 %v999
    %4196 = vmatmul.mubr.bf16.gmra.mrb[0].mxu0 %v998
    %v4197 = vpop.f32.mrb[0].mxu0
    %v4198 = vadd.f32 %v3045, %v4197
    %v4199 = vpop.f32.mrb[0].mxu0
    %v4200 = vpop.f32.mrb[0].mxu0
    %v4201 = vadd.f32 %v3048, %v4200
    %v4202 = vpop.f32.mrb[0].mxu0
    %4203 = vmatprep.mubr.bf16.mxu0 %v1001
    %4204 = vmatmul.mubr.bf16.gmra.mrb[0].mxu0 %v1000
    %v4205 = vpop.f32.mrb[0].mxu0
    %v4206 = vadd.f32 %v3053, %v4205
    %v4207 = vpop.f32.mrb[0].mxu0
    %v4208 = vpop.f32.mrb[0].mxu0
    %v4209 = vadd.f32 %v3056, %v4208
    %v4210 = vpop.f32.mrb[0].mxu0
    %4211 = vmatprep.mubr.bf16.mxu0 %v1003
    %4212 = vmatmul.mubr.bf16.gmra.mrb[0].mxu0 %v1002
    %v4213 = vpop.f32.mrb[0].mxu0
    %v4214 = vadd.f32 %v3061, %v4213
    %v4215 = vpop.f32.mrb[0].mxu0
    %v4216 = vpop.f32.mrb[0].mxu0
    %v4217 = vadd.f32 %v3064, %v4216
    %v4218 = vpop.f32.mrb[0].mxu0
    %4219 = vmatprep.mubr.bf16.mxu0 %v1005
    %4220 = vmatmul.mubr.bf16.gmra.mrb[0].mxu0 %v1004
    %v4221 = vpop.f32.mrb[0].mxu0
    %v4222 = vadd.f32 %v3069, %v4221
    %v4223 = vpop.f32.mrb[0].mxu0
    %v4224 = vpop.f32.mrb[0].mxu0
    %v4225 = vadd.f32 %v3072, %v4224
    %v4226 = vpop.f32.mrb[0].mxu0
    %4227 = vmatprep.mubr.bf16.mxu0 %v1007
    %4228 = vmatmul.mubr.bf16.gmra.mrb[0].mxu0 %v1006
    %v4229 = vpop.f32.mrb[0].mxu0
    %v4230 = vadd.f32 %v3077, %v4229
    %v4231 = vpop.f32.mrb[0].mxu0
    %v4232 = vpop.f32.mrb[0].mxu0
    %v4233 = vadd.f32 %v3080, %v4232
    %v4234 = vpop.f32.mrb[0].mxu0
    %4235 = vmatprep.mubr.bf16.mxu0 %v1009
    %4236 = vmatmul.mubr.bf16.gmra.mrb[0].mxu0 %v1008
    %v4237 = vpop.f32.mrb[0].mxu0
    %v4238 = vadd.f32 %v3085, %v4237
    %v4239 = vpop.f32.mrb[0].mxu0
    %v4240 = vpop.f32.mrb[0].mxu0
    %v4241 = vadd.f32 %v3088, %v4240
    %v4242 = vpop.f32.mrb[0].mxu0
    %4243 = vmatprep.mubr.bf16.mxu0 %v1011
    %4244 = vmatmul.mubr.bf16.gmra.mrb[0].mxu0 %v1010
    %v4245 = vpop.f32.mrb[0].mxu0
    %v4246 = vadd.f32 %v3093, %v4245
    %v4247 = vpop.f32.mrb[0].mxu0
    %v4248 = vpop.f32.mrb[0].mxu0
    %v4249 = vadd.f32 %v3096, %v4248
    %v4250 = vpop.f32.mrb[0].mxu0
    %4251 = vmatprep.mubr.bf16.mxu0 %v1013
    %4252 = vmatmul.mubr.bf16.gmra.mrb[0].mxu0 %v1012
    %v4253 = vpop.f32.mrb[0].mxu0
    %v4254 = vadd.f32 %v3101, %v4253
    %v4255 = vpop.f32.mrb[0].mxu0
    %v4256 = vpop.f32.mrb[0].mxu0
    %v4257 = vadd.f32 %v3104, %v4256
    %v4258 = vpop.f32.mrb[0].mxu0
    %4259 = vmatprep.mubr.bf16.mxu0 %v1015
    %4260 = vmatmul.mubr.bf16.gmra.mrb[0].mxu0 %v1014
    %v4261 = vpop.f32.mrb[0].mxu0
    %v4262 = vadd.f32 %v3109, %v4261
    %v4263 = vpop.f32.mrb[0].mxu0
    %v4264 = vpop.f32.mrb[0].mxu0
    %v4265 = vadd.f32 %v3112, %v4264
    %v4266 = vpop.f32.mrb[0].mxu0
    %4267 = vmatprep.mubr.bf16.mxu0 %v1017
    %4268 = vmatmul.mubr.bf16.gmra.mrb[0].mxu0 %v1016
    %v4269 = vpop.f32.mrb[0].mxu0
    %v4270 = vadd.f32 %v3117, %v4269
    %v4271 = vpop.f32.mrb[0].mxu0
    %v4272 = vpop.f32.mrb[0].mxu0
    %v4273 = vadd.f32 %v3120, %v4272
    %v4274 = vpop.f32.mrb[0].mxu0
    %4275 = vmatprep.mubr.bf16.mxu0 %v1019
    %4276 = vmatmul.mubr.bf16.gmra.mrb[0].mxu0 %v1018
    %v4277 = vpop.f32.mrb[0].mxu0
    %v4278 = vadd.f32 %v3125, %v4277
    %v4279 = vpop.f32.mrb[0].mxu0
    %v4280 = vpop.f32.mrb[0].mxu0
    %v4281 = vadd.f32 %v3128, %v4280
    %v4282 = vpop.f32.mrb[0].mxu0
    %4283 = vmatprep.mubr.bf16.mxu0 %v1021
    %4284 = vmatmul.mubr.bf16.gmra.mrb[0].mxu0 %v1020
    %v4285 = vpop.f32.mrb[0].mxu0
    %v4286 = vadd.f32 %v3133, %v4285
    %v4287 = vpop.f32.mrb[0].mxu0
    %v4288 = vpop.f32.mrb[0].mxu0
    %v4289 = vadd.f32 %v3136, %v4288
    %v4290 = vpop.f32.mrb[0].mxu0
    %4291 = vmatprep.mubr.bf16.mxu0 %v1023
    %4292 = vmatmul.mubr.bf16.gmra.mrb[0].mxu0 %v1022
    %v4293 = vpop.f32.mrb[0].mxu0
    %v4294 = vadd.f32 %v3141, %v4293
    %v4295 = vpop.f32.mrb[0].mxu0
    %v4296 = vpop.f32.mrb[0].mxu0
    %v4297 = vadd.f32 %v3144, %v4296
    %v4298 = vpop.f32.mrb[0].mxu0
    %4299 = vmatprep.mubr.bf16.mxu0 %v1025
    %4300 = vmatmul.mubr.bf16.gmra.mrb[0].mxu0 %v1024
    %v4301 = vpop.f32.mrb[0].mxu0
    %v4302 = vadd.f32 %v3149, %v4301
    %v4303 = vpop.f32.mrb[0].mxu0
    %v4304 = vpop.f32.mrb[0].mxu0
    %v4305 = vadd.f32 %v3152, %v4304
    %v4306 = vpop.f32.mrb[0].mxu0
    %4307 = vmatprep.mubr.bf16.mxu0 %v1027
    %4308 = vmatmul.mubr.bf16.gmra.mrb[0].mxu0 %v1026
    %v4309 = vpop.f32.mrb[0].mxu0
    %v4310 = vadd.f32 %v3157, %v4309
    %v4311 = vpop.f32.mrb[0].mxu0
    %v4312 = vpop.f32.mrb[0].mxu0
    %v4313 = vadd.f32 %v3160, %v4312
    %v4314 = vpop.f32.mrb[0].mxu0
    %4315 = vmatprep.mubr.bf16.mxu0 %v1029
    %4316 = vmatmul.mubr.bf16.gmra.mrb[0].mxu0 %v1028
    %v4317 = vpop.f32.mrb[0].mxu0
    %v4318 = vadd.f32 %v3165, %v4317
    %v4319 = vpop.f32.mrb[0].mxu0
    %v4320 = vpop.f32.mrb[0].mxu0
    %v4321 = vadd.f32 %v3168, %v4320
    %v4322 = vpop.f32.mrb[0].mxu0
    %4323 = vmatprep.mubr.bf16.mxu0 %v1031
    %4324 = vmatmul.mubr.bf16.gmra.mrb[0].mxu0 %v1030
    %v4325 = vpop.f32.mrb[0].mxu0
    %v4326 = vadd.f32 %v3173, %v4325
    %v4327 = vpop.f32.mrb[0].mxu0
    %v4328 = vpop.f32.mrb[0].mxu0
    %v4329 = vadd.f32 %v3176, %v4328
    %v4330 = vpop.f32.mrb[0].mxu0
    %4331 = vmatprep.mubr.bf16.mxu0 %v1033
    %4332 = vmatmul.mubr.bf16.gmra.mrb[0].mxu0 %v1032
    %v4333 = vpop.f32.mrb[0].mxu0
    %v4334 = vadd.f32 %v3181, %v4333
    %v4335 = vpop.f32.mrb[0].mxu0
    %v4336 = vpop.f32.mrb[0].mxu0
    %v4337 = vadd.f32 %v3184, %v4336
    %v4338 = vpop.f32.mrb[0].mxu0
    %4339 = vmatprep.mubr.bf16.mxu0 %v1035
    %4340 = vmatmul.mubr.bf16.gmra.mrb[0].mxu0 %v1034
    %v4341 = vpop.f32.mrb[0].mxu0
    %v4342 = vadd.f32 %v3189, %v4341
    %v4343 = vpop.f32.mrb[0].mxu0
    %v4344 = vpop.f32.mrb[0].mxu0
    %v4345 = vadd.f32 %v3192, %v4344
    %v4346 = vpop.f32.mrb[0].mxu0
    %4347 = vmatprep.mubr.bf16.mxu0 %v1037
    %4348 = vmatmul.mubr.bf16.gmra.mrb[0].mxu0 %v1036
    %v4349 = vpop.f32.mrb[0].mxu0
    %v4350 = vadd.f32 %v3197, %v4349
    %v4351 = vpop.f32.mrb[0].mxu0
    %v4352 = vpop.f32.mrb[0].mxu0
    %v4353 = vadd.f32 %v3200, %v4352
    %v4354 = vpop.f32.mrb[0].mxu0
    %4355 = vmatprep.mubr.bf16.mxu0 %v1039
    %4356 = vmatmul.mubr.bf16.gmra.mrb[0].mxu0 %v1038
    %v4357 = vpop.f32.mrb[0].mxu0
    %v4358 = vadd.f32 %v3205, %v4357
    %v4359 = vpop.f32.mrb[0].mxu0
    %v4360 = vpop.f32.mrb[0].mxu0
    %v4361 = vadd.f32 %v3208, %v4360
    %v4362 = vpop.f32.mrb[0].mxu0
    %4363 = vmatprep.mubr.bf16.mxu0 %v1041
    %4364 = vmatmul.mubr.bf16.gmra.mrb[0].mxu0 %v1040
    %v4365 = vpop.f32.mrb[0].mxu0
    %v4366 = vadd.f32 %v3213, %v4365
    %v4367 = vpop.f32.mrb[0].mxu0
    %v4368 = vpop.f32.mrb[0].mxu0
    %v4369 = vadd.f32 %v3216, %v4368
    %v4370 = vpop.f32.mrb[0].mxu0
    %4371 = vmatprep.mubr.bf16.mxu0 %v1043
    %4372 = vmatmul.mubr.bf16.gmra.mrb[0].mxu0 %v1042
    %v4373 = vpop.f32.mrb[0].mxu0
    %v4374 = vadd.f32 %v3221, %v4373
    %v4375 = vpop.f32.mrb[0].mxu0
    %v4376 = vpop.f32.mrb[0].mxu0
    %v4377 = vadd.f32 %v3224, %v4376
    %v4378 = vpop.f32.mrb[0].mxu0
    %4379 = vmatprep.mubr.bf16.mxu0 %v1045
    %4380 = vmatmul.mubr.bf16.gmra.mrb[0].mxu0 %v1044
    %v4381 = vpop.f32.mrb[0].mxu0
    %v4382 = vadd.f32 %v3229, %v4381
    %v4383 = vpop.f32.mrb[0].mxu0
    %v4384 = vpop.f32.mrb[0].mxu0
    %v4385 = vadd.f32 %v3232, %v4384
    %v4386 = vpop.f32.mrb[0].mxu0
    %4387 = vmatprep.mubr.bf16.mxu0 %v1047
    %4388 = vmatmul.mubr.bf16.gmra.mrb[0].mxu0 %v1046
    %v4389 = vpop.f32.mrb[0].mxu0
    %v4390 = vadd.f32 %v3237, %v4389
    %v4391 = vpop.f32.mrb[0].mxu0
    %v4392 = vpop.f32.mrb[0].mxu0
    %v4393 = vadd.f32 %v3240, %v4392
    %v4394 = vpop.f32.mrb[0].mxu0
    %4395 = vmatprep.mubr.bf16.mxu0 %v1049
    %4396 = vmatmul.mubr.bf16.gmra.mrb[0].mxu0 %v1048
    %v4397 = vpop.f32.mrb[0].mxu0
    %v4398 = vadd.f32 %v3245, %v4397
    %v4399 = vpop.f32.mrb[0].mxu0
    %v4400 = vpop.f32.mrb[0].mxu0
    %v4401 = vadd.f32 %v3248, %v4400
    %v4402 = vpop.f32.mrb[0].mxu0
    %4403 = vmatprep.mubr.bf16.mxu0 %v1051
    %4404 = vmatmul.mubr.bf16.gmra.mrb[0].mxu0 %v1050
    %v4405 = vpop.f32.mrb[0].mxu0
    %v4406 = vadd.f32 %v3253, %v4405
    %v4407 = vpop.f32.mrb[0].mxu0
    %v4408 = vpop.f32.mrb[0].mxu0
    %v4409 = vadd.f32 %v3256, %v4408
    %v4410 = vpop.f32.mrb[0].mxu0
    %4411 = vmatprep.mubr.bf16.mxu0 %v1053
    %4412 = vmatmul.mubr.bf16.gmra.mrb[0].mxu0 %v1052
    %v4413 = vpop.f32.mrb[0].mxu0
    %v4414 = vadd.f32 %v3261, %v4413
    %v4415 = vpop.f32.mrb[0].mxu0
    %v4416 = vpop.f32.mrb[0].mxu0
    %v4417 = vadd.f32 %v3264, %v4416
    %v4418 = vpop.f32.mrb[0].mxu0
    %4419 = vmatprep.mubr.bf16.mxu0 %v1055
    %4420 = vmatmul.mubr.bf16.gmra.mrb[0].mxu0 %v1054
    %v4421 = vpop.f32.mrb[0].mxu0
    %v4422 = vadd.f32 %v3269, %v4421
    %v4423 = vpop.f32.mrb[0].mxu0
    %v4424 = vpop.f32.mrb[0].mxu0
    %v4425 = vadd.f32 %v3272, %v4424
    %v4426 = vpop.f32.mrb[0].mxu0
    %4427 = vmatprep.mubr.bf16.mxu0 %v1057
    %4428 = vmatmul.mubr.bf16.gmra.mrb[0].mxu0 %v1056
    %v4429 = vpop.f32.mrb[0].mxu0
    %v4430 = vadd.f32 %v3277, %v4429
    %v4431 = vpop.f32.mrb[0].mxu0
    %v4432 = vpop.f32.mrb[0].mxu0
    %v4433 = vadd.f32 %v3280, %v4432
    %v4434 = vpop.f32.mrb[0].mxu0
    %4435 = vmatprep.mubr.bf16.mxu0 %v1059
    %4436 = vmatmul.mubr.bf16.gmra.mrb[0].mxu0 %v1058
    %v4437 = vpop.f32.mrb[0].mxu0
    %v4438 = vadd.f32 %v3285, %v4437
    %v4439 = vpop.f32.mrb[0].mxu0
    %v4440 = vpop.f32.mrb[0].mxu0
    %v4441 = vadd.f32 %v3288, %v4440
    %v4442 = vpop.f32.mrb[0].mxu0
    %4443 = vmatprep.mubr.bf16.mxu0 %v1061
    %4444 = vmatmul.mubr.bf16.gmra.mrb[0].mxu0 %v1060
    %v4445 = vpop.f32.mrb[0].mxu0
    %v4446 = vadd.f32 %v3293, %v4445
    %v4447 = vpop.f32.mrb[0].mxu0
    %v4448 = vpop.f32.mrb[0].mxu0
    %v4449 = vadd.f32 %v3296, %v4448
    %v4450 = vpop.f32.mrb[0].mxu0
    %4451 = vmatprep.mubr.bf16.mxu0 %v1063
    %4452 = vmatmul.mubr.bf16.gmra.mrb[0].mxu0 %v1062
    %v4453 = vpop.f32.mrb[0].mxu0
    %v4454 = vadd.f32 %v3301, %v4453
    %v4455 = vpop.f32.mrb[0].mxu0
    %v4456 = vpop.f32.mrb[0].mxu0
    %v4457 = vadd.f32 %v3304, %v4456
    %v4458 = vpop.f32.mrb[0].mxu0
    %4459 = vmatprep.mubr.bf16.mxu0 %v1065
    %4460 = vmatmul.mubr.bf16.gmra.mrb[0].mxu0 %v1064
    %v4461 = vpop.f32.mrb[0].mxu0
    %v4462 = vadd.f32 %v3309, %v4461
    %v4463 = vpop.f32.mrb[0].mxu0
    %v4464 = vpop.f32.mrb[0].mxu0
    %v4465 = vadd.f32 %v3312, %v4464
    %v4466 = vpop.f32.mrb[0].mxu0
    %4467 = vmatprep.mubr.bf16.mxu0 %v1067
    %4468 = vmatmul.mubr.bf16.gmra.mrb[0].mxu0 %v1066
    %v4469 = vpop.f32.mrb[0].mxu0
    %v4470 = vadd.f32 %v3317, %v4469
    %v4471 = vpop.f32.mrb[0].mxu0
    %v4472 = vpop.f32.mrb[0].mxu0
    %v4473 = vadd.f32 %v3320, %v4472
    %v4474 = vpop.f32.mrb[0].mxu0
    %4475 = vmatprep.mubr.bf16.mxu0 %v1069
    %4476 = vmatmul.mubr.bf16.gmra.mrb[0].mxu0 %v1068
    %v4477 = vpop.f32.mrb[0].mxu0
    %v4478 = vadd.f32 %v3325, %v4477
    %v4479 = vpop.f32.mrb[0].mxu0
    %v4480 = vpop.f32.mrb[0].mxu0
    %v4481 = vadd.f32 %v3328, %v4480
    %v4482 = vpop.f32.mrb[0].mxu0
    %4483 = vdwg.mxu0
    %v4484 = vld [vmem:[%s3] sm:$0x1]
    %v4486 = vlaneseq
    %v4487 = vshrl.u32 %v4486, 7
    %v4488 = vsub.s32 0, %v4487
    %v4489 = vrot.slane %v4484, %v4488
    %v4491 = vadd.f32 %v3462, %v4489
    %v4492 = vadd.f32 %v3465, %v4489
    %v4493 = vadd.f32 %v3470, %v4489
    %v4494 = vadd.f32 %v3473, %v4489
    %v4495 = vadd.f32 %v3478, %v4489
    %v4496 = vadd.f32 %v3481, %v4489
    %v4497 = vadd.f32 %v3486, %v4489
    %v4498 = vadd.f32 %v3489, %v4489
    %v4499 = vadd.f32 %v3494, %v4489
    %v4500 = vadd.f32 %v3497, %v4489
    %v4501 = vadd.f32 %v3502, %v4489
    %v4502 = vadd.f32 %v3505, %v4489
    %v4503 = vadd.f32 %v3510, %v4489
    %v4504 = vadd.f32 %v3513, %v4489
    %v4505 = vadd.f32 %v3518, %v4489
    %v4506 = vadd.f32 %v3521, %v4489
    %v4507 = vadd.f32 %v3526, %v4489
    %v4508 = vadd.f32 %v3529, %v4489
    %v4509 = vadd.f32 %v3534, %v4489
    %v4510 = vadd.f32 %v3537, %v4489
    %v4511 = vadd.f32 %v3542, %v4489
    %v4512 = vadd.f32 %v3545, %v4489
    %v4513 = vadd.f32 %v3550, %v4489
    %v4514 = vadd.f32 %v3553, %v4489
    %v4515 = vadd.f32 %v3558, %v4489
    %v4516 = vadd.f32 %v3561, %v4489
    %v4517 = vadd.f32 %v3566, %v4489
    %v4518 = vadd.f32 %v3569, %v4489
    %v4519 = vadd.f32 %v3574, %v4489
    %v4520 = vadd.f32 %v3577, %v4489
    %v4521 = vadd.f32 %v3582, %v4489
    %v4522 = vadd.f32 %v3585, %v4489
    %v4523 = vadd.f32 %v3590, %v4489
    %v4524 = vadd.f32 %v3593, %v4489
    %v4525 = vadd.f32 %v3598, %v4489
    %v4526 = vadd.f32 %v3601, %v4489
    %v4527 = vadd.f32 %v3606, %v4489
    %v4528 = vadd.f32 %v3609, %v4489
    %v4529 = vadd.f32 %v3614, %v4489
    %v4530 = vadd.f32 %v3617, %v4489
    %v4531 = vadd.f32 %v3622, %v4489
    %v4532 = vadd.f32 %v3625, %v4489
    %v4533 = vadd.f32 %v3630, %v4489
    %v4534 = vadd.f32 %v3633, %v4489
    %v4535 = vadd.f32 %v3638, %v4489
    %v4536 = vadd.f32 %v3641, %v4489
    %v4537 = vadd.f32 %v3646, %v4489
    %v4538 = vadd.f32 %v3649, %v4489
    %v4539 = vadd.f32 %v3654, %v4489
    %v4540 = vadd.f32 %v3657, %v4489
    %v4541 = vadd.f32 %v3662, %v4489
    %v4542 = vadd.f32 %v3665, %v4489
    %v4543 = vadd.f32 %v3670, %v4489
    %v4544 = vadd.f32 %v3673, %v4489
    %v4545 = vadd.f32 %v3678, %v4489
    %v4546 = vadd.f32 %v3681, %v4489
    %v4547 = vadd.f32 %v3686, %v4489
    %v4548 = vadd.f32 %v3689, %v4489
    %v4549 = vadd.f32 %v3694, %v4489
    %v4550 = vadd.f32 %v3697, %v4489
    %v4551 = vadd.f32 %v3702, %v4489
    %v4552 = vadd.f32 %v3705, %v4489
    %v4553 = vadd.f32 %v3710, %v4489
    %v4554 = vadd.f32 %v3713, %v4489
    %v4555 = vadd.f32 %v3718, %v4489
    %v4556 = vadd.f32 %v3721, %v4489
    %v4557 = vadd.f32 %v3726, %v4489
    %v4558 = vadd.f32 %v3729, %v4489
    %v4559 = vadd.f32 %v3734, %v4489
    %v4560 = vadd.f32 %v3737, %v4489
    %v4561 = vadd.f32 %v3742, %v4489
    %v4562 = vadd.f32 %v3745, %v4489
    %v4563 = vadd.f32 %v3750, %v4489
    %v4564 = vadd.f32 %v3753, %v4489
    %v4565 = vadd.f32 %v3758, %v4489
    %v4566 = vadd.f32 %v3761, %v4489
    %v4567 = vadd.f32 %v3766, %v4489
    %v4568 = vadd.f32 %v3769, %v4489
    %v4569 = vadd.f32 %v3774, %v4489
    %v4570 = vadd.f32 %v3777, %v4489
    %v4571 = vadd.f32 %v3782, %v4489
    %v4572 = vadd.f32 %v3785, %v4489
    %v4573 = vadd.f32 %v3790, %v4489
    %v4574 = vadd.f32 %v3793, %v4489
    %v4575 = vadd.f32 %v3798, %v4489
    %v4576 = vadd.f32 %v3801, %v4489
    %v4577 = vadd.f32 %v3806, %v4489
    %v4578 = vadd.f32 %v3809, %v4489
    %v4579 = vadd.f32 %v3814, %v4489
    %v4580 = vadd.f32 %v3817, %v4489
    %v4581 = vadd.f32 %v3822, %v4489
    %v4582 = vadd.f32 %v3825, %v4489
    %v4583 = vadd.f32 %v3830, %v4489
    %v4584 = vadd.f32 %v3833, %v4489
    %v4585 = vadd.f32 %v3838, %v4489
    %v4586 = vadd.f32 %v3841, %v4489
    %v4587 = vadd.f32 %v3846, %v4489
    %v4588 = vadd.f32 %v3849, %v4489
    %v4589 = vadd.f32 %v3854, %v4489
    %v4590 = vadd.f32 %v3857, %v4489
    %v4591 = vadd.f32 %v3862, %v4489
    %v4592 = vadd.f32 %v3865, %v4489
    %v4593 = vadd.f32 %v3870, %v4489
    %v4594 = vadd.f32 %v3873, %v4489
    %v4595 = vadd.f32 %v3878, %v4489
    %v4596 = vadd.f32 %v3881, %v4489
    %v4597 = vadd.f32 %v3886, %v4489
    %v4598 = vadd.f32 %v3889, %v4489
    %v4599 = vadd.f32 %v3894, %v4489
    %v4600 = vadd.f32 %v3897, %v4489
    %v4601 = vadd.f32 %v3902, %v4489
    %v4602 = vadd.f32 %v3905, %v4489
    %v4603 = vadd.f32 %v3910, %v4489
    %v4604 = vadd.f32 %v3913, %v4489
    %v4605 = vadd.f32 %v3918, %v4489
    %v4606 = vadd.f32 %v3921, %v4489
    %v4607 = vadd.f32 %v3926, %v4489
    %v4608 = vadd.f32 %v3929, %v4489
    %v4609 = vadd.f32 %v3934, %v4489
    %v4610 = vadd.f32 %v3937, %v4489
    %v4611 = vadd.f32 %v3942, %v4489
    %v4612 = vadd.f32 %v3945, %v4489
    %v4613 = vadd.f32 %v3950, %v4489
    %v4614 = vadd.f32 %v3953, %v4489
    %v4615 = vadd.f32 %v3958, %v4489
    %v4616 = vadd.f32 %v3961, %v4489
    %v4617 = vadd.f32 %v3966, %v4489
    %v4618 = vadd.f32 %v3969, %v4489
    %v4619 = vadd.f32 %v3974, %v4489
    %v4620 = vadd.f32 %v3977, %v4489
    %v4621 = vadd.f32 %v3982, %v4489
    %v4622 = vadd.f32 %v3985, %v4489
    %v4623 = vadd.f32 %v3990, %v4489
    %v4624 = vadd.f32 %v3993, %v4489
    %v4625 = vadd.f32 %v3998, %v4489
    %v4626 = vadd.f32 %v4001, %v4489
    %v4627 = vadd.f32 %v4006, %v4489
    %v4628 = vadd.f32 %v4009, %v4489
    %v4629 = vadd.f32 %v4014, %v4489
    %v4630 = vadd.f32 %v4017, %v4489
    %v4631 = vadd.f32 %v4022, %v4489
    %v4632 = vadd.f32 %v4025, %v4489
    %v4633 = vadd.f32 %v4030, %v4489
    %v4634 = vadd.f32 %v4033, %v4489
    %v4635 = vadd.f32 %v4038, %v4489
    %v4636 = vadd.f32 %v4041, %v4489
    %v4637 = vadd.f32 %v4046, %v4489
    %v4638 = vadd.f32 %v4049, %v4489
    %v4639 = vadd.f32 %v4054, %v4489
    %v4640 = vadd.f32 %v4057, %v4489
    %v4641 = vadd.f32 %v4062, %v4489
    %v4642 = vadd.f32 %v4065, %v4489
    %v4643 = vadd.f32 %v4070, %v4489
    %v4644 = vadd.f32 %v4073, %v4489
    %v4645 = vadd.f32 %v4078, %v4489
    %v4646 = vadd.f32 %v4081, %v4489
    %v4647 = vadd.f32 %v4086, %v4489
    %v4648 = vadd.f32 %v4089, %v4489
    %v4649 = vadd.f32 %v4094, %v4489
    %v4650 = vadd.f32 %v4097, %v4489
    %v4651 = vadd.f32 %v4102, %v4489
    %v4652 = vadd.f32 %v4105, %v4489
    %v4653 = vadd.f32 %v4110, %v4489
    %v4654 = vadd.f32 %v4113, %v4489
    %v4655 = vadd.f32 %v4118, %v4489
    %v4656 = vadd.f32 %v4121, %v4489
    %v4657 = vadd.f32 %v4126, %v4489
    %v4658 = vadd.f32 %v4129, %v4489
    %v4659 = vadd.f32 %v4134, %v4489
    %v4660 = vadd.f32 %v4137, %v4489
    %v4661 = vadd.f32 %v4142, %v4489
    %v4662 = vadd.f32 %v4145, %v4489
    %v4663 = vadd.f32 %v4150, %v4489
    %v4664 = vadd.f32 %v4153, %v4489
    %v4665 = vadd.f32 %v4158, %v4489
    %v4666 = vadd.f32 %v4161, %v4489
    %v4667 = vadd.f32 %v4166, %v4489
    %v4668 = vadd.f32 %v4169, %v4489
    %v4669 = vadd.f32 %v4174, %v4489
    %v4670 = vadd.f32 %v4177, %v4489
    %v4671 = vadd.f32 %v4182, %v4489
    %v4672 = vadd.f32 %v4185, %v4489
    %v4673 = vadd.f32 %v4190, %v4489
    %v4674 = vadd.f32 %v4193, %v4489
    %v4675 = vadd.f32 %v4198, %v4489
    %v4676 = vadd.f32 %v4201, %v4489
    %v4677 = vadd.f32 %v4206, %v4489
    %v4678 = vadd.f32 %v4209, %v4489
    %v4679 = vadd.f32 %v4214, %v4489
    %v4680 = vadd.f32 %v4217, %v4489
    %v4681 = vadd.f32 %v4222, %v4489
    %v4682 = vadd.f32 %v4225, %v4489
    %v4683 = vadd.f32 %v4230, %v4489
    %v4684 = vadd.f32 %v4233, %v4489
    %v4685 = vadd.f32 %v4238, %v4489
    %v4686 = vadd.f32 %v4241, %v4489
    %v4687 = vadd.f32 %v4246, %v4489
    %v4688 = vadd.f32 %v4249, %v4489
    %v4689 = vadd.f32 %v4254, %v4489
    %v4690 = vadd.f32 %v4257, %v4489
    %v4691 = vadd.f32 %v4262, %v4489
    %v4692 = vadd.f32 %v4265, %v4489
    %v4693 = vadd.f32 %v4270, %v4489
    %v4694 = vadd.f32 %v4273, %v4489
    %v4695 = vadd.f32 %v4278, %v4489
    %v4696 = vadd.f32 %v4281, %v4489
    %v4697 = vadd.f32 %v4286, %v4489
    %v4698 = vadd.f32 %v4289, %v4489
    %v4699 = vadd.f32 %v4294, %v4489
    %v4700 = vadd.f32 %v4297, %v4489
    %v4701 = vadd.f32 %v4302, %v4489
    %v4702 = vadd.f32 %v4305, %v4489
    %v4703 = vadd.f32 %v4310, %v4489
    %v4704 = vadd.f32 %v4313, %v4489
    %v4705 = vadd.f32 %v4318, %v4489
    %v4706 = vadd.f32 %v4321, %v4489
    %v4707 = vadd.f32 %v4326, %v4489
    %v4708 = vadd.f32 %v4329, %v4489
    %v4709 = vadd.f32 %v4334, %v4489
    %v4710 = vadd.f32 %v4337, %v4489
    %v4711 = vadd.f32 %v4342, %v4489
    %v4712 = vadd.f32 %v4345, %v4489
    %v4713 = vadd.f32 %v4350, %v4489
    %v4714 = vadd.f32 %v4353, %v4489
    %v4715 = vadd.f32 %v4358, %v4489
    %v4716 = vadd.f32 %v4361, %v4489
    %v4717 = vadd.f32 %v4366, %v4489
    %v4718 = vadd.f32 %v4369, %v4489
    %v4719 = vadd.f32 %v4374, %v4489
    %v4720 = vadd.f32 %v4377, %v4489
    %v4721 = vadd.f32 %v4382, %v4489
    %v4722 = vadd.f32 %v4385, %v4489
    %v4723 = vadd.f32 %v4390, %v4489
    %v4724 = vadd.f32 %v4393, %v4489
    %v4725 = vadd.f32 %v4398, %v4489
    %v4726 = vadd.f32 %v4401, %v4489
    %v4727 = vadd.f32 %v4406, %v4489
    %v4728 = vadd.f32 %v4409, %v4489
    %v4729 = vadd.f32 %v4414, %v4489
    %v4730 = vadd.f32 %v4417, %v4489
    %v4731 = vadd.f32 %v4422, %v4489
    %v4732 = vadd.f32 %v4425, %v4489
    %v4733 = vadd.f32 %v4430, %v4489
    %v4734 = vadd.f32 %v4433, %v4489
    %v4735 = vadd.f32 %v4438, %v4489
    %v4736 = vadd.f32 %v4441, %v4489
    %v4737 = vadd.f32 %v4446, %v4489
    %v4738 = vadd.f32 %v4449, %v4489
    %v4739 = vadd.f32 %v4454, %v4489
    %v4740 = vadd.f32 %v4457, %v4489
    %v4741 = vadd.f32 %v4462, %v4489
    %v4742 = vadd.f32 %v4465, %v4489
    %v4743 = vadd.f32 %v4470, %v4489
    %v4744 = vadd.f32 %v4473, %v4489
    %v4745 = vadd.f32 %v4478, %v4489
    %v4746 = vadd.f32 %v4481, %v4489
    %v4747 = vmax.f32 %v4491, 0.0
    %v4748 = vmax.f32 %v4492, 0.0
    %v4749 = vmax.f32 %v4493, 0.0
    %v4750 = vmax.f32 %v4494, 0.0
    %v4751 = vmax.f32 %v4495, 0.0
    %v4752 = vmax.f32 %v4496, 0.0
    %v4753 = vmax.f32 %v4497, 0.0
    %v4754 = vmax.f32 %v4498, 0.0
    %v4755 = vmax.f32 %v4499, 0.0
    %v4756 = vmax.f32 %v4500, 0.0
    %v4757 = vmax.f32 %v4501, 0.0
    %v4758 = vmax.f32 %v4502, 0.0
    %v4759 = vmax.f32 %v4503, 0.0
    %v4760 = vmax.f32 %v4504, 0.0
    %v4761 = vmax.f32 %v4505, 0.0
    %v4762 = vmax.f32 %v4506, 0.0
    %v4763 = vmax.f32 %v4507, 0.0
    %v4764 = vmax.f32 %v4508, 0.0
    %v4765 = vmax.f32 %v4509, 0.0
    %v4766 = vmax.f32 %v4510, 0.0
    %v4767 = vmax.f32 %v4511, 0.0
    %v4768 = vmax.f32 %v4512, 0.0
    %v4769 = vmax.f32 %v4513, 0.0
    %v4770 = vmax.f32 %v4514, 0.0
    %v4771 = vmax.f32 %v4515, 0.0
    %v4772 = vmax.f32 %v4516, 0.0
    %v4773 = vmax.f32 %v4517, 0.0
    %v4774 = vmax.f32 %v4518, 0.0
    %v4775 = vmax.f32 %v4519, 0.0
    %v4776 = vmax.f32 %v4520, 0.0
    %v4777 = vmax.f32 %v4521, 0.0
    %v4778 = vmax.f32 %v4522, 0.0
    %v4779 = vmax.f32 %v4523, 0.0
    %v4780 = vmax.f32 %v4524, 0.0
    %v4781 = vmax.f32 %v4525, 0.0
    %v4782 = vmax.f32 %v4526, 0.0
    %v4783 = vmax.f32 %v4527, 0.0
    %v4784 = vmax.f32 %v4528, 0.0
    %v4785 = vmax.f32 %v4529, 0.0
    %v4786 = vmax.f32 %v4530, 0.0
    %v4787 = vmax.f32 %v4531, 0.0
    %v4788 = vmax.f32 %v4532, 0.0
    %v4789 = vmax.f32 %v4533, 0.0
    %v4790 = vmax.f32 %v4534, 0.0
    %v4791 = vmax.f32 %v4535, 0.0
    %v4792 = vmax.f32 %v4536, 0.0
    %v4793 = vmax.f32 %v4537, 0.0
    %v4794 = vmax.f32 %v4538, 0.0
    %v4795 = vmax.f32 %v4539, 0.0
    %v4796 = vmax.f32 %v4540, 0.0
    %v4797 = vmax.f32 %v4541, 0.0
    %v4798 = vmax.f32 %v4542, 0.0
    %v4799 = vmax.f32 %v4543, 0.0
    %v4800 = vmax.f32 %v4544, 0.0
    %v4801 = vmax.f32 %v4545, 0.0
    %v4802 = vmax.f32 %v4546, 0.0
    %v4803 = vmax.f32 %v4547, 0.0
    %v4804 = vmax.f32 %v4548, 0.0
    %v4805 = vmax.f32 %v4549, 0.0
    %v4806 = vmax.f32 %v4550, 0.0
    %v4807 = vmax.f32 %v4551, 0.0
    %v4808 = vmax.f32 %v4552, 0.0
    %v4809 = vmax.f32 %v4553, 0.0
    %v4810 = vmax.f32 %v4554, 0.0
    %v4811 = vmax.f32 %v4555, 0.0
    %v4812 = vmax.f32 %v4556, 0.0
    %v4813 = vmax.f32 %v4557, 0.0
    %v4814 = vmax.f32 %v4558, 0.0
    %v4815 = vmax.f32 %v4559, 0.0
    %v4816 = vmax.f32 %v4560, 0.0
    %v4817 = vmax.f32 %v4561, 0.0
    %v4818 = vmax.f32 %v4562, 0.0
    %v4819 = vmax.f32 %v4563, 0.0
    %v4820 = vmax.f32 %v4564, 0.0
    %v4821 = vmax.f32 %v4565, 0.0
    %v4822 = vmax.f32 %v4566, 0.0
    %v4823 = vmax.f32 %v4567, 0.0
    %v4824 = vmax.f32 %v4568, 0.0
    %v4825 = vmax.f32 %v4569, 0.0
    %v4826 = vmax.f32 %v4570, 0.0
    %v4827 = vmax.f32 %v4571, 0.0
    %v4828 = vmax.f32 %v4572, 0.0
    %v4829 = vmax.f32 %v4573, 0.0
    %v4830 = vmax.f32 %v4574, 0.0
    %v4831 = vmax.f32 %v4575, 0.0
    %v4832 = vmax.f32 %v4576, 0.0
    %v4833 = vmax.f32 %v4577, 0.0
    %v4834 = vmax.f32 %v4578, 0.0
    %v4835 = vmax.f32 %v4579, 0.0
    %v4836 = vmax.f32 %v4580, 0.0
    %v4837 = vmax.f32 %v4581, 0.0
    %v4838 = vmax.f32 %v4582, 0.0
    %v4839 = vmax.f32 %v4583, 0.0
    %v4840 = vmax.f32 %v4584, 0.0
    %v4841 = vmax.f32 %v4585, 0.0
    %v4842 = vmax.f32 %v4586, 0.0
    %v4843 = vmax.f32 %v4587, 0.0
    %v4844 = vmax.f32 %v4588, 0.0
    %v4845 = vmax.f32 %v4589, 0.0
    %v4846 = vmax.f32 %v4590, 0.0
    %v4847 = vmax.f32 %v4591, 0.0
    %v4848 = vmax.f32 %v4592, 0.0
    %v4849 = vmax.f32 %v4593, 0.0
    %v4850 = vmax.f32 %v4594, 0.0
    %v4851 = vmax.f32 %v4595, 0.0
    %v4852 = vmax.f32 %v4596, 0.0
    %v4853 = vmax.f32 %v4597, 0.0
    %v4854 = vmax.f32 %v4598, 0.0
    %v4855 = vmax.f32 %v4599, 0.0
    %v4856 = vmax.f32 %v4600, 0.0
    %v4857 = vmax.f32 %v4601, 0.0
    %v4858 = vmax.f32 %v4602, 0.0
    %v4859 = vmax.f32 %v4603, 0.0
    %v4860 = vmax.f32 %v4604, 0.0
    %v4861 = vmax.f32 %v4605, 0.0
    %v4862 = vmax.f32 %v4606, 0.0
    %v4863 = vmax.f32 %v4607, 0.0
    %v4864 = vmax.f32 %v4608, 0.0
    %v4865 = vmax.f32 %v4609, 0.0
    %v4866 = vmax.f32 %v4610, 0.0
    %v4867 = vmax.f32 %v4611, 0.0
    %v4868 = vmax.f32 %v4612, 0.0
    %v4869 = vmax.f32 %v4613, 0.0
    %v4870 = vmax.f32 %v4614, 0.0
    %v4871 = vmax.f32 %v4615, 0.0
    %v4872 = vmax.f32 %v4616, 0.0
    %v4873 = vmax.f32 %v4617, 0.0
    %v4874 = vmax.f32 %v4618, 0.0
    %v4875 = vmax.f32 %v4619, 0.0
    %v4876 = vmax.f32 %v4620, 0.0
    %v4877 = vmax.f32 %v4621, 0.0
    %v4878 = vmax.f32 %v4622, 0.0
    %v4879 = vmax.f32 %v4623, 0.0
    %v4880 = vmax.f32 %v4624, 0.0
    %v4881 = vmax.f32 %v4625, 0.0
    %v4882 = vmax.f32 %v4626, 0.0
    %v4883 = vmax.f32 %v4627, 0.0
    %v4884 = vmax.f32 %v4628, 0.0
    %v4885 = vmax.f32 %v4629, 0.0
    %v4886 = vmax.f32 %v4630, 0.0
    %v4887 = vmax.f32 %v4631, 0.0
    %v4888 = vmax.f32 %v4632, 0.0
    %v4889 = vmax.f32 %v4633, 0.0
    %v4890 = vmax.f32 %v4634, 0.0
    %v4891 = vmax.f32 %v4635, 0.0
    %v4892 = vmax.f32 %v4636, 0.0
    %v4893 = vmax.f32 %v4637, 0.0
    %v4894 = vmax.f32 %v4638, 0.0
    %v4895 = vmax.f32 %v4639, 0.0
    %v4896 = vmax.f32 %v4640, 0.0
    %v4897 = vmax.f32 %v4641, 0.0
    %v4898 = vmax.f32 %v4642, 0.0
    %v4899 = vmax.f32 %v4643, 0.0
    %v4900 = vmax.f32 %v4644, 0.0
    %v4901 = vmax.f32 %v4645, 0.0
    %v4902 = vmax.f32 %v4646, 0.0
    %v4903 = vmax.f32 %v4647, 0.0
    %v4904 = vmax.f32 %v4648, 0.0
    %v4905 = vmax.f32 %v4649, 0.0
    %v4906 = vmax.f32 %v4650, 0.0
    %v4907 = vmax.f32 %v4651, 0.0
    %v4908 = vmax.f32 %v4652, 0.0
    %v4909 = vmax.f32 %v4653, 0.0
    %v4910 = vmax.f32 %v4654, 0.0
    %v4911 = vmax.f32 %v4655, 0.0
    %v4912 = vmax.f32 %v4656, 0.0
    %v4913 = vmax.f32 %v4657, 0.0
    %v4914 = vmax.f32 %v4658, 0.0
    %v4915 = vmax.f32 %v4659, 0.0
    %v4916 = vmax.f32 %v4660, 0.0
    %v4917 = vmax.f32 %v4661, 0.0
    %v4918 = vmax.f32 %v4662, 0.0
    %v4919 = vmax.f32 %v4663, 0.0
    %v4920 = vmax.f32 %v4664, 0.0
    %v4921 = vmax.f32 %v4665, 0.0
    %v4922 = vmax.f32 %v4666, 0.0
    %v4923 = vmax.f32 %v4667, 0.0
    %v4924 = vmax.f32 %v4668, 0.0
    %v4925 = vmax.f32 %v4669, 0.0
    %v4926 = vmax.f32 %v4670, 0.0
    %v4927 = vmax.f32 %v4671, 0.0
    %v4928 = vmax.f32 %v4672, 0.0
    %v4929 = vmax.f32 %v4673, 0.0
    %v4930 = vmax.f32 %v4674, 0.0
    %v4931 = vmax.f32 %v4675, 0.0
    %v4932 = vmax.f32 %v4676, 0.0
    %v4933 = vmax.f32 %v4677, 0.0
    %v4934 = vmax.f32 %v4678, 0.0
    %v4935 = vmax.f32 %v4679, 0.0
    %v4936 = vmax.f32 %v4680, 0.0
    %v4937 = vmax.f32 %v4681, 0.0
    %v4938 = vmax.f32 %v4682, 0.0
    %v4939 = vmax.f32 %v4683, 0.0
    %v4940 = vmax.f32 %v4684, 0.0
    %v4941 = vmax.f32 %v4685, 0.0
    %v4942 = vmax.f32 %v4686, 0.0
    %v4943 = vmax.f32 %v4687, 0.0
    %v4944 = vmax.f32 %v4688, 0.0
    %v4945 = vmax.f32 %v4689, 0.0
    %v4946 = vmax.f32 %v4690, 0.0
    %v4947 = vmax.f32 %v4691, 0.0
    %v4948 = vmax.f32 %v4692, 0.0
    %v4949 = vmax.f32 %v4693, 0.0
    %v4950 = vmax.f32 %v4694, 0.0
    %v4951 = vmax.f32 %v4695, 0.0
    %v4952 = vmax.f32 %v4696, 0.0
    %v4953 = vmax.f32 %v4697, 0.0
    %v4954 = vmax.f32 %v4698, 0.0
    %v4955 = vmax.f32 %v4699, 0.0
    %v4956 = vmax.f32 %v4700, 0.0
    %v4957 = vmax.f32 %v4701, 0.0
    %v4958 = vmax.f32 %v4702, 0.0
    %v4959 = vmax.f32 %v4703, 0.0
    %v4960 = vmax.f32 %v4704, 0.0
    %v4961 = vmax.f32 %v4705, 0.0
    %v4962 = vmax.f32 %v4706, 0.0
    %v4963 = vmax.f32 %v4707, 0.0
    %v4964 = vmax.f32 %v4708, 0.0
    %v4965 = vmax.f32 %v4709, 0.0
    %v4966 = vmax.f32 %v4710, 0.0
    %v4967 = vmax.f32 %v4711, 0.0
    %v4968 = vmax.f32 %v4712, 0.0
    %v4969 = vmax.f32 %v4713, 0.0
    %v4970 = vmax.f32 %v4714, 0.0
    %v4971 = vmax.f32 %v4715, 0.0
    %v4972 = vmax.f32 %v4716, 0.0
    %v4973 = vmax.f32 %v4717, 0.0
    %v4974 = vmax.f32 %v4718, 0.0
    %v4975 = vmax.f32 %v4719, 0.0
    %v4976 = vmax.f32 %v4720, 0.0
    %v4977 = vmax.f32 %v4721, 0.0
    %v4978 = vmax.f32 %v4722, 0.0
    %v4979 = vmax.f32 %v4723, 0.0
    %v4980 = vmax.f32 %v4724, 0.0
    %v4981 = vmax.f32 %v4725, 0.0
    %v4982 = vmax.f32 %v4726, 0.0
    %v4983 = vmax.f32 %v4727, 0.0
    %v4984 = vmax.f32 %v4728, 0.0
    %v4985 = vmax.f32 %v4729, 0.0
    %v4986 = vmax.f32 %v4730, 0.0
    %v4987 = vmax.f32 %v4731, 0.0
    %v4988 = vmax.f32 %v4732, 0.0
    %v4989 = vmax.f32 %v4733, 0.0
    %v4990 = vmax.f32 %v4734, 0.0
    %v4991 = vmax.f32 %v4735, 0.0
    %v4992 = vmax.f32 %v4736, 0.0
    %v4993 = vmax.f32 %v4737, 0.0
    %v4994 = vmax.f32 %v4738, 0.0
    %v4995 = vmax.f32 %v4739, 0.0
    %v4996 = vmax.f32 %v4740, 0.0
    %v4997 = vmax.f32 %v4741, 0.0
    %v4998 = vmax.f32 %v4742, 0.0
    %v4999 = vmax.f32 %v4743, 0.0
    %v5000 = vmax.f32 %v4744, 0.0
    %v5001 = vmax.f32 %v4745, 0.0
    %v5002 = vmax.f32 %v4746, 0.0
    %v5003 = vpack.c.bf16 %v4748, %v4747
    %v5004 = vpack.c.bf16 %v4750, %v4749
    %v5005 = vpack.c.bf16 %v4752, %v4751
    %v5006 = vpack.c.bf16 %v4754, %v4753
    %v5007 = vpack.c.bf16 %v4756, %v4755
    %v5008 = vpack.c.bf16 %v4758, %v4757
    %v5009 = vpack.c.bf16 %v4760, %v4759
    %v5010 = vpack.c.bf16 %v4762, %v4761
    %v5011 = vpack.c.bf16 %v4764, %v4763
    %v5012 = vpack.c.bf16 %v4766, %v4765
    %v5013 = vpack.c.bf16 %v4768, %v4767
    %v5014 = vpack.c.bf16 %v4770, %v4769
    %v5015 = vpack.c.bf16 %v4772, %v4771
    %v5016 = vpack.c.bf16 %v4774, %v4773
    %v5017 = vpack.c.bf16 %v4776, %v4775
    %v5018 = vpack.c.bf16 %v4778, %v4777
    %v5019 = vpack.c.bf16 %v4780, %v4779
    %v5020 = vpack.c.bf16 %v4782, %v4781
    %v5021 = vpack.c.bf16 %v4784, %v4783
    %v5022 = vpack.c.bf16 %v4786, %v4785
    %v5023 = vpack.c.bf16 %v4788, %v4787
    %v5024 = vpack.c.bf16 %v4790, %v4789
    %v5025 = vpack.c.bf16 %v4792, %v4791
    %v5026 = vpack.c.bf16 %v4794, %v4793
    %v5027 = vpack.c.bf16 %v4796, %v4795
    %v5028 = vpack.c.bf16 %v4798, %v4797
    %v5029 = vpack.c.bf16 %v4800, %v4799
    %v5030 = vpack.c.bf16 %v4802, %v4801
    %v5031 = vpack.c.bf16 %v4804, %v4803
    %v5032 = vpack.c.bf16 %v4806, %v4805
    %v5033 = vpack.c.bf16 %v4808, %v4807
    %v5034 = vpack.c.bf16 %v4810, %v4809
    %v5035 = vpack.c.bf16 %v4812, %v4811
    %v5036 = vpack.c.bf16 %v4814, %v4813
    %v5037 = vpack.c.bf16 %v4816, %v4815
    %v5038 = vpack.c.bf16 %v4818, %v4817
    %v5039 = vpack.c.bf16 %v4820, %v4819
    %v5040 = vpack.c.bf16 %v4822, %v4821
    %v5041 = vpack.c.bf16 %v4824, %v4823
    %v5042 = vpack.c.bf16 %v4826, %v4825
    %v5043 = vpack.c.bf16 %v4828, %v4827
    %v5044 = vpack.c.bf16 %v4830, %v4829
    %v5045 = vpack.c.bf16 %v4832, %v4831
    %v5046 = vpack.c.bf16 %v4834, %v4833
    %v5047 = vpack.c.bf16 %v4836, %v4835
    %v5048 = vpack.c.bf16 %v4838, %v4837
    %v5049 = vpack.c.bf16 %v4840, %v4839
    %v5050 = vpack.c.bf16 %v4842, %v4841
    %v5051 = vpack.c.bf16 %v4844, %v4843
    %v5052 = vpack.c.bf16 %v4846, %v4845
    %v5053 = vpack.c.bf16 %v4848, %v4847
    %v5054 = vpack.c.bf16 %v4850, %v4849
    %v5055 = vpack.c.bf16 %v4852, %v4851
    %v5056 = vpack.c.bf16 %v4854, %v4853
    %v5057 = vpack.c.bf16 %v4856, %v4855
    %v5058 = vpack.c.bf16 %v4858, %v4857
    %v5059 = vpack.c.bf16 %v4860, %v4859
    %v5060 = vpack.c.bf16 %v4862, %v4861
    %v5061 = vpack.c.bf16 %v4864, %v4863
    %v5062 = vpack.c.bf16 %v4866, %v4865
    %v5063 = vpack.c.bf16 %v4868, %v4867
    %v5064 = vpack.c.bf16 %v4870, %v4869
    %v5065 = vpack.c.bf16 %v4872, %v4871
    %v5066 = vpack.c.bf16 %v4874, %v4873
    %v5067 = vpack.c.bf16 %v4876, %v4875
    %v5068 = vpack.c.bf16 %v4878, %v4877
    %v5069 = vpack.c.bf16 %v4880, %v4879
    %v5070 = vpack.c.bf16 %v4882, %v4881
    %v5071 = vpack.c.bf16 %v4884, %v4883
    %v5072 = vpack.c.bf16 %v4886, %v4885
    %v5073 = vpack.c.bf16 %v4888, %v4887
    %v5074 = vpack.c.bf16 %v4890, %v4889
    %v5075 = vpack.c.bf16 %v4892, %v4891
    %v5076 = vpack.c.bf16 %v4894, %v4893
    %v5077 = vpack.c.bf16 %v4896, %v4895
    %v5078 = vpack.c.bf16 %v4898, %v4897
    %v5079 = vpack.c.bf16 %v4900, %v4899
    %v5080 = vpack.c.bf16 %v4902, %v4901
    %v5081 = vpack.c.bf16 %v4904, %v4903
    %v5082 = vpack.c.bf16 %v4906, %v4905
    %v5083 = vpack.c.bf16 %v4908, %v4907
    %v5084 = vpack.c.bf16 %v4910, %v4909
    %v5085 = vpack.c.bf16 %v4912, %v4911
    %v5086 = vpack.c.bf16 %v4914, %v4913
    %v5087 = vpack.c.bf16 %v4916, %v4915
    %v5088 = vpack.c.bf16 %v4918, %v4917
    %v5089 = vpack.c.bf16 %v4920, %v4919
    %v5090 = vpack.c.bf16 %v4922, %v4921
    %v5091 = vpack.c.bf16 %v4924, %v4923
    %v5092 = vpack.c.bf16 %v4926, %v4925
    %v5093 = vpack.c.bf16 %v4928, %v4927
    %v5094 = vpack.c.bf16 %v4930, %v4929
    %v5095 = vpack.c.bf16 %v4932, %v4931
    %v5096 = vpack.c.bf16 %v4934, %v4933
    %v5097 = vpack.c.bf16 %v4936, %v4935
    %v5098 = vpack.c.bf16 %v4938, %v4937
    %v5099 = vpack.c.bf16 %v4940, %v4939
    %v5100 = vpack.c.bf16 %v4942, %v4941
    %v5101 = vpack.c.bf16 %v4944, %v4943
    %v5102 = vpack.c.bf16 %v4946, %v4945
    %v5103 = vpack.c.bf16 %v4948, %v4947
    %v5104 = vpack.c.bf16 %v4950, %v4949
    %v5105 = vpack.c.bf16 %v4952, %v4951
    %v5106 = vpack.c.bf16 %v4954, %v4953
    %v5107 = vpack.c.bf16 %v4956, %v4955
    %v5108 = vpack.c.bf16 %v4958, %v4957
    %v5109 = vpack.c.bf16 %v4960, %v4959
    %v5110 = vpack.c.bf16 %v4962, %v4961
    %v5111 = vpack.c.bf16 %v4964, %v4963
    %v5112 = vpack.c.bf16 %v4966, %v4965
    %v5113 = vpack.c.bf16 %v4968, %v4967
    %v5114 = vpack.c.bf16 %v4970, %v4969
    %v5115 = vpack.c.bf16 %v4972, %v4971
    %v5116 = vpack.c.bf16 %v4974, %v4973
    %v5117 = vpack.c.bf16 %v4976, %v4975
    %v5118 = vpack.c.bf16 %v4978, %v4977
    %v5119 = vpack.c.bf16 %v4980, %v4979
    %v5120 = vpack.c.bf16 %v4982, %v4981
    %v5121 = vpack.c.bf16 %v4984, %v4983
    %v5122 = vpack.c.bf16 %v4986, %v4985
    %v5123 = vpack.c.bf16 %v4988, %v4987
    %v5124 = vpack.c.bf16 %v4990, %v4989
    %v5125 = vpack.c.bf16 %v4992, %v4991
    %v5126 = vpack.c.bf16 %v4994, %v4993
    %v5127 = vpack.c.bf16 %v4996, %v4995
    %v5128 = vpack.c.bf16 %v4998, %v4997
    %v5129 = vpack.c.bf16 %v5000, %v4999
    %v5130 = vpack.c.bf16 %v5002, %v5001
    %v5131 = vld [vmem:[%s4] sm:$0x1]
    %v5133 = vpack.i.b16 %v5131, %v5131
    %v5135 = vlaneseq
    %v5136 = vshrl.u32 %v5135, 7
    %v5137 = vsub.s32 0, %v5136
    %v5138 = vrot.slane %v5133, %v5137
    %v5139 = vmul.bf16 %v5003, %v5138
    %v5140 = vmul.bf16 %v5004, %v5138
    %v5141 = vmul.bf16 %v5005, %v5138
    %v5142 = vmul.bf16 %v5006, %v5138
    %v5143 = vmul.bf16 %v5007, %v5138
    %v5144 = vmul.bf16 %v5008, %v5138
    %v5145 = vmul.bf16 %v5009, %v5138
    %v5146 = vmul.bf16 %v5010, %v5138
    %v5147 = vmul.bf16 %v5011, %v5138
    %v5148 = vmul.bf16 %v5012, %v5138
    %v5149 = vmul.bf16 %v5013, %v5138
    %v5150 = vmul.bf16 %v5014, %v5138
    %v5151 = vmul.bf16 %v5015, %v5138
    %v5152 = vmul.bf16 %v5016, %v5138
    %v5153 = vmul.bf16 %v5017, %v5138
    %v5154 = vmul.bf16 %v5018, %v5138
    %v5155 = vmul.bf16 %v5019, %v5138
    %v5156 = vmul.bf16 %v5020, %v5138
    %v5157 = vmul.bf16 %v5021, %v5138
    %v5158 = vmul.bf16 %v5022, %v5138
    %v5159 = vmul.bf16 %v5023, %v5138
    %v5160 = vmul.bf16 %v5024, %v5138
    %v5161 = vmul.bf16 %v5025, %v5138
    %v5162 = vmul.bf16 %v5026, %v5138
    %v5163 = vmul.bf16 %v5027, %v5138
    %v5164 = vmul.bf16 %v5028, %v5138
    %v5165 = vmul.bf16 %v5029, %v5138
    %v5166 = vmul.bf16 %v5030, %v5138
    %v5167 = vmul.bf16 %v5031, %v5138
    %v5168 = vmul.bf16 %v5032, %v5138
    %v5169 = vmul.bf16 %v5033, %v5138
    %v5170 = vmul.bf16 %v5034, %v5138
    %v5171 = vmul.bf16 %v5035, %v5138
    %v5172 = vmul.bf16 %v5036, %v5138
    %v5173 = vmul.bf16 %v5037, %v5138
    %v5174 = vmul.bf16 %v5038, %v5138
    %v5175 = vmul.bf16 %v5039, %v5138
    %v5176 = vmul.bf16 %v5040, %v5138
    %v5177 = vmul.bf16 %v5041, %v5138
    %v5178 = vmul.bf16 %v5042, %v5138
    %v5179 = vmul.bf16 %v5043, %v5138
    %v5180 = vmul.bf16 %v5044, %v5138
    %v5181 = vmul.bf16 %v5045, %v5138
    %v5182 = vmul.bf16 %v5046, %v5138
    %v5183 = vmul.bf16 %v5047, %v5138
    %v5184 = vmul.bf16 %v5048, %v5138
    %v5185 = vmul.bf16 %v5049, %v5138
    %v5186 = vmul.bf16 %v5050, %v5138
    %v5187 = vmul.bf16 %v5051, %v5138
    %v5188 = vmul.bf16 %v5052, %v5138
    %v5189 = vmul.bf16 %v5053, %v5138
    %v5190 = vmul.bf16 %v5054, %v5138
    %v5191 = vmul.bf16 %v5055, %v5138
    %v5192 = vmul.bf16 %v5056, %v5138
    %v5193 = vmul.bf16 %v5057, %v5138
    %v5194 = vmul.bf16 %v5058, %v5138
    %v5195 = vmul.bf16 %v5059, %v5138
    %v5196 = vmul.bf16 %v5060, %v5138
    %v5197 = vmul.bf16 %v5061, %v5138
    %v5198 = vmul.bf16 %v5062, %v5138
    %v5199 = vmul.bf16 %v5063, %v5138
    %v5200 = vmul.bf16 %v5064, %v5138
    %v5201 = vmul.bf16 %v5065, %v5138
    %v5202 = vmul.bf16 %v5066, %v5138
    %v5203 = vmul.bf16 %v5067, %v5138
    %v5204 = vmul.bf16 %v5068, %v5138
    %v5205 = vmul.bf16 %v5069, %v5138
    %v5206 = vmul.bf16 %v5070, %v5138
    %v5207 = vmul.bf16 %v5071, %v5138
    %v5208 = vmul.bf16 %v5072, %v5138
    %v5209 = vmul.bf16 %v5073, %v5138
    %v5210 = vmul.bf16 %v5074, %v5138
    %v5211 = vmul.bf16 %v5075, %v5138
    %v5212 = vmul.bf16 %v5076, %v5138
    %v5213 = vmul.bf16 %v5077, %v5138
    %v5214 = vmul.bf16 %v5078, %v5138
    %v5215 = vmul.bf16 %v5079, %v5138
    %v5216 = vmul.bf16 %v5080, %v5138
    %v5217 = vmul.bf16 %v5081, %v5138
    %v5218 = vmul.bf16 %v5082, %v5138
    %v5219 = vmul.bf16 %v5083, %v5138
    %v5220 = vmul.bf16 %v5084, %v5138
    %v5221 = vmul.bf16 %v5085, %v5138
    %v5222 = vmul.bf16 %v5086, %v5138
    %v5223 = vmul.bf16 %v5087, %v5138
    %v5224 = vmul.bf16 %v5088, %v5138
    %v5225 = vmul.bf16 %v5089, %v5138
    %v5226 = vmul.bf16 %v5090, %v5138
    %v5227 = vmul.bf16 %v5091, %v5138
    %v5228 = vmul.bf16 %v5092, %v5138
    %v5229 = vmul.bf16 %v5093, %v5138
    %v5230 = vmul.bf16 %v5094, %v5138
    %v5231 = vmul.bf16 %v5095, %v5138
    %v5232 = vmul.bf16 %v5096, %v5138
    %v5233 = vmul.bf16 %v5097, %v5138
    %v5234 = vmul.bf16 %v5098, %v5138
    %v5235 = vmul.bf16 %v5099, %v5138
    %v5236 = vmul.bf16 %v5100, %v5138
    %v5237 = vmul.bf16 %v5101, %v5138
    %v5238 = vmul.bf16 %v5102, %v5138
    %v5239 = vmul.bf16 %v5103, %v5138
    %v5240 = vmul.bf16 %v5104, %v5138
    %v5241 = vmul.bf16 %v5105, %v5138
    %v5242 = vmul.bf16 %v5106, %v5138
    %v5243 = vmul.bf16 %v5107, %v5138
    %v5244 = vmul.bf16 %v5108, %v5138
    %v5245 = vmul.bf16 %v5109, %v5138
    %v5246 = vmul.bf16 %v5110, %v5138
    %v5247 = vmul.bf16 %v5111, %v5138
    %v5248 = vmul.bf16 %v5112, %v5138
    %v5249 = vmul.bf16 %v5113, %v5138
    %v5250 = vmul.bf16 %v5114, %v5138
    %v5251 = vmul.bf16 %v5115, %v5138
    %v5252 = vmul.bf16 %v5116, %v5138
    %v5253 = vmul.bf16 %v5117, %v5138
    %v5254 = vmul.bf16 %v5118, %v5138
    %v5255 = vmul.bf16 %v5119, %v5138
    %v5256 = vmul.bf16 %v5120, %v5138
    %v5257 = vmul.bf16 %v5121, %v5138
    %v5258 = vmul.bf16 %v5122, %v5138
    %v5259 = vmul.bf16 %v5123, %v5138
    %v5260 = vmul.bf16 %v5124, %v5138
    %v5261 = vmul.bf16 %v5125, %v5138
    %v5262 = vmul.bf16 %v5126, %v5138
    %v5263 = vmul.bf16 %v5127, %v5138
    %v5264 = vmul.bf16 %v5128, %v5138
    %v5265 = vmul.bf16 %v5129, %v5138
    %v5266 = vmul.bf16 %v5130, %v5138
    %v5267 = vunpack.c.l.bf16 %v5139
    %v5268 = vunpack.c.h.bf16 %v5139
    %v5269 = vunpack.c.l.bf16 %v5140
    %v5270 = vunpack.c.h.bf16 %v5140
    %v5271 = vunpack.c.l.bf16 %v5141
    %v5272 = vunpack.c.h.bf16 %v5141
    %v5273 = vunpack.c.l.bf16 %v5142
    %v5274 = vunpack.c.h.bf16 %v5142
    %v5275 = vunpack.c.l.bf16 %v5143
    %v5276 = vunpack.c.h.bf16 %v5143
    %v5277 = vunpack.c.l.bf16 %v5144
    %v5278 = vunpack.c.h.bf16 %v5144
    %v5279 = vunpack.c.l.bf16 %v5145
    %v5280 = vunpack.c.h.bf16 %v5145
    %v5281 = vunpack.c.l.bf16 %v5146
    %v5282 = vunpack.c.h.bf16 %v5146
    %v5283 = vunpack.c.l.bf16 %v5147
    %v5284 = vunpack.c.h.bf16 %v5147
    %v5285 = vunpack.c.l.bf16 %v5148
    %v5286 = vunpack.c.h.bf16 %v5148
    %v5287 = vunpack.c.l.bf16 %v5149
    %v5288 = vunpack.c.h.bf16 %v5149
    %v5289 = vunpack.c.l.bf16 %v5150
    %v5290 = vunpack.c.h.bf16 %v5150
    %v5291 = vunpack.c.l.bf16 %v5151
    %v5292 = vunpack.c.h.bf16 %v5151
    %v5293 = vunpack.c.l.bf16 %v5152
    %v5294 = vunpack.c.h.bf16 %v5152
    %v5295 = vunpack.c.l.bf16 %v5153
    %v5296 = vunpack.c.h.bf16 %v5153
    %v5297 = vunpack.c.l.bf16 %v5154
    %v5298 = vunpack.c.h.bf16 %v5154
    %v5299 = vunpack.c.l.bf16 %v5155
    %v5300 = vunpack.c.h.bf16 %v5155
    %v5301 = vunpack.c.l.bf16 %v5156
    %v5302 = vunpack.c.h.bf16 %v5156
    %v5303 = vunpack.c.l.bf16 %v5157
    %v5304 = vunpack.c.h.bf16 %v5157
    %v5305 = vunpack.c.l.bf16 %v5158
    %v5306 = vunpack.c.h.bf16 %v5158
    %v5307 = vunpack.c.l.bf16 %v5159
    %v5308 = vunpack.c.h.bf16 %v5159
    %v5309 = vunpack.c.l.bf16 %v5160
    %v5310 = vunpack.c.h.bf16 %v5160
    %v5311 = vunpack.c.l.bf16 %v5161
    %v5312 = vunpack.c.h.bf16 %v5161
    %v5313 = vunpack.c.l.bf16 %v5162
    %v5314 = vunpack.c.h.bf16 %v5162
    %v5315 = vunpack.c.l.bf16 %v5163
    %v5316 = vunpack.c.h.bf16 %v5163
    %v5317 = vunpack.c.l.bf16 %v5164
    %v5318 = vunpack.c.h.bf16 %v5164
    %v5319 = vunpack.c.l.bf16 %v5165
    %v5320 = vunpack.c.h.bf16 %v5165
    %v5321 = vunpack.c.l.bf16 %v5166
    %v5322 = vunpack.c.h.bf16 %v5166
    %v5323 = vunpack.c.l.bf16 %v5167
    %v5324 = vunpack.c.h.bf16 %v5167
    %v5325 = vunpack.c.l.bf16 %v5168
    %v5326 = vunpack.c.h.bf16 %v5168
    %v5327 = vunpack.c.l.bf16 %v5169
    %v5328 = vunpack.c.h.bf16 %v5169
    %v5329 = vunpack.c.l.bf16 %v5170
    %v5330 = vunpack.c.h.bf16 %v5170
    %v5331 = vunpack.c.l.bf16 %v5171
    %v5332 = vunpack.c.h.bf16 %v5171
    %v5333 = vunpack.c.l.bf16 %v5172
    %v5334 = vunpack.c.h.bf16 %v5172
    %v5335 = vunpack.c.l.bf16 %v5173
    %v5336 = vunpack.c.h.bf16 %v5173
    %v5337 = vunpack.c.l.bf16 %v5174
    %v5338 = vunpack.c.h.bf16 %v5174
    %v5339 = vunpack.c.l.bf16 %v5175
    %v5340 = vunpack.c.h.bf16 %v5175
    %v5341 = vunpack.c.l.bf16 %v5176
    %v5342 = vunpack.c.h.bf16 %v5176
    %v5343 = vunpack.c.l.bf16 %v5177
    %v5344 = vunpack.c.h.bf16 %v5177
    %v5345 = vunpack.c.l.bf16 %v5178
    %v5346 = vunpack.c.h.bf16 %v5178
    %v5347 = vunpack.c.l.bf16 %v5179
    %v5348 = vunpack.c.h.bf16 %v5179
    %v5349 = vunpack.c.l.bf16 %v5180
    %v5350 = vunpack.c.h.bf16 %v5180
    %v5351 = vunpack.c.l.bf16 %v5181
    %v5352 = vunpack.c.h.bf16 %v5181
    %v5353 = vunpack.c.l.bf16 %v5182
    %v5354 = vunpack.c.h.bf16 %v5182
    %v5355 = vunpack.c.l.bf16 %v5183
    %v5356 = vunpack.c.h.bf16 %v5183
    %v5357 = vunpack.c.l.bf16 %v5184
    %v5358 = vunpack.c.h.bf16 %v5184
    %v5359 = vunpack.c.l.bf16 %v5185
    %v5360 = vunpack.c.h.bf16 %v5185
    %v5361 = vunpack.c.l.bf16 %v5186
    %v5362 = vunpack.c.h.bf16 %v5186
    %v5363 = vunpack.c.l.bf16 %v5187
    %v5364 = vunpack.c.h.bf16 %v5187
    %v5365 = vunpack.c.l.bf16 %v5188
    %v5366 = vunpack.c.h.bf16 %v5188
    %v5367 = vunpack.c.l.bf16 %v5189
    %v5368 = vunpack.c.h.bf16 %v5189
    %v5369 = vunpack.c.l.bf16 %v5190
    %v5370 = vunpack.c.h.bf16 %v5190
    %v5371 = vunpack.c.l.bf16 %v5191
    %v5372 = vunpack.c.h.bf16 %v5191
    %v5373 = vunpack.c.l.bf16 %v5192
    %v5374 = vunpack.c.h.bf16 %v5192
    %v5375 = vunpack.c.l.bf16 %v5193
    %v5376 = vunpack.c.h.bf16 %v5193
    %v5377 = vunpack.c.l.bf16 %v5194
    %v5378 = vunpack.c.h.bf16 %v5194
    %v5379 = vunpack.c.l.bf16 %v5195
    %v5380 = vunpack.c.h.bf16 %v5195
    %v5381 = vunpack.c.l.bf16 %v5196
    %v5382 = vunpack.c.h.bf16 %v5196
    %v5383 = vunpack.c.l.bf16 %v5197
    %v5384 = vunpack.c.h.bf16 %v5197
    %v5385 = vunpack.c.l.bf16 %v5198
    %v5386 = vunpack.c.h.bf16 %v5198
    %v5387 = vunpack.c.l.bf16 %v5199
    %v5388 = vunpack.c.h.bf16 %v5199
    %v5389 = vunpack.c.l.bf16 %v5200
    %v5390 = vunpack.c.h.bf16 %v5200
    %v5391 = vunpack.c.l.bf16 %v5201
    %v5392 = vunpack.c.h.bf16 %v5201
    %v5393 = vunpack.c.l.bf16 %v5202
    %v5394 = vunpack.c.h.bf16 %v5202
    %v5395 = vunpack.c.l.bf16 %v5203
    %v5396 = vunpack.c.h.bf16 %v5203
    %v5397 = vunpack.c.l.bf16 %v5204
    %v5398 = vunpack.c.h.bf16 %v5204
    %v5399 = vunpack.c.l.bf16 %v5205
    %v5400 = vunpack.c.h.bf16 %v5205
    %v5401 = vunpack.c.l.bf16 %v5206
    %v5402 = vunpack.c.h.bf16 %v5206
    %v5403 = vunpack.c.l.bf16 %v5207
    %v5404 = vunpack.c.h.bf16 %v5207
    %v5405 = vunpack.c.l.bf16 %v5208
    %v5406 = vunpack.c.h.bf16 %v5208
    %v5407 = vunpack.c.l.bf16 %v5209
    %v5408 = vunpack.c.h.bf16 %v5209
    %v5409 = vunpack.c.l.bf16 %v5210
    %v5410 = vunpack.c.h.bf16 %v5210
    %v5411 = vunpack.c.l.bf16 %v5211
    %v5412 = vunpack.c.h.bf16 %v5211
    %v5413 = vunpack.c.l.bf16 %v5212
    %v5414 = vunpack.c.h.bf16 %v5212
    %v5415 = vunpack.c.l.bf16 %v5213
    %v5416 = vunpack.c.h.bf16 %v5213
    %v5417 = vunpack.c.l.bf16 %v5214
    %v5418 = vunpack.c.h.bf16 %v5214
    %v5419 = vunpack.c.l.bf16 %v5215
    %v5420 = vunpack.c.h.bf16 %v5215
    %v5421 = vunpack.c.l.bf16 %v5216
    %v5422 = vunpack.c.h.bf16 %v5216
    %v5423 = vunpack.c.l.bf16 %v5217
    %v5424 = vunpack.c.h.bf16 %v5217
    %v5425 = vunpack.c.l.bf16 %v5218
    %v5426 = vunpack.c.h.bf16 %v5218
    %v5427 = vunpack.c.l.bf16 %v5219
    %v5428 = vunpack.c.h.bf16 %v5219
    %v5429 = vunpack.c.l.bf16 %v5220
    %v5430 = vunpack.c.h.bf16 %v5220
    %v5431 = vunpack.c.l.bf16 %v5221
    %v5432 = vunpack.c.h.bf16 %v5221
    %v5433 = vunpack.c.l.bf16 %v5222
    %v5434 = vunpack.c.h.bf16 %v5222
    %v5435 = vunpack.c.l.bf16 %v5223
    %v5436 = vunpack.c.h.bf16 %v5223
    %v5437 = vunpack.c.l.bf16 %v5224
    %v5438 = vunpack.c.h.bf16 %v5224
    %v5439 = vunpack.c.l.bf16 %v5225
    %v5440 = vunpack.c.h.bf16 %v5225
    %v5441 = vunpack.c.l.bf16 %v5226
    %v5442 = vunpack.c.h.bf16 %v5226
    %v5443 = vunpack.c.l.bf16 %v5227
    %v5444 = vunpack.c.h.bf16 %v5227
    %v5445 = vunpack.c.l.bf16 %v5228
    %v5446 = vunpack.c.h.bf16 %v5228
    %v5447 = vunpack.c.l.bf16 %v5229
    %v5448 = vunpack.c.h.bf16 %v5229
    %v5449 = vunpack.c.l.bf16 %v5230
    %v5450 = vunpack.c.h.bf16 %v5230
    %v5451 = vunpack.c.l.bf16 %v5231
    %v5452 = vunpack.c.h.bf16 %v5231
    %v5453 = vunpack.c.l.bf16 %v5232
    %v5454 = vunpack.c.h.bf16 %v5232
    %v5455 = vunpack.c.l.bf16 %v5233
    %v5456 = vunpack.c.h.bf16 %v5233
    %v5457 = vunpack.c.l.bf16 %v5234
    %v5458 = vunpack.c.h.bf16 %v5234
    %v5459 = vunpack.c.l.bf16 %v5235
    %v5460 = vunpack.c.h.bf16 %v5235
    %v5461 = vunpack.c.l.bf16 %v5236
    %v5462 = vunpack.c.h.bf16 %v5236
    %v5463 = vunpack.c.l.bf16 %v5237
    %v5464 = vunpack.c.h.bf16 %v5237
    %v5465 = vunpack.c.l.bf16 %v5238
    %v5466 = vunpack.c.h.bf16 %v5238
    %v5467 = vunpack.c.l.bf16 %v5239
    %v5468 = vunpack.c.h.bf16 %v5239
    %v5469 = vunpack.c.l.bf16 %v5240
    %v5470 = vunpack.c.h.bf16 %v5240
    %v5471 = vunpack.c.l.bf16 %v5241
    %v5472 = vunpack.c.h.bf16 %v5241
    %v5473 = vunpack.c.l.bf16 %v5242
    %v5474 = vunpack.c.h.bf16 %v5242
    %v5475 = vunpack.c.l.bf16 %v5243
    %v5476 = vunpack.c.h.bf16 %v5243
    %v5477 = vunpack.c.l.bf16 %v5244
    %v5478 = vunpack.c.h.bf16 %v5244
    %v5479 = vunpack.c.l.bf16 %v5245
    %v5480 = vunpack.c.h.bf16 %v5245
    %v5481 = vunpack.c.l.bf16 %v5246
    %v5482 = vunpack.c.h.bf16 %v5246
    %v5483 = vunpack.c.l.bf16 %v5247
    %v5484 = vunpack.c.h.bf16 %v5247
    %v5485 = vunpack.c.l.bf16 %v5248
    %v5486 = vunpack.c.h.bf16 %v5248
    %v5487 = vunpack.c.l.bf16 %v5249
    %v5488 = vunpack.c.h.bf16 %v5249
    %v5489 = vunpack.c.l.bf16 %v5250
    %v5490 = vunpack.c.h.bf16 %v5250
    %v5491 = vunpack.c.l.bf16 %v5251
    %v5492 = vunpack.c.h.bf16 %v5251
    %v5493 = vunpack.c.l.bf16 %v5252
    %v5494 = vunpack.c.h.bf16 %v5252
    %v5495 = vunpack.c.l.bf16 %v5253
    %v5496 = vunpack.c.h.bf16 %v5253
    %v5497 = vunpack.c.l.bf16 %v5254
    %v5498 = vunpack.c.h.bf16 %v5254
    %v5499 = vunpack.c.l.bf16 %v5255
    %v5500 = vunpack.c.h.bf16 %v5255
    %v5501 = vunpack.c.l.bf16 %v5256
    %v5502 = vunpack.c.h.bf16 %v5256
    %v5503 = vunpack.c.l.bf16 %v5257
    %v5504 = vunpack.c.h.bf16 %v5257
    %v5505 = vunpack.c.l.bf16 %v5258
    %v5506 = vunpack.c.h.bf16 %v5258
    %v5507 = vunpack.c.l.bf16 %v5259
    %v5508 = vunpack.c.h.bf16 %v5259
    %v5509 = vunpack.c.l.bf16 %v5260
    %v5510 = vunpack.c.h.bf16 %v5260
    %v5511 = vunpack.c.l.bf16 %v5261
    %v5512 = vunpack.c.h.bf16 %v5261
    %v5513 = vunpack.c.l.bf16 %v5262
    %v5514 = vunpack.c.h.bf16 %v5262
    %v5515 = vunpack.c.l.bf16 %v5263
    %v5516 = vunpack.c.h.bf16 %v5263
    %v5517 = vunpack.c.l.bf16 %v5264
    %v5518 = vunpack.c.h.bf16 %v5264
    %v5519 = vunpack.c.l.bf16 %v5265
    %v5520 = vunpack.c.h.bf16 %v5265
    %v5521 = vunpack.c.l.bf16 %v5266
    %v5522 = vunpack.c.h.bf16 %v5266
    %vm5523 = vcmask 523264
    %v5524 = vsel %vm5523, %v5267, 0.0
    %5525 = vadd.xlane.f32.xlu0 %v5524
    %v5526 = vpop.xlane.xlu0 %5525
    %v5527 = vsel %vm5523, %v5268, 0.0
    %5528 = vadd.xlane.f32.xlu0 %v5527
    %v5529 = vpop.xlane.xlu0 %5528
    %v5530 = vsel %vm5523, %v5269, 0.0
    %5531 = vadd.xlane.f32.xlu0 %v5530
    %v5532 = vpop.xlane.xlu0 %5531
    %v5533 = vsel %vm5523, %v5270, 0.0
    %5534 = vadd.xlane.f32.xlu0 %v5533
    %v5535 = vpop.xlane.xlu0 %5534
    %v5536 = vsel %vm5523, %v5271, 0.0
    %5537 = vadd.xlane.f32.xlu0 %v5536
    %v5538 = vpop.xlane.xlu0 %5537
    %v5539 = vsel %vm5523, %v5272, 0.0
    %5540 = vadd.xlane.f32.xlu0 %v5539
    %v5541 = vpop.xlane.xlu0 %5540
    %v5542 = vsel %vm5523, %v5273, 0.0
    %5543 = vadd.xlane.f32.xlu0 %v5542
    %v5544 = vpop.xlane.xlu0 %5543
    %v5545 = vsel %vm5523, %v5274, 0.0
    %5546 = vadd.xlane.f32.xlu0 %v5545
    %v5547 = vpop.xlane.xlu0 %5546
    %v5548 = vsel %vm5523, %v5275, 0.0
    %5549 = vadd.xlane.f32.xlu0 %v5548
    %v5550 = vpop.xlane.xlu0 %5549
    %v5551 = vsel %vm5523, %v5276, 0.0
    %5552 = vadd.xlane.f32.xlu0 %v5551
    %v5553 = vpop.xlane.xlu0 %5552
    %v5554 = vsel %vm5523, %v5277, 0.0
    %5555 = vadd.xlane.f32.xlu0 %v5554
    %v5556 = vpop.xlane.xlu0 %5555
    %v5557 = vsel %vm5523, %v5278, 0.0
    %5558 = vadd.xlane.f32.xlu0 %v5557
    %v5559 = vpop.xlane.xlu0 %5558
    %v5560 = vsel %vm5523, %v5279, 0.0
    %5561 = vadd.xlane.f32.xlu0 %v5560
    %v5562 = vpop.xlane.xlu0 %5561
    %v5563 = vsel %vm5523, %v5280, 0.0
    %5564 = vadd.xlane.f32.xlu0 %v5563
    %v5565 = vpop.xlane.xlu0 %5564
    %v5566 = vsel %vm5523, %v5281, 0.0
    %5567 = vadd.xlane.f32.xlu0 %v5566
    %v5568 = vpop.xlane.xlu0 %5567
    %v5569 = vsel %vm5523, %v5282, 0.0
    %5570 = vadd.xlane.f32.xlu0 %v5569
    %v5571 = vpop.xlane.xlu0 %5570
    %v5572 = vsel %vm5523, %v5283, 0.0
    %5573 = vadd.xlane.f32.xlu0 %v5572
    %v5574 = vpop.xlane.xlu0 %5573
    %v5575 = vsel %vm5523, %v5284, 0.0
    %5576 = vadd.xlane.f32.xlu0 %v5575
    %v5577 = vpop.xlane.xlu0 %5576
    %v5578 = vsel %vm5523, %v5285, 0.0
    %5579 = vadd.xlane.f32.xlu0 %v5578
    %v5580 = vpop.xlane.xlu0 %5579
    %v5581 = vsel %vm5523, %v5286, 0.0
    %5582 = vadd.xlane.f32.xlu0 %v5581
    %v5583 = vpop.xlane.xlu0 %5582
    %v5584 = vsel %vm5523, %v5287, 0.0
    %5585 = vadd.xlane.f32.xlu0 %v5584
    %v5586 = vpop.xlane.xlu0 %5585
    %v5587 = vsel %vm5523, %v5288, 0.0
    %5588 = vadd.xlane.f32.xlu0 %v5587
    %v5589 = vpop.xlane.xlu0 %5588
    %v5590 = vsel %vm5523, %v5289, 0.0
    %5591 = vadd.xlane.f32.xlu0 %v5590
    %v5592 = vpop.xlane.xlu0 %5591
    %v5593 = vsel %vm5523, %v5290, 0.0
    %5594 = vadd.xlane.f32.xlu0 %v5593
    %v5595 = vpop.xlane.xlu0 %5594
    %v5596 = vsel %vm5523, %v5291, 0.0
    %5597 = vadd.xlane.f32.xlu0 %v5596
    %v5598 = vpop.xlane.xlu0 %5597
    %v5599 = vsel %vm5523, %v5292, 0.0
    %5600 = vadd.xlane.f32.xlu0 %v5599
    %v5601 = vpop.xlane.xlu0 %5600
    %v5602 = vsel %vm5523, %v5293, 0.0
    %5603 = vadd.xlane.f32.xlu0 %v5602
    %v5604 = vpop.xlane.xlu0 %5603
    %v5605 = vsel %vm5523, %v5294, 0.0
    %5606 = vadd.xlane.f32.xlu0 %v5605
    %v5607 = vpop.xlane.xlu0 %5606
    %v5608 = vsel %vm5523, %v5295, 0.0
    %5609 = vadd.xlane.f32.xlu0 %v5608
    %v5610 = vpop.xlane.xlu0 %5609
    %v5611 = vsel %vm5523, %v5296, 0.0
    %5612 = vadd.xlane.f32.xlu0 %v5611
    %v5613 = vpop.xlane.xlu0 %5612
    %v5614 = vsel %vm5523, %v5297, 0.0
    %5615 = vadd.xlane.f32.xlu0 %v5614
    %v5616 = vpop.xlane.xlu0 %5615
    %v5617 = vsel %vm5523, %v5298, 0.0
    %5618 = vadd.xlane.f32.xlu0 %v5617
    %v5619 = vpop.xlane.xlu0 %5618
    %v5620 = vsel %vm5523, %v5299, 0.0
    %5621 = vadd.xlane.f32.xlu0 %v5620
    %v5622 = vpop.xlane.xlu0 %5621
    %v5623 = vsel %vm5523, %v5300, 0.0
    %5624 = vadd.xlane.f32.xlu0 %v5623
    %v5625 = vpop.xlane.xlu0 %5624
    %v5626 = vsel %vm5523, %v5301, 0.0
    %5627 = vadd.xlane.f32.xlu0 %v5626
    %v5628 = vpop.xlane.xlu0 %5627
    %v5629 = vsel %vm5523, %v5302, 0.0
    %5630 = vadd.xlane.f32.xlu0 %v5629
    %v5631 = vpop.xlane.xlu0 %5630
    %v5632 = vsel %vm5523, %v5303, 0.0
    %5633 = vadd.xlane.f32.xlu0 %v5632
    %v5634 = vpop.xlane.xlu0 %5633
    %v5635 = vsel %vm5523, %v5304, 0.0
    %5636 = vadd.xlane.f32.xlu0 %v5635
    %v5637 = vpop.xlane.xlu0 %5636
    %v5638 = vsel %vm5523, %v5305, 0.0
    %5639 = vadd.xlane.f32.xlu0 %v5638
    %v5640 = vpop.xlane.xlu0 %5639
    %v5641 = vsel %vm5523, %v5306, 0.0
    %5642 = vadd.xlane.f32.xlu0 %v5641
    %v5643 = vpop.xlane.xlu0 %5642
    %v5644 = vsel %vm5523, %v5307, 0.0
    %5645 = vadd.xlane.f32.xlu0 %v5644
    %v5646 = vpop.xlane.xlu0 %5645
    %v5647 = vsel %vm5523, %v5308, 0.0
    %5648 = vadd.xlane.f32.xlu0 %v5647
    %v5649 = vpop.xlane.xlu0 %5648
    %v5650 = vsel %vm5523, %v5309, 0.0
    %5651 = vadd.xlane.f32.xlu0 %v5650
    %v5652 = vpop.xlane.xlu0 %5651
    %v5653 = vsel %vm5523, %v5310, 0.0
    %5654 = vadd.xlane.f32.xlu0 %v5653
    %v5655 = vpop.xlane.xlu0 %5654
    %v5656 = vsel %vm5523, %v5311, 0.0
    %5657 = vadd.xlane.f32.xlu0 %v5656
    %v5658 = vpop.xlane.xlu0 %5657
    %v5659 = vsel %vm5523, %v5312, 0.0
    %5660 = vadd.xlane.f32.xlu0 %v5659
    %v5661 = vpop.xlane.xlu0 %5660
    %v5662 = vsel %vm5523, %v5313, 0.0
    %5663 = vadd.xlane.f32.xlu0 %v5662
    %v5664 = vpop.xlane.xlu0 %5663
    %v5665 = vsel %vm5523, %v5314, 0.0
    %5666 = vadd.xlane.f32.xlu0 %v5665
    %v5667 = vpop.xlane.xlu0 %5666
    %v5668 = vsel %vm5523, %v5315, 0.0
    %5669 = vadd.xlane.f32.xlu0 %v5668
    %v5670 = vpop.xlane.xlu0 %5669
    %v5671 = vsel %vm5523, %v5316, 0.0
    %5672 = vadd.xlane.f32.xlu0 %v5671
    %v5673 = vpop.xlane.xlu0 %5672
    %v5674 = vsel %vm5523, %v5317, 0.0
    %5675 = vadd.xlane.f32.xlu0 %v5674
    %v5676 = vpop.xlane.xlu0 %5675
    %v5677 = vsel %vm5523, %v5318, 0.0
    %5678 = vadd.xlane.f32.xlu0 %v5677
    %v5679 = vpop.xlane.xlu0 %5678
    %v5680 = vsel %vm5523, %v5319, 0.0
    %5681 = vadd.xlane.f32.xlu0 %v5680
    %v5682 = vpop.xlane.xlu0 %5681
    %v5683 = vsel %vm5523, %v5320, 0.0
    %5684 = vadd.xlane.f32.xlu0 %v5683
    %v5685 = vpop.xlane.xlu0 %5684
    %v5686 = vsel %vm5523, %v5321, 0.0
    %5687 = vadd.xlane.f32.xlu0 %v5686
    %v5688 = vpop.xlane.xlu0 %5687
    %v5689 = vsel %vm5523, %v5322, 0.0
    %5690 = vadd.xlane.f32.xlu0 %v5689
    %v5691 = vpop.xlane.xlu0 %5690
    %v5692 = vsel %vm5523, %v5323, 0.0
    %5693 = vadd.xlane.f32.xlu0 %v5692
    %v5694 = vpop.xlane.xlu0 %5693
    %v5695 = vsel %vm5523, %v5324, 0.0
    %5696 = vadd.xlane.f32.xlu0 %v5695
    %v5697 = vpop.xlane.xlu0 %5696
    %v5698 = vsel %vm5523, %v5325, 0.0
    %5699 = vadd.xlane.f32.xlu0 %v5698
    %v5700 = vpop.xlane.xlu0 %5699
    %v5701 = vsel %vm5523, %v5326, 0.0
    %5702 = vadd.xlane.f32.xlu0 %v5701
    %v5703 = vpop.xlane.xlu0 %5702
    %v5704 = vsel %vm5523, %v5327, 0.0
    %5705 = vadd.xlane.f32.xlu0 %v5704
    %v5706 = vpop.xlane.xlu0 %5705
    %v5707 = vsel %vm5523, %v5328, 0.0
    %5708 = vadd.xlane.f32.xlu0 %v5707
    %v5709 = vpop.xlane.xlu0 %5708
    %v5710 = vsel %vm5523, %v5329, 0.0
    %5711 = vadd.xlane.f32.xlu0 %v5710
    %v5712 = vpop.xlane.xlu0 %5711
    %v5713 = vsel %vm5523, %v5330, 0.0
    %5714 = vadd.xlane.f32.xlu0 %v5713
    %v5715 = vpop.xlane.xlu0 %5714
    %v5716 = vsel %vm5523, %v5331, 0.0
    %5717 = vadd.xlane.f32.xlu0 %v5716
    %v5718 = vpop.xlane.xlu0 %5717
    %v5719 = vsel %vm5523, %v5332, 0.0
    %5720 = vadd.xlane.f32.xlu0 %v5719
    %v5721 = vpop.xlane.xlu0 %5720
    %v5722 = vsel %vm5523, %v5333, 0.0
    %5723 = vadd.xlane.f32.xlu0 %v5722
    %v5724 = vpop.xlane.xlu0 %5723
    %v5725 = vsel %vm5523, %v5334, 0.0
    %5726 = vadd.xlane.f32.xlu0 %v5725
    %v5727 = vpop.xlane.xlu0 %5726
    %v5728 = vsel %vm5523, %v5335, 0.0
    %5729 = vadd.xlane.f32.xlu0 %v5728
    %v5730 = vpop.xlane.xlu0 %5729
    %v5731 = vsel %vm5523, %v5336, 0.0
    %5732 = vadd.xlane.f32.xlu0 %v5731
    %v5733 = vpop.xlane.xlu0 %5732
    %v5734 = vsel %vm5523, %v5337, 0.0
    %5735 = vadd.xlane.f32.xlu0 %v5734
    %v5736 = vpop.xlane.xlu0 %5735
    %v5737 = vsel %vm5523, %v5338, 0.0
    %5738 = vadd.xlane.f32.xlu0 %v5737
    %v5739 = vpop.xlane.xlu0 %5738
    %v5740 = vsel %vm5523, %v5339, 0.0
    %5741 = vadd.xlane.f32.xlu0 %v5740
    %v5742 = vpop.xlane.xlu0 %5741
    %v5743 = vsel %vm5523, %v5340, 0.0
    %5744 = vadd.xlane.f32.xlu0 %v5743
    %v5745 = vpop.xlane.xlu0 %5744
    %v5746 = vsel %vm5523, %v5341, 0.0
    %5747 = vadd.xlane.f32.xlu0 %v5746
    %v5748 = vpop.xlane.xlu0 %5747
    %v5749 = vsel %vm5523, %v5342, 0.0
    %5750 = vadd.xlane.f32.xlu0 %v5749
    %v5751 = vpop.xlane.xlu0 %5750
    %v5752 = vsel %vm5523, %v5343, 0.0
    %5753 = vadd.xlane.f32.xlu0 %v5752
    %v5754 = vpop.xlane.xlu0 %5753
    %v5755 = vsel %vm5523, %v5344, 0.0
    %5756 = vadd.xlane.f32.xlu0 %v5755
    %v5757 = vpop.xlane.xlu0 %5756
    %v5758 = vsel %vm5523, %v5345, 0.0
    %5759 = vadd.xlane.f32.xlu0 %v5758
    %v5760 = vpop.xlane.xlu0 %5759
    %v5761 = vsel %vm5523, %v5346, 0.0
    %5762 = vadd.xlane.f32.xlu0 %v5761
    %v5763 = vpop.xlane.xlu0 %5762
    %v5764 = vsel %vm5523, %v5347, 0.0
    %5765 = vadd.xlane.f32.xlu0 %v5764
    %v5766 = vpop.xlane.xlu0 %5765
    %v5767 = vsel %vm5523, %v5348, 0.0
    %5768 = vadd.xlane.f32.xlu0 %v5767
    %v5769 = vpop.xlane.xlu0 %5768
    %v5770 = vsel %vm5523, %v5349, 0.0
    %5771 = vadd.xlane.f32.xlu0 %v5770
    %v5772 = vpop.xlane.xlu0 %5771
    %v5773 = vsel %vm5523, %v5350, 0.0
    %5774 = vadd.xlane.f32.xlu0 %v5773
    %v5775 = vpop.xlane.xlu0 %5774
    %v5776 = vsel %vm5523, %v5351, 0.0
    %5777 = vadd.xlane.f32.xlu0 %v5776
    %v5778 = vpop.xlane.xlu0 %5777
    %v5779 = vsel %vm5523, %v5352, 0.0
    %5780 = vadd.xlane.f32.xlu0 %v5779
    %v5781 = vpop.xlane.xlu0 %5780
    %v5782 = vsel %vm5523, %v5353, 0.0
    %5783 = vadd.xlane.f32.xlu0 %v5782
    %v5784 = vpop.xlane.xlu0 %5783
    %v5785 = vsel %vm5523, %v5354, 0.0
    %5786 = vadd.xlane.f32.xlu0 %v5785
    %v5787 = vpop.xlane.xlu0 %5786
    %v5788 = vsel %vm5523, %v5355, 0.0
    %5789 = vadd.xlane.f32.xlu0 %v5788
    %v5790 = vpop.xlane.xlu0 %5789
    %v5791 = vsel %vm5523, %v5356, 0.0
    %5792 = vadd.xlane.f32.xlu0 %v5791
    %v5793 = vpop.xlane.xlu0 %5792
    %v5794 = vsel %vm5523, %v5357, 0.0
    %5795 = vadd.xlane.f32.xlu0 %v5794
    %v5796 = vpop.xlane.xlu0 %5795
    %v5797 = vsel %vm5523, %v5358, 0.0
    %5798 = vadd.xlane.f32.xlu0 %v5797
    %v5799 = vpop.xlane.xlu0 %5798
    %v5800 = vsel %vm5523, %v5359, 0.0
    %5801 = vadd.xlane.f32.xlu0 %v5800
    %v5802 = vpop.xlane.xlu0 %5801
    %v5803 = vsel %vm5523, %v5360, 0.0
    %5804 = vadd.xlane.f32.xlu0 %v5803
    %v5805 = vpop.xlane.xlu0 %5804
    %v5806 = vsel %vm5523, %v5361, 0.0
    %5807 = vadd.xlane.f32.xlu0 %v5806
    %v5808 = vpop.xlane.xlu0 %5807
    %v5809 = vsel %vm5523, %v5362, 0.0
    %5810 = vadd.xlane.f32.xlu0 %v5809
    %v5811 = vpop.xlane.xlu0 %5810
    %v5812 = vsel %vm5523, %v5363, 0.0
    %5813 = vadd.xlane.f32.xlu0 %v5812
    %v5814 = vpop.xlane.xlu0 %5813
    %v5815 = vsel %vm5523, %v5364, 0.0
    %5816 = vadd.xlane.f32.xlu0 %v5815
    %v5817 = vpop.xlane.xlu0 %5816
    %v5818 = vsel %vm5523, %v5365, 0.0
    %5819 = vadd.xlane.f32.xlu0 %v5818
    %v5820 = vpop.xlane.xlu0 %5819
    %v5821 = vsel %vm5523, %v5366, 0.0
    %5822 = vadd.xlane.f32.xlu0 %v5821
    %v5823 = vpop.xlane.xlu0 %5822
    %v5824 = vsel %vm5523, %v5367, 0.0
    %5825 = vadd.xlane.f32.xlu0 %v5824
    %v5826 = vpop.xlane.xlu0 %5825
    %v5827 = vsel %vm5523, %v5368, 0.0
    %5828 = vadd.xlane.f32.xlu0 %v5827
    %v5829 = vpop.xlane.xlu0 %5828
    %v5830 = vsel %vm5523, %v5369, 0.0
    %5831 = vadd.xlane.f32.xlu0 %v5830
    %v5832 = vpop.xlane.xlu0 %5831
    %v5833 = vsel %vm5523, %v5370, 0.0
    %5834 = vadd.xlane.f32.xlu0 %v5833
    %v5835 = vpop.xlane.xlu0 %5834
    %v5836 = vsel %vm5523, %v5371, 0.0
    %5837 = vadd.xlane.f32.xlu0 %v5836
    %v5838 = vpop.xlane.xlu0 %5837
    %v5839 = vsel %vm5523, %v5372, 0.0
    %5840 = vadd.xlane.f32.xlu0 %v5839
    %v5841 = vpop.xlane.xlu0 %5840
    %v5842 = vsel %vm5523, %v5373, 0.0
    %5843 = vadd.xlane.f32.xlu0 %v5842
    %v5844 = vpop.xlane.xlu0 %5843
    %v5845 = vsel %vm5523, %v5374, 0.0
    %5846 = vadd.xlane.f32.xlu0 %v5845
    %v5847 = vpop.xlane.xlu0 %5846
    %v5848 = vsel %vm5523, %v5375, 0.0
    %5849 = vadd.xlane.f32.xlu0 %v5848
    %v5850 = vpop.xlane.xlu0 %5849
    %v5851 = vsel %vm5523, %v5376, 0.0
    %5852 = vadd.xlane.f32.xlu0 %v5851
    %v5853 = vpop.xlane.xlu0 %5852
    %v5854 = vsel %vm5523, %v5377, 0.0
    %5855 = vadd.xlane.f32.xlu0 %v5854
    %v5856 = vpop.xlane.xlu0 %5855
    %v5857 = vsel %vm5523, %v5378, 0.0
    %5858 = vadd.xlane.f32.xlu0 %v5857
    %v5859 = vpop.xlane.xlu0 %5858
    %v5860 = vsel %vm5523, %v5379, 0.0
    %5861 = vadd.xlane.f32.xlu0 %v5860
    %v5862 = vpop.xlane.xlu0 %5861
    %v5863 = vsel %vm5523, %v5380, 0.0
    %5864 = vadd.xlane.f32.xlu0 %v5863
    %v5865 = vpop.xlane.xlu0 %5864
    %v5866 = vsel %vm5523, %v5381, 0.0
    %5867 = vadd.xlane.f32.xlu0 %v5866
    %v5868 = vpop.xlane.xlu0 %5867
    %v5869 = vsel %vm5523, %v5382, 0.0
    %5870 = vadd.xlane.f32.xlu0 %v5869
    %v5871 = vpop.xlane.xlu0 %5870
    %v5872 = vsel %vm5523, %v5383, 0.0
    %5873 = vadd.xlane.f32.xlu0 %v5872
    %v5874 = vpop.xlane.xlu0 %5873
    %v5875 = vsel %vm5523, %v5384, 0.0
    %5876 = vadd.xlane.f32.xlu0 %v5875
    %v5877 = vpop.xlane.xlu0 %5876
    %v5878 = vsel %vm5523, %v5385, 0.0
    %5879 = vadd.xlane.f32.xlu0 %v5878
    %v5880 = vpop.xlane.xlu0 %5879
    %v5881 = vsel %vm5523, %v5386, 0.0
    %5882 = vadd.xlane.f32.xlu0 %v5881
    %v5883 = vpop.xlane.xlu0 %5882
    %v5884 = vsel %vm5523, %v5387, 0.0
    %5885 = vadd.xlane.f32.xlu0 %v5884
    %v5886 = vpop.xlane.xlu0 %5885
    %v5887 = vsel %vm5523, %v5388, 0.0
    %5888 = vadd.xlane.f32.xlu0 %v5887
    %v5889 = vpop.xlane.xlu0 %5888
    %v5890 = vsel %vm5523, %v5389, 0.0
    %5891 = vadd.xlane.f32.xlu0 %v5890
    %v5892 = vpop.xlane.xlu0 %5891
    %v5893 = vsel %vm5523, %v5390, 0.0
    %5894 = vadd.xlane.f32.xlu0 %v5893
    %v5895 = vpop.xlane.xlu0 %5894
    %v5896 = vsel %vm5523, %v5391, 0.0
    %5897 = vadd.xlane.f32.xlu0 %v5896
    %v5898 = vpop.xlane.xlu0 %5897
    %v5899 = vsel %vm5523, %v5392, 0.0
    %5900 = vadd.xlane.f32.xlu0 %v5899
    %v5901 = vpop.xlane.xlu0 %5900
    %v5902 = vsel %vm5523, %v5393, 0.0
    %5903 = vadd.xlane.f32.xlu0 %v5902
    %v5904 = vpop.xlane.xlu0 %5903
    %v5905 = vsel %vm5523, %v5394, 0.0
    %5906 = vadd.xlane.f32.xlu0 %v5905
    %v5907 = vpop.xlane.xlu0 %5906
    %v5908 = vsel %vm5523, %v5395, 0.0
    %5909 = vadd.xlane.f32.xlu0 %v5908
    %v5910 = vpop.xlane.xlu0 %5909
    %v5911 = vsel %vm5523, %v5396, 0.0
    %5912 = vadd.xlane.f32.xlu0 %v5911
    %v5913 = vpop.xlane.xlu0 %5912
    %v5914 = vsel %vm5523, %v5397, 0.0
    %5915 = vadd.xlane.f32.xlu0 %v5914
    %v5916 = vpop.xlane.xlu0 %5915
    %v5917 = vsel %vm5523, %v5398, 0.0
    %5918 = vadd.xlane.f32.xlu0 %v5917
    %v5919 = vpop.xlane.xlu0 %5918
    %v5920 = vsel %vm5523, %v5399, 0.0
    %5921 = vadd.xlane.f32.xlu0 %v5920
    %v5922 = vpop.xlane.xlu0 %5921
    %v5923 = vsel %vm5523, %v5400, 0.0
    %5924 = vadd.xlane.f32.xlu0 %v5923
    %v5925 = vpop.xlane.xlu0 %5924
    %v5926 = vsel %vm5523, %v5401, 0.0
    %5927 = vadd.xlane.f32.xlu0 %v5926
    %v5928 = vpop.xlane.xlu0 %5927
    %v5929 = vsel %vm5523, %v5402, 0.0
    %5930 = vadd.xlane.f32.xlu0 %v5929
    %v5931 = vpop.xlane.xlu0 %5930
    %v5932 = vsel %vm5523, %v5403, 0.0
    %5933 = vadd.xlane.f32.xlu0 %v5932
    %v5934 = vpop.xlane.xlu0 %5933
    %v5935 = vsel %vm5523, %v5404, 0.0
    %5936 = vadd.xlane.f32.xlu0 %v5935
    %v5937 = vpop.xlane.xlu0 %5936
    %v5938 = vsel %vm5523, %v5405, 0.0
    %5939 = vadd.xlane.f32.xlu0 %v5938
    %v5940 = vpop.xlane.xlu0 %5939
    %v5941 = vsel %vm5523, %v5406, 0.0
    %5942 = vadd.xlane.f32.xlu0 %v5941
    %v5943 = vpop.xlane.xlu0 %5942
    %v5944 = vsel %vm5523, %v5407, 0.0
    %5945 = vadd.xlane.f32.xlu0 %v5944
    %v5946 = vpop.xlane.xlu0 %5945
    %v5947 = vsel %vm5523, %v5408, 0.0
    %5948 = vadd.xlane.f32.xlu0 %v5947
    %v5949 = vpop.xlane.xlu0 %5948
    %v5950 = vsel %vm5523, %v5409, 0.0
    %5951 = vadd.xlane.f32.xlu0 %v5950
    %v5952 = vpop.xlane.xlu0 %5951
    %v5953 = vsel %vm5523, %v5410, 0.0
    %5954 = vadd.xlane.f32.xlu0 %v5953
    %v5955 = vpop.xlane.xlu0 %5954
    %v5956 = vsel %vm5523, %v5411, 0.0
    %5957 = vadd.xlane.f32.xlu0 %v5956
    %v5958 = vpop.xlane.xlu0 %5957
    %v5959 = vsel %vm5523, %v5412, 0.0
    %5960 = vadd.xlane.f32.xlu0 %v5959
    %v5961 = vpop.xlane.xlu0 %5960
    %v5962 = vsel %vm5523, %v5413, 0.0
    %5963 = vadd.xlane.f32.xlu0 %v5962
    %v5964 = vpop.xlane.xlu0 %5963
    %v5965 = vsel %vm5523, %v5414, 0.0
    %5966 = vadd.xlane.f32.xlu0 %v5965
    %v5967 = vpop.xlane.xlu0 %5966
    %v5968 = vsel %vm5523, %v5415, 0.0
    %5969 = vadd.xlane.f32.xlu0 %v5968
    %v5970 = vpop.xlane.xlu0 %5969
    %v5971 = vsel %vm5523, %v5416, 0.0
    %5972 = vadd.xlane.f32.xlu0 %v5971
    %v5973 = vpop.xlane.xlu0 %5972
    %v5974 = vsel %vm5523, %v5417, 0.0
    %5975 = vadd.xlane.f32.xlu0 %v5974
    %v5976 = vpop.xlane.xlu0 %5975
    %v5977 = vsel %vm5523, %v5418, 0.0
    %5978 = vadd.xlane.f32.xlu0 %v5977
    %v5979 = vpop.xlane.xlu0 %5978
    %v5980 = vsel %vm5523, %v5419, 0.0
    %5981 = vadd.xlane.f32.xlu0 %v5980
    %v5982 = vpop.xlane.xlu0 %5981
    %v5983 = vsel %vm5523, %v5420, 0.0
    %5984 = vadd.xlane.f32.xlu0 %v5983
    %v5985 = vpop.xlane.xlu0 %5984
    %v5986 = vsel %vm5523, %v5421, 0.0
    %5987 = vadd.xlane.f32.xlu0 %v5986
    %v5988 = vpop.xlane.xlu0 %5987
    %v5989 = vsel %vm5523, %v5422, 0.0
    %5990 = vadd.xlane.f32.xlu0 %v5989
    %v5991 = vpop.xlane.xlu0 %5990
    %v5992 = vsel %vm5523, %v5423, 0.0
    %5993 = vadd.xlane.f32.xlu0 %v5992
    %v5994 = vpop.xlane.xlu0 %5993
    %v5995 = vsel %vm5523, %v5424, 0.0
    %5996 = vadd.xlane.f32.xlu0 %v5995
    %v5997 = vpop.xlane.xlu0 %5996
    %v5998 = vsel %vm5523, %v5425, 0.0
    %5999 = vadd.xlane.f32.xlu0 %v5998
    %v6000 = vpop.xlane.xlu0 %5999
    %v6001 = vsel %vm5523, %v5426, 0.0
    %6002 = vadd.xlane.f32.xlu0 %v6001
    %v6003 = vpop.xlane.xlu0 %6002
    %v6004 = vsel %vm5523, %v5427, 0.0
    %6005 = vadd.xlane.f32.xlu0 %v6004
    %v6006 = vpop.xlane.xlu0 %6005
    %v6007 = vsel %vm5523, %v5428, 0.0
    %6008 = vadd.xlane.f32.xlu0 %v6007
    %v6009 = vpop.xlane.xlu0 %6008
    %v6010 = vsel %vm5523, %v5429, 0.0
    %6011 = vadd.xlane.f32.xlu0 %v6010
    %v6012 = vpop.xlane.xlu0 %6011
    %v6013 = vsel %vm5523, %v5430, 0.0
    %6014 = vadd.xlane.f32.xlu0 %v6013
    %v6015 = vpop.xlane.xlu0 %6014
    %v6016 = vsel %vm5523, %v5431, 0.0
    %6017 = vadd.xlane.f32.xlu0 %v6016
    %v6018 = vpop.xlane.xlu0 %6017
    %v6019 = vsel %vm5523, %v5432, 0.0
    %6020 = vadd.xlane.f32.xlu0 %v6019
    %v6021 = vpop.xlane.xlu0 %6020
    %v6022 = vsel %vm5523, %v5433, 0.0
    %6023 = vadd.xlane.f32.xlu0 %v6022
    %v6024 = vpop.xlane.xlu0 %6023
    %v6025 = vsel %vm5523, %v5434, 0.0
    %6026 = vadd.xlane.f32.xlu0 %v6025
    %v6027 = vpop.xlane.xlu0 %6026
    %v6028 = vsel %vm5523, %v5435, 0.0
    %6029 = vadd.xlane.f32.xlu0 %v6028
    %v6030 = vpop.xlane.xlu0 %6029
    %v6031 = vsel %vm5523, %v5436, 0.0
    %6032 = vadd.xlane.f32.xlu0 %v6031
    %v6033 = vpop.xlane.xlu0 %6032
    %v6034 = vsel %vm5523, %v5437, 0.0
    %6035 = vadd.xlane.f32.xlu0 %v6034
    %v6036 = vpop.xlane.xlu0 %6035
    %v6037 = vsel %vm5523, %v5438, 0.0
    %6038 = vadd.xlane.f32.xlu0 %v6037
    %v6039 = vpop.xlane.xlu0 %6038
    %v6040 = vsel %vm5523, %v5439, 0.0
    %6041 = vadd.xlane.f32.xlu0 %v6040
    %v6042 = vpop.xlane.xlu0 %6041
    %v6043 = vsel %vm5523, %v5440, 0.0
    %6044 = vadd.xlane.f32.xlu0 %v6043
    %v6045 = vpop.xlane.xlu0 %6044
    %v6046 = vsel %vm5523, %v5441, 0.0
    %6047 = vadd.xlane.f32.xlu0 %v6046
    %v6048 = vpop.xlane.xlu0 %6047
    %v6049 = vsel %vm5523, %v5442, 0.0
    %6050 = vadd.xlane.f32.xlu0 %v6049
    %v6051 = vpop.xlane.xlu0 %6050
    %v6052 = vsel %vm5523, %v5443, 0.0
    %6053 = vadd.xlane.f32.xlu0 %v6052
    %v6054 = vpop.xlane.xlu0 %6053
    %v6055 = vsel %vm5523, %v5444, 0.0
    %6056 = vadd.xlane.f32.xlu0 %v6055
    %v6057 = vpop.xlane.xlu0 %6056
    %v6058 = vsel %vm5523, %v5445, 0.0
    %6059 = vadd.xlane.f32.xlu0 %v6058
    %v6060 = vpop.xlane.xlu0 %6059
    %v6061 = vsel %vm5523, %v5446, 0.0
    %6062 = vadd.xlane.f32.xlu0 %v6061
    %v6063 = vpop.xlane.xlu0 %6062
    %v6064 = vsel %vm5523, %v5447, 0.0
    %6065 = vadd.xlane.f32.xlu0 %v6064
    %v6066 = vpop.xlane.xlu0 %6065
    %v6067 = vsel %vm5523, %v5448, 0.0
    %6068 = vadd.xlane.f32.xlu0 %v6067
    %v6069 = vpop.xlane.xlu0 %6068
    %v6070 = vsel %vm5523, %v5449, 0.0
    %6071 = vadd.xlane.f32.xlu0 %v6070
    %v6072 = vpop.xlane.xlu0 %6071
    %v6073 = vsel %vm5523, %v5450, 0.0
    %6074 = vadd.xlane.f32.xlu0 %v6073
    %v6075 = vpop.xlane.xlu0 %6074
    %v6076 = vsel %vm5523, %v5451, 0.0
    %6077 = vadd.xlane.f32.xlu0 %v6076
    %v6078 = vpop.xlane.xlu0 %6077
    %v6079 = vsel %vm5523, %v5452, 0.0
    %6080 = vadd.xlane.f32.xlu0 %v6079
    %v6081 = vpop.xlane.xlu0 %6080
    %v6082 = vsel %vm5523, %v5453, 0.0
    %6083 = vadd.xlane.f32.xlu0 %v6082
    %v6084 = vpop.xlane.xlu0 %6083
    %v6085 = vsel %vm5523, %v5454, 0.0
    %6086 = vadd.xlane.f32.xlu0 %v6085
    %v6087 = vpop.xlane.xlu0 %6086
    %v6088 = vsel %vm5523, %v5455, 0.0
    %6089 = vadd.xlane.f32.xlu0 %v6088
    %v6090 = vpop.xlane.xlu0 %6089
    %v6091 = vsel %vm5523, %v5456, 0.0
    %6092 = vadd.xlane.f32.xlu0 %v6091
    %v6093 = vpop.xlane.xlu0 %6092
    %v6094 = vsel %vm5523, %v5457, 0.0
    %6095 = vadd.xlane.f32.xlu0 %v6094
    %v6096 = vpop.xlane.xlu0 %6095
    %v6097 = vsel %vm5523, %v5458, 0.0
    %6098 = vadd.xlane.f32.xlu0 %v6097
    %v6099 = vpop.xlane.xlu0 %6098
    %v6100 = vsel %vm5523, %v5459, 0.0
    %6101 = vadd.xlane.f32.xlu0 %v6100
    %v6102 = vpop.xlane.xlu0 %6101
    %v6103 = vsel %vm5523, %v5460, 0.0
    %6104 = vadd.xlane.f32.xlu0 %v6103
    %v6105 = vpop.xlane.xlu0 %6104
    %v6106 = vsel %vm5523, %v5461, 0.0
    %6107 = vadd.xlane.f32.xlu0 %v6106
    %v6108 = vpop.xlane.xlu0 %6107
    %v6109 = vsel %vm5523, %v5462, 0.0
    %6110 = vadd.xlane.f32.xlu0 %v6109
    %v6111 = vpop.xlane.xlu0 %6110
    %v6112 = vsel %vm5523, %v5463, 0.0
    %6113 = vadd.xlane.f32.xlu0 %v6112
    %v6114 = vpop.xlane.xlu0 %6113
    %v6115 = vsel %vm5523, %v5464, 0.0
    %6116 = vadd.xlane.f32.xlu0 %v6115
    %v6117 = vpop.xlane.xlu0 %6116
    %v6118 = vsel %vm5523, %v5465, 0.0
    %6119 = vadd.xlane.f32.xlu0 %v6118
    %v6120 = vpop.xlane.xlu0 %6119
    %v6121 = vsel %vm5523, %v5466, 0.0
    %6122 = vadd.xlane.f32.xlu0 %v6121
    %v6123 = vpop.xlane.xlu0 %6122
    %v6124 = vsel %vm5523, %v5467, 0.0
    %6125 = vadd.xlane.f32.xlu0 %v6124
    %v6126 = vpop.xlane.xlu0 %6125
    %v6127 = vsel %vm5523, %v5468, 0.0
    %6128 = vadd.xlane.f32.xlu0 %v6127
    %v6129 = vpop.xlane.xlu0 %6128
    %v6130 = vsel %vm5523, %v5469, 0.0
    %6131 = vadd.xlane.f32.xlu0 %v6130
    %v6132 = vpop.xlane.xlu0 %6131
    %v6133 = vsel %vm5523, %v5470, 0.0
    %6134 = vadd.xlane.f32.xlu0 %v6133
    %v6135 = vpop.xlane.xlu0 %6134
    %v6136 = vsel %vm5523, %v5471, 0.0
    %6137 = vadd.xlane.f32.xlu0 %v6136
    %v6138 = vpop.xlane.xlu0 %6137
    %v6139 = vsel %vm5523, %v5472, 0.0
    %6140 = vadd.xlane.f32.xlu0 %v6139
    %v6141 = vpop.xlane.xlu0 %6140
    %v6142 = vsel %vm5523, %v5473, 0.0
    %6143 = vadd.xlane.f32.xlu0 %v6142
    %v6144 = vpop.xlane.xlu0 %6143
    %v6145 = vsel %vm5523, %v5474, 0.0
    %6146 = vadd.xlane.f32.xlu0 %v6145
    %v6147 = vpop.xlane.xlu0 %6146
    %v6148 = vsel %vm5523, %v5475, 0.0
    %6149 = vadd.xlane.f32.xlu0 %v6148
    %v6150 = vpop.xlane.xlu0 %6149
    %v6151 = vsel %vm5523, %v5476, 0.0
    %6152 = vadd.xlane.f32.xlu0 %v6151
    %v6153 = vpop.xlane.xlu0 %6152
    %v6154 = vsel %vm5523, %v5477, 0.0
    %6155 = vadd.xlane.f32.xlu0 %v6154
    %v6156 = vpop.xlane.xlu0 %6155
    %v6157 = vsel %vm5523, %v5478, 0.0
    %6158 = vadd.xlane.f32.xlu0 %v6157
    %v6159 = vpop.xlane.xlu0 %6158
    %v6160 = vsel %vm5523, %v5479, 0.0
    %6161 = vadd.xlane.f32.xlu0 %v6160
    %v6162 = vpop.xlane.xlu0 %6161
    %v6163 = vsel %vm5523, %v5480, 0.0
    %6164 = vadd.xlane.f32.xlu0 %v6163
    %v6165 = vpop.xlane.xlu0 %6164
    %v6166 = vsel %vm5523, %v5481, 0.0
    %6167 = vadd.xlane.f32.xlu0 %v6166
    %v6168 = vpop.xlane.xlu0 %6167
    %v6169 = vsel %vm5523, %v5482, 0.0
    %6170 = vadd.xlane.f32.xlu0 %v6169
    %v6171 = vpop.xlane.xlu0 %6170
    %v6172 = vsel %vm5523, %v5483, 0.0
    %6173 = vadd.xlane.f32.xlu0 %v6172
    %v6174 = vpop.xlane.xlu0 %6173
    %v6175 = vsel %vm5523, %v5484, 0.0
    %6176 = vadd.xlane.f32.xlu0 %v6175
    %v6177 = vpop.xlane.xlu0 %6176
    %v6178 = vsel %vm5523, %v5485, 0.0
    %6179 = vadd.xlane.f32.xlu0 %v6178
    %v6180 = vpop.xlane.xlu0 %6179
    %v6181 = vsel %vm5523, %v5486, 0.0
    %6182 = vadd.xlane.f32.xlu0 %v6181
    %v6183 = vpop.xlane.xlu0 %6182
    %v6184 = vsel %vm5523, %v5487, 0.0
    %6185 = vadd.xlane.f32.xlu0 %v6184
    %v6186 = vpop.xlane.xlu0 %6185
    %v6187 = vsel %vm5523, %v5488, 0.0
    %6188 = vadd.xlane.f32.xlu0 %v6187
    %v6189 = vpop.xlane.xlu0 %6188
    %v6190 = vsel %vm5523, %v5489, 0.0
    %6191 = vadd.xlane.f32.xlu0 %v6190
    %v6192 = vpop.xlane.xlu0 %6191
    %v6193 = vsel %vm5523, %v5490, 0.0
    %6194 = vadd.xlane.f32.xlu0 %v6193
    %v6195 = vpop.xlane.xlu0 %6194
    %v6196 = vsel %vm5523, %v5491, 0.0
    %6197 = vadd.xlane.f32.xlu0 %v6196
    %v6198 = vpop.xlane.xlu0 %6197
    %v6199 = vsel %vm5523, %v5492, 0.0
    %6200 = vadd.xlane.f32.xlu0 %v6199
    %v6201 = vpop.xlane.xlu0 %6200
    %v6202 = vsel %vm5523, %v5493, 0.0
    %6203 = vadd.xlane.f32.xlu0 %v6202
    %v6204 = vpop.xlane.xlu0 %6203
    %v6205 = vsel %vm5523, %v5494, 0.0
    %6206 = vadd.xlane.f32.xlu0 %v6205
    %v6207 = vpop.xlane.xlu0 %6206
    %v6208 = vsel %vm5523, %v5495, 0.0
    %6209 = vadd.xlane.f32.xlu0 %v6208
    %v6210 = vpop.xlane.xlu0 %6209
    %v6211 = vsel %vm5523, %v5496, 0.0
    %6212 = vadd.xlane.f32.xlu0 %v6211
    %v6213 = vpop.xlane.xlu0 %6212
    %v6214 = vsel %vm5523, %v5497, 0.0
    %6215 = vadd.xlane.f32.xlu0 %v6214
    %v6216 = vpop.xlane.xlu0 %6215
    %v6217 = vsel %vm5523, %v5498, 0.0
    %6218 = vadd.xlane.f32.xlu0 %v6217
    %v6219 = vpop.xlane.xlu0 %6218
    %v6220 = vsel %vm5523, %v5499, 0.0
    %6221 = vadd.xlane.f32.xlu0 %v6220
    %v6222 = vpop.xlane.xlu0 %6221
    %v6223 = vsel %vm5523, %v5500, 0.0
    %6224 = vadd.xlane.f32.xlu0 %v6223
    %v6225 = vpop.xlane.xlu0 %6224
    %v6226 = vsel %vm5523, %v5501, 0.0
    %6227 = vadd.xlane.f32.xlu0 %v6226
    %v6228 = vpop.xlane.xlu0 %6227
    %v6229 = vsel %vm5523, %v5502, 0.0
    %6230 = vadd.xlane.f32.xlu0 %v6229
    %v6231 = vpop.xlane.xlu0 %6230
    %v6232 = vsel %vm5523, %v5503, 0.0
    %6233 = vadd.xlane.f32.xlu0 %v6232
    %v6234 = vpop.xlane.xlu0 %6233
    %v6235 = vsel %vm5523, %v5504, 0.0
    %6236 = vadd.xlane.f32.xlu0 %v6235
    %v6237 = vpop.xlane.xlu0 %6236
    %v6238 = vsel %vm5523, %v5505, 0.0
    %6239 = vadd.xlane.f32.xlu0 %v6238
    %v6240 = vpop.xlane.xlu0 %6239
    %v6241 = vsel %vm5523, %v5506, 0.0
    %6242 = vadd.xlane.f32.xlu0 %v6241
    %v6243 = vpop.xlane.xlu0 %6242
    %v6244 = vsel %vm5523, %v5507, 0.0
    %6245 = vadd.xlane.f32.xlu0 %v6244
    %v6246 = vpop.xlane.xlu0 %6245
    %v6247 = vsel %vm5523, %v5508, 0.0
    %6248 = vadd.xlane.f32.xlu0 %v6247
    %v6249 = vpop.xlane.xlu0 %6248
    %v6250 = vsel %vm5523, %v5509, 0.0
    %6251 = vadd.xlane.f32.xlu0 %v6250
    %v6252 = vpop.xlane.xlu0 %6251
    %v6253 = vsel %vm5523, %v5510, 0.0
    %6254 = vadd.xlane.f32.xlu0 %v6253
    %v6255 = vpop.xlane.xlu0 %6254
    %v6256 = vsel %vm5523, %v5511, 0.0
    %6257 = vadd.xlane.f32.xlu0 %v6256
    %v6258 = vpop.xlane.xlu0 %6257
    %v6259 = vsel %vm5523, %v5512, 0.0
    %6260 = vadd.xlane.f32.xlu0 %v6259
    %v6261 = vpop.xlane.xlu0 %6260
    %v6262 = vsel %vm5523, %v5513, 0.0
    %6263 = vadd.xlane.f32.xlu0 %v6262
    %v6264 = vpop.xlane.xlu0 %6263
    %v6265 = vsel %vm5523, %v5514, 0.0
    %6266 = vadd.xlane.f32.xlu0 %v6265
    %v6267 = vpop.xlane.xlu0 %6266
    %v6268 = vsel %vm5523, %v5515, 0.0
    %6269 = vadd.xlane.f32.xlu0 %v6268
    %v6270 = vpop.xlane.xlu0 %6269
    %v6271 = vsel %vm5523, %v5516, 0.0
    %6272 = vadd.xlane.f32.xlu0 %v6271
    %v6273 = vpop.xlane.xlu0 %6272
    %v6274 = vsel %vm5523, %v5517, 0.0
    %6275 = vadd.xlane.f32.xlu0 %v6274
    %v6276 = vpop.xlane.xlu0 %6275
    %v6277 = vsel %vm5523, %v5518, 0.0
    %6278 = vadd.xlane.f32.xlu0 %v6277
    %v6279 = vpop.xlane.xlu0 %6278
    %v6280 = vsel %vm5523, %v5519, 0.0
    %6281 = vadd.xlane.f32.xlu0 %v6280
    %v6282 = vpop.xlane.xlu0 %6281
    %v6283 = vsel %vm5523, %v5520, 0.0
    %6284 = vadd.xlane.f32.xlu0 %v6283
    %v6285 = vpop.xlane.xlu0 %6284
    %v6286 = vsel %vm5523, %v5521, 0.0
    %6287 = vadd.xlane.f32.xlu0 %v6286
    %v6288 = vpop.xlane.xlu0 %6287
    %v6289 = vsel %vm5523, %v5522, 0.0
    %6290 = vadd.xlane.f32.xlu0 %v6289
    %v6291 = vpop.xlane.xlu0 %6290
    %s6292 = sld [smem:[#allocation2]]
    %v6293 = vstv %s6292
    %v6294 = vadd.f32 %v5526, %v6293
    %v6295 = vadd.f32 %v5529, %v6293
    %v6296 = vadd.f32 %v5532, %v6293
    %v6297 = vadd.f32 %v5535, %v6293
    %v6298 = vadd.f32 %v5538, %v6293
    %v6299 = vadd.f32 %v5541, %v6293
    %v6300 = vadd.f32 %v5544, %v6293
    %v6301 = vadd.f32 %v5547, %v6293
    %v6302 = vadd.f32 %v5550, %v6293
    %v6303 = vadd.f32 %v5553, %v6293
    %v6304 = vadd.f32 %v5556, %v6293
    %v6305 = vadd.f32 %v5559, %v6293
    %v6306 = vadd.f32 %v5562, %v6293
    %v6307 = vadd.f32 %v5565, %v6293
    %v6308 = vadd.f32 %v5568, %v6293
    %v6309 = vadd.f32 %v5571, %v6293
    %v6310 = vadd.f32 %v5574, %v6293
    %v6311 = vadd.f32 %v5577, %v6293
    %v6312 = vadd.f32 %v5580, %v6293
    %v6313 = vadd.f32 %v5583, %v6293
    %v6314 = vadd.f32 %v5586, %v6293
    %v6315 = vadd.f32 %v5589, %v6293
    %v6316 = vadd.f32 %v5592, %v6293
    %v6317 = vadd.f32 %v5595, %v6293
    %v6318 = vadd.f32 %v5598, %v6293
    %v6319 = vadd.f32 %v5601, %v6293
    %v6320 = vadd.f32 %v5604, %v6293
    %v6321 = vadd.f32 %v5607, %v6293
    %v6322 = vadd.f32 %v5610, %v6293
    %v6323 = vadd.f32 %v5613, %v6293
    %v6324 = vadd.f32 %v5616, %v6293
    %v6325 = vadd.f32 %v5619, %v6293
    %v6326 = vadd.f32 %v5622, %v6293
    %v6327 = vadd.f32 %v5625, %v6293
    %v6328 = vadd.f32 %v5628, %v6293
    %v6329 = vadd.f32 %v5631, %v6293
    %v6330 = vadd.f32 %v5634, %v6293
    %v6331 = vadd.f32 %v5637, %v6293
    %v6332 = vadd.f32 %v5640, %v6293
    %v6333 = vadd.f32 %v5643, %v6293
    %v6334 = vadd.f32 %v5646, %v6293
    %v6335 = vadd.f32 %v5649, %v6293
    %v6336 = vadd.f32 %v5652, %v6293
    %v6337 = vadd.f32 %v5655, %v6293
    %v6338 = vadd.f32 %v5658, %v6293
    %v6339 = vadd.f32 %v5661, %v6293
    %v6340 = vadd.f32 %v5664, %v6293
    %v6341 = vadd.f32 %v5667, %v6293
    %v6342 = vadd.f32 %v5670, %v6293
    %v6343 = vadd.f32 %v5673, %v6293
    %v6344 = vadd.f32 %v5676, %v6293
    %v6345 = vadd.f32 %v5679, %v6293
    %v6346 = vadd.f32 %v5682, %v6293
    %v6347 = vadd.f32 %v5685, %v6293
    %v6348 = vadd.f32 %v5688, %v6293
    %v6349 = vadd.f32 %v5691, %v6293
    %v6350 = vadd.f32 %v5694, %v6293
    %v6351 = vadd.f32 %v5697, %v6293
    %v6352 = vadd.f32 %v5700, %v6293
    %v6353 = vadd.f32 %v5703, %v6293
    %v6354 = vadd.f32 %v5706, %v6293
    %v6355 = vadd.f32 %v5709, %v6293
    %v6356 = vadd.f32 %v5712, %v6293
    %v6357 = vadd.f32 %v5715, %v6293
    %v6358 = vadd.f32 %v5718, %v6293
    %v6359 = vadd.f32 %v5721, %v6293
    %v6360 = vadd.f32 %v5724, %v6293
    %v6361 = vadd.f32 %v5727, %v6293
    %v6362 = vadd.f32 %v5730, %v6293
    %v6363 = vadd.f32 %v5733, %v6293
    %v6364 = vadd.f32 %v5736, %v6293
    %v6365 = vadd.f32 %v5739, %v6293
    %v6366 = vadd.f32 %v5742, %v6293
    %v6367 = vadd.f32 %v5745, %v6293
    %v6368 = vadd.f32 %v5748, %v6293
    %v6369 = vadd.f32 %v5751, %v6293
    %v6370 = vadd.f32 %v5754, %v6293
    %v6371 = vadd.f32 %v5757, %v6293
    %v6372 = vadd.f32 %v5760, %v6293
    %v6373 = vadd.f32 %v5763, %v6293
    %v6374 = vadd.f32 %v5766, %v6293
    %v6375 = vadd.f32 %v5769, %v6293
    %v6376 = vadd.f32 %v5772, %v6293
    %v6377 = vadd.f32 %v5775, %v6293
    %v6378 = vadd.f32 %v5778, %v6293
    %v6379 = vadd.f32 %v5781, %v6293
    %v6380 = vadd.f32 %v5784, %v6293
    %v6381 = vadd.f32 %v5787, %v6293
    %v6382 = vadd.f32 %v5790, %v6293
    %v6383 = vadd.f32 %v5793, %v6293
    %v6384 = vadd.f32 %v5796, %v6293
    %v6385 = vadd.f32 %v5799, %v6293
    %v6386 = vadd.f32 %v5802, %v6293
    %v6387 = vadd.f32 %v5805, %v6293
    %v6388 = vadd.f32 %v5808, %v6293
    %v6389 = vadd.f32 %v5811, %v6293
    %v6390 = vadd.f32 %v5814, %v6293
    %v6391 = vadd.f32 %v5817, %v6293
    %v6392 = vadd.f32 %v5820, %v6293
    %v6393 = vadd.f32 %v5823, %v6293
    %v6394 = vadd.f32 %v5826, %v6293
    %v6395 = vadd.f32 %v5829, %v6293
    %v6396 = vadd.f32 %v5832, %v6293
    %v6397 = vadd.f32 %v5835, %v6293
    %v6398 = vadd.f32 %v5838, %v6293
    %v6399 = vadd.f32 %v5841, %v6293
    %v6400 = vadd.f32 %v5844, %v6293
    %v6401 = vadd.f32 %v5847, %v6293
    %v6402 = vadd.f32 %v5850, %v6293
    %v6403 = vadd.f32 %v5853, %v6293
    %v6404 = vadd.f32 %v5856, %v6293
    %v6405 = vadd.f32 %v5859, %v6293
    %v6406 = vadd.f32 %v5862, %v6293
    %v6407 = vadd.f32 %v5865, %v6293
    %v6408 = vadd.f32 %v5868, %v6293
    %v6409 = vadd.f32 %v5871, %v6293
    %v6410 = vadd.f32 %v5874, %v6293
    %v6411 = vadd.f32 %v5877, %v6293
    %v6412 = vadd.f32 %v5880, %v6293
    %v6413 = vadd.f32 %v5883, %v6293
    %v6414 = vadd.f32 %v5886, %v6293
    %v6415 = vadd.f32 %v5889, %v6293
    %v6416 = vadd.f32 %v5892, %v6293
    %v6417 = vadd.f32 %v5895, %v6293
    %v6418 = vadd.f32 %v5898, %v6293
    %v6419 = vadd.f32 %v5901, %v6293
    %v6420 = vadd.f32 %v5904, %v6293
    %v6421 = vadd.f32 %v5907, %v6293
    %v6422 = vadd.f32 %v5910, %v6293
    %v6423 = vadd.f32 %v5913, %v6293
    %v6424 = vadd.f32 %v5916, %v6293
    %v6425 = vadd.f32 %v5919, %v6293
    %v6426 = vadd.f32 %v5922, %v6293
    %v6427 = vadd.f32 %v5925, %v6293
    %v6428 = vadd.f32 %v5928, %v6293
    %v6429 = vadd.f32 %v5931, %v6293
    %v6430 = vadd.f32 %v5934, %v6293
    %v6431 = vadd.f32 %v5937, %v6293
    %v6432 = vadd.f32 %v5940, %v6293
    %v6433 = vadd.f32 %v5943, %v6293
    %v6434 = vadd.f32 %v5946, %v6293
    %v6435 = vadd.f32 %v5949, %v6293
    %v6436 = vadd.f32 %v5952, %v6293
    %v6437 = vadd.f32 %v5955, %v6293
    %v6438 = vadd.f32 %v5958, %v6293
    %v6439 = vadd.f32 %v5961, %v6293
    %v6440 = vadd.f32 %v5964, %v6293
    %v6441 = vadd.f32 %v5967, %v6293
    %v6442 = vadd.f32 %v5970, %v6293
    %v6443 = vadd.f32 %v5973, %v6293
    %v6444 = vadd.f32 %v5976, %v6293
    %v6445 = vadd.f32 %v5979, %v6293
    %v6446 = vadd.f32 %v5982, %v6293
    %v6447 = vadd.f32 %v5985, %v6293
    %v6448 = vadd.f32 %v5988, %v6293
    %v6449 = vadd.f32 %v5991, %v6293
    %v6450 = vadd.f32 %v5994, %v6293
    %v6451 = vadd.f32 %v5997, %v6293
    %v6452 = vadd.f32 %v6000, %v6293
    %v6453 = vadd.f32 %v6003, %v6293
    %v6454 = vadd.f32 %v6006, %v6293
    %v6455 = vadd.f32 %v6009, %v6293
    %v6456 = vadd.f32 %v6012, %v6293
    %v6457 = vadd.f32 %v6015, %v6293
    %v6458 = vadd.f32 %v6018, %v6293
    %v6459 = vadd.f32 %v6021, %v6293
    %v6460 = vadd.f32 %v6024, %v6293
    %v6461 = vadd.f32 %v6027, %v6293
    %v6462 = vadd.f32 %v6030, %v6293
    %v6463 = vadd.f32 %v6033, %v6293
    %v6464 = vadd.f32 %v6036, %v6293
    %v6465 = vadd.f32 %v6039, %v6293
    %v6466 = vadd.f32 %v6042, %v6293
    %v6467 = vadd.f32 %v6045, %v6293
    %v6468 = vadd.f32 %v6048, %v6293
    %v6469 = vadd.f32 %v6051, %v6293
    %v6470 = vadd.f32 %v6054, %v6293
    %v6471 = vadd.f32 %v6057, %v6293
    %v6472 = vadd.f32 %v6060, %v6293
    %v6473 = vadd.f32 %v6063, %v6293
    %v6474 = vadd.f32 %v6066, %v6293
    %v6475 = vadd.f32 %v6069, %v6293
    %v6476 = vadd.f32 %v6072, %v6293
    %v6477 = vadd.f32 %v6075, %v6293
    %v6478 = vadd.f32 %v6078, %v6293
    %v6479 = vadd.f32 %v6081, %v6293
    %v6480 = vadd.f32 %v6084, %v6293
    %v6481 = vadd.f32 %v6087, %v6293
    %v6482 = vadd.f32 %v6090, %v6293
    %v6483 = vadd.f32 %v6093, %v6293
    %v6484 = vadd.f32 %v6096, %v6293
    %v6485 = vadd.f32 %v6099, %v6293
    %v6486 = vadd.f32 %v6102, %v6293
    %v6487 = vadd.f32 %v6105, %v6293
    %v6488 = vadd.f32 %v6108, %v6293
    %v6489 = vadd.f32 %v6111, %v6293
    %v6490 = vadd.f32 %v6114, %v6293
    %v6491 = vadd.f32 %v6117, %v6293
    %v6492 = vadd.f32 %v6120, %v6293
    %v6493 = vadd.f32 %v6123, %v6293
    %v6494 = vadd.f32 %v6126, %v6293
    %v6495 = vadd.f32 %v6129, %v6293
    %v6496 = vadd.f32 %v6132, %v6293
    %v6497 = vadd.f32 %v6135, %v6293
    %v6498 = vadd.f32 %v6138, %v6293
    %v6499 = vadd.f32 %v6141, %v6293
    %v6500 = vadd.f32 %v6144, %v6293
    %v6501 = vadd.f32 %v6147, %v6293
    %v6502 = vadd.f32 %v6150, %v6293
    %v6503 = vadd.f32 %v6153, %v6293
    %v6504 = vadd.f32 %v6156, %v6293
    %v6505 = vadd.f32 %v6159, %v6293
    %v6506 = vadd.f32 %v6162, %v6293
    %v6507 = vadd.f32 %v6165, %v6293
    %v6508 = vadd.f32 %v6168, %v6293
    %v6509 = vadd.f32 %v6171, %v6293
    %v6510 = vadd.f32 %v6174, %v6293
    %v6511 = vadd.f32 %v6177, %v6293
    %v6512 = vadd.f32 %v6180, %v6293
    %v6513 = vadd.f32 %v6183, %v6293
    %v6514 = vadd.f32 %v6186, %v6293
    %v6515 = vadd.f32 %v6189, %v6293
    %v6516 = vadd.f32 %v6192, %v6293
    %v6517 = vadd.f32 %v6195, %v6293
    %v6518 = vadd.f32 %v6198, %v6293
    %v6519 = vadd.f32 %v6201, %v6293
    %v6520 = vadd.f32 %v6204, %v6293
    %v6521 = vadd.f32 %v6207, %v6293
    %v6522 = vadd.f32 %v6210, %v6293
    %v6523 = vadd.f32 %v6213, %v6293
    %v6524 = vadd.f32 %v6216, %v6293
    %v6525 = vadd.f32 %v6219, %v6293
    %v6526 = vadd.f32 %v6222, %v6293
    %v6527 = vadd.f32 %v6225, %v6293
    %v6528 = vadd.f32 %v6228, %v6293
    %v6529 = vadd.f32 %v6231, %v6293
    %v6530 = vadd.f32 %v6234, %v6293
    %v6531 = vadd.f32 %v6237, %v6293
    %v6532 = vadd.f32 %v6240, %v6293
    %v6533 = vadd.f32 %v6243, %v6293
    %v6534 = vadd.f32 %v6246, %v6293
    %v6535 = vadd.f32 %v6249, %v6293
    %v6536 = vadd.f32 %v6252, %v6293
    %v6537 = vadd.f32 %v6255, %v6293
    %v6538 = vadd.f32 %v6258, %v6293
    %v6539 = vadd.f32 %v6261, %v6293
    %v6540 = vadd.f32 %v6264, %v6293
    %v6541 = vadd.f32 %v6267, %v6293
    %v6542 = vadd.f32 %v6270, %v6293
    %v6543 = vadd.f32 %v6273, %v6293
    %v6544 = vadd.f32 %v6276, %v6293
    %v6545 = vadd.f32 %v6279, %v6293
    %v6546 = vadd.f32 %v6282, %v6293
    %v6547 = vadd.f32 %v6285, %v6293
    %v6548 = vadd.f32 %v6288, %v6293
    %v6549 = vadd.f32 %v6291, %v6293
    %v6550 = vxor.u32 %v6294, 2147483648
    %v6551 = vxor.u32 %v6295, 2147483648
    %v6552 = vxor.u32 %v6296, 2147483648
    %v6553 = vxor.u32 %v6297, 2147483648
    %v6554 = vxor.u32 %v6298, 2147483648
    %v6555 = vxor.u32 %v6299, 2147483648
    %v6556 = vxor.u32 %v6300, 2147483648
    %v6557 = vxor.u32 %v6301, 2147483648
    %v6558 = vxor.u32 %v6302, 2147483648
    %v6559 = vxor.u32 %v6303, 2147483648
    %v6560 = vxor.u32 %v6304, 2147483648
    %v6561 = vxor.u32 %v6305, 2147483648
    %v6562 = vxor.u32 %v6306, 2147483648
    %v6563 = vxor.u32 %v6307, 2147483648
    %v6564 = vxor.u32 %v6308, 2147483648
    %v6565 = vxor.u32 %v6309, 2147483648
    %v6566 = vxor.u32 %v6310, 2147483648
    %v6567 = vxor.u32 %v6311, 2147483648
    %v6568 = vxor.u32 %v6312, 2147483648
    %v6569 = vxor.u32 %v6313, 2147483648
    %v6570 = vxor.u32 %v6314, 2147483648
    %v6571 = vxor.u32 %v6315, 2147483648
    %v6572 = vxor.u32 %v6316, 2147483648
    %v6573 = vxor.u32 %v6317, 2147483648
    %v6574 = vxor.u32 %v6318, 2147483648
    %v6575 = vxor.u32 %v6319, 2147483648
    %v6576 = vxor.u32 %v6320, 2147483648
    %v6577 = vxor.u32 %v6321, 2147483648
    %v6578 = vxor.u32 %v6322, 2147483648
    %v6579 = vxor.u32 %v6323, 2147483648
    %v6580 = vxor.u32 %v6324, 2147483648
    %v6581 = vxor.u32 %v6325, 2147483648
    %v6582 = vxor.u32 %v6326, 2147483648
    %v6583 = vxor.u32 %v6327, 2147483648
    %v6584 = vxor.u32 %v6328, 2147483648
    %v6585 = vxor.u32 %v6329, 2147483648
    %v6586 = vxor.u32 %v6330, 2147483648
    %v6587 = vxor.u32 %v6331, 2147483648
    %v6588 = vxor.u32 %v6332, 2147483648
    %v6589 = vxor.u32 %v6333, 2147483648
    %v6590 = vxor.u32 %v6334, 2147483648
    %v6591 = vxor.u32 %v6335, 2147483648
    %v6592 = vxor.u32 %v6336, 2147483648
    %v6593 = vxor.u32 %v6337, 2147483648
    %v6594 = vxor.u32 %v6338, 2147483648
    %v6595 = vxor.u32 %v6339, 2147483648
    %v6596 = vxor.u32 %v6340, 2147483648
    %v6597 = vxor.u32 %v6341, 2147483648
    %v6598 = vxor.u32 %v6342, 2147483648
    %v6599 = vxor.u32 %v6343, 2147483648
    %v6600 = vxor.u32 %v6344, 2147483648
    %v6601 = vxor.u32 %v6345, 2147483648
    %v6602 = vxor.u32 %v6346, 2147483648
    %v6603 = vxor.u32 %v6347, 2147483648
    %v6604 = vxor.u32 %v6348, 2147483648
    %v6605 = vxor.u32 %v6349, 2147483648
    %v6606 = vxor.u32 %v6350, 2147483648
    %v6607 = vxor.u32 %v6351, 2147483648
    %v6608 = vxor.u32 %v6352, 2147483648
    %v6609 = vxor.u32 %v6353, 2147483648
    %v6610 = vxor.u32 %v6354, 2147483648
    %v6611 = vxor.u32 %v6355, 2147483648
    %v6612 = vxor.u32 %v6356, 2147483648
    %v6613 = vxor.u32 %v6357, 2147483648
    %v6614 = vxor.u32 %v6358, 2147483648
    %v6615 = vxor.u32 %v6359, 2147483648
    %v6616 = vxor.u32 %v6360, 2147483648
    %v6617 = vxor.u32 %v6361, 2147483648
    %v6618 = vxor.u32 %v6362, 2147483648
    %v6619 = vxor.u32 %v6363, 2147483648
    %v6620 = vxor.u32 %v6364, 2147483648
    %v6621 = vxor.u32 %v6365, 2147483648
    %v6622 = vxor.u32 %v6366, 2147483648
    %v6623 = vxor.u32 %v6367, 2147483648
    %v6624 = vxor.u32 %v6368, 2147483648
    %v6625 = vxor.u32 %v6369, 2147483648
    %v6626 = vxor.u32 %v6370, 2147483648
    %v6627 = vxor.u32 %v6371, 2147483648
    %v6628 = vxor.u32 %v6372, 2147483648
    %v6629 = vxor.u32 %v6373, 2147483648
    %v6630 = vxor.u32 %v6374, 2147483648
    %v6631 = vxor.u32 %v6375, 2147483648
    %v6632 = vxor.u32 %v6376, 2147483648
    %v6633 = vxor.u32 %v6377, 2147483648
    %v6634 = vxor.u32 %v6378, 2147483648
    %v6635 = vxor.u32 %v6379, 2147483648
    %v6636 = vxor.u32 %v6380, 2147483648
    %v6637 = vxor.u32 %v6381, 2147483648
    %v6638 = vxor.u32 %v6382, 2147483648
    %v6639 = vxor.u32 %v6383, 2147483648
    %v6640 = vxor.u32 %v6384, 2147483648
    %v6641 = vxor.u32 %v6385, 2147483648
    %v6642 = vxor.u32 %v6386, 2147483648
    %v6643 = vxor.u32 %v6387, 2147483648
    %v6644 = vxor.u32 %v6388, 2147483648
    %v6645 = vxor.u32 %v6389, 2147483648
    %v6646 = vxor.u32 %v6390, 2147483648
    %v6647 = vxor.u32 %v6391, 2147483648
    %v6648 = vxor.u32 %v6392, 2147483648
    %v6649 = vxor.u32 %v6393, 2147483648
    %v6650 = vxor.u32 %v6394, 2147483648
    %v6651 = vxor.u32 %v6395, 2147483648
    %v6652 = vxor.u32 %v6396, 2147483648
    %v6653 = vxor.u32 %v6397, 2147483648
    %v6654 = vxor.u32 %v6398, 2147483648
    %v6655 = vxor.u32 %v6399, 2147483648
    %v6656 = vxor.u32 %v6400, 2147483648
    %v6657 = vxor.u32 %v6401, 2147483648
    %v6658 = vxor.u32 %v6402, 2147483648
    %v6659 = vxor.u32 %v6403, 2147483648
    %v6660 = vxor.u32 %v6404, 2147483648
    %v6661 = vxor.u32 %v6405, 2147483648
    %v6662 = vxor.u32 %v6406, 2147483648
    %v6663 = vxor.u32 %v6407, 2147483648
    %v6664 = vxor.u32 %v6408, 2147483648
    %v6665 = vxor.u32 %v6409, 2147483648
    %v6666 = vxor.u32 %v6410, 2147483648
    %v6667 = vxor.u32 %v6411, 2147483648
    %v6668 = vxor.u32 %v6412, 2147483648
    %v6669 = vxor.u32 %v6413, 2147483648
    %v6670 = vxor.u32 %v6414, 2147483648
    %v6671 = vxor.u32 %v6415, 2147483648
    %v6672 = vxor.u32 %v6416, 2147483648
    %v6673 = vxor.u32 %v6417, 2147483648
    %v6674 = vxor.u32 %v6418, 2147483648
    %v6675 = vxor.u32 %v6419, 2147483648
    %v6676 = vxor.u32 %v6420, 2147483648
    %v6677 = vxor.u32 %v6421, 2147483648
    %v6678 = vxor.u32 %v6422, 2147483648
    %v6679 = vxor.u32 %v6423, 2147483648
    %v6680 = vxor.u32 %v6424, 2147483648
    %v6681 = vxor.u32 %v6425, 2147483648
    %v6682 = vxor.u32 %v6426, 2147483648
    %v6683 = vxor.u32 %v6427, 2147483648
    %v6684 = vxor.u32 %v6428, 2147483648
    %v6685 = vxor.u32 %v6429, 2147483648
    %v6686 = vxor.u32 %v6430, 2147483648
    %v6687 = vxor.u32 %v6431, 2147483648
    %v6688 = vxor.u32 %v6432, 2147483648
    %v6689 = vxor.u32 %v6433, 2147483648
    %v6690 = vxor.u32 %v6434, 2147483648
    %v6691 = vxor.u32 %v6435, 2147483648
    %v6692 = vxor.u32 %v6436, 2147483648
    %v6693 = vxor.u32 %v6437, 2147483648
    %v6694 = vxor.u32 %v6438, 2147483648
    %v6695 = vxor.u32 %v6439, 2147483648
    %v6696 = vxor.u32 %v6440, 2147483648
    %v6697 = vxor.u32 %v6441, 2147483648
    %v6698 = vxor.u32 %v6442, 2147483648
    %v6699 = vxor.u32 %v6443, 2147483648
    %v6700 = vxor.u32 %v6444, 2147483648
    %v6701 = vxor.u32 %v6445, 2147483648
    %v6702 = vxor.u32 %v6446, 2147483648
    %v6703 = vxor.u32 %v6447, 2147483648
    %v6704 = vxor.u32 %v6448, 2147483648
    %v6705 = vxor.u32 %v6449, 2147483648
    %v6706 = vxor.u32 %v6450, 2147483648
    %v6707 = vxor.u32 %v6451, 2147483648
    %v6708 = vxor.u32 %v6452, 2147483648
    %v6709 = vxor.u32 %v6453, 2147483648
    %v6710 = vxor.u32 %v6454, 2147483648
    %v6711 = vxor.u32 %v6455, 2147483648
    %v6712 = vxor.u32 %v6456, 2147483648
    %v6713 = vxor.u32 %v6457, 2147483648
    %v6714 = vxor.u32 %v6458, 2147483648
    %v6715 = vxor.u32 %v6459, 2147483648
    %v6716 = vxor.u32 %v6460, 2147483648
    %v6717 = vxor.u32 %v6461, 2147483648
    %v6718 = vxor.u32 %v6462, 2147483648
    %v6719 = vxor.u32 %v6463, 2147483648
    %v6720 = vxor.u32 %v6464, 2147483648
    %v6721 = vxor.u32 %v6465, 2147483648
    %v6722 = vxor.u32 %v6466, 2147483648
    %v6723 = vxor.u32 %v6467, 2147483648
    %v6724 = vxor.u32 %v6468, 2147483648
    %v6725 = vxor.u32 %v6469, 2147483648
    %v6726 = vxor.u32 %v6470, 2147483648
    %v6727 = vxor.u32 %v6471, 2147483648
    %v6728 = vxor.u32 %v6472, 2147483648
    %v6729 = vxor.u32 %v6473, 2147483648
    %v6730 = vxor.u32 %v6474, 2147483648
    %v6731 = vxor.u32 %v6475, 2147483648
    %v6732 = vxor.u32 %v6476, 2147483648
    %v6733 = vxor.u32 %v6477, 2147483648
    %v6734 = vxor.u32 %v6478, 2147483648
    %v6735 = vxor.u32 %v6479, 2147483648
    %v6736 = vxor.u32 %v6480, 2147483648
    %v6737 = vxor.u32 %v6481, 2147483648
    %v6738 = vxor.u32 %v6482, 2147483648
    %v6739 = vxor.u32 %v6483, 2147483648
    %v6740 = vxor.u32 %v6484, 2147483648
    %v6741 = vxor.u32 %v6485, 2147483648
    %v6742 = vxor.u32 %v6486, 2147483648
    %v6743 = vxor.u32 %v6487, 2147483648
    %v6744 = vxor.u32 %v6488, 2147483648
    %v6745 = vxor.u32 %v6489, 2147483648
    %v6746 = vxor.u32 %v6490, 2147483648
    %v6747 = vxor.u32 %v6491, 2147483648
    %v6748 = vxor.u32 %v6492, 2147483648
    %v6749 = vxor.u32 %v6493, 2147483648
    %v6750 = vxor.u32 %v6494, 2147483648
    %v6751 = vxor.u32 %v6495, 2147483648
    %v6752 = vxor.u32 %v6496, 2147483648
    %v6753 = vxor.u32 %v6497, 2147483648
    %v6754 = vxor.u32 %v6498, 2147483648
    %v6755 = vxor.u32 %v6499, 2147483648
    %v6756 = vxor.u32 %v6500, 2147483648
    %v6757 = vxor.u32 %v6501, 2147483648
    %v6758 = vxor.u32 %v6502, 2147483648
    %v6759 = vxor.u32 %v6503, 2147483648
    %v6760 = vxor.u32 %v6504, 2147483648
    %v6761 = vxor.u32 %v6505, 2147483648
    %v6762 = vxor.u32 %v6506, 2147483648
    %v6763 = vxor.u32 %v6507, 2147483648
    %v6764 = vxor.u32 %v6508, 2147483648
    %v6765 = vxor.u32 %v6509, 2147483648
    %v6766 = vxor.u32 %v6510, 2147483648
    %v6767 = vxor.u32 %v6511, 2147483648
    %v6768 = vxor.u32 %v6512, 2147483648
    %v6769 = vxor.u32 %v6513, 2147483648
    %v6770 = vxor.u32 %v6514, 2147483648
    %v6771 = vxor.u32 %v6515, 2147483648
    %v6772 = vxor.u32 %v6516, 2147483648
    %v6773 = vxor.u32 %v6517, 2147483648
    %v6774 = vxor.u32 %v6518, 2147483648
    %v6775 = vxor.u32 %v6519, 2147483648
    %v6776 = vxor.u32 %v6520, 2147483648
    %v6777 = vxor.u32 %v6521, 2147483648
    %v6778 = vxor.u32 %v6522, 2147483648
    %v6779 = vxor.u32 %v6523, 2147483648
    %v6780 = vxor.u32 %v6524, 2147483648
    %v6781 = vxor.u32 %v6525, 2147483648
    %v6782 = vxor.u32 %v6526, 2147483648
    %v6783 = vxor.u32 %v6527, 2147483648
    %v6784 = vxor.u32 %v6528, 2147483648
    %v6785 = vxor.u32 %v6529, 2147483648
    %v6786 = vxor.u32 %v6530, 2147483648
    %v6787 = vxor.u32 %v6531, 2147483648
    %v6788 = vxor.u32 %v6532, 2147483648
    %v6789 = vxor.u32 %v6533, 2147483648
    %v6790 = vxor.u32 %v6534, 2147483648
    %v6791 = vxor.u32 %v6535, 2147483648
    %v6792 = vxor.u32 %v6536, 2147483648
    %v6793 = vxor.u32 %v6537, 2147483648
    %v6794 = vxor.u32 %v6538, 2147483648
    %v6795 = vxor.u32 %v6539, 2147483648
    %v6796 = vxor.u32 %v6540, 2147483648
    %v6797 = vxor.u32 %v6541, 2147483648
    %v6798 = vxor.u32 %v6542, 2147483648
    %v6799 = vxor.u32 %v6543, 2147483648
    %v6800 = vxor.u32 %v6544, 2147483648
    %v6801 = vxor.u32 %v6545, 2147483648
    %v6802 = vxor.u32 %v6546, 2147483648
    %v6803 = vxor.u32 %v6547, 2147483648
    %v6804 = vxor.u32 %v6548, 2147483648
    %v6805 = vxor.u32 %v6549, 2147483648
    %v6806 = vmul.f32 %v6550, 1.442695
    %v6807 = vpow.pop %v6806
    %v6808 = vmul.f32 %v6551, 1.442695
    %v6809 = vpow.pop %v6808
    %v6810 = vmul.f32 %v6552, 1.442695
    %v6811 = vpow.pop %v6810
    %v6812 = vmul.f32 %v6553, 1.442695
    %v6813 = vpow.pop %v6812
    %v6814 = vmul.f32 %v6554, 1.442695
    %v6815 = vpow.pop %v6814
    %v6816 = vmul.f32 %v6555, 1.442695
    %v6817 = vpow.pop %v6816
    %v6818 = vmul.f32 %v6556, 1.442695
    %v6819 = vpow.pop %v6818
    %v6820 = vmul.f32 %v6557, 1.442695
    %v6821 = vpow.pop %v6820
    %v6822 = vmul.f32 %v6558, 1.442695
    %v6823 = vpow.pop %v6822
    %v6824 = vmul.f32 %v6559, 1.442695
    %v6825 = vpow.pop %v6824
    %v6826 = vmul.f32 %v6560, 1.442695
    %v6827 = vpow.pop %v6826
    %v6828 = vmul.f32 %v6561, 1.442695
    %v6829 = vpow.pop %v6828
    %v6830 = vmul.f32 %v6562, 1.442695
    %v6831 = vpow.pop %v6830
    %v6832 = vmul.f32 %v6563, 1.442695
    %v6833 = vpow.pop %v6832
    %v6834 = vmul.f32 %v6564, 1.442695
    %v6835 = vpow.pop %v6834
    %v6836 = vmul.f32 %v6565, 1.442695
    %v6837 = vpow.pop %v6836
    %v6838 = vmul.f32 %v6566, 1.442695
    %v6839 = vpow.pop %v6838
    %v6840 = vmul.f32 %v6567, 1.442695
    %v6841 = vpow.pop %v6840
    %v6842 = vmul.f32 %v6568, 1.442695
    %v6843 = vpow.pop %v6842
    %v6844 = vmul.f32 %v6569, 1.442695
    %v6845 = vpow.pop %v6844
    %v6846 = vmul.f32 %v6570, 1.442695
    %v6847 = vpow.pop %v6846
    %v6848 = vmul.f32 %v6571, 1.442695
    %v6849 = vpow.pop %v6848
    %v6850 = vmul.f32 %v6572, 1.442695
    %v6851 = vpow.pop %v6850
    %v6852 = vmul.f32 %v6573, 1.442695
    %v6853 = vpow.pop %v6852
    %v6854 = vmul.f32 %v6574, 1.442695
    %v6855 = vpow.pop %v6854
    %v6856 = vmul.f32 %v6575, 1.442695
    %v6857 = vpow.pop %v6856
    %v6858 = vmul.f32 %v6576, 1.442695
    %v6859 = vpow.pop %v6858
    %v6860 = vmul.f32 %v6577, 1.442695
    %v6861 = vpow.pop %v6860
    %v6862 = vmul.f32 %v6578, 1.442695
    %v6863 = vpow.pop %v6862
    %v6864 = vmul.f32 %v6579, 1.442695
    %v6865 = vpow.pop %v6864
    %v6866 = vmul.f32 %v6580, 1.442695
    %v6867 = vpow.pop %v6866
    %v6868 = vmul.f32 %v6581, 1.442695
    %v6869 = vpow.pop %v6868
    %v6870 = vmul.f32 %v6582, 1.442695
    %v6871 = vpow.pop %v6870
    %v6872 = vmul.f32 %v6583, 1.442695
    %v6873 = vpow.pop %v6872
    %v6874 = vmul.f32 %v6584, 1.442695
    %v6875 = vpow.pop %v6874
    %v6876 = vmul.f32 %v6585, 1.442695
    %v6877 = vpow.pop %v6876
    %v6878 = vmul.f32 %v6586, 1.442695
    %v6879 = vpow.pop %v6878
    %v6880 = vmul.f32 %v6587, 1.442695
    %v6881 = vpow.pop %v6880
    %v6882 = vmul.f32 %v6588, 1.442695
    %v6883 = vpow.pop %v6882
    %v6884 = vmul.f32 %v6589, 1.442695
    %v6885 = vpow.pop %v6884
    %v6886 = vmul.f32 %v6590, 1.442695
    %v6887 = vpow.pop %v6886
    %v6888 = vmul.f32 %v6591, 1.442695
    %v6889 = vpow.pop %v6888
    %v6890 = vmul.f32 %v6592, 1.442695
    %v6891 = vpow.pop %v6890
    %v6892 = vmul.f32 %v6593, 1.442695
    %v6893 = vpow.pop %v6892
    %v6894 = vmul.f32 %v6594, 1.442695
    %v6895 = vpow.pop %v6894
    %v6896 = vmul.f32 %v6595, 1.442695
    %v6897 = vpow.pop %v6896
    %v6898 = vmul.f32 %v6596, 1.442695
    %v6899 = vpow.pop %v6898
    %v6900 = vmul.f32 %v6597, 1.442695
    %v6901 = vpow.pop %v6900
    %v6902 = vmul.f32 %v6598, 1.442695
    %v6903 = vpow.pop %v6902
    %v6904 = vmul.f32 %v6599, 1.442695
    %v6905 = vpow.pop %v6904
    %v6906 = vmul.f32 %v6600, 1.442695
    %v6907 = vpow.pop %v6906
    %v6908 = vmul.f32 %v6601, 1.442695
    %v6909 = vpow.pop %v6908
    %v6910 = vmul.f32 %v6602, 1.442695
    %v6911 = vpow.pop %v6910
    %v6912 = vmul.f32 %v6603, 1.442695
    %v6913 = vpow.pop %v6912
    %v6914 = vmul.f32 %v6604, 1.442695
    %v6915 = vpow.pop %v6914
    %v6916 = vmul.f32 %v6605, 1.442695
    %v6917 = vpow.pop %v6916
    %v6918 = vmul.f32 %v6606, 1.442695
    %v6919 = vpow.pop %v6918
    %v6920 = vmul.f32 %v6607, 1.442695
    %v6921 = vpow.pop %v6920
    %v6922 = vmul.f32 %v6608, 1.442695
    %v6923 = vpow.pop %v6922
    %v6924 = vmul.f32 %v6609, 1.442695
    %v6925 = vpow.pop %v6924
    %v6926 = vmul.f32 %v6610, 1.442695
    %v6927 = vpow.pop %v6926
    %v6928 = vmul.f32 %v6611, 1.442695
    %v6929 = vpow.pop %v6928
    %v6930 = vmul.f32 %v6612, 1.442695
    %v6931 = vpow.pop %v6930
    %v6932 = vmul.f32 %v6613, 1.442695
    %v6933 = vpow.pop %v6932
    %v6934 = vmul.f32 %v6614, 1.442695
    %v6935 = vpow.pop %v6934
    %v6936 = vmul.f32 %v6615, 1.442695
    %v6937 = vpow.pop %v6936
    %v6938 = vmul.f32 %v6616, 1.442695
    %v6939 = vpow.pop %v6938
    %v6940 = vmul.f32 %v6617, 1.442695
    %v6941 = vpow.pop %v6940
    %v6942 = vmul.f32 %v6618, 1.442695
    %v6943 = vpow.pop %v6942
    %v6944 = vmul.f32 %v6619, 1.442695
    %v6945 = vpow.pop %v6944
    %v6946 = vmul.f32 %v6620, 1.442695
    %v6947 = vpow.pop %v6946
    %v6948 = vmul.f32 %v6621, 1.442695
    %v6949 = vpow.pop %v6948
    %v6950 = vmul.f32 %v6622, 1.442695
    %v6951 = vpow.pop %v6950
    %v6952 = vmul.f32 %v6623, 1.442695
    %v6953 = vpow.pop %v6952
    %v6954 = vmul.f32 %v6624, 1.442695
    %v6955 = vpow.pop %v6954
    %v6956 = vmul.f32 %v6625, 1.442695
    %v6957 = vpow.pop %v6956
    %v6958 = vmul.f32 %v6626, 1.442695
    %v6959 = vpow.pop %v6958
    %v6960 = vmul.f32 %v6627, 1.442695
    %v6961 = vpow.pop %v6960
    %v6962 = vmul.f32 %v6628, 1.442695
    %v6963 = vpow.pop %v6962
    %v6964 = vmul.f32 %v6629, 1.442695
    %v6965 = vpow.pop %v6964
    %v6966 = vmul.f32 %v6630, 1.442695
    %v6967 = vpow.pop %v6966
    %v6968 = vmul.f32 %v6631, 1.442695
    %v6969 = vpow.pop %v6968
    %v6970 = vmul.f32 %v6632, 1.442695
    %v6971 = vpow.pop %v6970
    %v6972 = vmul.f32 %v6633, 1.442695
    %v6973 = vpow.pop %v6972
    %v6974 = vmul.f32 %v6634, 1.442695
    %v6975 = vpow.pop %v6974
    %v6976 = vmul.f32 %v6635, 1.442695
    %v6977 = vpow.pop %v6976
    %v6978 = vmul.f32 %v6636, 1.442695
    %v6979 = vpow.pop %v6978
    %v6980 = vmul.f32 %v6637, 1.442695
    %v6981 = vpow.pop %v6980
    %v6982 = vmul.f32 %v6638, 1.442695
    %v6983 = vpow.pop %v6982
    %v6984 = vmul.f32 %v6639, 1.442695
    %v6985 = vpow.pop %v6984
    %v6986 = vmul.f32 %v6640, 1.442695
    %v6987 = vpow.pop %v6986
    %v6988 = vmul.f32 %v6641, 1.442695
    %v6989 = vpow.pop %v6988
    %v6990 = vmul.f32 %v6642, 1.442695
    %v6991 = vpow.pop %v6990
    %v6992 = vmul.f32 %v6643, 1.442695
    %v6993 = vpow.pop %v6992
    %v6994 = vmul.f32 %v6644, 1.442695
    %v6995 = vpow.pop %v6994
    %v6996 = vmul.f32 %v6645, 1.442695
    %v6997 = vpow.pop %v6996
    %v6998 = vmul.f32 %v6646, 1.442695
    %v6999 = vpow.pop %v6998
    %v7000 = vmul.f32 %v6647, 1.442695
    %v7001 = vpow.pop %v7000
    %v7002 = vmul.f32 %v6648, 1.442695
    %v7003 = vpow.pop %v7002
    %v7004 = vmul.f32 %v6649, 1.442695
    %v7005 = vpow.pop %v7004
    %v7006 = vmul.f32 %v6650, 1.442695
    %v7007 = vpow.pop %v7006
    %v7008 = vmul.f32 %v6651, 1.442695
    %v7009 = vpow.pop %v7008
    %v7010 = vmul.f32 %v6652, 1.442695
    %v7011 = vpow.pop %v7010
    %v7012 = vmul.f32 %v6653, 1.442695
    %v7013 = vpow.pop %v7012
    %v7014 = vmul.f32 %v6654, 1.442695
    %v7015 = vpow.pop %v7014
    %v7016 = vmul.f32 %v6655, 1.442695
    %v7017 = vpow.pop %v7016
    %v7018 = vmul.f32 %v6656, 1.442695
    %v7019 = vpow.pop %v7018
    %v7020 = vmul.f32 %v6657, 1.442695
    %v7021 = vpow.pop %v7020
    %v7022 = vmul.f32 %v6658, 1.442695
    %v7023 = vpow.pop %v7022
    %v7024 = vmul.f32 %v6659, 1.442695
    %v7025 = vpow.pop %v7024
    %v7026 = vmul.f32 %v6660, 1.442695
    %v7027 = vpow.pop %v7026
    %v7028 = vmul.f32 %v6661, 1.442695
    %v7029 = vpow.pop %v7028
    %v7030 = vmul.f32 %v6662, 1.442695
    %v7031 = vpow.pop %v7030
    %v7032 = vmul.f32 %v6663, 1.442695
    %v7033 = vpow.pop %v7032
    %v7034 = vmul.f32 %v6664, 1.442695
    %v7035 = vpow.pop %v7034
    %v7036 = vmul.f32 %v6665, 1.442695
    %v7037 = vpow.pop %v7036
    %v7038 = vmul.f32 %v6666, 1.442695
    %v7039 = vpow.pop %v7038
    %v7040 = vmul.f32 %v6667, 1.442695
    %v7041 = vpow.pop %v7040
    %v7042 = vmul.f32 %v6668, 1.442695
    %v7043 = vpow.pop %v7042
    %v7044 = vmul.f32 %v6669, 1.442695
    %v7045 = vpow.pop %v7044
    %v7046 = vmul.f32 %v6670, 1.442695
    %v7047 = vpow.pop %v7046
    %v7048 = vmul.f32 %v6671, 1.442695
    %v7049 = vpow.pop %v7048
    %v7050 = vmul.f32 %v6672, 1.442695
    %v7051 = vpow.pop %v7050
    %v7052 = vmul.f32 %v6673, 1.442695
    %v7053 = vpow.pop %v7052
    %v7054 = vmul.f32 %v6674, 1.442695
    %v7055 = vpow.pop %v7054
    %v7056 = vmul.f32 %v6675, 1.442695
    %v7057 = vpow.pop %v7056
    %v7058 = vmul.f32 %v6676, 1.442695
    %v7059 = vpow.pop %v7058
    %v7060 = vmul.f32 %v6677, 1.442695
    %v7061 = vpow.pop %v7060
    %v7062 = vmul.f32 %v6678, 1.442695
    %v7063 = vpow.pop %v7062
    %v7064 = vmul.f32 %v6679, 1.442695
    %v7065 = vpow.pop %v7064
    %v7066 = vmul.f32 %v6680, 1.442695
    %v7067 = vpow.pop %v7066
    %v7068 = vmul.f32 %v6681, 1.442695
    %v7069 = vpow.pop %v7068
    %v7070 = vmul.f32 %v6682, 1.442695
    %v7071 = vpow.pop %v7070
    %v7072 = vmul.f32 %v6683, 1.442695
    %v7073 = vpow.pop %v7072
    %v7074 = vmul.f32 %v6684, 1.442695
    %v7075 = vpow.pop %v7074
    %v7076 = vmul.f32 %v6685, 1.442695
    %v7077 = vpow.pop %v7076
    %v7078 = vmul.f32 %v6686, 1.442695
    %v7079 = vpow.pop %v7078
    %v7080 = vmul.f32 %v6687, 1.442695
    %v7081 = vpow.pop %v7080
    %v7082 = vmul.f32 %v6688, 1.442695
    %v7083 = vpow.pop %v7082
    %v7084 = vmul.f32 %v6689, 1.442695
    %v7085 = vpow.pop %v7084
    %v7086 = vmul.f32 %v6690, 1.442695
    %v7087 = vpow.pop %v7086
    %v7088 = vmul.f32 %v6691, 1.442695
    %v7089 = vpow.pop %v7088
    %v7090 = vmul.f32 %v6692, 1.442695
    %v7091 = vpow.pop %v7090
    %v7092 = vmul.f32 %v6693, 1.442695
    %v7093 = vpow.pop %v7092
    %v7094 = vmul.f32 %v6694, 1.442695
    %v7095 = vpow.pop %v7094
    %v7096 = vmul.f32 %v6695, 1.442695
    %v7097 = vpow.pop %v7096
    %v7098 = vmul.f32 %v6696, 1.442695
    %v7099 = vpow.pop %v7098
    %v7100 = vmul.f32 %v6697, 1.442695
    %v7101 = vpow.pop %v7100
    %v7102 = vmul.f32 %v6698, 1.442695
    %v7103 = vpow.pop %v7102
    %v7104 = vmul.f32 %v6699, 1.442695
    %v7105 = vpow.pop %v7104
    %v7106 = vmul.f32 %v6700, 1.442695
    %v7107 = vpow.pop %v7106
    %v7108 = vmul.f32 %v6701, 1.442695
    %v7109 = vpow.pop %v7108
    %v7110 = vmul.f32 %v6702, 1.442695
    %v7111 = vpow.pop %v7110
    %v7112 = vmul.f32 %v6703, 1.442695
    %v7113 = vpow.pop %v7112
    %v7114 = vmul.f32 %v6704, 1.442695
    %v7115 = vpow.pop %v7114
    %v7116 = vmul.f32 %v6705, 1.442695
    %v7117 = vpow.pop %v7116
    %v7118 = vmul.f32 %v6706, 1.442695
    %v7119 = vpow.pop %v7118
    %v7120 = vmul.f32 %v6707, 1.442695
    %v7121 = vpow.pop %v7120
    %v7122 = vmul.f32 %v6708, 1.442695
    %v7123 = vpow.pop %v7122
    %v7124 = vmul.f32 %v6709, 1.442695
    %v7125 = vpow.pop %v7124
    %v7126 = vmul.f32 %v6710, 1.442695
    %v7127 = vpow.pop %v7126
    %v7128 = vmul.f32 %v6711, 1.442695
    %v7129 = vpow.pop %v7128
    %v7130 = vmul.f32 %v6712, 1.442695
    %v7131 = vpow.pop %v7130
    %v7132 = vmul.f32 %v6713, 1.442695
    %v7133 = vpow.pop %v7132
    %v7134 = vmul.f32 %v6714, 1.442695
    %v7135 = vpow.pop %v7134
    %v7136 = vmul.f32 %v6715, 1.442695
    %v7137 = vpow.pop %v7136
    %v7138 = vmul.f32 %v6716, 1.442695
    %v7139 = vpow.pop %v7138
    %v7140 = vmul.f32 %v6717, 1.442695
    %v7141 = vpow.pop %v7140
    %v7142 = vmul.f32 %v6718, 1.442695
    %v7143 = vpow.pop %v7142
    %v7144 = vmul.f32 %v6719, 1.442695
    %v7145 = vpow.pop %v7144
    %v7146 = vmul.f32 %v6720, 1.442695
    %v7147 = vpow.pop %v7146
    %v7148 = vmul.f32 %v6721, 1.442695
    %v7149 = vpow.pop %v7148
    %v7150 = vmul.f32 %v6722, 1.442695
    %v7151 = vpow.pop %v7150
    %v7152 = vmul.f32 %v6723, 1.442695
    %v7153 = vpow.pop %v7152
    %v7154 = vmul.f32 %v6724, 1.442695
    %v7155 = vpow.pop %v7154
    %v7156 = vmul.f32 %v6725, 1.442695
    %v7157 = vpow.pop %v7156
    %v7158 = vmul.f32 %v6726, 1.442695
    %v7159 = vpow.pop %v7158
    %v7160 = vmul.f32 %v6727, 1.442695
    %v7161 = vpow.pop %v7160
    %v7162 = vmul.f32 %v6728, 1.442695
    %v7163 = vpow.pop %v7162
    %v7164 = vmul.f32 %v6729, 1.442695
    %v7165 = vpow.pop %v7164
    %v7166 = vmul.f32 %v6730, 1.442695
    %v7167 = vpow.pop %v7166
    %v7168 = vmul.f32 %v6731, 1.442695
    %v7169 = vpow.pop %v7168
    %v7170 = vmul.f32 %v6732, 1.442695
    %v7171 = vpow.pop %v7170
    %v7172 = vmul.f32 %v6733, 1.442695
    %v7173 = vpow.pop %v7172
    %v7174 = vmul.f32 %v6734, 1.442695
    %v7175 = vpow.pop %v7174
    %v7176 = vmul.f32 %v6735, 1.442695
    %v7177 = vpow.pop %v7176
    %v7178 = vmul.f32 %v6736, 1.442695
    %v7179 = vpow.pop %v7178
    %v7180 = vmul.f32 %v6737, 1.442695
    %v7181 = vpow.pop %v7180
    %v7182 = vmul.f32 %v6738, 1.442695
    %v7183 = vpow.pop %v7182
    %v7184 = vmul.f32 %v6739, 1.442695
    %v7185 = vpow.pop %v7184
    %v7186 = vmul.f32 %v6740, 1.442695
    %v7187 = vpow.pop %v7186
    %v7188 = vmul.f32 %v6741, 1.442695
    %v7189 = vpow.pop %v7188
    %v7190 = vmul.f32 %v6742, 1.442695
    %v7191 = vpow.pop %v7190
    %v7192 = vmul.f32 %v6743, 1.442695
    %v7193 = vpow.pop %v7192
    %v7194 = vmul.f32 %v6744, 1.442695
    %v7195 = vpow.pop %v7194
    %v7196 = vmul.f32 %v6745, 1.442695
    %v7197 = vpow.pop %v7196
    %v7198 = vmul.f32 %v6746, 1.442695
    %v7199 = vpow.pop %v7198
    %v7200 = vmul.f32 %v6747, 1.442695
    %v7201 = vpow.pop %v7200
    %v7202 = vmul.f32 %v6748, 1.442695
    %v7203 = vpow.pop %v7202
    %v7204 = vmul.f32 %v6749, 1.442695
    %v7205 = vpow.pop %v7204
    %v7206 = vmul.f32 %v6750, 1.442695
    %v7207 = vpow.pop %v7206
    %v7208 = vmul.f32 %v6751, 1.442695
    %v7209 = vpow.pop %v7208
    %v7210 = vmul.f32 %v6752, 1.442695
    %v7211 = vpow.pop %v7210
    %v7212 = vmul.f32 %v6753, 1.442695
    %v7213 = vpow.pop %v7212
    %v7214 = vmul.f32 %v6754, 1.442695
    %v7215 = vpow.pop %v7214
    %v7216 = vmul.f32 %v6755, 1.442695
    %v7217 = vpow.pop %v7216
    %v7218 = vmul.f32 %v6756, 1.442695
    %v7219 = vpow.pop %v7218
    %v7220 = vmul.f32 %v6757, 1.442695
    %v7221 = vpow.pop %v7220
    %v7222 = vmul.f32 %v6758, 1.442695
    %v7223 = vpow.pop %v7222
    %v7224 = vmul.f32 %v6759, 1.442695
    %v7225 = vpow.pop %v7224
    %v7226 = vmul.f32 %v6760, 1.442695
    %v7227 = vpow.pop %v7226
    %v7228 = vmul.f32 %v6761, 1.442695
    %v7229 = vpow.pop %v7228
    %v7230 = vmul.f32 %v6762, 1.442695
    %v7231 = vpow.pop %v7230
    %v7232 = vmul.f32 %v6763, 1.442695
    %v7233 = vpow.pop %v7232
    %v7234 = vmul.f32 %v6764, 1.442695
    %v7235 = vpow.pop %v7234
    %v7236 = vmul.f32 %v6765, 1.442695
    %v7237 = vpow.pop %v7236
    %v7238 = vmul.f32 %v6766, 1.442695
    %v7239 = vpow.pop %v7238
    %v7240 = vmul.f32 %v6767, 1.442695
    %v7241 = vpow.pop %v7240
    %v7242 = vmul.f32 %v6768, 1.442695
    %v7243 = vpow.pop %v7242
    %v7244 = vmul.f32 %v6769, 1.442695
    %v7245 = vpow.pop %v7244
    %v7246 = vmul.f32 %v6770, 1.442695
    %v7247 = vpow.pop %v7246
    %v7248 = vmul.f32 %v6771, 1.442695
    %v7249 = vpow.pop %v7248
    %v7250 = vmul.f32 %v6772, 1.442695
    %v7251 = vpow.pop %v7250
    %v7252 = vmul.f32 %v6773, 1.442695
    %v7253 = vpow.pop %v7252
    %v7254 = vmul.f32 %v6774, 1.442695
    %v7255 = vpow.pop %v7254
    %v7256 = vmul.f32 %v6775, 1.442695
    %v7257 = vpow.pop %v7256
    %v7258 = vmul.f32 %v6776, 1.442695
    %v7259 = vpow.pop %v7258
    %v7260 = vmul.f32 %v6777, 1.442695
    %v7261 = vpow.pop %v7260
    %v7262 = vmul.f32 %v6778, 1.442695
    %v7263 = vpow.pop %v7262
    %v7264 = vmul.f32 %v6779, 1.442695
    %v7265 = vpow.pop %v7264
    %v7266 = vmul.f32 %v6780, 1.442695
    %v7267 = vpow.pop %v7266
    %v7268 = vmul.f32 %v6781, 1.442695
    %v7269 = vpow.pop %v7268
    %v7270 = vmul.f32 %v6782, 1.442695
    %v7271 = vpow.pop %v7270
    %v7272 = vmul.f32 %v6783, 1.442695
    %v7273 = vpow.pop %v7272
    %v7274 = vmul.f32 %v6784, 1.442695
    %v7275 = vpow.pop %v7274
    %v7276 = vmul.f32 %v6785, 1.442695
    %v7277 = vpow.pop %v7276
    %v7278 = vmul.f32 %v6786, 1.442695
    %v7279 = vpow.pop %v7278
    %v7280 = vmul.f32 %v6787, 1.442695
    %v7281 = vpow.pop %v7280
    %v7282 = vmul.f32 %v6788, 1.442695
    %v7283 = vpow.pop %v7282
    %v7284 = vmul.f32 %v6789, 1.442695
    %v7285 = vpow.pop %v7284
    %v7286 = vmul.f32 %v6790, 1.442695
    %v7287 = vpow.pop %v7286
    %v7288 = vmul.f32 %v6791, 1.442695
    %v7289 = vpow.pop %v7288
    %v7290 = vmul.f32 %v6792, 1.442695
    %v7291 = vpow.pop %v7290
    %v7292 = vmul.f32 %v6793, 1.442695
    %v7293 = vpow.pop %v7292
    %v7294 = vmul.f32 %v6794, 1.442695
    %v7295 = vpow.pop %v7294
    %v7296 = vmul.f32 %v6795, 1.442695
    %v7297 = vpow.pop %v7296
    %v7298 = vmul.f32 %v6796, 1.442695
    %v7299 = vpow.pop %v7298
    %v7300 = vmul.f32 %v6797, 1.442695
    %v7301 = vpow.pop %v7300
    %v7302 = vmul.f32 %v6798, 1.442695
    %v7303 = vpow.pop %v7302
    %v7304 = vmul.f32 %v6799, 1.442695
    %v7305 = vpow.pop %v7304
    %v7306 = vmul.f32 %v6800, 1.442695
    %v7307 = vpow.pop %v7306
    %v7308 = vmul.f32 %v6801, 1.442695
    %v7309 = vpow.pop %v7308
    %v7310 = vmul.f32 %v6802, 1.442695
    %v7311 = vpow.pop %v7310
    %v7312 = vmul.f32 %v6803, 1.442695
    %v7313 = vpow.pop %v7312
    %v7314 = vmul.f32 %v6804, 1.442695
    %v7315 = vpow.pop %v7314
    %v7316 = vmul.f32 %v6805, 1.442695
    %v7317 = vpow.pop %v7316
    %v7318 = vadd.f32 %v6807, 1.0
    %v7319 = vadd.f32 %v6809, 1.0
    %v7320 = vadd.f32 %v6811, 1.0
    %v7321 = vadd.f32 %v6813, 1.0
    %v7322 = vadd.f32 %v6815, 1.0
    %v7323 = vadd.f32 %v6817, 1.0
    %v7324 = vadd.f32 %v6819, 1.0
    %v7325 = vadd.f32 %v6821, 1.0
    %v7326 = vadd.f32 %v6823, 1.0
    %v7327 = vadd.f32 %v6825, 1.0
    %v7328 = vadd.f32 %v6827, 1.0
    %v7329 = vadd.f32 %v6829, 1.0
    %v7330 = vadd.f32 %v6831, 1.0
    %v7331 = vadd.f32 %v6833, 1.0
    %v7332 = vadd.f32 %v6835, 1.0
    %v7333 = vadd.f32 %v6837, 1.0
    %v7334 = vadd.f32 %v6839, 1.0
    %v7335 = vadd.f32 %v6841, 1.0
    %v7336 = vadd.f32 %v6843, 1.0
    %v7337 = vadd.f32 %v6845, 1.0
    %v7338 = vadd.f32 %v6847, 1.0
    %v7339 = vadd.f32 %v6849, 1.0
    %v7340 = vadd.f32 %v6851, 1.0
    %v7341 = vadd.f32 %v6853, 1.0
    %v7342 = vadd.f32 %v6855, 1.0
    %v7343 = vadd.f32 %v6857, 1.0
    %v7344 = vadd.f32 %v6859, 1.0
    %v7345 = vadd.f32 %v6861, 1.0
    %v7346 = vadd.f32 %v6863, 1.0
    %v7347 = vadd.f32 %v6865, 1.0
    %v7348 = vadd.f32 %v6867, 1.0
    %v7349 = vadd.f32 %v6869, 1.0
    %v7350 = vadd.f32 %v6871, 1.0
    %v7351 = vadd.f32 %v6873, 1.0
    %v7352 = vadd.f32 %v6875, 1.0
    %v7353 = vadd.f32 %v6877, 1.0
    %v7354 = vadd.f32 %v6879, 1.0
    %v7355 = vadd.f32 %v6881, 1.0
    %v7356 = vadd.f32 %v6883, 1.0
    %v7357 = vadd.f32 %v6885, 1.0
    %v7358 = vadd.f32 %v6887, 1.0
    %v7359 = vadd.f32 %v6889, 1.0
    %v7360 = vadd.f32 %v6891, 1.0
    %v7361 = vadd.f32 %v6893, 1.0
    %v7362 = vadd.f32 %v6895, 1.0
    %v7363 = vadd.f32 %v6897, 1.0
    %v7364 = vadd.f32 %v6899, 1.0
    %v7365 = vadd.f32 %v6901, 1.0
    %v7366 = vadd.f32 %v6903, 1.0
    %v7367 = vadd.f32 %v6905, 1.0
    %v7368 = vadd.f32 %v6907, 1.0
    %v7369 = vadd.f32 %v6909, 1.0
    %v7370 = vadd.f32 %v6911, 1.0
    %v7371 = vadd.f32 %v6913, 1.0
    %v7372 = vadd.f32 %v6915, 1.0
    %v7373 = vadd.f32 %v6917, 1.0
    %v7374 = vadd.f32 %v6919, 1.0
    %v7375 = vadd.f32 %v6921, 1.0
    %v7376 = vadd.f32 %v6923, 1.0
    %v7377 = vadd.f32 %v6925, 1.0
    %v7378 = vadd.f32 %v6927, 1.0
    %v7379 = vadd.f32 %v6929, 1.0
    %v7380 = vadd.f32 %v6931, 1.0
    %v7381 = vadd.f32 %v6933, 1.0
    %v7382 = vadd.f32 %v6935, 1.0
    %v7383 = vadd.f32 %v6937, 1.0
    %v7384 = vadd.f32 %v6939, 1.0
    %v7385 = vadd.f32 %v6941, 1.0
    %v7386 = vadd.f32 %v6943, 1.0
    %v7387 = vadd.f32 %v6945, 1.0
    %v7388 = vadd.f32 %v6947, 1.0
    %v7389 = vadd.f32 %v6949, 1.0
    %v7390 = vadd.f32 %v6951, 1.0
    %v7391 = vadd.f32 %v6953, 1.0
    %v7392 = vadd.f32 %v6955, 1.0
    %v7393 = vadd.f32 %v6957, 1.0
    %v7394 = vadd.f32 %v6959, 1.0
    %v7395 = vadd.f32 %v6961, 1.0
    %v7396 = vadd.f32 %v6963, 1.0
    %v7397 = vadd.f32 %v6965, 1.0
    %v7398 = vadd.f32 %v6967, 1.0
    %v7399 = vadd.f32 %v6969, 1.0
    %v7400 = vadd.f32 %v6971, 1.0
    %v7401 = vadd.f32 %v6973, 1.0
    %v7402 = vadd.f32 %v6975, 1.0
    %v7403 = vadd.f32 %v6977, 1.0
    %v7404 = vadd.f32 %v6979, 1.0
    %v7405 = vadd.f32 %v6981, 1.0
    %v7406 = vadd.f32 %v6983, 1.0
    %v7407 = vadd.f32 %v6985, 1.0
    %v7408 = vadd.f32 %v6987, 1.0
    %v7409 = vadd.f32 %v6989, 1.0
    %v7410 = vadd.f32 %v6991, 1.0
    %v7411 = vadd.f32 %v6993, 1.0
    %v7412 = vadd.f32 %v6995, 1.0
    %v7413 = vadd.f32 %v6997, 1.0
    %v7414 = vadd.f32 %v6999, 1.0
    %v7415 = vadd.f32 %v7001, 1.0
    %v7416 = vadd.f32 %v7003, 1.0
    %v7417 = vadd.f32 %v7005, 1.0
    %v7418 = vadd.f32 %v7007, 1.0
    %v7419 = vadd.f32 %v7009, 1.0
    %v7420 = vadd.f32 %v7011, 1.0
    %v7421 = vadd.f32 %v7013, 1.0
    %v7422 = vadd.f32 %v7015, 1.0
    %v7423 = vadd.f32 %v7017, 1.0
    %v7424 = vadd.f32 %v7019, 1.0
    %v7425 = vadd.f32 %v7021, 1.0
    %v7426 = vadd.f32 %v7023, 1.0
    %v7427 = vadd.f32 %v7025, 1.0
    %v7428 = vadd.f32 %v7027, 1.0
    %v7429 = vadd.f32 %v7029, 1.0
    %v7430 = vadd.f32 %v7031, 1.0
    %v7431 = vadd.f32 %v7033, 1.0
    %v7432 = vadd.f32 %v7035, 1.0
    %v7433 = vadd.f32 %v7037, 1.0
    %v7434 = vadd.f32 %v7039, 1.0
    %v7435 = vadd.f32 %v7041, 1.0
    %v7436 = vadd.f32 %v7043, 1.0
    %v7437 = vadd.f32 %v7045, 1.0
    %v7438 = vadd.f32 %v7047, 1.0
    %v7439 = vadd.f32 %v7049, 1.0
    %v7440 = vadd.f32 %v7051, 1.0
    %v7441 = vadd.f32 %v7053, 1.0
    %v7442 = vadd.f32 %v7055, 1.0
    %v7443 = vadd.f32 %v7057, 1.0
    %v7444 = vadd.f32 %v7059, 1.0
    %v7445 = vadd.f32 %v7061, 1.0
    %v7446 = vadd.f32 %v7063, 1.0
    %v7447 = vadd.f32 %v7065, 1.0
    %v7448 = vadd.f32 %v7067, 1.0
    %v7449 = vadd.f32 %v7069, 1.0
    %v7450 = vadd.f32 %v7071, 1.0
    %v7451 = vadd.f32 %v7073, 1.0
    %v7452 = vadd.f32 %v7075, 1.0
    %v7453 = vadd.f32 %v7077, 1.0
    %v7454 = vadd.f32 %v7079, 1.0
    %v7455 = vadd.f32 %v7081, 1.0
    %v7456 = vadd.f32 %v7083, 1.0
    %v7457 = vadd.f32 %v7085, 1.0
    %v7458 = vadd.f32 %v7087, 1.0
    %v7459 = vadd.f32 %v7089, 1.0
    %v7460 = vadd.f32 %v7091, 1.0
    %v7461 = vadd.f32 %v7093, 1.0
    %v7462 = vadd.f32 %v7095, 1.0
    %v7463 = vadd.f32 %v7097, 1.0
    %v7464 = vadd.f32 %v7099, 1.0
    %v7465 = vadd.f32 %v7101, 1.0
    %v7466 = vadd.f32 %v7103, 1.0
    %v7467 = vadd.f32 %v7105, 1.0
    %v7468 = vadd.f32 %v7107, 1.0
    %v7469 = vadd.f32 %v7109, 1.0
    %v7470 = vadd.f32 %v7111, 1.0
    %v7471 = vadd.f32 %v7113, 1.0
    %v7472 = vadd.f32 %v7115, 1.0
    %v7473 = vadd.f32 %v7117, 1.0
    %v7474 = vadd.f32 %v7119, 1.0
    %v7475 = vadd.f32 %v7121, 1.0
    %v7476 = vadd.f32 %v7123, 1.0
    %v7477 = vadd.f32 %v7125, 1.0
    %v7478 = vadd.f32 %v7127, 1.0
    %v7479 = vadd.f32 %v7129, 1.0
    %v7480 = vadd.f32 %v7131, 1.0
    %v7481 = vadd.f32 %v7133, 1.0
    %v7482 = vadd.f32 %v7135, 1.0
    %v7483 = vadd.f32 %v7137, 1.0
    %v7484 = vadd.f32 %v7139, 1.0
    %v7485 = vadd.f32 %v7141, 1.0
    %v7486 = vadd.f32 %v7143, 1.0
    %v7487 = vadd.f32 %v7145, 1.0
    %v7488 = vadd.f32 %v7147, 1.0
    %v7489 = vadd.f32 %v7149, 1.0
    %v7490 = vadd.f32 %v7151, 1.0
    %v7491 = vadd.f32 %v7153, 1.0
    %v7492 = vadd.f32 %v7155, 1.0
    %v7493 = vadd.f32 %v7157, 1.0
    %v7494 = vadd.f32 %v7159, 1.0
    %v7495 = vadd.f32 %v7161, 1.0
    %v7496 = vadd.f32 %v7163, 1.0
    %v7497 = vadd.f32 %v7165, 1.0
    %v7498 = vadd.f32 %v7167, 1.0
    %v7499 = vadd.f32 %v7169, 1.0
    %v7500 = vadd.f32 %v7171, 1.0
    %v7501 = vadd.f32 %v7173, 1.0
    %v7502 = vadd.f32 %v7175, 1.0
    %v7503 = vadd.f32 %v7177, 1.0
    %v7504 = vadd.f32 %v7179, 1.0
    %v7505 = vadd.f32 %v7181, 1.0
    %v7506 = vadd.f32 %v7183, 1.0
    %v7507 = vadd.f32 %v7185, 1.0
    %v7508 = vadd.f32 %v7187, 1.0
    %v7509 = vadd.f32 %v7189, 1.0
    %v7510 = vadd.f32 %v7191, 1.0
    %v7511 = vadd.f32 %v7193, 1.0
    %v7512 = vadd.f32 %v7195, 1.0
    %v7513 = vadd.f32 %v7197, 1.0
    %v7514 = vadd.f32 %v7199, 1.0
    %v7515 = vadd.f32 %v7201, 1.0
    %v7516 = vadd.f32 %v7203, 1.0
    %v7517 = vadd.f32 %v7205, 1.0
    %v7518 = vadd.f32 %v7207, 1.0
    %v7519 = vadd.f32 %v7209, 1.0
    %v7520 = vadd.f32 %v7211, 1.0
    %v7521 = vadd.f32 %v7213, 1.0
    %v7522 = vadd.f32 %v7215, 1.0
    %v7523 = vadd.f32 %v7217, 1.0
    %v7524 = vadd.f32 %v7219, 1.0
    %v7525 = vadd.f32 %v7221, 1.0
    %v7526 = vadd.f32 %v7223, 1.0
    %v7527 = vadd.f32 %v7225, 1.0
    %v7528 = vadd.f32 %v7227, 1.0
    %v7529 = vadd.f32 %v7229, 1.0
    %v7530 = vadd.f32 %v7231, 1.0
    %v7531 = vadd.f32 %v7233, 1.0
    %v7532 = vadd.f32 %v7235, 1.0
    %v7533 = vadd.f32 %v7237, 1.0
    %v7534 = vadd.f32 %v7239, 1.0
    %v7535 = vadd.f32 %v7241, 1.0
    %v7536 = vadd.f32 %v7243, 1.0
    %v7537 = vadd.f32 %v7245, 1.0
    %v7538 = vadd.f32 %v7247, 1.0
    %v7539 = vadd.f32 %v7249, 1.0
    %v7540 = vadd.f32 %v7251, 1.0
    %v7541 = vadd.f32 %v7253, 1.0
    %v7542 = vadd.f32 %v7255, 1.0
    %v7543 = vadd.f32 %v7257, 1.0
    %v7544 = vadd.f32 %v7259, 1.0
    %v7545 = vadd.f32 %v7261, 1.0
    %v7546 = vadd.f32 %v7263, 1.0
    %v7547 = vadd.f32 %v7265, 1.0
    %v7548 = vadd.f32 %v7267, 1.0
    %v7549 = vadd.f32 %v7269, 1.0
    %v7550 = vadd.f32 %v7271, 1.0
    %v7551 = vadd.f32 %v7273, 1.0
    %v7552 = vadd.f32 %v7275, 1.0
    %v7553 = vadd.f32 %v7277, 1.0
    %v7554 = vadd.f32 %v7279, 1.0
    %v7555 = vadd.f32 %v7281, 1.0
    %v7556 = vadd.f32 %v7283, 1.0
    %v7557 = vadd.f32 %v7285, 1.0
    %v7558 = vadd.f32 %v7287, 1.0
    %v7559 = vadd.f32 %v7289, 1.0
    %v7560 = vadd.f32 %v7291, 1.0
    %v7561 = vadd.f32 %v7293, 1.0
    %v7562 = vadd.f32 %v7295, 1.0
    %v7563 = vadd.f32 %v7297, 1.0
    %v7564 = vadd.f32 %v7299, 1.0
    %v7565 = vadd.f32 %v7301, 1.0
    %v7566 = vadd.f32 %v7303, 1.0
    %v7567 = vadd.f32 %v7305, 1.0
    %v7568 = vadd.f32 %v7307, 1.0
    %v7569 = vadd.f32 %v7309, 1.0
    %v7570 = vadd.f32 %v7311, 1.0
    %v7571 = vadd.f32 %v7313, 1.0
    %v7572 = vadd.f32 %v7315, 1.0
    %v7573 = vadd.f32 %v7317, 1.0
    %v7574 = vrcp.pop %v7318
    %v7575 = vmul.f32 1.0, %v7574
    %v7576 = vrcp.pop %v7319
    %v7577 = vmul.f32 1.0, %v7576
    %v7578 = vrcp.pop %v7320
    %v7579 = vmul.f32 1.0, %v7578
    %v7580 = vrcp.pop %v7321
    %v7581 = vmul.f32 1.0, %v7580
    %v7582 = vrcp.pop %v7322
    %v7583 = vmul.f32 1.0, %v7582
    %v7584 = vrcp.pop %v7323
    %v7585 = vmul.f32 1.0, %v7584
    %v7586 = vrcp.pop %v7324
    %v7587 = vmul.f32 1.0, %v7586
    %v7588 = vrcp.pop %v7325
    %v7589 = vmul.f32 1.0, %v7588
    %v7590 = vrcp.pop %v7326
    %v7591 = vmul.f32 1.0, %v7590
    %v7592 = vrcp.pop %v7327
    %v7593 = vmul.f32 1.0, %v7592
    %v7594 = vrcp.pop %v7328
    %v7595 = vmul.f32 1.0, %v7594
    %v7596 = vrcp.pop %v7329
    %v7597 = vmul.f32 1.0, %v7596
    %v7598 = vrcp.pop %v7330
    %v7599 = vmul.f32 1.0, %v7598
    %v7600 = vrcp.pop %v7331
    %v7601 = vmul.f32 1.0, %v7600
    %v7602 = vrcp.pop %v7332
    %v7603 = vmul.f32 1.0, %v7602
    %v7604 = vrcp.pop %v7333
    %v7605 = vmul.f32 1.0, %v7604
    %v7606 = vrcp.pop %v7334
    %v7607 = vmul.f32 1.0, %v7606
    %v7608 = vrcp.pop %v7335
    %v7609 = vmul.f32 1.0, %v7608
    %v7610 = vrcp.pop %v7336
    %v7611 = vmul.f32 1.0, %v7610
    %v7612 = vrcp.pop %v7337
    %v7613 = vmul.f32 1.0, %v7612
    %v7614 = vrcp.pop %v7338
    %v7615 = vmul.f32 1.0, %v7614
    %v7616 = vrcp.pop %v7339
    %v7617 = vmul.f32 1.0, %v7616
    %v7618 = vrcp.pop %v7340
    %v7619 = vmul.f32 1.0, %v7618
    %v7620 = vrcp.pop %v7341
    %v7621 = vmul.f32 1.0, %v7620
    %v7622 = vrcp.pop %v7342
    %v7623 = vmul.f32 1.0, %v7622
    %v7624 = vrcp.pop %v7343
    %v7625 = vmul.f32 1.0, %v7624
    %v7626 = vrcp.pop %v7344
    %v7627 = vmul.f32 1.0, %v7626
    %v7628 = vrcp.pop %v7345
    %v7629 = vmul.f32 1.0, %v7628
    %v7630 = vrcp.pop %v7346
    %v7631 = vmul.f32 1.0, %v7630
    %v7632 = vrcp.pop %v7347
    %v7633 = vmul.f32 1.0, %v7632
    %v7634 = vrcp.pop %v7348
    %v7635 = vmul.f32 1.0, %v7634
    %v7636 = vrcp.pop %v7349
    %v7637 = vmul.f32 1.0, %v7636
    %v7638 = vrcp.pop %v7350
    %v7639 = vmul.f32 1.0, %v7638
    %v7640 = vrcp.pop %v7351
    %v7641 = vmul.f32 1.0, %v7640
    %v7642 = vrcp.pop %v7352
    %v7643 = vmul.f32 1.0, %v7642
    %v7644 = vrcp.pop %v7353
    %v7645 = vmul.f32 1.0, %v7644
    %v7646 = vrcp.pop %v7354
    %v7647 = vmul.f32 1.0, %v7646
    %v7648 = vrcp.pop %v7355
    %v7649 = vmul.f32 1.0, %v7648
    %v7650 = vrcp.pop %v7356
    %v7651 = vmul.f32 1.0, %v7650
    %v7652 = vrcp.pop %v7357
    %v7653 = vmul.f32 1.0, %v7652
    %v7654 = vrcp.pop %v7358
    %v7655 = vmul.f32 1.0, %v7654
    %v7656 = vrcp.pop %v7359
    %v7657 = vmul.f32 1.0, %v7656
    %v7658 = vrcp.pop %v7360
    %v7659 = vmul.f32 1.0, %v7658
    %v7660 = vrcp.pop %v7361
    %v7661 = vmul.f32 1.0, %v7660
    %v7662 = vrcp.pop %v7362
    %v7663 = vmul.f32 1.0, %v7662
    %v7664 = vrcp.pop %v7363
    %v7665 = vmul.f32 1.0, %v7664
    %v7666 = vrcp.pop %v7364
    %v7667 = vmul.f32 1.0, %v7666
    %v7668 = vrcp.pop %v7365
    %v7669 = vmul.f32 1.0, %v7668
    %v7670 = vrcp.pop %v7366
    %v7671 = vmul.f32 1.0, %v7670
    %v7672 = vrcp.pop %v7367
    %v7673 = vmul.f32 1.0, %v7672
    %v7674 = vrcp.pop %v7368
    %v7675 = vmul.f32 1.0, %v7674
    %v7676 = vrcp.pop %v7369
    %v7677 = vmul.f32 1.0, %v7676
    %v7678 = vrcp.pop %v7370
    %v7679 = vmul.f32 1.0, %v7678
    %v7680 = vrcp.pop %v7371
    %v7681 = vmul.f32 1.0, %v7680
    %v7682 = vrcp.pop %v7372
    %v7683 = vmul.f32 1.0, %v7682
    %v7684 = vrcp.pop %v7373
    %v7685 = vmul.f32 1.0, %v7684
    %v7686 = vrcp.pop %v7374
    %v7687 = vmul.f32 1.0, %v7686
    %v7688 = vrcp.pop %v7375
    %v7689 = vmul.f32 1.0, %v7688
    %v7690 = vrcp.pop %v7376
    %v7691 = vmul.f32 1.0, %v7690
    %v7692 = vrcp.pop %v7377
    %v7693 = vmul.f32 1.0, %v7692
    %v7694 = vrcp.pop %v7378
    %v7695 = vmul.f32 1.0, %v7694
    %v7696 = vrcp.pop %v7379
    %v7697 = vmul.f32 1.0, %v7696
    %v7698 = vrcp.pop %v7380
    %v7699 = vmul.f32 1.0, %v7698
    %v7700 = vrcp.pop %v7381
    %v7701 = vmul.f32 1.0, %v7700
    %v7702 = vrcp.pop %v7382
    %v7703 = vmul.f32 1.0, %v7702
    %v7704 = vrcp.pop %v7383
    %v7705 = vmul.f32 1.0, %v7704
    %v7706 = vrcp.pop %v7384
    %v7707 = vmul.f32 1.0, %v7706
    %v7708 = vrcp.pop %v7385
    %v7709 = vmul.f32 1.0, %v7708
    %v7710 = vrcp.pop %v7386
    %v7711 = vmul.f32 1.0, %v7710
    %v7712 = vrcp.pop %v7387
    %v7713 = vmul.f32 1.0, %v7712
    %v7714 = vrcp.pop %v7388
    %v7715 = vmul.f32 1.0, %v7714
    %v7716 = vrcp.pop %v7389
    %v7717 = vmul.f32 1.0, %v7716
    %v7718 = vrcp.pop %v7390
    %v7719 = vmul.f32 1.0, %v7718
    %v7720 = vrcp.pop %v7391
    %v7721 = vmul.f32 1.0, %v7720
    %v7722 = vrcp.pop %v7392
    %v7723 = vmul.f32 1.0, %v7722
    %v7724 = vrcp.pop %v7393
    %v7725 = vmul.f32 1.0, %v7724
    %v7726 = vrcp.pop %v7394
    %v7727 = vmul.f32 1.0, %v7726
    %v7728 = vrcp.pop %v7395
    %v7729 = vmul.f32 1.0, %v7728
    %v7730 = vrcp.pop %v7396
    %v7731 = vmul.f32 1.0, %v7730
    %v7732 = vrcp.pop %v7397
    %v7733 = vmul.f32 1.0, %v7732
    %v7734 = vrcp.pop %v7398
    %v7735 = vmul.f32 1.0, %v7734
    %v7736 = vrcp.pop %v7399
    %v7737 = vmul.f32 1.0, %v7736
    %v7738 = vrcp.pop %v7400
    %v7739 = vmul.f32 1.0, %v7738
    %v7740 = vrcp.pop %v7401
    %v7741 = vmul.f32 1.0, %v7740
    %v7742 = vrcp.pop %v7402
    %v7743 = vmul.f32 1.0, %v7742
    %v7744 = vrcp.pop %v7403
    %v7745 = vmul.f32 1.0, %v7744
    %v7746 = vrcp.pop %v7404
    %v7747 = vmul.f32 1.0, %v7746
    %v7748 = vrcp.pop %v7405
    %v7749 = vmul.f32 1.0, %v7748
    %v7750 = vrcp.pop %v7406
    %v7751 = vmul.f32 1.0, %v7750
    %v7752 = vrcp.pop %v7407
    %v7753 = vmul.f32 1.0, %v7752
    %v7754 = vrcp.pop %v7408
    %v7755 = vmul.f32 1.0, %v7754
    %v7756 = vrcp.pop %v7409
    %v7757 = vmul.f32 1.0, %v7756
    %v7758 = vrcp.pop %v7410
    %v7759 = vmul.f32 1.0, %v7758
    %v7760 = vrcp.pop %v7411
    %v7761 = vmul.f32 1.0, %v7760
    %v7762 = vrcp.pop %v7412
    %v7763 = vmul.f32 1.0, %v7762
    %v7764 = vrcp.pop %v7413
    %v7765 = vmul.f32 1.0, %v7764
    %v7766 = vrcp.pop %v7414
    %v7767 = vmul.f32 1.0, %v7766
    %v7768 = vrcp.pop %v7415
    %v7769 = vmul.f32 1.0, %v7768
    %v7770 = vrcp.pop %v7416
    %v7771 = vmul.f32 1.0, %v7770
    %v7772 = vrcp.pop %v7417
    %v7773 = vmul.f32 1.0, %v7772
    %v7774 = vrcp.pop %v7418
    %v7775 = vmul.f32 1.0, %v7774
    %v7776 = vrcp.pop %v7419
    %v7777 = vmul.f32 1.0, %v7776
    %v7778 = vrcp.pop %v7420
    %v7779 = vmul.f32 1.0, %v7778
    %v7780 = vrcp.pop %v7421
    %v7781 = vmul.f32 1.0, %v7780
    %v7782 = vrcp.pop %v7422
    %v7783 = vmul.f32 1.0, %v7782
    %v7784 = vrcp.pop %v7423
    %v7785 = vmul.f32 1.0, %v7784
    %v7786 = vrcp.pop %v7424
    %v7787 = vmul.f32 1.0, %v7786
    %v7788 = vrcp.pop %v7425
    %v7789 = vmul.f32 1.0, %v7788
    %v7790 = vrcp.pop %v7426
    %v7791 = vmul.f32 1.0, %v7790
    %v7792 = vrcp.pop %v7427
    %v7793 = vmul.f32 1.0, %v7792
    %v7794 = vrcp.pop %v7428
    %v7795 = vmul.f32 1.0, %v7794
    %v7796 = vrcp.pop %v7429
    %v7797 = vmul.f32 1.0, %v7796
    %v7798 = vrcp.pop %v7430
    %v7799 = vmul.f32 1.0, %v7798
    %v7800 = vrcp.pop %v7431
    %v7801 = vmul.f32 1.0, %v7800
    %v7802 = vrcp.pop %v7432
    %v7803 = vmul.f32 1.0, %v7802
    %v7804 = vrcp.pop %v7433
    %v7805 = vmul.f32 1.0, %v7804
    %v7806 = vrcp.pop %v7434
    %v7807 = vmul.f32 1.0, %v7806
    %v7808 = vrcp.pop %v7435
    %v7809 = vmul.f32 1.0, %v7808
    %v7810 = vrcp.pop %v7436
    %v7811 = vmul.f32 1.0, %v7810
    %v7812 = vrcp.pop %v7437
    %v7813 = vmul.f32 1.0, %v7812
    %v7814 = vrcp.pop %v7438
    %v7815 = vmul.f32 1.0, %v7814
    %v7816 = vrcp.pop %v7439
    %v7817 = vmul.f32 1.0, %v7816
    %v7818 = vrcp.pop %v7440
    %v7819 = vmul.f32 1.0, %v7818
    %v7820 = vrcp.pop %v7441
    %v7821 = vmul.f32 1.0, %v7820
    %v7822 = vrcp.pop %v7442
    %v7823 = vmul.f32 1.0, %v7822
    %v7824 = vrcp.pop %v7443
    %v7825 = vmul.f32 1.0, %v7824
    %v7826 = vrcp.pop %v7444
    %v7827 = vmul.f32 1.0, %v7826
    %v7828 = vrcp.pop %v7445
    %v7829 = vmul.f32 1.0, %v7828
    %v7830 = vrcp.pop %v7446
    %v7831 = vmul.f32 1.0, %v7830
    %v7832 = vrcp.pop %v7447
    %v7833 = vmul.f32 1.0, %v7832
    %v7834 = vrcp.pop %v7448
    %v7835 = vmul.f32 1.0, %v7834
    %v7836 = vrcp.pop %v7449
    %v7837 = vmul.f32 1.0, %v7836
    %v7838 = vrcp.pop %v7450
    %v7839 = vmul.f32 1.0, %v7838
    %v7840 = vrcp.pop %v7451
    %v7841 = vmul.f32 1.0, %v7840
    %v7842 = vrcp.pop %v7452
    %v7843 = vmul.f32 1.0, %v7842
    %v7844 = vrcp.pop %v7453
    %v7845 = vmul.f32 1.0, %v7844
    %v7846 = vrcp.pop %v7454
    %v7847 = vmul.f32 1.0, %v7846
    %v7848 = vrcp.pop %v7455
    %v7849 = vmul.f32 1.0, %v7848
    %v7850 = vrcp.pop %v7456
    %v7851 = vmul.f32 1.0, %v7850
    %v7852 = vrcp.pop %v7457
    %v7853 = vmul.f32 1.0, %v7852
    %v7854 = vrcp.pop %v7458
    %v7855 = vmul.f32 1.0, %v7854
    %v7856 = vrcp.pop %v7459
    %v7857 = vmul.f32 1.0, %v7856
    %v7858 = vrcp.pop %v7460
    %v7859 = vmul.f32 1.0, %v7858
    %v7860 = vrcp.pop %v7461
    %v7861 = vmul.f32 1.0, %v7860
    %v7862 = vrcp.pop %v7462
    %v7863 = vmul.f32 1.0, %v7862
    %v7864 = vrcp.pop %v7463
    %v7865 = vmul.f32 1.0, %v7864
    %v7866 = vrcp.pop %v7464
    %v7867 = vmul.f32 1.0, %v7866
    %v7868 = vrcp.pop %v7465
    %v7869 = vmul.f32 1.0, %v7868
    %v7870 = vrcp.pop %v7466
    %v7871 = vmul.f32 1.0, %v7870
    %v7872 = vrcp.pop %v7467
    %v7873 = vmul.f32 1.0, %v7872
    %v7874 = vrcp.pop %v7468
    %v7875 = vmul.f32 1.0, %v7874
    %v7876 = vrcp.pop %v7469
    %v7877 = vmul.f32 1.0, %v7876
    %v7878 = vrcp.pop %v7470
    %v7879 = vmul.f32 1.0, %v7878
    %v7880 = vrcp.pop %v7471
    %v7881 = vmul.f32 1.0, %v7880
    %v7882 = vrcp.pop %v7472
    %v7883 = vmul.f32 1.0, %v7882
    %v7884 = vrcp.pop %v7473
    %v7885 = vmul.f32 1.0, %v7884
    %v7886 = vrcp.pop %v7474
    %v7887 = vmul.f32 1.0, %v7886
    %v7888 = vrcp.pop %v7475
    %v7889 = vmul.f32 1.0, %v7888
    %v7890 = vrcp.pop %v7476
    %v7891 = vmul.f32 1.0, %v7890
    %v7892 = vrcp.pop %v7477
    %v7893 = vmul.f32 1.0, %v7892
    %v7894 = vrcp.pop %v7478
    %v7895 = vmul.f32 1.0, %v7894
    %v7896 = vrcp.pop %v7479
    %v7897 = vmul.f32 1.0, %v7896
    %v7898 = vrcp.pop %v7480
    %v7899 = vmul.f32 1.0, %v7898
    %v7900 = vrcp.pop %v7481
    %v7901 = vmul.f32 1.0, %v7900
    %v7902 = vrcp.pop %v7482
    %v7903 = vmul.f32 1.0, %v7902
    %v7904 = vrcp.pop %v7483
    %v7905 = vmul.f32 1.0, %v7904
    %v7906 = vrcp.pop %v7484
    %v7907 = vmul.f32 1.0, %v7906
    %v7908 = vrcp.pop %v7485
    %v7909 = vmul.f32 1.0, %v7908
    %v7910 = vrcp.pop %v7486
    %v7911 = vmul.f32 1.0, %v7910
    %v7912 = vrcp.pop %v7487
    %v7913 = vmul.f32 1.0, %v7912
    %v7914 = vrcp.pop %v7488
    %v7915 = vmul.f32 1.0, %v7914
    %v7916 = vrcp.pop %v7489
    %v7917 = vmul.f32 1.0, %v7916
    %v7918 = vrcp.pop %v7490
    %v7919 = vmul.f32 1.0, %v7918
    %v7920 = vrcp.pop %v7491
    %v7921 = vmul.f32 1.0, %v7920
    %v7922 = vrcp.pop %v7492
    %v7923 = vmul.f32 1.0, %v7922
    %v7924 = vrcp.pop %v7493
    %v7925 = vmul.f32 1.0, %v7924
    %v7926 = vrcp.pop %v7494
    %v7927 = vmul.f32 1.0, %v7926
    %v7928 = vrcp.pop %v7495
    %v7929 = vmul.f32 1.0, %v7928
    %v7930 = vrcp.pop %v7496
    %v7931 = vmul.f32 1.0, %v7930
    %v7932 = vrcp.pop %v7497
    %v7933 = vmul.f32 1.0, %v7932
    %v7934 = vrcp.pop %v7498
    %v7935 = vmul.f32 1.0, %v7934
    %v7936 = vrcp.pop %v7499
    %v7937 = vmul.f32 1.0, %v7936
    %v7938 = vrcp.pop %v7500
    %v7939 = vmul.f32 1.0, %v7938
    %v7940 = vrcp.pop %v7501
    %v7941 = vmul.f32 1.0, %v7940
    %v7942 = vrcp.pop %v7502
    %v7943 = vmul.f32 1.0, %v7942
    %v7944 = vrcp.pop %v7503
    %v7945 = vmul.f32 1.0, %v7944
    %v7946 = vrcp.pop %v7504
    %v7947 = vmul.f32 1.0, %v7946
    %v7948 = vrcp.pop %v7505
    %v7949 = vmul.f32 1.0, %v7948
    %v7950 = vrcp.pop %v7506
    %v7951 = vmul.f32 1.0, %v7950
    %v7952 = vrcp.pop %v7507
    %v7953 = vmul.f32 1.0, %v7952
    %v7954 = vrcp.pop %v7508
    %v7955 = vmul.f32 1.0, %v7954
    %v7956 = vrcp.pop %v7509
    %v7957 = vmul.f32 1.0, %v7956
    %v7958 = vrcp.pop %v7510
    %v7959 = vmul.f32 1.0, %v7958
    %v7960 = vrcp.pop %v7511
    %v7961 = vmul.f32 1.0, %v7960
    %v7962 = vrcp.pop %v7512
    %v7963 = vmul.f32 1.0, %v7962
    %v7964 = vrcp.pop %v7513
    %v7965 = vmul.f32 1.0, %v7964
    %v7966 = vrcp.pop %v7514
    %v7967 = vmul.f32 1.0, %v7966
    %v7968 = vrcp.pop %v7515
    %v7969 = vmul.f32 1.0, %v7968
    %v7970 = vrcp.pop %v7516
    %v7971 = vmul.f32 1.0, %v7970
    %v7972 = vrcp.pop %v7517
    %v7973 = vmul.f32 1.0, %v7972
    %v7974 = vrcp.pop %v7518
    %v7975 = vmul.f32 1.0, %v7974
    %v7976 = vrcp.pop %v7519
    %v7977 = vmul.f32 1.0, %v7976
    %v7978 = vrcp.pop %v7520
    %v7979 = vmul.f32 1.0, %v7978
    %v7980 = vrcp.pop %v7521
    %v7981 = vmul.f32 1.0, %v7980
    %v7982 = vrcp.pop %v7522
    %v7983 = vmul.f32 1.0, %v7982
    %v7984 = vrcp.pop %v7523
    %v7985 = vmul.f32 1.0, %v7984
    %v7986 = vrcp.pop %v7524
    %v7987 = vmul.f32 1.0, %v7986
    %v7988 = vrcp.pop %v7525
    %v7989 = vmul.f32 1.0, %v7988
    %v7990 = vrcp.pop %v7526
    %v7991 = vmul.f32 1.0, %v7990
    %v7992 = vrcp.pop %v7527
    %v7993 = vmul.f32 1.0, %v7992
    %v7994 = vrcp.pop %v7528
    %v7995 = vmul.f32 1.0, %v7994
    %v7996 = vrcp.pop %v7529
    %v7997 = vmul.f32 1.0, %v7996
    %v7998 = vrcp.pop %v7530
    %v7999 = vmul.f32 1.0, %v7998
    %v8000 = vrcp.pop %v7531
    %v8001 = vmul.f32 1.0, %v8000
    %v8002 = vrcp.pop %v7532
    %v8003 = vmul.f32 1.0, %v8002
    %v8004 = vrcp.pop %v7533
    %v8005 = vmul.f32 1.0, %v8004
    %v8006 = vrcp.pop %v7534
    %v8007 = vmul.f32 1.0, %v8006
    %v8008 = vrcp.pop %v7535
    %v8009 = vmul.f32 1.0, %v8008
    %v8010 = vrcp.pop %v7536
    %v8011 = vmul.f32 1.0, %v8010
    %v8012 = vrcp.pop %v7537
    %v8013 = vmul.f32 1.0, %v8012
    %v8014 = vrcp.pop %v7538
    %v8015 = vmul.f32 1.0, %v8014
    %v8016 = vrcp.pop %v7539
    %v8017 = vmul.f32 1.0, %v8016
    %v8018 = vrcp.pop %v7540
    %v8019 = vmul.f32 1.0, %v8018
    %v8020 = vrcp.pop %v7541
    %v8021 = vmul.f32 1.0, %v8020
    %v8022 = vrcp.pop %v7542
    %v8023 = vmul.f32 1.0, %v8022
    %v8024 = vrcp.pop %v7543
    %v8025 = vmul.f32 1.0, %v8024
    %v8026 = vrcp.pop %v7544
    %v8027 = vmul.f32 1.0, %v8026
    %v8028 = vrcp.pop %v7545
    %v8029 = vmul.f32 1.0, %v8028
    %v8030 = vrcp.pop %v7546
    %v8031 = vmul.f32 1.0, %v8030
    %v8032 = vrcp.pop %v7547
    %v8033 = vmul.f32 1.0, %v8032
    %v8034 = vrcp.pop %v7548
    %v8035 = vmul.f32 1.0, %v8034
    %v8036 = vrcp.pop %v7549
    %v8037 = vmul.f32 1.0, %v8036
    %v8038 = vrcp.pop %v7550
    %v8039 = vmul.f32 1.0, %v8038
    %v8040 = vrcp.pop %v7551
    %v8041 = vmul.f32 1.0, %v8040
    %v8042 = vrcp.pop %v7552
    %v8043 = vmul.f32 1.0, %v8042
    %v8044 = vrcp.pop %v7553
    %v8045 = vmul.f32 1.0, %v8044
    %v8046 = vrcp.pop %v7554
    %v8047 = vmul.f32 1.0, %v8046
    %v8048 = vrcp.pop %v7555
    %v8049 = vmul.f32 1.0, %v8048
    %v8050 = vrcp.pop %v7556
    %v8051 = vmul.f32 1.0, %v8050
    %v8052 = vrcp.pop %v7557
    %v8053 = vmul.f32 1.0, %v8052
    %v8054 = vrcp.pop %v7558
    %v8055 = vmul.f32 1.0, %v8054
    %v8056 = vrcp.pop %v7559
    %v8057 = vmul.f32 1.0, %v8056
    %v8058 = vrcp.pop %v7560
    %v8059 = vmul.f32 1.0, %v8058
    %v8060 = vrcp.pop %v7561
    %v8061 = vmul.f32 1.0, %v8060
    %v8062 = vrcp.pop %v7562
    %v8063 = vmul.f32 1.0, %v8062
    %v8064 = vrcp.pop %v7563
    %v8065 = vmul.f32 1.0, %v8064
    %v8066 = vrcp.pop %v7564
    %v8067 = vmul.f32 1.0, %v8066
    %v8068 = vrcp.pop %v7565
    %v8069 = vmul.f32 1.0, %v8068
    %v8070 = vrcp.pop %v7566
    %v8071 = vmul.f32 1.0, %v8070
    %v8072 = vrcp.pop %v7567
    %v8073 = vmul.f32 1.0, %v8072
    %v8074 = vrcp.pop %v7568
    %v8075 = vmul.f32 1.0, %v8074
    %v8076 = vrcp.pop %v7569
    %v8077 = vmul.f32 1.0, %v8076
    %v8078 = vrcp.pop %v7570
    %v8079 = vmul.f32 1.0, %v8078
    %v8080 = vrcp.pop %v7571
    %v8081 = vmul.f32 1.0, %v8080
    %v8082 = vrcp.pop %v7572
    %v8083 = vmul.f32 1.0, %v8082
    %v8084 = vrcp.pop %v7573
    %v8085 = vmul.f32 1.0, %v8084
    %v8342 = vlaneseq
    %v8343 = vand.u32 %v8342, 127
    %v8344 = vlaneseq
    %v8345 = vshrl.u32 %v8344, 7
    %v8346 = vsub.s32 %v8343, %v8345
    %v8347 = vrot.slane %v7575, %v8346
    %v8348 = vadd.s32 %v8343, 4294967288
    %v8349 = vlaneseq
    %v8350 = vshrl.u32 %v8349, 7
    %v8351 = vsub.s32 %v8348, %v8350
    %v8352 = vrot.slane %v7577, %v8351
    %vm8353 = vcmask 130112
    %v8354 = vsel %vm8353, %v8352, %v8347
    %v8355 = vadd.s32 %v8343, 4294967280
    %v8356 = vlaneseq
    %v8357 = vshrl.u32 %v8356, 7
    %v8358 = vsub.s32 %v8355, %v8357
    %v8359 = vrot.slane %v7579, %v8358
    %vm8360 = vcmask 195712
    %v8361 = vsel %vm8360, %v8359, %v8354
    %v8362 = vadd.s32 %v8343, 4294967272
    %v8363 = vlaneseq
    %v8364 = vshrl.u32 %v8363, 7
    %v8365 = vsub.s32 %v8362, %v8364
    %v8366 = vrot.slane %v7581, %v8365
    %vm8367 = vcmask 261312
    %v8368 = vsel %vm8367, %v8366, %v8361
    %v8369 = vadd.s32 %v8343, 4294967264
    %v8370 = vlaneseq
    %v8371 = vshrl.u32 %v8370, 7
    %v8372 = vsub.s32 %v8369, %v8371
    %v8373 = vrot.slane %v7583, %v8372
    %vm8374 = vcmask 326912
    %v8375 = vsel %vm8374, %v8373, %v8368
    %v8376 = vadd.s32 %v8343, 4294967256
    %v8377 = vlaneseq
    %v8378 = vshrl.u32 %v8377, 7
    %v8379 = vsub.s32 %v8376, %v8378
    %v8380 = vrot.slane %v7585, %v8379
    %vm8381 = vcmask 392512
    %v8382 = vsel %vm8381, %v8380, %v8375
    %v8383 = vadd.s32 %v8343, 4294967248
    %v8384 = vlaneseq
    %v8385 = vshrl.u32 %v8384, 7
    %v8386 = vsub.s32 %v8383, %v8385
    %v8387 = vrot.slane %v7587, %v8386
    %vm8388 = vcmask 458112
    %v8389 = vsel %vm8388, %v8387, %v8382
    %v8390 = vadd.s32 %v8343, 4294967240
    %v8391 = vlaneseq
    %v8392 = vshrl.u32 %v8391, 7
    %v8393 = vsub.s32 %v8390, %v8392
    %v8394 = vrot.slane %v7589, %v8393
    %vm8395 = vcmask 523712
    %v8396 = vsel %vm8395, %v8394, %v8389
    %v8397 = vadd.s32 %v8343, 4294967232
    %v8398 = vlaneseq
    %v8399 = vshrl.u32 %v8398, 7
    %v8400 = vsub.s32 %v8397, %v8399
    %v8401 = vrot.slane %v7591, %v8400
    %vm8402 = vcmask 589312
    %v8403 = vsel %vm8402, %v8401, %v8396
    %v8404 = vadd.s32 %v8343, 4294967224
    %v8405 = vlaneseq
    %v8406 = vshrl.u32 %v8405, 7
    %v8407 = vsub.s32 %v8404, %v8406
    %v8408 = vrot.slane %v7593, %v8407
    %vm8409 = vcmask 654912
    %v8410 = vsel %vm8409, %v8408, %v8403
    %v8411 = vadd.s32 %v8343, 4294967216
    %v8412 = vlaneseq
    %v8413 = vshrl.u32 %v8412, 7
    %v8414 = vsub.s32 %v8411, %v8413
    %v8415 = vrot.slane %v7595, %v8414
    %vm8416 = vcmask 720512
    %v8417 = vsel %vm8416, %v8415, %v8410
    %v8418 = vadd.s32 %v8343, 4294967208
    %v8419 = vlaneseq
    %v8420 = vshrl.u32 %v8419, 7
    %v8421 = vsub.s32 %v8418, %v8420
    %v8422 = vrot.slane %v7597, %v8421
    %vm8423 = vcmask 786112
    %v8424 = vsel %vm8423, %v8422, %v8417
    %v8425 = vadd.s32 %v8343, 4294967200
    %v8426 = vlaneseq
    %v8427 = vshrl.u32 %v8426, 7
    %v8428 = vsub.s32 %v8425, %v8427
    %v8429 = vrot.slane %v7599, %v8428
    %vm8430 = vcmask 851712
    %v8431 = vsel %vm8430, %v8429, %v8424
    %v8432 = vadd.s32 %v8343, 4294967192
    %v8433 = vlaneseq
    %v8434 = vshrl.u32 %v8433, 7
    %v8435 = vsub.s32 %v8432, %v8434
    %v8436 = vrot.slane %v7601, %v8435
    %vm8437 = vcmask 917312
    %v8438 = vsel %vm8437, %v8436, %v8431
    %v8439 = vadd.s32 %v8343, 4294967184
    %v8440 = vlaneseq
    %v8441 = vshrl.u32 %v8440, 7
    %v8442 = vsub.s32 %v8439, %v8441
    %v8443 = vrot.slane %v7603, %v8442
    %vm8444 = vcmask 982912
    %v8445 = vsel %vm8444, %v8443, %v8438
    %v8446 = vadd.s32 %v8343, 4294967176
    %v8447 = vlaneseq
    %v8448 = vshrl.u32 %v8447, 7
    %v8449 = vsub.s32 %v8446, %v8448
    %v8450 = vrot.slane %v7605, %v8449
    %vm8451 = vcmask 1048512
    %v8452 = vsel %vm8451, %v8450, %v8445
    %v8453 = vlaneseq
    %v8454 = vshrl.u32 %v8453, 7
    %v8455 = vsub.s32 %v8343, %v8454
    %v8456 = vrot.slane %v7607, %v8455
    %v8457 = vlaneseq
    %v8458 = vshrl.u32 %v8457, 7
    %v8459 = vsub.s32 %v8348, %v8458
    %v8460 = vrot.slane %v7609, %v8459
    %v8461 = vsel %vm8353, %v8460, %v8456
    %v8462 = vlaneseq
    %v8463 = vshrl.u32 %v8462, 7
    %v8464 = vsub.s32 %v8355, %v8463
    %v8465 = vrot.slane %v7611, %v8464
    %v8466 = vsel %vm8360, %v8465, %v8461
    %v8467 = vlaneseq
    %v8468 = vshrl.u32 %v8467, 7
    %v8469 = vsub.s32 %v8362, %v8468
    %v8470 = vrot.slane %v7613, %v8469
    %v8471 = vsel %vm8367, %v8470, %v8466
    %v8472 = vlaneseq
    %v8473 = vshrl.u32 %v8472, 7
    %v8474 = vsub.s32 %v8369, %v8473
    %v8475 = vrot.slane %v7615, %v8474
    %v8476 = vsel %vm8374, %v8475, %v8471
    %v8477 = vlaneseq
    %v8478 = vshrl.u32 %v8477, 7
    %v8479 = vsub.s32 %v8376, %v8478
    %v8480 = vrot.slane %v7617, %v8479
    %v8481 = vsel %vm8381, %v8480, %v8476
    %v8482 = vlaneseq
    %v8483 = vshrl.u32 %v8482, 7
    %v8484 = vsub.s32 %v8383, %v8483
    %v8485 = vrot.slane %v7619, %v8484
    %v8486 = vsel %vm8388, %v8485, %v8481
    %v8487 = vlaneseq
    %v8488 = vshrl.u32 %v8487, 7
    %v8489 = vsub.s32 %v8390, %v8488
    %v8490 = vrot.slane %v7621, %v8489
    %v8491 = vsel %vm8395, %v8490, %v8486
    %v8492 = vlaneseq
    %v8493 = vshrl.u32 %v8492, 7
    %v8494 = vsub.s32 %v8397, %v8493
    %v8495 = vrot.slane %v7623, %v8494
    %v8496 = vsel %vm8402, %v8495, %v8491
    %v8497 = vlaneseq
    %v8498 = vshrl.u32 %v8497, 7
    %v8499 = vsub.s32 %v8404, %v8498
    %v8500 = vrot.slane %v7625, %v8499
    %v8501 = vsel %vm8409, %v8500, %v8496
    %v8502 = vlaneseq
    %v8503 = vshrl.u32 %v8502, 7
    %v8504 = vsub.s32 %v8411, %v8503
    %v8505 = vrot.slane %v7627, %v8504
    %v8506 = vsel %vm8416, %v8505, %v8501
    %v8507 = vlaneseq
    %v8508 = vshrl.u32 %v8507, 7
    %v8509 = vsub.s32 %v8418, %v8508
    %v8510 = vrot.slane %v7629, %v8509
    %v8511 = vsel %vm8423, %v8510, %v8506
    %v8512 = vlaneseq
    %v8513 = vshrl.u32 %v8512, 7
    %v8514 = vsub.s32 %v8425, %v8513
    %v8515 = vrot.slane %v7631, %v8514
    %v8516 = vsel %vm8430, %v8515, %v8511
    %v8517 = vlaneseq
    %v8518 = vshrl.u32 %v8517, 7
    %v8519 = vsub.s32 %v8432, %v8518
    %v8520 = vrot.slane %v7633, %v8519
    %v8521 = vsel %vm8437, %v8520, %v8516
    %v8522 = vlaneseq
    %v8523 = vshrl.u32 %v8522, 7
    %v8524 = vsub.s32 %v8439, %v8523
    %v8525 = vrot.slane %v7635, %v8524
    %v8526 = vsel %vm8444, %v8525, %v8521
    %v8527 = vlaneseq
    %v8528 = vshrl.u32 %v8527, 7
    %v8529 = vsub.s32 %v8446, %v8528
    %v8530 = vrot.slane %v7637, %v8529
    %v8531 = vsel %vm8451, %v8530, %v8526
    %v8532 = vlaneseq
    %v8533 = vshrl.u32 %v8532, 7
    %v8534 = vsub.s32 %v8343, %v8533
    %v8535 = vrot.slane %v7639, %v8534
    %v8536 = vlaneseq
    %v8537 = vshrl.u32 %v8536, 7
    %v8538 = vsub.s32 %v8348, %v8537
    %v8539 = vrot.slane %v7641, %v8538
    %v8540 = vsel %vm8353, %v8539, %v8535
    %v8541 = vlaneseq
    %v8542 = vshrl.u32 %v8541, 7
    %v8543 = vsub.s32 %v8355, %v8542
    %v8544 = vrot.slane %v7643, %v8543
    %v8545 = vsel %vm8360, %v8544, %v8540
    %v8546 = vlaneseq
    %v8547 = vshrl.u32 %v8546, 7
    %v8548 = vsub.s32 %v8362, %v8547
    %v8549 = vrot.slane %v7645, %v8548
    %v8550 = vsel %vm8367, %v8549, %v8545
    %v8551 = vlaneseq
    %v8552 = vshrl.u32 %v8551, 7
    %v8553 = vsub.s32 %v8369, %v8552
    %v8554 = vrot.slane %v7647, %v8553
    %v8555 = vsel %vm8374, %v8554, %v8550
    %v8556 = vlaneseq
    %v8557 = vshrl.u32 %v8556, 7
    %v8558 = vsub.s32 %v8376, %v8557
    %v8559 = vrot.slane %v7649, %v8558
    %v8560 = vsel %vm8381, %v8559, %v8555
    %v8561 = vlaneseq
    %v8562 = vshrl.u32 %v8561, 7
    %v8563 = vsub.s32 %v8383, %v8562
    %v8564 = vrot.slane %v7651, %v8563
    %v8565 = vsel %vm8388, %v8564, %v8560
    %v8566 = vlaneseq
    %v8567 = vshrl.u32 %v8566, 7
    %v8568 = vsub.s32 %v8390, %v8567
    %v8569 = vrot.slane %v7653, %v8568
    %v8570 = vsel %vm8395, %v8569, %v8565
    %v8571 = vlaneseq
    %v8572 = vshrl.u32 %v8571, 7
    %v8573 = vsub.s32 %v8397, %v8572
    %v8574 = vrot.slane %v7655, %v8573
    %v8575 = vsel %vm8402, %v8574, %v8570
    %v8576 = vlaneseq
    %v8577 = vshrl.u32 %v8576, 7
    %v8578 = vsub.s32 %v8404, %v8577
    %v8579 = vrot.slane %v7657, %v8578
    %v8580 = vsel %vm8409, %v8579, %v8575
    %v8581 = vlaneseq
    %v8582 = vshrl.u32 %v8581, 7
    %v8583 = vsub.s32 %v8411, %v8582
    %v8584 = vrot.slane %v7659, %v8583
    %v8585 = vsel %vm8416, %v8584, %v8580
    %v8586 = vlaneseq
    %v8587 = vshrl.u32 %v8586, 7
    %v8588 = vsub.s32 %v8418, %v8587
    %v8589 = vrot.slane %v7661, %v8588
    %v8590 = vsel %vm8423, %v8589, %v8585
    %v8591 = vlaneseq
    %v8592 = vshrl.u32 %v8591, 7
    %v8593 = vsub.s32 %v8425, %v8592
    %v8594 = vrot.slane %v7663, %v8593
    %v8595 = vsel %vm8430, %v8594, %v8590
    %v8596 = vlaneseq
    %v8597 = vshrl.u32 %v8596, 7
    %v8598 = vsub.s32 %v8432, %v8597
    %v8599 = vrot.slane %v7665, %v8598
    %v8600 = vsel %vm8437, %v8599, %v8595
    %v8601 = vlaneseq
    %v8602 = vshrl.u32 %v8601, 7
    %v8603 = vsub.s32 %v8439, %v8602
    %v8604 = vrot.slane %v7667, %v8603
    %v8605 = vsel %vm8444, %v8604, %v8600
    %v8606 = vlaneseq
    %v8607 = vshrl.u32 %v8606, 7
    %v8608 = vsub.s32 %v8446, %v8607
    %v8609 = vrot.slane %v7669, %v8608
    %v8610 = vsel %vm8451, %v8609, %v8605
    %v8611 = vlaneseq
    %v8612 = vshrl.u32 %v8611, 7
    %v8613 = vsub.s32 %v8343, %v8612
    %v8614 = vrot.slane %v7671, %v8613
    %v8615 = vlaneseq
    %v8616 = vshrl.u32 %v8615, 7
    %v8617 = vsub.s32 %v8348, %v8616
    %v8618 = vrot.slane %v7673, %v8617
    %v8619 = vsel %vm8353, %v8618, %v8614
    %v8620 = vlaneseq
    %v8621 = vshrl.u32 %v8620, 7
    %v8622 = vsub.s32 %v8355, %v8621
    %v8623 = vrot.slane %v7675, %v8622
    %v8624 = vsel %vm8360, %v8623, %v8619
    %v8625 = vlaneseq
    %v8626 = vshrl.u32 %v8625, 7
    %v8627 = vsub.s32 %v8362, %v8626
    %v8628 = vrot.slane %v7677, %v8627
    %v8629 = vsel %vm8367, %v8628, %v8624
    %v8630 = vlaneseq
    %v8631 = vshrl.u32 %v8630, 7
    %v8632 = vsub.s32 %v8369, %v8631
    %v8633 = vrot.slane %v7679, %v8632
    %v8634 = vsel %vm8374, %v8633, %v8629
    %v8635 = vlaneseq
    %v8636 = vshrl.u32 %v8635, 7
    %v8637 = vsub.s32 %v8376, %v8636
    %v8638 = vrot.slane %v7681, %v8637
    %v8639 = vsel %vm8381, %v8638, %v8634
    %v8640 = vlaneseq
    %v8641 = vshrl.u32 %v8640, 7
    %v8642 = vsub.s32 %v8383, %v8641
    %v8643 = vrot.slane %v7683, %v8642
    %v8644 = vsel %vm8388, %v8643, %v8639
    %v8645 = vlaneseq
    %v8646 = vshrl.u32 %v8645, 7
    %v8647 = vsub.s32 %v8390, %v8646
    %v8648 = vrot.slane %v7685, %v8647
    %v8649 = vsel %vm8395, %v8648, %v8644
    %v8650 = vlaneseq
    %v8651 = vshrl.u32 %v8650, 7
    %v8652 = vsub.s32 %v8397, %v8651
    %v8653 = vrot.slane %v7687, %v8652
    %v8654 = vsel %vm8402, %v8653, %v8649
    %v8655 = vlaneseq
    %v8656 = vshrl.u32 %v8655, 7
    %v8657 = vsub.s32 %v8404, %v8656
    %v8658 = vrot.slane %v7689, %v8657
    %v8659 = vsel %vm8409, %v8658, %v8654
    %v8660 = vlaneseq
    %v8661 = vshrl.u32 %v8660, 7
    %v8662 = vsub.s32 %v8411, %v8661
    %v8663 = vrot.slane %v7691, %v8662
    %v8664 = vsel %vm8416, %v8663, %v8659
    %v8665 = vlaneseq
    %v8666 = vshrl.u32 %v8665, 7
    %v8667 = vsub.s32 %v8418, %v8666
    %v8668 = vrot.slane %v7693, %v8667
    %v8669 = vsel %vm8423, %v8668, %v8664
    %v8670 = vlaneseq
    %v8671 = vshrl.u32 %v8670, 7
    %v8672 = vsub.s32 %v8425, %v8671
    %v8673 = vrot.slane %v7695, %v8672
    %v8674 = vsel %vm8430, %v8673, %v8669
    %v8675 = vlaneseq
    %v8676 = vshrl.u32 %v8675, 7
    %v8677 = vsub.s32 %v8432, %v8676
    %v8678 = vrot.slane %v7697, %v8677
    %v8679 = vsel %vm8437, %v8678, %v8674
    %v8680 = vlaneseq
    %v8681 = vshrl.u32 %v8680, 7
    %v8682 = vsub.s32 %v8439, %v8681
    %v8683 = vrot.slane %v7699, %v8682
    %v8684 = vsel %vm8444, %v8683, %v8679
    %v8685 = vlaneseq
    %v8686 = vshrl.u32 %v8685, 7
    %v8687 = vsub.s32 %v8446, %v8686
    %v8688 = vrot.slane %v7701, %v8687
    %v8689 = vsel %vm8451, %v8688, %v8684
    %v8690 = vlaneseq
    %v8691 = vshrl.u32 %v8690, 7
    %v8692 = vsub.s32 %v8343, %v8691
    %v8693 = vrot.slane %v7703, %v8692
    %v8694 = vlaneseq
    %v8695 = vshrl.u32 %v8694, 7
    %v8696 = vsub.s32 %v8348, %v8695
    %v8697 = vrot.slane %v7705, %v8696
    %v8698 = vsel %vm8353, %v8697, %v8693
    %v8699 = vlaneseq
    %v8700 = vshrl.u32 %v8699, 7
    %v8701 = vsub.s32 %v8355, %v8700
    %v8702 = vrot.slane %v7707, %v8701
    %v8703 = vsel %vm8360, %v8702, %v8698
    %v8704 = vlaneseq
    %v8705 = vshrl.u32 %v8704, 7
    %v8706 = vsub.s32 %v8362, %v8705
    %v8707 = vrot.slane %v7709, %v8706
    %v8708 = vsel %vm8367, %v8707, %v8703
    %v8709 = vlaneseq
    %v8710 = vshrl.u32 %v8709, 7
    %v8711 = vsub.s32 %v8369, %v8710
    %v8712 = vrot.slane %v7711, %v8711
    %v8713 = vsel %vm8374, %v8712, %v8708
    %v8714 = vlaneseq
    %v8715 = vshrl.u32 %v8714, 7
    %v8716 = vsub.s32 %v8376, %v8715
    %v8717 = vrot.slane %v7713, %v8716
    %v8718 = vsel %vm8381, %v8717, %v8713
    %v8719 = vlaneseq
    %v8720 = vshrl.u32 %v8719, 7
    %v8721 = vsub.s32 %v8383, %v8720
    %v8722 = vrot.slane %v7715, %v8721
    %v8723 = vsel %vm8388, %v8722, %v8718
    %v8724 = vlaneseq
    %v8725 = vshrl.u32 %v8724, 7
    %v8726 = vsub.s32 %v8390, %v8725
    %v8727 = vrot.slane %v7717, %v8726
    %v8728 = vsel %vm8395, %v8727, %v8723
    %v8729 = vlaneseq
    %v8730 = vshrl.u32 %v8729, 7
    %v8731 = vsub.s32 %v8397, %v8730
    %v8732 = vrot.slane %v7719, %v8731
    %v8733 = vsel %vm8402, %v8732, %v8728
    %v8734 = vlaneseq
    %v8735 = vshrl.u32 %v8734, 7
    %v8736 = vsub.s32 %v8404, %v8735
    %v8737 = vrot.slane %v7721, %v8736
    %v8738 = vsel %vm8409, %v8737, %v8733
    %v8739 = vlaneseq
    %v8740 = vshrl.u32 %v8739, 7
    %v8741 = vsub.s32 %v8411, %v8740
    %v8742 = vrot.slane %v7723, %v8741
    %v8743 = vsel %vm8416, %v8742, %v8738
    %v8744 = vlaneseq
    %v8745 = vshrl.u32 %v8744, 7
    %v8746 = vsub.s32 %v8418, %v8745
    %v8747 = vrot.slane %v7725, %v8746
    %v8748 = vsel %vm8423, %v8747, %v8743
    %v8749 = vlaneseq
    %v8750 = vshrl.u32 %v8749, 7
    %v8751 = vsub.s32 %v8425, %v8750
    %v8752 = vrot.slane %v7727, %v8751
    %v8753 = vsel %vm8430, %v8752, %v8748
    %v8754 = vlaneseq
    %v8755 = vshrl.u32 %v8754, 7
    %v8756 = vsub.s32 %v8432, %v8755
    %v8757 = vrot.slane %v7729, %v8756
    %v8758 = vsel %vm8437, %v8757, %v8753
    %v8759 = vlaneseq
    %v8760 = vshrl.u32 %v8759, 7
    %v8761 = vsub.s32 %v8439, %v8760
    %v8762 = vrot.slane %v7731, %v8761
    %v8763 = vsel %vm8444, %v8762, %v8758
    %v8764 = vlaneseq
    %v8765 = vshrl.u32 %v8764, 7
    %v8766 = vsub.s32 %v8446, %v8765
    %v8767 = vrot.slane %v7733, %v8766
    %v8768 = vsel %vm8451, %v8767, %v8763
    %v8769 = vlaneseq
    %v8770 = vshrl.u32 %v8769, 7
    %v8771 = vsub.s32 %v8343, %v8770
    %v8772 = vrot.slane %v7735, %v8771
    %v8773 = vlaneseq
    %v8774 = vshrl.u32 %v8773, 7
    %v8775 = vsub.s32 %v8348, %v8774
    %v8776 = vrot.slane %v7737, %v8775
    %v8777 = vsel %vm8353, %v8776, %v8772
    %v8778 = vlaneseq
    %v8779 = vshrl.u32 %v8778, 7
    %v8780 = vsub.s32 %v8355, %v8779
    %v8781 = vrot.slane %v7739, %v8780
    %v8782 = vsel %vm8360, %v8781, %v8777
    %v8783 = vlaneseq
    %v8784 = vshrl.u32 %v8783, 7
    %v8785 = vsub.s32 %v8362, %v8784
    %v8786 = vrot.slane %v7741, %v8785
    %v8787 = vsel %vm8367, %v8786, %v8782
    %v8788 = vlaneseq
    %v8789 = vshrl.u32 %v8788, 7
    %v8790 = vsub.s32 %v8369, %v8789
    %v8791 = vrot.slane %v7743, %v8790
    %v8792 = vsel %vm8374, %v8791, %v8787
    %v8793 = vlaneseq
    %v8794 = vshrl.u32 %v8793, 7
    %v8795 = vsub.s32 %v8376, %v8794
    %v8796 = vrot.slane %v7745, %v8795
    %v8797 = vsel %vm8381, %v8796, %v8792
    %v8798 = vlaneseq
    %v8799 = vshrl.u32 %v8798, 7
    %v8800 = vsub.s32 %v8383, %v8799
    %v8801 = vrot.slane %v7747, %v8800
    %v8802 = vsel %vm8388, %v8801, %v8797
    %v8803 = vlaneseq
    %v8804 = vshrl.u32 %v8803, 7
    %v8805 = vsub.s32 %v8390, %v8804
    %v8806 = vrot.slane %v7749, %v8805
    %v8807 = vsel %vm8395, %v8806, %v8802
    %v8808 = vlaneseq
    %v8809 = vshrl.u32 %v8808, 7
    %v8810 = vsub.s32 %v8397, %v8809
    %v8811 = vrot.slane %v7751, %v8810
    %v8812 = vsel %vm8402, %v8811, %v8807
    %v8813 = vlaneseq
    %v8814 = vshrl.u32 %v8813, 7
    %v8815 = vsub.s32 %v8404, %v8814
    %v8816 = vrot.slane %v7753, %v8815
    %v8817 = vsel %vm8409, %v8816, %v8812
    %v8818 = vlaneseq
    %v8819 = vshrl.u32 %v8818, 7
    %v8820 = vsub.s32 %v8411, %v8819
    %v8821 = vrot.slane %v7755, %v8820
    %v8822 = vsel %vm8416, %v8821, %v8817
    %v8823 = vlaneseq
    %v8824 = vshrl.u32 %v8823, 7
    %v8825 = vsub.s32 %v8418, %v8824
    %v8826 = vrot.slane %v7757, %v8825
    %v8827 = vsel %vm8423, %v8826, %v8822
    %v8828 = vlaneseq
    %v8829 = vshrl.u32 %v8828, 7
    %v8830 = vsub.s32 %v8425, %v8829
    %v8831 = vrot.slane %v7759, %v8830
    %v8832 = vsel %vm8430, %v8831, %v8827
    %v8833 = vlaneseq
    %v8834 = vshrl.u32 %v8833, 7
    %v8835 = vsub.s32 %v8432, %v8834
    %v8836 = vrot.slane %v7761, %v8835
    %v8837 = vsel %vm8437, %v8836, %v8832
    %v8838 = vlaneseq
    %v8839 = vshrl.u32 %v8838, 7
    %v8840 = vsub.s32 %v8439, %v8839
    %v8841 = vrot.slane %v7763, %v8840
    %v8842 = vsel %vm8444, %v8841, %v8837
    %v8843 = vlaneseq
    %v8844 = vshrl.u32 %v8843, 7
    %v8845 = vsub.s32 %v8446, %v8844
    %v8846 = vrot.slane %v7765, %v8845
    %v8847 = vsel %vm8451, %v8846, %v8842
    %v8848 = vlaneseq
    %v8849 = vshrl.u32 %v8848, 7
    %v8850 = vsub.s32 %v8343, %v8849
    %v8851 = vrot.slane %v7767, %v8850
    %v8852 = vlaneseq
    %v8853 = vshrl.u32 %v8852, 7
    %v8854 = vsub.s32 %v8348, %v8853
    %v8855 = vrot.slane %v7769, %v8854
    %v8856 = vsel %vm8353, %v8855, %v8851
    %v8857 = vlaneseq
    %v8858 = vshrl.u32 %v8857, 7
    %v8859 = vsub.s32 %v8355, %v8858
    %v8860 = vrot.slane %v7771, %v8859
    %v8861 = vsel %vm8360, %v8860, %v8856
    %v8862 = vlaneseq
    %v8863 = vshrl.u32 %v8862, 7
    %v8864 = vsub.s32 %v8362, %v8863
    %v8865 = vrot.slane %v7773, %v8864
    %v8866 = vsel %vm8367, %v8865, %v8861
    %v8867 = vlaneseq
    %v8868 = vshrl.u32 %v8867, 7
    %v8869 = vsub.s32 %v8369, %v8868
    %v8870 = vrot.slane %v7775, %v8869
    %v8871 = vsel %vm8374, %v8870, %v8866
    %v8872 = vlaneseq
    %v8873 = vshrl.u32 %v8872, 7
    %v8874 = vsub.s32 %v8376, %v8873
    %v8875 = vrot.slane %v7777, %v8874
    %v8876 = vsel %vm8381, %v8875, %v8871
    %v8877 = vlaneseq
    %v8878 = vshrl.u32 %v8877, 7
    %v8879 = vsub.s32 %v8383, %v8878
    %v8880 = vrot.slane %v7779, %v8879
    %v8881 = vsel %vm8388, %v8880, %v8876
    %v8882 = vlaneseq
    %v8883 = vshrl.u32 %v8882, 7
    %v8884 = vsub.s32 %v8390, %v8883
    %v8885 = vrot.slane %v7781, %v8884
    %v8886 = vsel %vm8395, %v8885, %v8881
    %v8887 = vlaneseq
    %v8888 = vshrl.u32 %v8887, 7
    %v8889 = vsub.s32 %v8397, %v8888
    %v8890 = vrot.slane %v7783, %v8889
    %v8891 = vsel %vm8402, %v8890, %v8886
    %v8892 = vlaneseq
    %v8893 = vshrl.u32 %v8892, 7
    %v8894 = vsub.s32 %v8404, %v8893
    %v8895 = vrot.slane %v7785, %v8894
    %v8896 = vsel %vm8409, %v8895, %v8891
    %v8897 = vlaneseq
    %v8898 = vshrl.u32 %v8897, 7
    %v8899 = vsub.s32 %v8411, %v8898
    %v8900 = vrot.slane %v7787, %v8899
    %v8901 = vsel %vm8416, %v8900, %v8896
    %v8902 = vlaneseq
    %v8903 = vshrl.u32 %v8902, 7
    %v8904 = vsub.s32 %v8418, %v8903
    %v8905 = vrot.slane %v7789, %v8904
    %v8906 = vsel %vm8423, %v8905, %v8901
    %v8907 = vlaneseq
    %v8908 = vshrl.u32 %v8907, 7
    %v8909 = vsub.s32 %v8425, %v8908
    %v8910 = vrot.slane %v7791, %v8909
    %v8911 = vsel %vm8430, %v8910, %v8906
    %v8912 = vlaneseq
    %v8913 = vshrl.u32 %v8912, 7
    %v8914 = vsub.s32 %v8432, %v8913
    %v8915 = vrot.slane %v7793, %v8914
    %v8916 = vsel %vm8437, %v8915, %v8911
    %v8917 = vlaneseq
    %v8918 = vshrl.u32 %v8917, 7
    %v8919 = vsub.s32 %v8439, %v8918
    %v8920 = vrot.slane %v7795, %v8919
    %v8921 = vsel %vm8444, %v8920, %v8916
    %v8922 = vlaneseq
    %v8923 = vshrl.u32 %v8922, 7
    %v8924 = vsub.s32 %v8446, %v8923
    %v8925 = vrot.slane %v7797, %v8924
    %v8926 = vsel %vm8451, %v8925, %v8921
    %v8927 = vlaneseq
    %v8928 = vshrl.u32 %v8927, 7
    %v8929 = vsub.s32 %v8343, %v8928
    %v8930 = vrot.slane %v7799, %v8929
    %v8931 = vlaneseq
    %v8932 = vshrl.u32 %v8931, 7
    %v8933 = vsub.s32 %v8348, %v8932
    %v8934 = vrot.slane %v7801, %v8933
    %v8935 = vsel %vm8353, %v8934, %v8930
    %v8936 = vlaneseq
    %v8937 = vshrl.u32 %v8936, 7
    %v8938 = vsub.s32 %v8355, %v8937
    %v8939 = vrot.slane %v7803, %v8938
    %v8940 = vsel %vm8360, %v8939, %v8935
    %v8941 = vlaneseq
    %v8942 = vshrl.u32 %v8941, 7
    %v8943 = vsub.s32 %v8362, %v8942
    %v8944 = vrot.slane %v7805, %v8943
    %v8945 = vsel %vm8367, %v8944, %v8940
    %v8946 = vlaneseq
    %v8947 = vshrl.u32 %v8946, 7
    %v8948 = vsub.s32 %v8369, %v8947
    %v8949 = vrot.slane %v7807, %v8948
    %v8950 = vsel %vm8374, %v8949, %v8945
    %v8951 = vlaneseq
    %v8952 = vshrl.u32 %v8951, 7
    %v8953 = vsub.s32 %v8376, %v8952
    %v8954 = vrot.slane %v7809, %v8953
    %v8955 = vsel %vm8381, %v8954, %v8950
    %v8956 = vlaneseq
    %v8957 = vshrl.u32 %v8956, 7
    %v8958 = vsub.s32 %v8383, %v8957
    %v8959 = vrot.slane %v7811, %v8958
    %v8960 = vsel %vm8388, %v8959, %v8955
    %v8961 = vlaneseq
    %v8962 = vshrl.u32 %v8961, 7
    %v8963 = vsub.s32 %v8390, %v8962
    %v8964 = vrot.slane %v7813, %v8963
    %v8965 = vsel %vm8395, %v8964, %v8960
    %v8966 = vlaneseq
    %v8967 = vshrl.u32 %v8966, 7
    %v8968 = vsub.s32 %v8397, %v8967
    %v8969 = vrot.slane %v7815, %v8968
    %v8970 = vsel %vm8402, %v8969, %v8965
    %v8971 = vlaneseq
    %v8972 = vshrl.u32 %v8971, 7
    %v8973 = vsub.s32 %v8404, %v8972
    %v8974 = vrot.slane %v7817, %v8973
    %v8975 = vsel %vm8409, %v8974, %v8970
    %v8976 = vlaneseq
    %v8977 = vshrl.u32 %v8976, 7
    %v8978 = vsub.s32 %v8411, %v8977
    %v8979 = vrot.slane %v7819, %v8978
    %v8980 = vsel %vm8416, %v8979, %v8975
    %v8981 = vlaneseq
    %v8982 = vshrl.u32 %v8981, 7
    %v8983 = vsub.s32 %v8418, %v8982
    %v8984 = vrot.slane %v7821, %v8983
    %v8985 = vsel %vm8423, %v8984, %v8980
    %v8986 = vlaneseq
    %v8987 = vshrl.u32 %v8986, 7
    %v8988 = vsub.s32 %v8425, %v8987
    %v8989 = vrot.slane %v7823, %v8988
    %v8990 = vsel %vm8430, %v8989, %v8985
    %v8991 = vlaneseq
    %v8992 = vshrl.u32 %v8991, 7
    %v8993 = vsub.s32 %v8432, %v8992
    %v8994 = vrot.slane %v7825, %v8993
    %v8995 = vsel %vm8437, %v8994, %v8990
    %v8996 = vlaneseq
    %v8997 = vshrl.u32 %v8996, 7
    %v8998 = vsub.s32 %v8439, %v8997
    %v8999 = vrot.slane %v7827, %v8998
    %v9000 = vsel %vm8444, %v8999, %v8995
    %v9001 = vlaneseq
    %v9002 = vshrl.u32 %v9001, 7
    %v9003 = vsub.s32 %v8446, %v9002
    %v9004 = vrot.slane %v7829, %v9003
    %v9005 = vsel %vm8451, %v9004, %v9000
    %v9006 = vlaneseq
    %v9007 = vshrl.u32 %v9006, 7
    %v9008 = vsub.s32 %v8343, %v9007
    %v9009 = vrot.slane %v7831, %v9008
    %v9010 = vlaneseq
    %v9011 = vshrl.u32 %v9010, 7
    %v9012 = vsub.s32 %v8348, %v9011
    %v9013 = vrot.slane %v7833, %v9012
    %v9014 = vsel %vm8353, %v9013, %v9009
    %v9015 = vlaneseq
    %v9016 = vshrl.u32 %v9015, 7
    %v9017 = vsub.s32 %v8355, %v9016
    %v9018 = vrot.slane %v7835, %v9017
    %v9019 = vsel %vm8360, %v9018, %v9014
    %v9020 = vlaneseq
    %v9021 = vshrl.u32 %v9020, 7
    %v9022 = vsub.s32 %v8362, %v9021
    %v9023 = vrot.slane %v7837, %v9022
    %v9024 = vsel %vm8367, %v9023, %v9019
    %v9025 = vlaneseq
    %v9026 = vshrl.u32 %v9025, 7
    %v9027 = vsub.s32 %v8369, %v9026
    %v9028 = vrot.slane %v7839, %v9027
    %v9029 = vsel %vm8374, %v9028, %v9024
    %v9030 = vlaneseq
    %v9031 = vshrl.u32 %v9030, 7
    %v9032 = vsub.s32 %v8376, %v9031
    %v9033 = vrot.slane %v7841, %v9032
    %v9034 = vsel %vm8381, %v9033, %v9029
    %v9035 = vlaneseq
    %v9036 = vshrl.u32 %v9035, 7
    %v9037 = vsub.s32 %v8383, %v9036
    %v9038 = vrot.slane %v7843, %v9037
    %v9039 = vsel %vm8388, %v9038, %v9034
    %v9040 = vlaneseq
    %v9041 = vshrl.u32 %v9040, 7
    %v9042 = vsub.s32 %v8390, %v9041
    %v9043 = vrot.slane %v7845, %v9042
    %v9044 = vsel %vm8395, %v9043, %v9039
    %v9045 = vlaneseq
    %v9046 = vshrl.u32 %v9045, 7
    %v9047 = vsub.s32 %v8397, %v9046
    %v9048 = vrot.slane %v7847, %v9047
    %v9049 = vsel %vm8402, %v9048, %v9044
    %v9050 = vlaneseq
    %v9051 = vshrl.u32 %v9050, 7
    %v9052 = vsub.s32 %v8404, %v9051
    %v9053 = vrot.slane %v7849, %v9052
    %v9054 = vsel %vm8409, %v9053, %v9049
    %v9055 = vlaneseq
    %v9056 = vshrl.u32 %v9055, 7
    %v9057 = vsub.s32 %v8411, %v9056
    %v9058 = vrot.slane %v7851, %v9057
    %v9059 = vsel %vm8416, %v9058, %v9054
    %v9060 = vlaneseq
    %v9061 = vshrl.u32 %v9060, 7
    %v9062 = vsub.s32 %v8418, %v9061
    %v9063 = vrot.slane %v7853, %v9062
    %v9064 = vsel %vm8423, %v9063, %v9059
    %v9065 = vlaneseq
    %v9066 = vshrl.u32 %v9065, 7
    %v9067 = vsub.s32 %v8425, %v9066
    %v9068 = vrot.slane %v7855, %v9067
    %v9069 = vsel %vm8430, %v9068, %v9064
    %v9070 = vlaneseq
    %v9071 = vshrl.u32 %v9070, 7
    %v9072 = vsub.s32 %v8432, %v9071
    %v9073 = vrot.slane %v7857, %v9072
    %v9074 = vsel %vm8437, %v9073, %v9069
    %v9075 = vlaneseq
    %v9076 = vshrl.u32 %v9075, 7
    %v9077 = vsub.s32 %v8439, %v9076
    %v9078 = vrot.slane %v7859, %v9077
    %v9079 = vsel %vm8444, %v9078, %v9074
    %v9080 = vlaneseq
    %v9081 = vshrl.u32 %v9080, 7
    %v9082 = vsub.s32 %v8446, %v9081
    %v9083 = vrot.slane %v7861, %v9082
    %v9084 = vsel %vm8451, %v9083, %v9079
    %v9085 = vlaneseq
    %v9086 = vshrl.u32 %v9085, 7
    %v9087 = vsub.s32 %v8343, %v9086
    %v9088 = vrot.slane %v7863, %v9087
    %v9089 = vlaneseq
    %v9090 = vshrl.u32 %v9089, 7
    %v9091 = vsub.s32 %v8348, %v9090
    %v9092 = vrot.slane %v7865, %v9091
    %v9093 = vsel %vm8353, %v9092, %v9088
    %v9094 = vlaneseq
    %v9095 = vshrl.u32 %v9094, 7
    %v9096 = vsub.s32 %v8355, %v9095
    %v9097 = vrot.slane %v7867, %v9096
    %v9098 = vsel %vm8360, %v9097, %v9093
    %v9099 = vlaneseq
    %v9100 = vshrl.u32 %v9099, 7
    %v9101 = vsub.s32 %v8362, %v9100
    %v9102 = vrot.slane %v7869, %v9101
    %v9103 = vsel %vm8367, %v9102, %v9098
    %v9104 = vlaneseq
    %v9105 = vshrl.u32 %v9104, 7
    %v9106 = vsub.s32 %v8369, %v9105
    %v9107 = vrot.slane %v7871, %v9106
    %v9108 = vsel %vm8374, %v9107, %v9103
    %v9109 = vlaneseq
    %v9110 = vshrl.u32 %v9109, 7
    %v9111 = vsub.s32 %v8376, %v9110
    %v9112 = vrot.slane %v7873, %v9111
    %v9113 = vsel %vm8381, %v9112, %v9108
    %v9114 = vlaneseq
    %v9115 = vshrl.u32 %v9114, 7
    %v9116 = vsub.s32 %v8383, %v9115
    %v9117 = vrot.slane %v7875, %v9116
    %v9118 = vsel %vm8388, %v9117, %v9113
    %v9119 = vlaneseq
    %v9120 = vshrl.u32 %v9119, 7
    %v9121 = vsub.s32 %v8390, %v9120
    %v9122 = vrot.slane %v7877, %v9121
    %v9123 = vsel %vm8395, %v9122, %v9118
    %v9124 = vlaneseq
    %v9125 = vshrl.u32 %v9124, 7
    %v9126 = vsub.s32 %v8397, %v9125
    %v9127 = vrot.slane %v7879, %v9126
    %v9128 = vsel %vm8402, %v9127, %v9123
    %v9129 = vlaneseq
    %v9130 = vshrl.u32 %v9129, 7
    %v9131 = vsub.s32 %v8404, %v9130
    %v9132 = vrot.slane %v7881, %v9131
    %v9133 = vsel %vm8409, %v9132, %v9128
    %v9134 = vlaneseq
    %v9135 = vshrl.u32 %v9134, 7
    %v9136 = vsub.s32 %v8411, %v9135
    %v9137 = vrot.slane %v7883, %v9136
    %v9138 = vsel %vm8416, %v9137, %v9133
    %v9139 = vlaneseq
    %v9140 = vshrl.u32 %v9139, 7
    %v9141 = vsub.s32 %v8418, %v9140
    %v9142 = vrot.slane %v7885, %v9141
    %v9143 = vsel %vm8423, %v9142, %v9138
    %v9144 = vlaneseq
    %v9145 = vshrl.u32 %v9144, 7
    %v9146 = vsub.s32 %v8425, %v9145
    %v9147 = vrot.slane %v7887, %v9146
    %v9148 = vsel %vm8430, %v9147, %v9143
    %v9149 = vlaneseq
    %v9150 = vshrl.u32 %v9149, 7
    %v9151 = vsub.s32 %v8432, %v9150
    %v9152 = vrot.slane %v7889, %v9151
    %v9153 = vsel %vm8437, %v9152, %v9148
    %v9154 = vlaneseq
    %v9155 = vshrl.u32 %v9154, 7
    %v9156 = vsub.s32 %v8439, %v9155
    %v9157 = vrot.slane %v7891, %v9156
    %v9158 = vsel %vm8444, %v9157, %v9153
    %v9159 = vlaneseq
    %v9160 = vshrl.u32 %v9159, 7
    %v9161 = vsub.s32 %v8446, %v9160
    %v9162 = vrot.slane %v7893, %v9161
    %v9163 = vsel %vm8451, %v9162, %v9158
    %v9164 = vlaneseq
    %v9165 = vshrl.u32 %v9164, 7
    %v9166 = vsub.s32 %v8343, %v9165
    %v9167 = vrot.slane %v7895, %v9166
    %v9168 = vlaneseq
    %v9169 = vshrl.u32 %v9168, 7
    %v9170 = vsub.s32 %v8348, %v9169
    %v9171 = vrot.slane %v7897, %v9170
    %v9172 = vsel %vm8353, %v9171, %v9167
    %v9173 = vlaneseq
    %v9174 = vshrl.u32 %v9173, 7
    %v9175 = vsub.s32 %v8355, %v9174
    %v9176 = vrot.slane %v7899, %v9175
    %v9177 = vsel %vm8360, %v9176, %v9172
    %v9178 = vlaneseq
    %v9179 = vshrl.u32 %v9178, 7
    %v9180 = vsub.s32 %v8362, %v9179
    %v9181 = vrot.slane %v7901, %v9180
    %v9182 = vsel %vm8367, %v9181, %v9177
    %v9183 = vlaneseq
    %v9184 = vshrl.u32 %v9183, 7
    %v9185 = vsub.s32 %v8369, %v9184
    %v9186 = vrot.slane %v7903, %v9185
    %v9187 = vsel %vm8374, %v9186, %v9182
    %v9188 = vlaneseq
    %v9189 = vshrl.u32 %v9188, 7
    %v9190 = vsub.s32 %v8376, %v9189
    %v9191 = vrot.slane %v7905, %v9190
    %v9192 = vsel %vm8381, %v9191, %v9187
    %v9193 = vlaneseq
    %v9194 = vshrl.u32 %v9193, 7
    %v9195 = vsub.s32 %v8383, %v9194
    %v9196 = vrot.slane %v7907, %v9195
    %v9197 = vsel %vm8388, %v9196, %v9192
    %v9198 = vlaneseq
    %v9199 = vshrl.u32 %v9198, 7
    %v9200 = vsub.s32 %v8390, %v9199
    %v9201 = vrot.slane %v7909, %v9200
    %v9202 = vsel %vm8395, %v9201, %v9197
    %v9203 = vlaneseq
    %v9204 = vshrl.u32 %v9203, 7
    %v9205 = vsub.s32 %v8397, %v9204
    %v9206 = vrot.slane %v7911, %v9205
    %v9207 = vsel %vm8402, %v9206, %v9202
    %v9208 = vlaneseq
    %v9209 = vshrl.u32 %v9208, 7
    %v9210 = vsub.s32 %v8404, %v9209
    %v9211 = vrot.slane %v7913, %v9210
    %v9212 = vsel %vm8409, %v9211, %v9207
    %v9213 = vlaneseq
    %v9214 = vshrl.u32 %v9213, 7
    %v9215 = vsub.s32 %v8411, %v9214
    %v9216 = vrot.slane %v7915, %v9215
    %v9217 = vsel %vm8416, %v9216, %v9212
    %v9218 = vlaneseq
    %v9219 = vshrl.u32 %v9218, 7
    %v9220 = vsub.s32 %v8418, %v9219
    %v9221 = vrot.slane %v7917, %v9220
    %v9222 = vsel %vm8423, %v9221, %v9217
    %v9223 = vlaneseq
    %v9224 = vshrl.u32 %v9223, 7
    %v9225 = vsub.s32 %v8425, %v9224
    %v9226 = vrot.slane %v7919, %v9225
    %v9227 = vsel %vm8430, %v9226, %v9222
    %v9228 = vlaneseq
    %v9229 = vshrl.u32 %v9228, 7
    %v9230 = vsub.s32 %v8432, %v9229
    %v9231 = vrot.slane %v7921, %v9230
    %v9232 = vsel %vm8437, %v9231, %v9227
    %v9233 = vlaneseq
    %v9234 = vshrl.u32 %v9233, 7
    %v9235 = vsub.s32 %v8439, %v9234
    %v9236 = vrot.slane %v7923, %v9235
    %v9237 = vsel %vm8444, %v9236, %v9232
    %v9238 = vlaneseq
    %v9239 = vshrl.u32 %v9238, 7
    %v9240 = vsub.s32 %v8446, %v9239
    %v9241 = vrot.slane %v7925, %v9240
    %v9242 = vsel %vm8451, %v9241, %v9237
    %v9243 = vlaneseq
    %v9244 = vshrl.u32 %v9243, 7
    %v9245 = vsub.s32 %v8343, %v9244
    %v9246 = vrot.slane %v7927, %v9245
    %v9247 = vlaneseq
    %v9248 = vshrl.u32 %v9247, 7
    %v9249 = vsub.s32 %v8348, %v9248
    %v9250 = vrot.slane %v7929, %v9249
    %v9251 = vsel %vm8353, %v9250, %v9246
    %v9252 = vlaneseq
    %v9253 = vshrl.u32 %v9252, 7
    %v9254 = vsub.s32 %v8355, %v9253
    %v9255 = vrot.slane %v7931, %v9254
    %v9256 = vsel %vm8360, %v9255, %v9251
    %v9257 = vlaneseq
    %v9258 = vshrl.u32 %v9257, 7
    %v9259 = vsub.s32 %v8362, %v9258
    %v9260 = vrot.slane %v7933, %v9259
    %v9261 = vsel %vm8367, %v9260, %v9256
    %v9262 = vlaneseq
    %v9263 = vshrl.u32 %v9262, 7
    %v9264 = vsub.s32 %v8369, %v9263
    %v9265 = vrot.slane %v7935, %v9264
    %v9266 = vsel %vm8374, %v9265, %v9261
    %v9267 = vlaneseq
    %v9268 = vshrl.u32 %v9267, 7
    %v9269 = vsub.s32 %v8376, %v9268
    %v9270 = vrot.slane %v7937, %v9269
    %v9271 = vsel %vm8381, %v9270, %v9266
    %v9272 = vlaneseq
    %v9273 = vshrl.u32 %v9272, 7
    %v9274 = vsub.s32 %v8383, %v9273
    %v9275 = vrot.slane %v7939, %v9274
    %v9276 = vsel %vm8388, %v9275, %v9271
    %v9277 = vlaneseq
    %v9278 = vshrl.u32 %v9277, 7
    %v9279 = vsub.s32 %v8390, %v9278
    %v9280 = vrot.slane %v7941, %v9279
    %v9281 = vsel %vm8395, %v9280, %v9276
    %v9282 = vlaneseq
    %v9283 = vshrl.u32 %v9282, 7
    %v9284 = vsub.s32 %v8397, %v9283
    %v9285 = vrot.slane %v7943, %v9284
    %v9286 = vsel %vm8402, %v9285, %v9281
    %v9287 = vlaneseq
    %v9288 = vshrl.u32 %v9287, 7
    %v9289 = vsub.s32 %v8404, %v9288
    %v9290 = vrot.slane %v7945, %v9289
    %v9291 = vsel %vm8409, %v9290, %v9286
    %v9292 = vlaneseq
    %v9293 = vshrl.u32 %v9292, 7
    %v9294 = vsub.s32 %v8411, %v9293
    %v9295 = vrot.slane %v7947, %v9294
    %v9296 = vsel %vm8416, %v9295, %v9291
    %v9297 = vlaneseq
    %v9298 = vshrl.u32 %v9297, 7
    %v9299 = vsub.s32 %v8418, %v9298
    %v9300 = vrot.slane %v7949, %v9299
    %v9301 = vsel %vm8423, %v9300, %v9296
    %v9302 = vlaneseq
    %v9303 = vshrl.u32 %v9302, 7
    %v9304 = vsub.s32 %v8425, %v9303
    %v9305 = vrot.slane %v7951, %v9304
    %v9306 = vsel %vm8430, %v9305, %v9301
    %v9307 = vlaneseq
    %v9308 = vshrl.u32 %v9307, 7
    %v9309 = vsub.s32 %v8432, %v9308
    %v9310 = vrot.slane %v7953, %v9309
    %v9311 = vsel %vm8437, %v9310, %v9306
    %v9312 = vlaneseq
    %v9313 = vshrl.u32 %v9312, 7
    %v9314 = vsub.s32 %v8439, %v9313
    %v9315 = vrot.slane %v7955, %v9314
    %v9316 = vsel %vm8444, %v9315, %v9311
    %v9317 = vlaneseq
    %v9318 = vshrl.u32 %v9317, 7
    %v9319 = vsub.s32 %v8446, %v9318
    %v9320 = vrot.slane %v7957, %v9319
    %v9321 = vsel %vm8451, %v9320, %v9316
    %v9322 = vlaneseq
    %v9323 = vshrl.u32 %v9322, 7
    %v9324 = vsub.s32 %v8343, %v9323
    %v9325 = vrot.slane %v7959, %v9324
    %v9326 = vlaneseq
    %v9327 = vshrl.u32 %v9326, 7
    %v9328 = vsub.s32 %v8348, %v9327
    %v9329 = vrot.slane %v7961, %v9328
    %v9330 = vsel %vm8353, %v9329, %v9325
    %v9331 = vlaneseq
    %v9332 = vshrl.u32 %v9331, 7
    %v9333 = vsub.s32 %v8355, %v9332
    %v9334 = vrot.slane %v7963, %v9333
    %v9335 = vsel %vm8360, %v9334, %v9330
    %v9336 = vlaneseq
    %v9337 = vshrl.u32 %v9336, 7
    %v9338 = vsub.s32 %v8362, %v9337
    %v9339 = vrot.slane %v7965, %v9338
    %v9340 = vsel %vm8367, %v9339, %v9335
    %v9341 = vlaneseq
    %v9342 = vshrl.u32 %v9341, 7
    %v9343 = vsub.s32 %v8369, %v9342
    %v9344 = vrot.slane %v7967, %v9343
    %v9345 = vsel %vm8374, %v9344, %v9340
    %v9346 = vlaneseq
    %v9347 = vshrl.u32 %v9346, 7
    %v9348 = vsub.s32 %v8376, %v9347
    %v9349 = vrot.slane %v7969, %v9348
    %v9350 = vsel %vm8381, %v9349, %v9345
    %v9351 = vlaneseq
    %v9352 = vshrl.u32 %v9351, 7
    %v9353 = vsub.s32 %v8383, %v9352
    %v9354 = vrot.slane %v7971, %v9353
    %v9355 = vsel %vm8388, %v9354, %v9350
    %v9356 = vlaneseq
    %v9357 = vshrl.u32 %v9356, 7
    %v9358 = vsub.s32 %v8390, %v9357
    %v9359 = vrot.slane %v7973, %v9358
    %v9360 = vsel %vm8395, %v9359, %v9355
    %v9361 = vlaneseq
    %v9362 = vshrl.u32 %v9361, 7
    %v9363 = vsub.s32 %v8397, %v9362
    %v9364 = vrot.slane %v7975, %v9363
    %v9365 = vsel %vm8402, %v9364, %v9360
    %v9366 = vlaneseq
    %v9367 = vshrl.u32 %v9366, 7
    %v9368 = vsub.s32 %v8404, %v9367
    %v9369 = vrot.slane %v7977, %v9368
    %v9370 = vsel %vm8409, %v9369, %v9365
    %v9371 = vlaneseq
    %v9372 = vshrl.u32 %v9371, 7
    %v9373 = vsub.s32 %v8411, %v9372
    %v9374 = vrot.slane %v7979, %v9373
    %v9375 = vsel %vm8416, %v9374, %v9370
    %v9376 = vlaneseq
    %v9377 = vshrl.u32 %v9376, 7
    %v9378 = vsub.s32 %v8418, %v9377
    %v9379 = vrot.slane %v7981, %v9378
    %v9380 = vsel %vm8423, %v9379, %v9375
    %v9381 = vlaneseq
    %v9382 = vshrl.u32 %v9381, 7
    %v9383 = vsub.s32 %v8425, %v9382
    %v9384 = vrot.slane %v7983, %v9383
    %v9385 = vsel %vm8430, %v9384, %v9380
    %v9386 = vlaneseq
    %v9387 = vshrl.u32 %v9386, 7
    %v9388 = vsub.s32 %v8432, %v9387
    %v9389 = vrot.slane %v7985, %v9388
    %v9390 = vsel %vm8437, %v9389, %v9385
    %v9391 = vlaneseq
    %v9392 = vshrl.u32 %v9391, 7
    %v9393 = vsub.s32 %v8439, %v9392
    %v9394 = vrot.slane %v7987, %v9393
    %v9395 = vsel %vm8444, %v9394, %v9390
    %v9396 = vlaneseq
    %v9397 = vshrl.u32 %v9396, 7
    %v9398 = vsub.s32 %v8446, %v9397
    %v9399 = vrot.slane %v7989, %v9398
    %v9400 = vsel %vm8451, %v9399, %v9395
    %v9401 = vlaneseq
    %v9402 = vshrl.u32 %v9401, 7
    %v9403 = vsub.s32 %v8343, %v9402
    %v9404 = vrot.slane %v7991, %v9403
    %v9405 = vlaneseq
    %v9406 = vshrl.u32 %v9405, 7
    %v9407 = vsub.s32 %v8348, %v9406
    %v9408 = vrot.slane %v7993, %v9407
    %v9409 = vsel %vm8353, %v9408, %v9404
    %v9410 = vlaneseq
    %v9411 = vshrl.u32 %v9410, 7
    %v9412 = vsub.s32 %v8355, %v9411
    %v9413 = vrot.slane %v7995, %v9412
    %v9414 = vsel %vm8360, %v9413, %v9409
    %v9415 = vlaneseq
    %v9416 = vshrl.u32 %v9415, 7
    %v9417 = vsub.s32 %v8362, %v9416
    %v9418 = vrot.slane %v7997, %v9417
    %v9419 = vsel %vm8367, %v9418, %v9414
    %v9420 = vlaneseq
    %v9421 = vshrl.u32 %v9420, 7
    %v9422 = vsub.s32 %v8369, %v9421
    %v9423 = vrot.slane %v7999, %v9422
    %v9424 = vsel %vm8374, %v9423, %v9419
    %v9425 = vlaneseq
    %v9426 = vshrl.u32 %v9425, 7
    %v9427 = vsub.s32 %v8376, %v9426
    %v9428 = vrot.slane %v8001, %v9427
    %v9429 = vsel %vm8381, %v9428, %v9424
    %v9430 = vlaneseq
    %v9431 = vshrl.u32 %v9430, 7
    %v9432 = vsub.s32 %v8383, %v9431
    %v9433 = vrot.slane %v8003, %v9432
    %v9434 = vsel %vm8388, %v9433, %v9429
    %v9435 = vlaneseq
    %v9436 = vshrl.u32 %v9435, 7
    %v9437 = vsub.s32 %v8390, %v9436
    %v9438 = vrot.slane %v8005, %v9437
    %v9439 = vsel %vm8395, %v9438, %v9434
    %v9440 = vlaneseq
    %v9441 = vshrl.u32 %v9440, 7
    %v9442 = vsub.s32 %v8397, %v9441
    %v9443 = vrot.slane %v8007, %v9442
    %v9444 = vsel %vm8402, %v9443, %v9439
    %v9445 = vlaneseq
    %v9446 = vshrl.u32 %v9445, 7
    %v9447 = vsub.s32 %v8404, %v9446
    %v9448 = vrot.slane %v8009, %v9447
    %v9449 = vsel %vm8409, %v9448, %v9444
    %v9450 = vlaneseq
    %v9451 = vshrl.u32 %v9450, 7
    %v9452 = vsub.s32 %v8411, %v9451
    %v9453 = vrot.slane %v8011, %v9452
    %v9454 = vsel %vm8416, %v9453, %v9449
    %v9455 = vlaneseq
    %v9456 = vshrl.u32 %v9455, 7
    %v9457 = vsub.s32 %v8418, %v9456
    %v9458 = vrot.slane %v8013, %v9457
    %v9459 = vsel %vm8423, %v9458, %v9454
    %v9460 = vlaneseq
    %v9461 = vshrl.u32 %v9460, 7
    %v9462 = vsub.s32 %v8425, %v9461
    %v9463 = vrot.slane %v8015, %v9462
    %v9464 = vsel %vm8430, %v9463, %v9459
    %v9465 = vlaneseq
    %v9466 = vshrl.u32 %v9465, 7
    %v9467 = vsub.s32 %v8432, %v9466
    %v9468 = vrot.slane %v8017, %v9467
    %v9469 = vsel %vm8437, %v9468, %v9464
    %v9470 = vlaneseq
    %v9471 = vshrl.u32 %v9470, 7
    %v9472 = vsub.s32 %v8439, %v9471
    %v9473 = vrot.slane %v8019, %v9472
    %v9474 = vsel %vm8444, %v9473, %v9469
    %v9475 = vlaneseq
    %v9476 = vshrl.u32 %v9475, 7
    %v9477 = vsub.s32 %v8446, %v9476
    %v9478 = vrot.slane %v8021, %v9477
    %v9479 = vsel %vm8451, %v9478, %v9474
    %v9480 = vlaneseq
    %v9481 = vshrl.u32 %v9480, 7
    %v9482 = vsub.s32 %v8343, %v9481
    %v9483 = vrot.slane %v8023, %v9482
    %v9484 = vlaneseq
    %v9485 = vshrl.u32 %v9484, 7
    %v9486 = vsub.s32 %v8348, %v9485
    %v9487 = vrot.slane %v8025, %v9486
    %v9488 = vsel %vm8353, %v9487, %v9483
    %v9489 = vlaneseq
    %v9490 = vshrl.u32 %v9489, 7
    %v9491 = vsub.s32 %v8355, %v9490
    %v9492 = vrot.slane %v8027, %v9491
    %v9493 = vsel %vm8360, %v9492, %v9488
    %v9494 = vlaneseq
    %v9495 = vshrl.u32 %v9494, 7
    %v9496 = vsub.s32 %v8362, %v9495
    %v9497 = vrot.slane %v8029, %v9496
    %v9498 = vsel %vm8367, %v9497, %v9493
    %v9499 = vlaneseq
    %v9500 = vshrl.u32 %v9499, 7
    %v9501 = vsub.s32 %v8369, %v9500
    %v9502 = vrot.slane %v8031, %v9501
    %v9503 = vsel %vm8374, %v9502, %v9498
    %v9504 = vlaneseq
    %v9505 = vshrl.u32 %v9504, 7
    %v9506 = vsub.s32 %v8376, %v9505
    %v9507 = vrot.slane %v8033, %v9506
    %v9508 = vsel %vm8381, %v9507, %v9503
    %v9509 = vlaneseq
    %v9510 = vshrl.u32 %v9509, 7
    %v9511 = vsub.s32 %v8383, %v9510
    %v9512 = vrot.slane %v8035, %v9511
    %v9513 = vsel %vm8388, %v9512, %v9508
    %v9514 = vlaneseq
    %v9515 = vshrl.u32 %v9514, 7
    %v9516 = vsub.s32 %v8390, %v9515
    %v9517 = vrot.slane %v8037, %v9516
    %v9518 = vsel %vm8395, %v9517, %v9513
    %v9519 = vlaneseq
    %v9520 = vshrl.u32 %v9519, 7
    %v9521 = vsub.s32 %v8397, %v9520
    %v9522 = vrot.slane %v8039, %v9521
    %v9523 = vsel %vm8402, %v9522, %v9518
    %v9524 = vlaneseq
    %v9525 = vshrl.u32 %v9524, 7
    %v9526 = vsub.s32 %v8404, %v9525
    %v9527 = vrot.slane %v8041, %v9526
    %v9528 = vsel %vm8409, %v9527, %v9523
    %v9529 = vlaneseq
    %v9530 = vshrl.u32 %v9529, 7
    %v9531 = vsub.s32 %v8411, %v9530
    %v9532 = vrot.slane %v8043, %v9531
    %v9533 = vsel %vm8416, %v9532, %v9528
    %v9534 = vlaneseq
    %v9535 = vshrl.u32 %v9534, 7
    %v9536 = vsub.s32 %v8418, %v9535
    %v9537 = vrot.slane %v8045, %v9536
    %v9538 = vsel %vm8423, %v9537, %v9533
    %v9539 = vlaneseq
    %v9540 = vshrl.u32 %v9539, 7
    %v9541 = vsub.s32 %v8425, %v9540
    %v9542 = vrot.slane %v8047, %v9541
    %v9543 = vsel %vm8430, %v9542, %v9538
    %v9544 = vlaneseq
    %v9545 = vshrl.u32 %v9544, 7
    %v9546 = vsub.s32 %v8432, %v9545
    %v9547 = vrot.slane %v8049, %v9546
    %v9548 = vsel %vm8437, %v9547, %v9543
    %v9549 = vlaneseq
    %v9550 = vshrl.u32 %v9549, 7
    %v9551 = vsub.s32 %v8439, %v9550
    %v9552 = vrot.slane %v8051, %v9551
    %v9553 = vsel %vm8444, %v9552, %v9548
    %v9554 = vlaneseq
    %v9555 = vshrl.u32 %v9554, 7
    %v9556 = vsub.s32 %v8446, %v9555
    %v9557 = vrot.slane %v8053, %v9556
    %v9558 = vsel %vm8451, %v9557, %v9553
    %v9559 = vlaneseq
    %v9560 = vshrl.u32 %v9559, 7
    %v9561 = vsub.s32 %v8343, %v9560
    %v9562 = vrot.slane %v8055, %v9561
    %v9563 = vlaneseq
    %v9564 = vshrl.u32 %v9563, 7
    %v9565 = vsub.s32 %v8348, %v9564
    %v9566 = vrot.slane %v8057, %v9565
    %v9567 = vsel %vm8353, %v9566, %v9562
    %v9568 = vlaneseq
    %v9569 = vshrl.u32 %v9568, 7
    %v9570 = vsub.s32 %v8355, %v9569
    %v9571 = vrot.slane %v8059, %v9570
    %v9572 = vsel %vm8360, %v9571, %v9567
    %v9573 = vlaneseq
    %v9574 = vshrl.u32 %v9573, 7
    %v9575 = vsub.s32 %v8362, %v9574
    %v9576 = vrot.slane %v8061, %v9575
    %v9577 = vsel %vm8367, %v9576, %v9572
    %v9578 = vlaneseq
    %v9579 = vshrl.u32 %v9578, 7
    %v9580 = vsub.s32 %v8369, %v9579
    %v9581 = vrot.slane %v8063, %v9580
    %v9582 = vsel %vm8374, %v9581, %v9577
    %v9583 = vlaneseq
    %v9584 = vshrl.u32 %v9583, 7
    %v9585 = vsub.s32 %v8376, %v9584
    %v9586 = vrot.slane %v8065, %v9585
    %v9587 = vsel %vm8381, %v9586, %v9582
    %v9588 = vlaneseq
    %v9589 = vshrl.u32 %v9588, 7
    %v9590 = vsub.s32 %v8383, %v9589
    %v9591 = vrot.slane %v8067, %v9590
    %v9592 = vsel %vm8388, %v9591, %v9587
    %v9593 = vlaneseq
    %v9594 = vshrl.u32 %v9593, 7
    %v9595 = vsub.s32 %v8390, %v9594
    %v9596 = vrot.slane %v8069, %v9595
    %v9597 = vsel %vm8395, %v9596, %v9592
    %v9598 = vlaneseq
    %v9599 = vshrl.u32 %v9598, 7
    %v9600 = vsub.s32 %v8397, %v9599
    %v9601 = vrot.slane %v8071, %v9600
    %v9602 = vsel %vm8402, %v9601, %v9597
    %v9603 = vlaneseq
    %v9604 = vshrl.u32 %v9603, 7
    %v9605 = vsub.s32 %v8404, %v9604
    %v9606 = vrot.slane %v8073, %v9605
    %v9607 = vsel %vm8409, %v9606, %v9602
    %v9608 = vlaneseq
    %v9609 = vshrl.u32 %v9608, 7
    %v9610 = vsub.s32 %v8411, %v9609
    %v9611 = vrot.slane %v8075, %v9610
    %v9612 = vsel %vm8416, %v9611, %v9607
    %v9613 = vlaneseq
    %v9614 = vshrl.u32 %v9613, 7
    %v9615 = vsub.s32 %v8418, %v9614
    %v9616 = vrot.slane %v8077, %v9615
    %v9617 = vsel %vm8423, %v9616, %v9612
    %v9618 = vlaneseq
    %v9619 = vshrl.u32 %v9618, 7
    %v9620 = vsub.s32 %v8425, %v9619
    %v9621 = vrot.slane %v8079, %v9620
    %v9622 = vsel %vm8430, %v9621, %v9617
    %v9623 = vlaneseq
    %v9624 = vshrl.u32 %v9623, 7
    %v9625 = vsub.s32 %v8432, %v9624
    %v9626 = vrot.slane %v8081, %v9625
    %v9627 = vsel %vm8437, %v9626, %v9622
    %v9628 = vlaneseq
    %v9629 = vshrl.u32 %v9628, 7
    %v9630 = vsub.s32 %v8439, %v9629
    %v9631 = vrot.slane %v8083, %v9630
    %v9632 = vsel %vm8444, %v9631, %v9627
    %v9633 = vlaneseq
    %v9634 = vshrl.u32 %v9633, 7
    %v9635 = vsub.s32 %v8446, %v9634
    %v9636 = vrot.slane %v8085, %v9635
    %v9637 = vsel %vm8451, %v9636, %v9632
    %vm9638 = vcmask 1041409
    %v9639 = vsel %vm9638, %v8531, %v8452
    %vm9640 = vcmask 1042434
    %v9641 = vsel %vm9640, %v8610, %v9639
    %vm9642 = vcmask 1043459
    %v9643 = vsel %vm9642, %v8689, %v9641
    %vm9644 = vcmask 1044484
    %v9645 = vsel %vm9644, %v8768, %v9643
    %vm9646 = vcmask 1045509
    %v9647 = vsel %vm9646, %v8847, %v9645
    %vm9648 = vcmask 1046534
    %v9649 = vsel %vm9648, %v8926, %v9647
    %vm9650 = vcmask 1047559
    %v9651 = vsel %vm9650, %v9005, %v9649
    %v9652 = vsel %vm9638, %v9163, %v9084
    %v9653 = vsel %vm9640, %v9242, %v9652
    %v9654 = vsel %vm9642, %v9321, %v9653
    %v9655 = vsel %vm9644, %v9400, %v9654
    %v9656 = vsel %vm9646, %v9479, %v9655
    %v9657 = vsel %vm9648, %v9558, %v9656
    %v9658 = vsel %vm9650, %v9637, %v9657
    %9661 = vst [vmem:[#allocation3] sm:$0xff] %v9651
    %9662 = vst [vmem:[#allocation3 + $0x8] sm:$0xff] %v9658
    // Predicated region
    $region26: #{tpu_custom_call.1} parent=1 // pred_check
      _
    $region27: #{tpu_custom_call.1} parent=1 // pred_check_branch
      %9664 = sbr.rel (0) target = $region29
    $region28: #{tpu_custom_call.1} parent=1 // pred_region
      %s9666 = ssub.s32 256, 256
      %9667 = vsyncadd [#allocation4], %s9666
      %s9668 = sshll.u32 [#allocation3], 4
      %s9669 = int_to_ptr.vmem [resolvable:$true] %s9668
      %9674 = dma.vmem_to_hbm [thread:$0]  %s9669, 256, %s6, [#allocation4], 128, 128, 8
    $region29: #{tpu_custom_call.1} parent=1 // pred_fallthru
      _
    // Predicated region
    $region30: #{tpu_custom_call.1} parent=1 // pred_check
      _
    $region31: #{tpu_custom_call.1} parent=1 // pred_check_branch
      %9676 = sbr.rel (0) target = $region33
    $region32: #{tpu_custom_call.1} parent=1 // pred_region
      %9677 = dma.done [#allocation4], 256
    $region33: #{tpu_custom_call.1} parent=1 // pred_fallthru
      _
    %9678 = vsyncpa [#allocation4], 1

</llo_original>
